<compile_context>
chip_gen: v7x
topology: tpu7x:2x2x1
jax: 0.10.0
libtpu: 0.0.40
codegen_flags: <defaults>
</compile_context>

<pallas_src>
import functools

import jax
import jax.numpy as jnp
from jax.experimental import pallas as pl
from jax.experimental.pallas import tpu as pltpu


# ----------------------------------------------------------------------------
# Fused Pallas kernel: RSConv encoder (L layers) + pool + head + log_softmax
# ----------------------------------------------------------------------------
def fused_rsconv_kernel(idx_ref, rel_ref, feat_ref,
                        w1_ref, b1_ref, w2_ref, b2_ref,
                        wout_ref, bout_ref, wh_ref, bh_ref, out_ref):
    """One grid step == one batch element; everything stays in VMEM.

    idx_ref : (1, N*K, 1) int32   kNN neighbor indices (local to this batch elem)
    rel_ref : (1, N*K, 10) f32    geometric relation features (layer-invariant)
    feat_ref: (1, N, C_MAX) f32   input features zero-padded to C_MAX lanes
    w1/b1   : (10, H), (1, H)     concatenated relation-MLP layer 1 (H = L*16)
    w2/b2   : (L, H, C_MAX), (L, 1, C_MAX)    per-layer relation-MLP layer 2 (zero-padded)
    wout/bout:(L, C_MAX, C_MAX), (L, 1, C_MAX) per-layer channel-raising 1x1 conv
    wh/bh   : (C_MAX, NCLS), (1, NCLS)        classifier head
    out_ref : (1, 1, NCLS)        log-probabilities for this batch element
    """
    _, N, c_max = feat_ref.shape
    _, nk, _ = idx_ref.shape
    K = nk // N
    L = w2_ref.shape[0]

    def mxu(a, b):  # bf16 operands (v6e/v7x MXU-native), f32 accumulation
        return jnp.dot(a.astype(jnp.bfloat16), b.astype(jnp.bfloat16),
                       preferred_element_type=jnp.float32)

    # --- one-hot gather matrix, built once and reused by every layer ----------
    idx = idx_ref[0]                                               # (NK, 1) int32
    cols = jax.lax.broadcasted_iota(jnp.int32, (nk, N), 1)
    onehot = jnp.where(idx == cols, 1.0, 0.0)                      # (NK, N) f32 (exact)

    # --- relation MLP, hoisted out of the layer loop (rel is layer-invariant) -
    rel = rel_ref[0]                                               # (NK, 10)
    h = jnp.maximum(mxu(rel, w1_ref[...]) + b1_ref[...], 0.0)      # (NK, H)

    # --- L RSConv layers; features carried as VMEM-resident values ------------
    x = feat_ref[0]                                                # (N, C_MAX), zero-padded
    for layer in range(L):
        w_ij = mxu(h, w2_ref[layer]) + b2_ref[layer]               # (NK, C_MAX) relation weights
        nb = jnp.dot(onehot, x, preferred_element_type=jnp.float32)  # (NK, C_MAX) exact gather
        msg = w_ij * nb                                            # relation-shaped weighting
        agg = jnp.max(msg.reshape(N, K, c_max), axis=1)            # max over K neighbors (N, C_MAX)
        x = jnp.maximum(mxu(agg, wout_ref[layer]) + bout_ref[layer], 0.0)

    # --- head: global max pool over points -> linear -> log_softmax -----------
    pooled = jnp.max(x, axis=0, keepdims=True)                     # (1, C_MAX)
    logits = mxu(pooled, wh_ref[...]) + bh_ref[...]                # (1, NCLS)
    m = jnp.max(logits, axis=-1, keepdims=True)
    z = logits - m
    lse = jnp.log(jnp.sum(jnp.exp(z), axis=-1, keepdims=True))
    out_ref[0] = z - lse


# ----------------------------------------------------------------------------
# pallas_call wrapper
# ----------------------------------------------------------------------------
def fused_rsconv_classifier(idx, rel, feat, params):
    """idx: (B, N*K, 1) int32, rel: (B, N*K, 10), feat: (B, N, C_MAX) -> (B, NCLS)."""
    w1, b1, w2, b2, wout, bout, wh, bh = params
    B, nk, _ = idx.shape
    _, N, c_max = feat.shape
    rdim = rel.shape[-1]
    ncls = wh.shape[-1]

    const2 = lambda b: (0, 0)
    const3 = lambda b: (0, 0, 0)

    out = pl.pallas_call(
        fused_rsconv_kernel,
        out_shape=jax.ShapeDtypeStruct((B, 1, ncls), jnp.float32),
        grid=(B,),
        in_specs=[
            pl.BlockSpec((1, nk, 1), lambda b: (b, 0, 0)),         # idx
            pl.BlockSpec((1, nk, rdim), lambda b: (b, 0, 0)),      # rel
            pl.BlockSpec((1, N, c_max), lambda b: (b, 0, 0)),      # feat (padded)
            pl.BlockSpec(w1.shape, const2),
            pl.BlockSpec(b1.shape, const2),
            pl.BlockSpec(w2.shape, const3),
            pl.BlockSpec(b2.shape, const3),
            pl.BlockSpec(wout.shape, const3),
            pl.BlockSpec(bout.shape, const3),
            pl.BlockSpec(wh.shape, const2),
            pl.BlockSpec(bh.shape, const2),
        ],
        out_specs=pl.BlockSpec((1, 1, ncls), lambda b: (b, 0, 0)),
        compiler_params=pltpu.CompilerParams(
            dimension_semantics=("parallel",),       # B=2 -> both TCs on v7x
            vmem_limit_bytes=32 * 1024 * 1024),
    )(idx, rel, feat, w1, b1, w2, b2, wout, bout, wh, bh)
    return out[:, 0, :]


# ----------------------------------------------------------------------------
# Glue: kNN neighborhoods, relation features, parameter init, full forward
# ----------------------------------------------------------------------------
def knn_indices(pos, k):
    # pos: (B, N, 3) -> (B, N, K) nearest neighbors (incl. self); top_k, not argsort.
    d2 = jnp.sum((pos[:, :, None, :] - pos[:, None, :, :]) ** 2, axis=-1)
    _, idx = jax.lax.top_k(-d2, k)
    return idx


def gather_neighbors(x, idx):
    # x: (B, N, C), idx: (B, N, K) -> (B, N, K, C)   (used once, for relation features)
    bidx = jnp.arange(x.shape[0])[:, None, None]
    return x[bidx, idx]


def relation_features(pos, idx):
    # 10-dim RSConv relation: [||dp||, dp(3), p_i(3), p_j(3)]
    pos_j = gather_neighbors(pos, idx)                       # (B, N, K, 3)
    pos_i = jnp.broadcast_to(pos[:, :, None, :], pos_j.shape)
    dp = pos_j - pos_i
    dist = jnp.sqrt(jnp.sum(dp * dp, axis=-1, keepdims=True) + 1e-8)
    return jnp.concatenate([dist, dp, pos_i, pos_j], axis=-1)  # (B, N, K, 10)


def init_params(key, input_nc=7, output_nc=23, num_layers=4, rel_hidden=16):
    """Weights packed/zero-padded for the fused kernel:
       - W1 of all layers concatenated along lanes -> one (10, L*16) matmul,
       - W2/Wout/biases zero-padded to C_MAX and stacked over the layer axis."""
    channels = [input_nc, 16, 32, 64, 64][: num_layers + 1]
    c_max = max(channels)
    assert channels[-1] == c_max, "head consumes the full padded channel width"
    hid = num_layers * rel_hidden

    w1 = jnp.zeros((10, hid), jnp.float32)
    b1 = jnp.zeros((1, hid), jnp.float32)
    w2 = jnp.zeros((num_layers, hid, c_max), jnp.float32)
    b2 = jnp.zeros((num_layers, 1, c_max), jnp.float32)
    wout = jnp.zeros((num_layers, c_max, c_max), jnp.float32)
    bout = jnp.zeros((num_layers, 1, c_max), jnp.float32)

    for l in range(num_layers):
        c_in, c_out = channels[l], channels[l + 1]
        key, k1, k2, k3 = jax.random.split(key, 4)
        w1 = w1.at[:, l * rel_hidden:(l + 1) * rel_hidden].set(
            0.1 * jax.random.normal(k1, (10, rel_hidden), jnp.float32))
        w2 = w2.at[l, l * rel_hidden:(l + 1) * rel_hidden, :c_in].set(
            0.1 * jax.random.normal(k2, (rel_hidden, c_in), jnp.float32))
        b2 = b2.at[l, 0, :c_in].set(1.0)          # start near identity weighting
        wout = wout.at[l, :c_in, :c_out].set(
            0.1 * jax.random.normal(k3, (c_in, c_out), jnp.float32))
        # bout stays zero

    key, kh = jax.random.split(key)
    wh = 0.1 * jax.random.normal(kh, (c_max, output_nc), jnp.float32)
    bh = jnp.zeros((1, output_nc), jnp.float32)
    return (w1, b1, w2, b2, wout, bout, wh, bh)


@functools.partial(jax.jit, static_argnames=("k",))
def rsconv_classifier_forward(pos, feat, labels, params, *, k=8):
    """Reproduces RSConvClassifier.forward: returns (log_probs, nll_loss)."""
    B, N, _ = pos.shape
    c_max = params[2].shape[-1]

    idx = knn_indices(pos, k)                                # (B, N, K) int32
    rel = relation_features(pos, idx)                        # (B, N, K, 10)

    # Wrapper-side layout plumbing (flatten / pad) so the kernel never has to
    # merge sublane dims or emit narrow-lane intermediates.
    idx_flat = idx.reshape(B, N * k, 1).astype(jnp.int32)    # (B, N*K, 1)
    rel_flat = rel.reshape(B, N * k, rel.shape[-1])          # (B, N*K, 10)
    featp = jnp.zeros((B, N, c_max), jnp.float32).at[:, :, :feat.shape[-1]].set(feat)

    log_probs = fused_rsconv_classifier(idx_flat, rel_flat, featp, params)

    # nll_loss (tiny gather, glue)
    picked = jnp.take_along_axis(log_probs, labels[:, None], axis=-1)[:, 0]
    loss = -jnp.mean(picked)
    return log_probs, loss


# ----------------------------------------------------------------------------
if __name__ == "__main__":
    key = jax.random.PRNGKey(0)
    k_pos, k_feat, k_lab, k_par = jax.random.split(key, 4)

    B, N, K = 2, 64, 8
    INPUT_NC, OUTPUT_NC, NUM_LAYERS = 7, 23, 4

    pos = jax.random.normal(k_pos, (B, N, 3), jnp.float32)           # point positions
    feat = jax.random.normal(k_feat, (B, N, INPUT_NC), jnp.float32)  # data.x features
    labels = jax.random.randint(k_lab, (B,), 0, OUTPUT_NC)           # data.y.squeeze()

    params = init_params(k_par, input_nc=INPUT_NC, output_nc=OUTPUT_NC,
                         num_layers=NUM_LAYERS)

    log_probs, loss = rsconv_classifier_forward(pos, feat, labels, params, k=K)
    jax.block_until_ready((log_probs, loss))

    assert log_probs.shape == (B, OUTPUT_NC)
    # log_softmax rows must (log-)sum to 1
    assert jnp.allclose(jnp.sum(jnp.exp(log_probs), axis=-1), 1.0, atol=1e-4)
    assert jnp.isfinite(loss)

    # TODO(synk): the full torch-points3d RSConv MSG backbone (multi-scale grouping,
    # FPS downsampling, batch norm) is not specified in the snippet; this implements
    # the RSConv core (relation-MLP weighting + neighbor max-agg + 1x1 conv) x4,
    # global pooling head, log_softmax and nll_loss.
    print("KERNEL_OK")
</pallas_src>

<mosaic_0001>
module attributes {stable_mosaic.version = 11 : i64} {
  func.func @fused_rsconv_kernel(%arg0: i32, %arg1: memref<1x512x1xi32, #tpu.memory_space<vmem>>, %arg2: memref<1x512x10xf32, #tpu.memory_space<vmem>>, %arg3: memref<1x64x64xf32, #tpu.memory_space<vmem>>, %arg4: memref<10x64xf32, #tpu.memory_space<vmem>>, %arg5: memref<1x64xf32, #tpu.memory_space<vmem>>, %arg6: memref<4x64x64xf32, #tpu.memory_space<vmem>>, %arg7: memref<4x1x64xf32, #tpu.memory_space<vmem>>, %arg8: memref<4x64x64xf32, #tpu.memory_space<vmem>>, %arg9: memref<4x1x64xf32, #tpu.memory_space<vmem>>, %arg10: memref<64x23xf32, #tpu.memory_space<vmem>>, %arg11: memref<1x23xf32, #tpu.memory_space<vmem>>, %arg12: memref<1x1x23xf32, #tpu.memory_space<vmem>>) attributes {dimension_semantics = [#tpu.dimension_semantics<parallel>], iteration_bounds = array<i64: 2>, scalar_prefetch = 0 : i64, scratch_operands = 0 : i64, tpu.core_type = #tpu.core_type<tc>, window_params = [{transform_indices = @transform_0, window_bounds = array<i64: 1, 512, 1>}, {transform_indices = @transform_1, window_bounds = array<i64: 1, 512, 10>}, {transform_indices = @transform_2, window_bounds = array<i64: 1, 64, 64>}, {pipeline_mode = #tpu.pipeline_mode<synchronous>, transform_indices = @transform_3, window_bounds = array<i64: 10, 64>}, {pipeline_mode = #tpu.pipeline_mode<synchronous>, transform_indices = @transform_4, window_bounds = array<i64: 1, 64>}, {pipeline_mode = #tpu.pipeline_mode<synchronous>, transform_indices = @transform_5, window_bounds = array<i64: 4, 64, 64>}, {pipeline_mode = #tpu.pipeline_mode<synchronous>, transform_indices = @transform_6, window_bounds = array<i64: 4, 1, 64>}, {pipeline_mode = #tpu.pipeline_mode<synchronous>, transform_indices = @transform_7, window_bounds = array<i64: 4, 64, 64>}, {pipeline_mode = #tpu.pipeline_mode<synchronous>, transform_indices = @transform_8, window_bounds = array<i64: 4, 1, 64>}, {pipeline_mode = #tpu.pipeline_mode<synchronous>, transform_indices = @transform_9, window_bounds = array<i64: 64, 23>}, {pipeline_mode = #tpu.pipeline_mode<synchronous>, transform_indices = @transform_10, window_bounds = array<i64: 1, 23>}, {transform_indices = @transform_11, window_bounds = array<i64: 1, 1, 23>}]} {
    %c0 = arith.constant 0 : index
    %c0_0 = arith.constant 0 : index
    %c0_1 = arith.constant 0 : index
    %0 = vector.load %arg1[%c0, %c0_0, %c0_1] : memref<1x512x1xi32, #tpu.memory_space<vmem>>, vector<1x512x1xi32>
    %1 = vector.shape_cast %0 : vector<1x512x1xi32> to vector<512x1xi32>
    %2 = tpu.iota {dimensions = array<i32: 1>} : vector<512x64xi32>
    %3 = vector.broadcast %1 : vector<512x1xi32> to vector<512x64xi32>
    %4 = arith.cmpi eq, %3, %2 : vector<512x64xi32>
    %cst = arith.constant 1.000000e+00 : f32
    %cst_2 = arith.constant 0.000000e+00 : f32
    %5 = vector.broadcast %cst : f32 to vector<512x64xf32>
    %6 = vector.broadcast %cst_2 : f32 to vector<512x64xf32>
    %7 = arith.select %4, %5, %6 : vector<512x64xi1>, vector<512x64xf32>
    %c0_3 = arith.constant 0 : index
    %c0_4 = arith.constant 0 : index
    %c0_5 = arith.constant 0 : index
    %8 = vector.load %arg2[%c0_3, %c0_4, %c0_5] : memref<1x512x10xf32, #tpu.memory_space<vmem>>, vector<1x512x10xf32>
    %9 = vector.shape_cast %8 : vector<1x512x10xf32> to vector<512x10xf32>
    %c0_6 = arith.constant 0 : index
    %c0_7 = arith.constant 0 : index
    %10 = vector.load %arg4[%c0_6, %c0_7] : memref<10x64xf32, #tpu.memory_space<vmem>>, vector<10x64xf32>
    %11 = arith.truncf %9 : vector<512x10xf32> to vector<512x10xbf16>
    %12 = arith.truncf %10 : vector<10x64xf32> to vector<10x64xbf16>
    %cst_8 = arith.constant dense<0.000000e+00> : vector<512x64xf32>
    %13 = tpu.matmul %11, %12, %cst_8 {dimension_numbers = #tpu.dot_dimension_numbers<[1], [0], [0], [1], [0, 0, 1, 1], [], []>} : vector<512x10xbf16>, vector<10x64xbf16>, vector<512x64xf32> -> vector<512x64xf32>
    %c0_9 = arith.constant 0 : index
    %c0_10 = arith.constant 0 : index
    %14 = vector.load %arg5[%c0_9, %c0_10] : memref<1x64xf32, #tpu.memory_space<vmem>>, vector<1x64xf32>
    %15 = vector.broadcast %14 : vector<1x64xf32> to vector<512x64xf32>
    %16 = arith.addf %13, %15 : vector<512x64xf32>
    %cst_11 = arith.constant 0.000000e+00 : f32
    %17 = vector.broadcast %cst_11 : f32 to vector<512x64xf32>
    %18 = arith.maximumf %16, %17 : vector<512x64xf32>
    %c0_12 = arith.constant 0 : index
    %c0_13 = arith.constant 0 : index
    %c0_14 = arith.constant 0 : index
    %19 = vector.load %arg3[%c0_12, %c0_13, %c0_14] : memref<1x64x64xf32, #tpu.memory_space<vmem>>, vector<1x64x64xf32>
    %20 = vector.shape_cast %19 : vector<1x64x64xf32> to vector<64x64xf32>
    %c0_15 = arith.constant 0 : index
    %c0_16 = arith.constant 0 : index
    %c0_17 = arith.constant 0 : index
    %21 = vector.load %arg6[%c0_15, %c0_16, %c0_17] : memref<4x64x64xf32, #tpu.memory_space<vmem>>, vector<1x64x64xf32>
    %22 = vector.shape_cast %21 : vector<1x64x64xf32> to vector<64x64xf32>
    %23 = arith.truncf %18 : vector<512x64xf32> to vector<512x64xbf16>
    %24 = arith.truncf %22 : vector<64x64xf32> to vector<64x64xbf16>
    %cst_18 = arith.constant dense<0.000000e+00> : vector<512x64xf32>
    %25 = tpu.matmul %23, %24, %cst_18 {dimension_numbers = #tpu.dot_dimension_numbers<[1], [0], [0], [1], [0, 0, 1, 1], [], []>} : vector<512x64xbf16>, vector<64x64xbf16>, vector<512x64xf32> -> vector<512x64xf32>
    %c0_19 = arith.constant 0 : index
    %c0_20 = arith.constant 0 : index
    %c0_21 = arith.constant 0 : index
    %26 = vector.load %arg7[%c0_19, %c0_20, %c0_21] : memref<4x1x64xf32, #tpu.memory_space<vmem>>, vector<1x1x64xf32>
    %27 = vector.shape_cast %26 : vector<1x1x64xf32> to vector<1x64xf32>
    %28 = vector.broadcast %27 : vector<1x64xf32> to vector<512x64xf32>
    %29 = arith.addf %25, %28 : vector<512x64xf32>
    %cst_22 = arith.constant dense<0.000000e+00> : vector<512x64xf32>
    %30 = tpu.matmul %7, %20, %cst_22 {dimension_numbers = #tpu.dot_dimension_numbers<[1], [0], [0], [1], [0, 0, 1, 1], [], []>} : vector<512x64xf32>, vector<64x64xf32>, vector<512x64xf32> -> vector<512x64xf32>
    %31 = arith.mulf %29, %30 : vector<512x64xf32>
    %32 = vector.shape_cast %31 : vector<512x64xf32> to vector<64x8x64xf32>
    %cst_23 = arith.constant dense<0xFF800000> : vector<64x64xf32>
    %33 = vector.multi_reduction <maximumf>, %32, %cst_23 [1] : vector<64x8x64xf32> to vector<64x64xf32>
    %c0_24 = arith.constant 0 : index
    %c0_25 = arith.constant 0 : index
    %c0_26 = arith.constant 0 : index
    %34 = vector.load %arg8[%c0_24, %c0_25, %c0_26] : memref<4x64x64xf32, #tpu.memory_space<vmem>>, vector<1x64x64xf32>
    %35 = vector.shape_cast %34 : vector<1x64x64xf32> to vector<64x64xf32>
    %36 = arith.truncf %33 : vector<64x64xf32> to vector<64x64xbf16>
    %37 = arith.truncf %35 : vector<64x64xf32> to vector<64x64xbf16>
    %cst_27 = arith.constant dense<0.000000e+00> : vector<64x64xf32>
    %38 = tpu.matmul %36, %37, %cst_27 {dimension_numbers = #tpu.dot_dimension_numbers<[1], [0], [0], [1], [0, 0, 1, 1], [], []>} : vector<64x64xbf16>, vector<64x64xbf16>, vector<64x64xf32> -> vector<64x64xf32>
    %c0_28 = arith.constant 0 : index
    %c0_29 = arith.constant 0 : index
    %c0_30 = arith.constant 0 : index
    %39 = vector.load %arg9[%c0_28, %c0_29, %c0_30] : memref<4x1x64xf32, #tpu.memory_space<vmem>>, vector<1x1x64xf32>
    %40 = vector.shape_cast %39 : vector<1x1x64xf32> to vector<1x64xf32>
    %41 = vector.broadcast %40 : vector<1x64xf32> to vector<64x64xf32>
    %42 = arith.addf %38, %41 : vector<64x64xf32>
    %cst_31 = arith.constant 0.000000e+00 : f32
    %43 = vector.broadcast %cst_31 : f32 to vector<64x64xf32>
    %44 = arith.maximumf %42, %43 : vector<64x64xf32>
    %c1 = arith.constant 1 : index
    %c0_32 = arith.constant 0 : index
    %c0_33 = arith.constant 0 : index
    %45 = vector.load %arg6[%c1, %c0_32, %c0_33] : memref<4x64x64xf32, #tpu.memory_space<vmem>>, vector<1x64x64xf32>
    %46 = vector.shape_cast %45 : vector<1x64x64xf32> to vector<64x64xf32>
    %47 = arith.truncf %18 : vector<512x64xf32> to vector<512x64xbf16>
    %48 = arith.truncf %46 : vector<64x64xf32> to vector<64x64xbf16>
    %cst_34 = arith.constant dense<0.000000e+00> : vector<512x64xf32>
    %49 = tpu.matmul %47, %48, %cst_34 {dimension_numbers = #tpu.dot_dimension_numbers<[1], [0], [0], [1], [0, 0, 1, 1], [], []>} : vector<512x64xbf16>, vector<64x64xbf16>, vector<512x64xf32> -> vector<512x64xf32>
    %c1_35 = arith.constant 1 : index
    %c0_36 = arith.constant 0 : index
    %c0_37 = arith.constant 0 : index
    %50 = vector.load %arg7[%c1_35, %c0_36, %c0_37] : memref<4x1x64xf32, #tpu.memory_space<vmem>>, vector<1x1x64xf32>
    %51 = vector.shape_cast %50 : vector<1x1x64xf32> to vector<1x64xf32>
    %52 = vector.broadcast %51 : vector<1x64xf32> to vector<512x64xf32>
    %53 = arith.addf %49, %52 : vector<512x64xf32>
    %cst_38 = arith.constant dense<0.000000e+00> : vector<512x64xf32>
    %54 = tpu.matmul %7, %44, %cst_38 {dimension_numbers = #tpu.dot_dimension_numbers<[1], [0], [0], [1], [0, 0, 1, 1], [], []>} : vector<512x64xf32>, vector<64x64xf32>, vector<512x64xf32> -> vector<512x64xf32>
    %55 = arith.mulf %53, %54 : vector<512x64xf32>
    %56 = vector.shape_cast %55 : vector<512x64xf32> to vector<64x8x64xf32>
    %cst_39 = arith.constant dense<0xFF800000> : vector<64x64xf32>
    %57 = vector.multi_reduction <maximumf>, %56, %cst_39 [1] : vector<64x8x64xf32> to vector<64x64xf32>
    %c1_40 = arith.constant 1 : index
    %c0_41 = arith.constant 0 : index
    %c0_42 = arith.constant 0 : index
    %58 = vector.load %arg8[%c1_40, %c0_41, %c0_42] : memref<4x64x64xf32, #tpu.memory_space<vmem>>, vector<1x64x64xf32>
    %59 = vector.shape_cast %58 : vector<1x64x64xf32> to vector<64x64xf32>
    %60 = arith.truncf %57 : vector<64x64xf32> to vector<64x64xbf16>
    %61 = arith.truncf %59 : vector<64x64xf32> to vector<64x64xbf16>
    %cst_43 = arith.constant dense<0.000000e+00> : vector<64x64xf32>
    %62 = tpu.matmul %60, %61, %cst_43 {dimension_numbers = #tpu.dot_dimension_numbers<[1], [0], [0], [1], [0, 0, 1, 1], [], []>} : vector<64x64xbf16>, vector<64x64xbf16>, vector<64x64xf32> -> vector<64x64xf32>
    %c1_44 = arith.constant 1 : index
    %c0_45 = arith.constant 0 : index
    %c0_46 = arith.constant 0 : index
    %63 = vector.load %arg9[%c1_44, %c0_45, %c0_46] : memref<4x1x64xf32, #tpu.memory_space<vmem>>, vector<1x1x64xf32>
    %64 = vector.shape_cast %63 : vector<1x1x64xf32> to vector<1x64xf32>
    %65 = vector.broadcast %64 : vector<1x64xf32> to vector<64x64xf32>
    %66 = arith.addf %62, %65 : vector<64x64xf32>
    %cst_47 = arith.constant 0.000000e+00 : f32
    %67 = vector.broadcast %cst_47 : f32 to vector<64x64xf32>
    %68 = arith.maximumf %66, %67 : vector<64x64xf32>
    %c2 = arith.constant 2 : index
    %c0_48 = arith.constant 0 : index
    %c0_49 = arith.constant 0 : index
    %69 = vector.load %arg6[%c2, %c0_48, %c0_49] : memref<4x64x64xf32, #tpu.memory_space<vmem>>, vector<1x64x64xf32>
    %70 = vector.shape_cast %69 : vector<1x64x64xf32> to vector<64x64xf32>
    %71 = arith.truncf %18 : vector<512x64xf32> to vector<512x64xbf16>
    %72 = arith.truncf %70 : vector<64x64xf32> to vector<64x64xbf16>
    %cst_50 = arith.constant dense<0.000000e+00> : vector<512x64xf32>
    %73 = tpu.matmul %71, %72, %cst_50 {dimension_numbers = #tpu.dot_dimension_numbers<[1], [0], [0], [1], [0, 0, 1, 1], [], []>} : vector<512x64xbf16>, vector<64x64xbf16>, vector<512x64xf32> -> vector<512x64xf32>
    %c2_51 = arith.constant 2 : index
    %c0_52 = arith.constant 0 : index
    %c0_53 = arith.constant 0 : index
    %74 = vector.load %arg7[%c2_51, %c0_52, %c0_53] : memref<4x1x64xf32, #tpu.memory_space<vmem>>, vector<1x1x64xf32>
    %75 = vector.shape_cast %74 : vector<1x1x64xf32> to vector<1x64xf32>
    %76 = vector.broadcast %75 : vector<1x64xf32> to vector<512x64xf32>
    %77 = arith.addf %73, %76 : vector<512x64xf32>
    %cst_54 = arith.constant dense<0.000000e+00> : vector<512x64xf32>
    %78 = tpu.matmul %7, %68, %cst_54 {dimension_numbers = #tpu.dot_dimension_numbers<[1], [0], [0], [1], [0, 0, 1, 1], [], []>} : vector<512x64xf32>, vector<64x64xf32>, vector<512x64xf32> -> vector<512x64xf32>
    %79 = arith.mulf %77, %78 : vector<512x64xf32>
    %80 = vector.shape_cast %79 : vector<512x64xf32> to vector<64x8x64xf32>
    %cst_55 = arith.constant dense<0xFF800000> : vector<64x64xf32>
    %81 = vector.multi_reduction <maximumf>, %80, %cst_55 [1] : vector<64x8x64xf32> to vector<64x64xf32>
    %c2_56 = arith.constant 2 : index
    %c0_57 = arith.constant 0 : index
    %c0_58 = arith.constant 0 : index
    %82 = vector.load %arg8[%c2_56, %c0_57, %c0_58] : memref<4x64x64xf32, #tpu.memory_space<vmem>>, vector<1x64x64xf32>
    %83 = vector.shape_cast %82 : vector<1x64x64xf32> to vector<64x64xf32>
    %84 = arith.truncf %81 : vector<64x64xf32> to vector<64x64xbf16>
    %85 = arith.truncf %83 : vector<64x64xf32> to vector<64x64xbf16>
    %cst_59 = arith.constant dense<0.000000e+00> : vector<64x64xf32>
    %86 = tpu.matmul %84, %85, %cst_59 {dimension_numbers = #tpu.dot_dimension_numbers<[1], [0], [0], [1], [0, 0, 1, 1], [], []>} : vector<64x64xbf16>, vector<64x64xbf16>, vector<64x64xf32> -> vector<64x64xf32>
    %c2_60 = arith.constant 2 : index
    %c0_61 = arith.constant 0 : index
    %c0_62 = arith.constant 0 : index
    %87 = vector.load %arg9[%c2_60, %c0_61, %c0_62] : memref<4x1x64xf32, #tpu.memory_space<vmem>>, vector<1x1x64xf32>
    %88 = vector.shape_cast %87 : vector<1x1x64xf32> to vector<1x64xf32>
    %89 = vector.broadcast %88 : vector<1x64xf32> to vector<64x64xf32>
    %90 = arith.addf %86, %89 : vector<64x64xf32>
    %cst_63 = arith.constant 0.000000e+00 : f32
    %91 = vector.broadcast %cst_63 : f32 to vector<64x64xf32>
    %92 = arith.maximumf %90, %91 : vector<64x64xf32>
    %c3 = arith.constant 3 : index
    %c0_64 = arith.constant 0 : index
    %c0_65 = arith.constant 0 : index
    %93 = vector.load %arg6[%c3, %c0_64, %c0_65] : memref<4x64x64xf32, #tpu.memory_space<vmem>>, vector<1x64x64xf32>
    %94 = vector.shape_cast %93 : vector<1x64x64xf32> to vector<64x64xf32>
    %95 = arith.truncf %18 : vector<512x64xf32> to vector<512x64xbf16>
    %96 = arith.truncf %94 : vector<64x64xf32> to vector<64x64xbf16>
    %cst_66 = arith.constant dense<0.000000e+00> : vector<512x64xf32>
    %97 = tpu.matmul %95, %96, %cst_66 {dimension_numbers = #tpu.dot_dimension_numbers<[1], [0], [0], [1], [0, 0, 1, 1], [], []>} : vector<512x64xbf16>, vector<64x64xbf16>, vector<512x64xf32> -> vector<512x64xf32>
    %c3_67 = arith.constant 3 : index
    %c0_68 = arith.constant 0 : index
    %c0_69 = arith.constant 0 : index
    %98 = vector.load %arg7[%c3_67, %c0_68, %c0_69] : memref<4x1x64xf32, #tpu.memory_space<vmem>>, vector<1x1x64xf32>
    %99 = vector.shape_cast %98 : vector<1x1x64xf32> to vector<1x64xf32>
    %100 = vector.broadcast %99 : vector<1x64xf32> to vector<512x64xf32>
    %101 = arith.addf %97, %100 : vector<512x64xf32>
    %cst_70 = arith.constant dense<0.000000e+00> : vector<512x64xf32>
    %102 = tpu.matmul %7, %92, %cst_70 {dimension_numbers = #tpu.dot_dimension_numbers<[1], [0], [0], [1], [0, 0, 1, 1], [], []>} : vector<512x64xf32>, vector<64x64xf32>, vector<512x64xf32> -> vector<512x64xf32>
    %103 = arith.mulf %101, %102 : vector<512x64xf32>
    %104 = vector.shape_cast %103 : vector<512x64xf32> to vector<64x8x64xf32>
    %cst_71 = arith.constant dense<0xFF800000> : vector<64x64xf32>
    %105 = vector.multi_reduction <maximumf>, %104, %cst_71 [1] : vector<64x8x64xf32> to vector<64x64xf32>
    %c3_72 = arith.constant 3 : index
    %c0_73 = arith.constant 0 : index
    %c0_74 = arith.constant 0 : index
    %106 = vector.load %arg8[%c3_72, %c0_73, %c0_74] : memref<4x64x64xf32, #tpu.memory_space<vmem>>, vector<1x64x64xf32>
    %107 = vector.shape_cast %106 : vector<1x64x64xf32> to vector<64x64xf32>
    %108 = arith.truncf %105 : vector<64x64xf32> to vector<64x64xbf16>
    %109 = arith.truncf %107 : vector<64x64xf32> to vector<64x64xbf16>
    %cst_75 = arith.constant dense<0.000000e+00> : vector<64x64xf32>
    %110 = tpu.matmul %108, %109, %cst_75 {dimension_numbers = #tpu.dot_dimension_numbers<[1], [0], [0], [1], [0, 0, 1, 1], [], []>} : vector<64x64xbf16>, vector<64x64xbf16>, vector<64x64xf32> -> vector<64x64xf32>
    %c3_76 = arith.constant 3 : index
    %c0_77 = arith.constant 0 : index
    %c0_78 = arith.constant 0 : index
    %111 = vector.load %arg9[%c3_76, %c0_77, %c0_78] : memref<4x1x64xf32, #tpu.memory_space<vmem>>, vector<1x1x64xf32>
    %112 = vector.shape_cast %111 : vector<1x1x64xf32> to vector<1x64xf32>
    %113 = vector.broadcast %112 : vector<1x64xf32> to vector<64x64xf32>
    %114 = arith.addf %110, %113 : vector<64x64xf32>
    %cst_79 = arith.constant 0.000000e+00 : f32
    %115 = vector.broadcast %cst_79 : f32 to vector<64x64xf32>
    %116 = arith.maximumf %114, %115 : vector<64x64xf32>
    %cst_80 = arith.constant dense<0xFF800000> : vector<64xf32>
    %117 = vector.multi_reduction <maximumf>, %116, %cst_80 [0] : vector<64x64xf32> to vector<64xf32>
    %118 = vector.shape_cast %117 : vector<64xf32> to vector<1x64xf32>
    %c0_81 = arith.constant 0 : index
    %c0_82 = arith.constant 0 : index
    %119 = vector.load %arg10[%c0_81, %c0_82] : memref<64x23xf32, #tpu.memory_space<vmem>>, vector<64x23xf32>
    %120 = arith.truncf %118 : vector<1x64xf32> to vector<1x64xbf16>
    %121 = arith.truncf %119 : vector<64x23xf32> to vector<64x23xbf16>
    %cst_83 = arith.constant dense<0.000000e+00> : vector<1x23xf32>
    %122 = tpu.matmul %120, %121, %cst_83 {dimension_numbers = #tpu.dot_dimension_numbers<[1], [0], [0], [1], [0, 0, 1, 1], [], []>} : vector<1x64xbf16>, vector<64x23xbf16>, vector<1x23xf32> -> vector<1x23xf32>
    %c0_84 = arith.constant 0 : index
    %c0_85 = arith.constant 0 : index
    %123 = vector.load %arg11[%c0_84, %c0_85] : memref<1x23xf32, #tpu.memory_space<vmem>>, vector<1x23xf32>
    %124 = arith.addf %122, %123 : vector<1x23xf32>
    %cst_86 = arith.constant dense<0xFF800000> : vector<1xf32>
    %125 = vector.multi_reduction <maximumf>, %124, %cst_86 [1] : vector<1x23xf32> to vector<1xf32>
    %126 = vector.shape_cast %125 : vector<1xf32> to vector<1x1xf32>
    %127 = vector.broadcast %126 : vector<1x1xf32> to vector<1x23xf32>
    %128 = arith.subf %124, %127 : vector<1x23xf32>
    %129 = math.exp %128 : vector<1x23xf32>
    %cst_87 = arith.constant dense<0.000000e+00> : vector<1xf32>
    %130 = vector.multi_reduction <add>, %129, %cst_87 [1] : vector<1x23xf32> to vector<1xf32>
    %131 = vector.shape_cast %130 : vector<1xf32> to vector<1x1xf32>
    %132 = math.log %131 : vector<1x1xf32>
    %133 = vector.broadcast %132 : vector<1x1xf32> to vector<1x23xf32>
    %134 = arith.subf %128, %133 : vector<1x23xf32>
    %c0_88 = arith.constant 0 : index
    %c0_89 = arith.constant 0 : index
    %c0_90 = arith.constant 0 : index
    %135 = vector.load %arg12[%c0_88, %c0_89, %c0_90] : memref<1x1x23xf32, #tpu.memory_space<vmem>>, vector<1x1x23xf32>
    %136 = vector.shape_cast %135 : vector<1x1x23xf32> to vector<1x23xf32>
    %137 = vector.shape_cast %134 : vector<1x23xf32> to vector<1x1x23xf32>
    tpu.vector_store %arg12[%c0_88, %c0_89, %c0_90], %137 {strides = array<i32>} : memref<1x1x23xf32, #tpu.memory_space<vmem>>, vector<1x1x23xf32>,
    return
  }
  func.func @transform_0(%arg0: i32) -> (i32, i32, i32) {
    %c0_i32 = arith.constant 0 : i32
    %c0_i32_0 = arith.constant 0 : i32
    %c0_i32_1 = arith.constant 0 : i32
    return %arg0, %c0_i32, %c0_i32_0 : i32, i32, i32
  }
  func.func @transform_1(%arg0: i32) -> (i32, i32, i32) {
    %c0_i32 = arith.constant 0 : i32
    %c0_i32_0 = arith.constant 0 : i32
    %c0_i32_1 = arith.constant 0 : i32
    return %arg0, %c0_i32, %c0_i32_0 : i32, i32, i32
  }
  func.func @transform_2(%arg0: i32) -> (i32, i32, i32) {
    %c0_i32 = arith.constant 0 : i32
    %c0_i32_0 = arith.constant 0 : i32
    %c0_i32_1 = arith.constant 0 : i32
    return %arg0, %c0_i32, %c0_i32_0 : i32, i32, i32
  }
  func.func @transform_3(%arg0: i32) -> (i32, i32) {
    %c0_i32 = arith.constant 0 : i32
    %c0_i32_0 = arith.constant 0 : i32
    %c0_i32_1 = arith.constant 0 : i32
    return %c0_i32, %c0_i32_0 : i32, i32
  }
  func.func @transform_4(%arg0: i32) -> (i32, i32) {
    %c0_i32 = arith.constant 0 : i32
    %c0_i32_0 = arith.constant 0 : i32
    %c0_i32_1 = arith.constant 0 : i32
    return %c0_i32, %c0_i32_0 : i32, i32
  }
  func.func @transform_5(%arg0: i32) -> (i32, i32, i32) {
    %c0_i32 = arith.constant 0 : i32
    %c0_i32_0 = arith.constant 0 : i32
    %c0_i32_1 = arith.constant 0 : i32
    %c0_i32_2 = arith.constant 0 : i32
    return %c0_i32, %c0_i32_0, %c0_i32_1 : i32, i32, i32
  }
  func.func @transform_6(%arg0: i32) -> (i32, i32, i32) {
    %c0_i32 = arith.constant 0 : i32
    %c0_i32_0 = arith.constant 0 : i32
    %c0_i32_1 = arith.constant 0 : i32
    %c0_i32_2 = arith.constant 0 : i32
    return %c0_i32, %c0_i32_0, %c0_i32_1 : i32, i32, i32
  }
  func.func @transform_7(%arg0: i32) -> (i32, i32, i32) {
    %c0_i32 = arith.constant 0 : i32
    %c0_i32_0 = arith.constant 0 : i32
    %c0_i32_1 = arith.constant 0 : i32
    %c0_i32_2 = arith.constant 0 : i32
    return %c0_i32, %c0_i32_0, %c0_i32_1 : i32, i32, i32
  }
  func.func @transform_8(%arg0: i32) -> (i32, i32, i32) {
    %c0_i32 = arith.constant 0 : i32
    %c0_i32_0 = arith.constant 0 : i32
    %c0_i32_1 = arith.constant 0 : i32
    %c0_i32_2 = arith.constant 0 : i32
    return %c0_i32, %c0_i32_0, %c0_i32_1 : i32, i32, i32
  }
  func.func @transform_9(%arg0: i32) -> (i32, i32) {
    %c0_i32 = arith.constant 0 : i32
    %c0_i32_0 = arith.constant 0 : i32
    %c0_i32_1 = arith.constant 0 : i32
    return %c0_i32, %c0_i32_0 : i32, i32
  }
  func.func @transform_10(%arg0: i32) -> (i32, i32) {
    %c0_i32 = arith.constant 0 : i32
    %c0_i32_0 = arith.constant 0 : i32
    %c0_i32_1 = arith.constant 0 : i32
    return %c0_i32, %c0_i32_0 : i32, i32
  }
  func.func @transform_11(%arg0: i32) -> (i32, i32, i32) {
    %c0_i32 = arith.constant 0 : i32
    %c0_i32_0 = arith.constant 0 : i32
    %c0_i32_1 = arith.constant 0 : i32
    return %arg0, %c0_i32, %c0_i32_0 : i32, i32, i32
  }
}

</mosaic_0001>

<llo_original>
// kernel: neg.2
$region0: #{neg.2}
  #allocation0 [shape = 's32[1]{0}', space=sflag, size = 0x4, scoped, tag = 'scoped memory for neg.2']
  %s0 = inlined_call_operand.vmem [shape: f32[2,64,64], index: 0, kind: input, shape index: {}]
  %s1 = inlined_call_operand.vmem [shape: f32[2,64,64], index: 1, kind: output, shape index: {}]
  %v2 = vld [vmem:[%s0] sm:$0xff]
  %3 = xla_tuple %v2
  %4 = xla_tuple %3
  %v5 = vxor.u32 %v2, 2147483648
  %6 = xla_tuple %v5
  %7 = vst [vmem:[%s1] sm:$0xff] %v5
  %s8 = scalar_lea.vmem %s0, 64
  %v9 = vld [vmem:[%s8] sm:$0xff]
  %10 = xla_tuple %v9
  %11 = xla_tuple %10
  %v12 = vxor.u32 %v9, 2147483648
  %13 = xla_tuple %v12
  %s14 = scalar_lea.vmem %s1, 64
  %15 = vst [vmem:[%s14] sm:$0xff] %v12
  %s16 = scalar_lea.vmem %s0, 8
  %v17 = vld [vmem:[%s16] sm:$0xff]
  %18 = xla_tuple %v17
  %19 = xla_tuple %18
  %v20 = vxor.u32 %v17, 2147483648
  %21 = xla_tuple %v20
  %s22 = scalar_lea.vmem %s1, 8
  %23 = vst [vmem:[%s22] sm:$0xff] %v20
  %s24 = scalar_lea.vmem %s0, 72
  %v25 = vld [vmem:[%s24] sm:$0xff]
  %26 = xla_tuple %v25
  %27 = xla_tuple %26
  %v28 = vxor.u32 %v25, 2147483648
  %29 = xla_tuple %v28
  %s30 = scalar_lea.vmem %s1, 72
  %31 = vst [vmem:[%s30] sm:$0xff] %v28
  %s32 = scalar_lea.vmem %s0, 16
  %v33 = vld [vmem:[%s32] sm:$0xff]
  %34 = xla_tuple %v33
  %35 = xla_tuple %34
  %v36 = vxor.u32 %v33, 2147483648
  %37 = xla_tuple %v36
  %s38 = scalar_lea.vmem %s1, 16
  %39 = vst [vmem:[%s38] sm:$0xff] %v36
  %s40 = scalar_lea.vmem %s0, 80
  %v41 = vld [vmem:[%s40] sm:$0xff]
  %42 = xla_tuple %v41
  %43 = xla_tuple %42
  %v44 = vxor.u32 %v41, 2147483648
  %45 = xla_tuple %v44
  %s46 = scalar_lea.vmem %s1, 80
  %47 = vst [vmem:[%s46] sm:$0xff] %v44
  %s48 = scalar_lea.vmem %s0, 24
  %v49 = vld [vmem:[%s48] sm:$0xff]
  %50 = xla_tuple %v49
  %51 = xla_tuple %50
  %v52 = vxor.u32 %v49, 2147483648
  %53 = xla_tuple %v52
  %s54 = scalar_lea.vmem %s1, 24
  %55 = vst [vmem:[%s54] sm:$0xff] %v52
  %s56 = scalar_lea.vmem %s0, 88
  %v57 = vld [vmem:[%s56] sm:$0xff]
  %58 = xla_tuple %v57
  %59 = xla_tuple %58
  %v60 = vxor.u32 %v57, 2147483648
  %61 = xla_tuple %v60
  %s62 = scalar_lea.vmem %s1, 88
  %63 = vst [vmem:[%s62] sm:$0xff] %v60
  %s64 = scalar_lea.vmem %s0, 32
  %v65 = vld [vmem:[%s64] sm:$0xff]
  %66 = xla_tuple %v65
  %67 = xla_tuple %66
  %v68 = vxor.u32 %v65, 2147483648
  %69 = xla_tuple %v68
  %s70 = scalar_lea.vmem %s1, 32
  %71 = vst [vmem:[%s70] sm:$0xff] %v68
  %s72 = scalar_lea.vmem %s0, 96
  %v73 = vld [vmem:[%s72] sm:$0xff]
  %74 = xla_tuple %v73
  %75 = xla_tuple %74
  %v76 = vxor.u32 %v73, 2147483648
  %77 = xla_tuple %v76
  %s78 = scalar_lea.vmem %s1, 96
  %79 = vst [vmem:[%s78] sm:$0xff] %v76
  %s80 = scalar_lea.vmem %s0, 40
  %v81 = vld [vmem:[%s80] sm:$0xff]
  %82 = xla_tuple %v81
  %83 = xla_tuple %82
  %v84 = vxor.u32 %v81, 2147483648
  %85 = xla_tuple %v84
  %s86 = scalar_lea.vmem %s1, 40
  %87 = vst [vmem:[%s86] sm:$0xff] %v84
  %s88 = scalar_lea.vmem %s0, 104
  %v89 = vld [vmem:[%s88] sm:$0xff]
  %90 = xla_tuple %v89
  %91 = xla_tuple %90
  %v92 = vxor.u32 %v89, 2147483648
  %93 = xla_tuple %v92
  %s94 = scalar_lea.vmem %s1, 104
  %95 = vst [vmem:[%s94] sm:$0xff] %v92
  %s96 = scalar_lea.vmem %s0, 48
  %v97 = vld [vmem:[%s96] sm:$0xff]
  %98 = xla_tuple %v97
  %99 = xla_tuple %98
  %v100 = vxor.u32 %v97, 2147483648
  %101 = xla_tuple %v100
  %s102 = scalar_lea.vmem %s1, 48
  %103 = vst [vmem:[%s102] sm:$0xff] %v100
  %s104 = scalar_lea.vmem %s0, 112
  %v105 = vld [vmem:[%s104] sm:$0xff]
  %106 = xla_tuple %v105
  %107 = xla_tuple %106
  %v108 = vxor.u32 %v105, 2147483648
  %109 = xla_tuple %v108
  %s110 = scalar_lea.vmem %s1, 112
  %111 = vst [vmem:[%s110] sm:$0xff] %v108
  %s112 = scalar_lea.vmem %s0, 56
  %v113 = vld [vmem:[%s112] sm:$0xff]
  %114 = xla_tuple %v113
  %115 = xla_tuple %114
  %v116 = vxor.u32 %v113, 2147483648
  %117 = xla_tuple %v116
  %s118 = scalar_lea.vmem %s1, 56
  %119 = vst [vmem:[%s118] sm:$0xff] %v116
  %s120 = scalar_lea.vmem %s0, 120
  %v121 = vld [vmem:[%s120] sm:$0xff]
  %122 = xla_tuple %v121
  %123 = xla_tuple %122
  %v124 = vxor.u32 %v121, 2147483648
  %125 = xla_tuple %v124
  %s126 = scalar_lea.vmem %s1, 120
  %127 = vst [vmem:[%s126] sm:$0xff] %v124

// kernel: rsconv_classifier_forward.1
$region0: #{rsconv_classifier_forward.1}
  #allocation0 [shape = 'u32[]', space=smem, size = 0x4, offset = 0x4, fixed_abs, tag = 'smem constant byte address 0x4 - core index']
  #allocation1 [shape = 'u32[144,128]{1,0:T(1,128)}', space=vmem, size = 0x12000, scoped, tag = 'internal scratch']
  %s0 = inlined_call_operand.vmem [shape: s32[2,512,1], index: 0, kind: input, shape index: {}]
  %s1 = inlined_call_operand.vmem [shape: f32[2,512,10], index: 1, kind: input, shape index: {}]
  %s2 = inlined_call_operand.vmem [shape: f32[2,64,64], index: 2, kind: input, shape index: {}]
  %s3 = inlined_call_operand.vmem [shape: f32[10,64], index: 3, kind: input, shape index: {}]
  %s4 = inlined_call_operand.vmem [shape: f32[1,64], index: 4, kind: input, shape index: {}]
  %s5 = inlined_call_operand.vmem [shape: f32[4,64,64], index: 5, kind: input, shape index: {}]
  %s6 = inlined_call_operand.vmem [shape: f32[4,1,64], index: 6, kind: input, shape index: {}]
  %s7 = inlined_call_operand.vmem [shape: f32[4,64,64], index: 7, kind: input, shape index: {}]
  %s8 = inlined_call_operand.vmem [shape: f32[4,1,64], index: 8, kind: input, shape index: {}]
  %s9 = inlined_call_operand.vmem [shape: f32[64,23], index: 9, kind: input, shape index: {}]
  %s10 = inlined_call_operand.vmem [shape: f32[1,23], index: 10, kind: input, shape index: {}]
  %s11 = inlined_call_operand.vmem [shape: f32[2,1,23], index: 11, kind: output, shape index: {}]
  %s12 = sld [smem:[#allocation0]]
  $region77: #{rsconv_classifier_forward.1} parent=0
    _
  %s14 = ssub.s32 1, %s12
  %s15 = scalar_select 0, %s14, %s12
  loop: start=0, step=1, limit=4
  $region2: #{rsconv_classifier_forward.1} parent=0 // loop_pre_header
    _
  $region3: #{rsconv_classifier_forward.1} parent=0 // loop_header
    %s17 = sphi 0, %s21
    %p18 = scmp.ge.s32.totalorder %s17, 4
    %s27 = sphi 0, %s29
    %s30 = sphi 0, %s27
    %s31 = sphi 0, %s30
    %s47 = sphi 0, %s31
    %s53 = sphi 0, %s55
    %s56 = sphi 0, %s53
    %s57 = sphi 0, %s56
    %s73 = sphi 0, %s57
    %s79 = sphi 0, %s81
    %s82 = sphi 0, %s79
    %s83 = sphi 0, %s82
    %s99 = sphi 0, %s83
    %s103 = sphi 0, %s103
    %s105 = sphi 0, %s103
    %s106 = sphi 0, %s105
    %s120 = sphi 0, %s106
    %s124 = sphi 0, %s124
    %s126 = sphi 0, %s124
    %s127 = sphi 0, %s126
    %s141 = sphi 0, %s127
    %s145 = sphi 0, %s145
    %s147 = sphi 0, %s145
    %s148 = sphi 0, %s147
    %s162 = sphi 0, %s148
    %s166 = sphi 0, %s166
    %s168 = sphi 0, %s166
    %s169 = sphi 0, %s168
    %s183 = sphi 0, %s169
    %s187 = sphi 0, %s187
    %s189 = sphi 0, %s187
    %s190 = sphi 0, %s189
    %s204 = sphi 0, %s190
    %s208 = sphi 0, %s208
    %s210 = sphi 0, %s208
    %s211 = sphi 0, %s210
    %s225 = sphi 0, %s211
    %s229 = sphi 0, %s229
    %s231 = sphi 0, %s229
    %s232 = sphi 0, %s231
    %s246 = sphi 0, %s232
    %s250 = sphi 0, %s250
    %s252 = sphi 0, %s250
    %s253 = sphi 0, %s252
    %s267 = sphi 0, %s253
    %s273 = sphi 0, %s275
    %s276 = sphi 0, %s273
    %s277 = sphi 0, %s276
    %s293 = sphi 0, %s277
  $region4: #{rsconv_classifier_forward.1} parent=0 // loop_header_branch
    %20 = sbr.rel (%p18) target = $region8
  $region5: #{rsconv_classifier_forward.1} parent=0 // loop_body
    %s22 = ssub.s32 %s17, 1
    %s23 = ssub.s32 %s17, 2
    %s24 = sadd.s32 %s17, 1
    %s25 = ssub.s32 %s17, %s24
    %p26 = scmp.eq.s32.totalorder %s25, 0
    %s28 = sadd.s32 %s27, 1
    %s29 = scalar_select %p26, %s27, %s28
    %p32 = pneg %p26
    %p33 = scmp.eq.s32.totalorder %s17, 1
    %p34 = por %p32, %p33
    %p35 = scmp.ne.s32.totalorder %s27, %s30
    %p36 = scmp.eq.s32.totalorder %s17, 0
    %p37 = por %p35, %p36
    %p38 = scmp.ne.s32.totalorder %s27, %s30
    %p39 = scmp.eq.s32.totalorder %s22, 1
    %p40 = por %p38, %p39
    %p41 = scmp.ne.s32.totalorder %s30, %s31
    %p42 = scmp.eq.s32.totalorder %s22, 0
    %p43 = por %p41, %p42
    %p44 = scmp.ne.s32.totalorder %s30, %s31
    %p45 = scmp.eq.s32.totalorder %s23, 1
    %p46 = por %p44, %p45
    %p48 = scmp.ne.s32.totalorder %s31, %s47
    %p49 = scmp.eq.s32.totalorder %s23, 0
    %p50 = por %p48, %p49
    %s51 = ssub.s32 %s17, %s24
    %p52 = scmp.eq.s32.totalorder %s51, 0
    %s54 = sadd.s32 %s53, 1
    %s55 = scalar_select %p52, %s53, %s54
    %p58 = pneg %p52
    %p59 = scmp.eq.s32.totalorder %s17, 1
    %p60 = por %p58, %p59
    %p61 = scmp.ne.s32.totalorder %s53, %s56
    %p62 = scmp.eq.s32.totalorder %s17, 0
    %p63 = por %p61, %p62
    %p64 = scmp.ne.s32.totalorder %s53, %s56
    %p65 = scmp.eq.s32.totalorder %s22, 1
    %p66 = por %p64, %p65
    %p67 = scmp.ne.s32.totalorder %s56, %s57
    %p68 = scmp.eq.s32.totalorder %s22, 0
    %p69 = por %p67, %p68
    %p70 = scmp.ne.s32.totalorder %s56, %s57
    %p71 = scmp.eq.s32.totalorder %s23, 1
    %p72 = por %p70, %p71
    %p74 = scmp.ne.s32.totalorder %s57, %s73
    %p75 = scmp.eq.s32.totalorder %s23, 0
    %p76 = por %p74, %p75
    %s77 = ssub.s32 %s17, %s24
    %p78 = scmp.eq.s32.totalorder %s77, 0
    %s80 = sadd.s32 %s79, 1
    %s81 = scalar_select %p78, %s79, %s80
    %p84 = pneg %p78
    %p85 = scmp.eq.s32.totalorder %s17, 1
    %p86 = por %p84, %p85
    %p87 = scmp.ne.s32.totalorder %s79, %s82
    %p88 = scmp.eq.s32.totalorder %s17, 0
    %p89 = por %p87, %p88
    %p90 = scmp.ne.s32.totalorder %s79, %s82
    %p91 = scmp.eq.s32.totalorder %s22, 1
    %p92 = por %p90, %p91
    %p93 = scmp.ne.s32.totalorder %s82, %s83
    %p94 = scmp.eq.s32.totalorder %s22, 0
    %p95 = por %p93, %p94
    %p96 = scmp.ne.s32.totalorder %s82, %s83
    %p97 = scmp.eq.s32.totalorder %s23, 1
    %p98 = por %p96, %p97
    %p100 = scmp.ne.s32.totalorder %s83, %s99
    %p101 = scmp.eq.s32.totalorder %s23, 0
    %p102 = por %p100, %p101
    %s104 = sadd.s32 %s103, 1
    %p107 = scmp.eq.s32.totalorder %s17, 1
    %p108 = scmp.ne.s32.totalorder %s103, %s105
    %p109 = scmp.eq.s32.totalorder %s17, 0
    %p110 = por %p108, %p109
    %p111 = scmp.ne.s32.totalorder %s103, %s105
    %p112 = scmp.eq.s32.totalorder %s22, 1
    %p113 = por %p111, %p112
    %p114 = scmp.ne.s32.totalorder %s105, %s106
    %p115 = scmp.eq.s32.totalorder %s22, 0
    %p116 = por %p114, %p115
    %p117 = scmp.ne.s32.totalorder %s105, %s106
    %p118 = scmp.eq.s32.totalorder %s23, 1
    %p119 = por %p117, %p118
    %p121 = scmp.ne.s32.totalorder %s106, %s120
    %p122 = scmp.eq.s32.totalorder %s23, 0
    %p123 = por %p121, %p122
    %s125 = sadd.s32 %s124, 1
    %p128 = scmp.eq.s32.totalorder %s17, 1
    %p129 = scmp.ne.s32.totalorder %s124, %s126
    %p130 = scmp.eq.s32.totalorder %s17, 0
    %p131 = por %p129, %p130
    %p132 = scmp.ne.s32.totalorder %s124, %s126
    %p133 = scmp.eq.s32.totalorder %s22, 1
    %p134 = por %p132, %p133
    %p135 = scmp.ne.s32.totalorder %s126, %s127
    %p136 = scmp.eq.s32.totalorder %s22, 0
    %p137 = por %p135, %p136
    %p138 = scmp.ne.s32.totalorder %s126, %s127
    %p139 = scmp.eq.s32.totalorder %s23, 1
    %p140 = por %p138, %p139
    %p142 = scmp.ne.s32.totalorder %s127, %s141
    %p143 = scmp.eq.s32.totalorder %s23, 0
    %p144 = por %p142, %p143
    %s146 = sadd.s32 %s145, 1
    %p149 = scmp.eq.s32.totalorder %s17, 1
    %p150 = scmp.ne.s32.totalorder %s145, %s147
    %p151 = scmp.eq.s32.totalorder %s17, 0
    %p152 = por %p150, %p151
    %p153 = scmp.ne.s32.totalorder %s145, %s147
    %p154 = scmp.eq.s32.totalorder %s22, 1
    %p155 = por %p153, %p154
    %p156 = scmp.ne.s32.totalorder %s147, %s148
    %p157 = scmp.eq.s32.totalorder %s22, 0
    %p158 = por %p156, %p157
    %p159 = scmp.ne.s32.totalorder %s147, %s148
    %p160 = scmp.eq.s32.totalorder %s23, 1
    %p161 = por %p159, %p160
    %p163 = scmp.ne.s32.totalorder %s148, %s162
    %p164 = scmp.eq.s32.totalorder %s23, 0
    %p165 = por %p163, %p164
    %s167 = sadd.s32 %s166, 1
    %p170 = scmp.eq.s32.totalorder %s17, 1
    %p171 = scmp.ne.s32.totalorder %s166, %s168
    %p172 = scmp.eq.s32.totalorder %s17, 0
    %p173 = por %p171, %p172
    %p174 = scmp.ne.s32.totalorder %s166, %s168
    %p175 = scmp.eq.s32.totalorder %s22, 1
    %p176 = por %p174, %p175
    %p177 = scmp.ne.s32.totalorder %s168, %s169
    %p178 = scmp.eq.s32.totalorder %s22, 0
    %p179 = por %p177, %p178
    %p180 = scmp.ne.s32.totalorder %s168, %s169
    %p181 = scmp.eq.s32.totalorder %s23, 1
    %p182 = por %p180, %p181
    %p184 = scmp.ne.s32.totalorder %s169, %s183
    %p185 = scmp.eq.s32.totalorder %s23, 0
    %p186 = por %p184, %p185
    %s188 = sadd.s32 %s187, 1
    %p191 = scmp.eq.s32.totalorder %s17, 1
    %p192 = scmp.ne.s32.totalorder %s187, %s189
    %p193 = scmp.eq.s32.totalorder %s17, 0
    %p194 = por %p192, %p193
    %p195 = scmp.ne.s32.totalorder %s187, %s189
    %p196 = scmp.eq.s32.totalorder %s22, 1
    %p197 = por %p195, %p196
    %p198 = scmp.ne.s32.totalorder %s189, %s190
    %p199 = scmp.eq.s32.totalorder %s22, 0
    %p200 = por %p198, %p199
    %p201 = scmp.ne.s32.totalorder %s189, %s190
    %p202 = scmp.eq.s32.totalorder %s23, 1
    %p203 = por %p201, %p202
    %p205 = scmp.ne.s32.totalorder %s190, %s204
    %p206 = scmp.eq.s32.totalorder %s23, 0
    %p207 = por %p205, %p206
    %s209 = sadd.s32 %s208, 1
    %p212 = scmp.eq.s32.totalorder %s17, 1
    %p213 = scmp.ne.s32.totalorder %s208, %s210
    %p214 = scmp.eq.s32.totalorder %s17, 0
    %p215 = por %p213, %p214
    %p216 = scmp.ne.s32.totalorder %s208, %s210
    %p217 = scmp.eq.s32.totalorder %s22, 1
    %p218 = por %p216, %p217
    %p219 = scmp.ne.s32.totalorder %s210, %s211
    %p220 = scmp.eq.s32.totalorder %s22, 0
    %p221 = por %p219, %p220
    %p222 = scmp.ne.s32.totalorder %s210, %s211
    %p223 = scmp.eq.s32.totalorder %s23, 1
    %p224 = por %p222, %p223
    %p226 = scmp.ne.s32.totalorder %s211, %s225
    %p227 = scmp.eq.s32.totalorder %s23, 0
    %p228 = por %p226, %p227
    %s230 = sadd.s32 %s229, 1
    %p233 = scmp.eq.s32.totalorder %s17, 1
    %p234 = scmp.ne.s32.totalorder %s229, %s231
    %p235 = scmp.eq.s32.totalorder %s17, 0
    %p236 = por %p234, %p235
    %p237 = scmp.ne.s32.totalorder %s229, %s231
    %p238 = scmp.eq.s32.totalorder %s22, 1
    %p239 = por %p237, %p238
    %p240 = scmp.ne.s32.totalorder %s231, %s232
    %p241 = scmp.eq.s32.totalorder %s22, 0
    %p242 = por %p240, %p241
    %p243 = scmp.ne.s32.totalorder %s231, %s232
    %p244 = scmp.eq.s32.totalorder %s23, 1
    %p245 = por %p243, %p244
    %p247 = scmp.ne.s32.totalorder %s232, %s246
    %p248 = scmp.eq.s32.totalorder %s23, 0
    %p249 = por %p247, %p248
    %s251 = sadd.s32 %s250, 1
    %p254 = scmp.eq.s32.totalorder %s17, 1
    %p255 = scmp.ne.s32.totalorder %s250, %s252
    %p256 = scmp.eq.s32.totalorder %s17, 0
    %p257 = por %p255, %p256
    %p258 = scmp.ne.s32.totalorder %s250, %s252
    %p259 = scmp.eq.s32.totalorder %s22, 1
    %p260 = por %p258, %p259
    %p261 = scmp.ne.s32.totalorder %s252, %s253
    %p262 = scmp.eq.s32.totalorder %s22, 0
    %p263 = por %p261, %p262
    %p264 = scmp.ne.s32.totalorder %s252, %s253
    %p265 = scmp.eq.s32.totalorder %s23, 1
    %p266 = por %p264, %p265
    %p268 = scmp.ne.s32.totalorder %s253, %s267
    %p269 = scmp.eq.s32.totalorder %s23, 0
    %p270 = por %p268, %p269
    %s271 = ssub.s32 %s17, %s24
    %p272 = scmp.eq.s32.totalorder %s271, 0
    %s274 = sadd.s32 %s273, 1
    %s275 = scalar_select %p272, %s273, %s274
    %p278 = pneg %p272
    %p279 = scmp.eq.s32.totalorder %s17, 1
    %p280 = por %p278, %p279
    %p281 = scmp.ne.s32.totalorder %s273, %s276
    %p282 = scmp.eq.s32.totalorder %s17, 0
    %p283 = por %p281, %p282
    %p284 = scmp.ne.s32.totalorder %s273, %s276
    %p285 = scmp.eq.s32.totalorder %s22, 1
    %p286 = por %p284, %p285
    %p287 = scmp.ne.s32.totalorder %s276, %s277
    %p288 = scmp.eq.s32.totalorder %s22, 0
    %p289 = por %p287, %p288
    %p290 = scmp.ne.s32.totalorder %s276, %s277
    %p291 = scmp.eq.s32.totalorder %s23, 1
    %p292 = por %p290, %p291
    %p294 = scmp.ne.s32.totalorder %s277, %s293
    %p295 = scmp.eq.s32.totalorder %s23, 0
    %p296 = por %p294, %p295
    %p297 = scmp.le.s32.totalorder 1, %s17
    %p298 = scmp.lt.s32.totalorder %s17, 3
    %p299 = pnand %p297, %p298
    %p300 = pneg %p299
    // Predicated region
    $region9: #{rsconv_classifier_forward.1} parent=5 // pred_check
      _
    $region10: #{rsconv_classifier_forward.1} parent=5 // pred_check_branch
      %302 = sbr.rel (%p299) target = $region12
    $region11: #{rsconv_classifier_forward.1} parent=5 // pred_region
      %s303 = ssub.s32 %s17, 1
      // Predicated region
      $region13: #{rsconv_classifier_forward.1} parent=11 // pred_check
        %p304 = pneg %p116
      $region14: #{rsconv_classifier_forward.1} parent=11 // pred_check_branch
        %306 = sbr.rel (%p304) target = $region16
      $region15: #{rsconv_classifier_forward.1} parent=11 // pred_region
        _
      $region16: #{rsconv_classifier_forward.1} parent=11 // pred_fallthru
        _
      // Predicated region
      $region17: #{rsconv_classifier_forward.1} parent=11 // pred_check
        %p307 = pneg %p137
      $region18: #{rsconv_classifier_forward.1} parent=11 // pred_check_branch
        %309 = sbr.rel (%p307) target = $region20
      $region19: #{rsconv_classifier_forward.1} parent=11 // pred_region
        _
      $region20: #{rsconv_classifier_forward.1} parent=11 // pred_fallthru
        _
      // Predicated region
      $region21: #{rsconv_classifier_forward.1} parent=11 // pred_check
        %p310 = pneg %p158
      $region22: #{rsconv_classifier_forward.1} parent=11 // pred_check_branch
        %312 = sbr.rel (%p310) target = $region24
      $region23: #{rsconv_classifier_forward.1} parent=11 // pred_region
        _
      $region24: #{rsconv_classifier_forward.1} parent=11 // pred_fallthru
        _
      // Predicated region
      $region25: #{rsconv_classifier_forward.1} parent=11 // pred_check
        %p313 = pneg %p179
      $region26: #{rsconv_classifier_forward.1} parent=11 // pred_check_branch
        %315 = sbr.rel (%p313) target = $region28
      $region27: #{rsconv_classifier_forward.1} parent=11 // pred_region
        _
      $region28: #{rsconv_classifier_forward.1} parent=11 // pred_fallthru
        _
      // Predicated region
      $region29: #{rsconv_classifier_forward.1} parent=11 // pred_check
        %p316 = pneg %p200
      $region30: #{rsconv_classifier_forward.1} parent=11 // pred_check_branch
        %318 = sbr.rel (%p316) target = $region32
      $region31: #{rsconv_classifier_forward.1} parent=11 // pred_region
        _
      $region32: #{rsconv_classifier_forward.1} parent=11 // pred_fallthru
        _
      // Predicated region
      $region33: #{rsconv_classifier_forward.1} parent=11 // pred_check
        %p319 = pneg %p221
      $region34: #{rsconv_classifier_forward.1} parent=11 // pred_check_branch
        %321 = sbr.rel (%p319) target = $region36
      $region35: #{rsconv_classifier_forward.1} parent=11 // pred_region
        _
      $region36: #{rsconv_classifier_forward.1} parent=11 // pred_fallthru
        _
      // Predicated region
      $region37: #{rsconv_classifier_forward.1} parent=11 // pred_check
        %p322 = pneg %p242
      $region38: #{rsconv_classifier_forward.1} parent=11 // pred_check_branch
        %324 = sbr.rel (%p322) target = $region40
      $region39: #{rsconv_classifier_forward.1} parent=11 // pred_region
        _
      $region40: #{rsconv_classifier_forward.1} parent=11 // pred_fallthru
        _
      // Predicated region
      $region41: #{rsconv_classifier_forward.1} parent=11 // pred_check
        %p325 = pneg %p263
      $region42: #{rsconv_classifier_forward.1} parent=11 // pred_check_branch
        %327 = sbr.rel (%p325) target = $region44
      $region43: #{rsconv_classifier_forward.1} parent=11 // pred_region
        _
      $region44: #{rsconv_classifier_forward.1} parent=11 // pred_fallthru
        _
    $region12: #{rsconv_classifier_forward.1} parent=5 // pred_fallthru
      _
    %p328 = scmp.lt.s32.totalorder %s17, 2
    // Predicated region
    $region45: #{rsconv_classifier_forward.1} parent=5 // pred_check
      %p329 = pneg %p328
    $region46: #{rsconv_classifier_forward.1} parent=5 // pred_check_branch
      %331 = sbr.rel (%p329) target = $region48
    $region47: #{rsconv_classifier_forward.1} parent=5 // pred_region
      // Predicated region
      $region49: #{rsconv_classifier_forward.1} parent=47 // pred_check
        %p332 = pneg %p37
      $region50: #{rsconv_classifier_forward.1} parent=47 // pred_check_branch
        %334 = sbr.rel (%p332) target = $region52
      $region51: #{rsconv_classifier_forward.1} parent=47 // pred_region
        %p335 = scmp.lt.s32.totalorder %s17, 1
        %s336 = scalar_select %p335, %s17, 1
        %s337 = smul.addr %s336, 64
        %s338 = smul.addr %s337, 8
        %s339 = scalar_lea.vmem %s0, %s338
      $region52: #{rsconv_classifier_forward.1} parent=47 // pred_fallthru
        _
      // Predicated region
      $region53: #{rsconv_classifier_forward.1} parent=47 // pred_check
        %p340 = pneg %p63
      $region54: #{rsconv_classifier_forward.1} parent=47 // pred_check_branch
        %342 = sbr.rel (%p340) target = $region56
      $region55: #{rsconv_classifier_forward.1} parent=47 // pred_region
        %p343 = scmp.lt.s32.totalorder %s17, 1
        %s344 = scalar_select %p343, %s17, 1
        %s345 = smul.addr %s344, 64
        %s346 = smul.addr %s345, 8
        %s347 = scalar_lea.vmem %s1, %s346
      $region56: #{rsconv_classifier_forward.1} parent=47 // pred_fallthru
        _
      // Predicated region
      $region57: #{rsconv_classifier_forward.1} parent=47 // pred_check
        %p348 = pneg %p89
      $region58: #{rsconv_classifier_forward.1} parent=47 // pred_check_branch
        %350 = sbr.rel (%p348) target = $region60
      $region59: #{rsconv_classifier_forward.1} parent=47 // pred_region
        %p351 = scmp.lt.s32.totalorder %s17, 1
        %s352 = scalar_select %p351, %s17, 1
        %s353 = smul.addr %s352, 8
        %s354 = smul.addr %s353, 8
        %s355 = scalar_lea.vmem %s2, %s354
      $region60: #{rsconv_classifier_forward.1} parent=47 // pred_fallthru
        _
    $region48: #{rsconv_classifier_forward.1} parent=5 // pred_fallthru
      _
    %p356 = scmp.le.s32.totalorder 1, %s17
    %p357 = scmp.lt.s32.totalorder %s17, 3
    %p358 = pnand %p356, %p357
    %p359 = pneg %p358
    // Predicated region
    $region61: #{rsconv_classifier_forward.1} parent=5 // pred_check
      _
    $region62: #{rsconv_classifier_forward.1} parent=5 // pred_check_branch
      %361 = sbr.rel (%p358) target = $region64
    $region63: #{rsconv_classifier_forward.1} parent=5 // pred_region
      %s362 = ssub.s32 %s17, 1
      %p363 = scmp.lt.s32.totalorder %s22, 1
      %s364 = scalar_select %p363, %s22, 1
      %s365 = smul.addr %s364, 64
      %s366 = smul.addr %s365, 8
      %s367 = scalar_lea.vmem %s0, %s366
      %p368 = pneg %p43
      %p369 = pneg %p40
      %p370 = scmp.lt.s32.totalorder %s22, 1
      %s371 = scalar_select %p370, %s22, 1
      %s372 = smul.addr %s371, 64
      %s373 = smul.addr %s372, 8
      %s374 = scalar_lea.vmem %s1, %s373
      %p375 = pneg %p69
      %p376 = pneg %p66
      %p377 = scmp.lt.s32.totalorder %s22, 1
      %s378 = scalar_select %p377, %s22, 1
      %s379 = smul.addr %s378, 8
      %s380 = smul.addr %s379, 8
      %s381 = scalar_lea.vmem %s2, %s380
      %p382 = pneg %p95
      %p383 = pneg %p92
      %p384 = pneg %p116
      %p385 = pneg %p113
      %p386 = pneg %p137
      %p387 = pneg %p134
      %p388 = pneg %p158
      %p389 = pneg %p155
      %p390 = pneg %p179
      %p391 = pneg %p176
      %p392 = pneg %p200
      %p393 = pneg %p197
      %p394 = pneg %p221
      %p395 = pneg %p218
      %p396 = pneg %p242
      %p397 = pneg %p239
      %p398 = pneg %p263
      %p399 = pneg %p260
      %p400 = pneg %p289
      %p401 = pneg %p286
      %p402 = scmp.lt.s32.totalorder %s22, 1
      %s403 = scalar_select %p402, %s22, 1
      %s404 = scalar_lea.vmem %s11, %s403
      %p405 = scmp.lt.s32.totalorder %s22, 1
      %s406 = scalar_select %p405, %s22, 1
      %s407 = smul.addr %s406, 64
      %s408 = smul.addr %s407, 8
      %s409 = scalar_lea.vmem %s0, %s408
      %p410 = scmp.lt.s32.totalorder %s22, 1
      %s411 = scalar_select %p410, %s22, 1
      %s412 = smul.addr %s411, 64
      %s413 = smul.addr %s412, 8
      %s414 = scalar_lea.vmem %s1, %s413
      %p415 = scmp.lt.s32.totalorder %s22, 1
      %s416 = scalar_select %p415, %s22, 1
      %s417 = smul.addr %s416, 8
      %s418 = smul.addr %s417, 8
      %s419 = scalar_lea.vmem %s2, %s418
      %p420 = scmp.lt.s32.totalorder %s22, 1
      %s421 = scalar_select %p420, %s22, 1
      %s422 = scalar_lea.vmem %s11, %s421
      %v424 = vld [vmem:[%s409] sm:$0xff]
      %v425 = vld [vmem:[%s409 + $0x8] sm:$0xff]
      %v426 = vld [vmem:[%s409 + $0x10] sm:$0xff]
      %v427 = vld [vmem:[%s409 + $0x18] sm:$0xff]
      %v428 = vld [vmem:[%s409 + $0x20] sm:$0xff]
      %v429 = vld [vmem:[%s409 + $0x28] sm:$0xff]
      %v430 = vld [vmem:[%s409 + $0x30] sm:$0xff]
      %v431 = vld [vmem:[%s409 + $0x38] sm:$0xff]
      %v432 = vld [vmem:[%s409 + $0x40] sm:$0xff]
      %v433 = vld [vmem:[%s409 + $0x48] sm:$0xff]
      %v434 = vld [vmem:[%s409 + $0x50] sm:$0xff]
      %v435 = vld [vmem:[%s409 + $0x58] sm:$0xff]
      %v436 = vld [vmem:[%s409 + $0x60] sm:$0xff]
      %v437 = vld [vmem:[%s409 + $0x68] sm:$0xff]
      %v438 = vld [vmem:[%s409 + $0x70] sm:$0xff]
      %v439 = vld [vmem:[%s409 + $0x78] sm:$0xff]
      %v440 = vld [vmem:[%s409 + $0x80] sm:$0xff]
      %v441 = vld [vmem:[%s409 + $0x88] sm:$0xff]
      %v442 = vld [vmem:[%s409 + $0x90] sm:$0xff]
      %v443 = vld [vmem:[%s409 + $0x98] sm:$0xff]
      %v444 = vld [vmem:[%s409 + $0xa0] sm:$0xff]
      %v445 = vld [vmem:[%s409 + $0xa8] sm:$0xff]
      %v446 = vld [vmem:[%s409 + $0xb0] sm:$0xff]
      %v447 = vld [vmem:[%s409 + $0xb8] sm:$0xff]
      %v448 = vld [vmem:[%s409 + $0xc0] sm:$0xff]
      %v449 = vld [vmem:[%s409 + $0xc8] sm:$0xff]
      %v450 = vld [vmem:[%s409 + $0xd0] sm:$0xff]
      %v451 = vld [vmem:[%s409 + $0xd8] sm:$0xff]
      %v452 = vld [vmem:[%s409 + $0xe0] sm:$0xff]
      %v453 = vld [vmem:[%s409 + $0xe8] sm:$0xff]
      %v454 = vld [vmem:[%s409 + $0xf0] sm:$0xff]
      %v455 = vld [vmem:[%s409 + $0xf8] sm:$0xff]
      %v456 = vld [vmem:[%s409 + $0x100] sm:$0xff]
      %v457 = vld [vmem:[%s409 + $0x108] sm:$0xff]
      %v458 = vld [vmem:[%s409 + $0x110] sm:$0xff]
      %v459 = vld [vmem:[%s409 + $0x118] sm:$0xff]
      %v460 = vld [vmem:[%s409 + $0x120] sm:$0xff]
      %v461 = vld [vmem:[%s409 + $0x128] sm:$0xff]
      %v462 = vld [vmem:[%s409 + $0x130] sm:$0xff]
      %v463 = vld [vmem:[%s409 + $0x138] sm:$0xff]
      %v464 = vld [vmem:[%s409 + $0x140] sm:$0xff]
      %v465 = vld [vmem:[%s409 + $0x148] sm:$0xff]
      %v466 = vld [vmem:[%s409 + $0x150] sm:$0xff]
      %v467 = vld [vmem:[%s409 + $0x158] sm:$0xff]
      %v468 = vld [vmem:[%s409 + $0x160] sm:$0xff]
      %v469 = vld [vmem:[%s409 + $0x168] sm:$0xff]
      %v470 = vld [vmem:[%s409 + $0x170] sm:$0xff]
      %v471 = vld [vmem:[%s409 + $0x178] sm:$0xff]
      %v472 = vld [vmem:[%s409 + $0x180] sm:$0xff]
      %v473 = vld [vmem:[%s409 + $0x188] sm:$0xff]
      %v474 = vld [vmem:[%s409 + $0x190] sm:$0xff]
      %v475 = vld [vmem:[%s409 + $0x198] sm:$0xff]
      %v476 = vld [vmem:[%s409 + $0x1a0] sm:$0xff]
      %v477 = vld [vmem:[%s409 + $0x1a8] sm:$0xff]
      %v478 = vld [vmem:[%s409 + $0x1b0] sm:$0xff]
      %v479 = vld [vmem:[%s409 + $0x1b8] sm:$0xff]
      %v480 = vld [vmem:[%s409 + $0x1c0] sm:$0xff]
      %v481 = vld [vmem:[%s409 + $0x1c8] sm:$0xff]
      %v482 = vld [vmem:[%s409 + $0x1d0] sm:$0xff]
      %v483 = vld [vmem:[%s409 + $0x1d8] sm:$0xff]
      %v484 = vld [vmem:[%s409 + $0x1e0] sm:$0xff]
      %v485 = vld [vmem:[%s409 + $0x1e8] sm:$0xff]
      %v486 = vld [vmem:[%s409 + $0x1f0] sm:$0xff]
      %v487 = vld [vmem:[%s409 + $0x1f8] sm:$0xff]
      %v488 = vlaneseq
      %v489 = vand.u32 %v488, 127
      %490 = vset.pattern.permute.xlu0 0
      %491 = vperm.xlu0 %490, %v424
      %v492 = vpop.permute.xlu0 %491
      %493 = vset.pattern.permute.xlu0 0
      %494 = vperm.xlu0 %493, %v425
      %v495 = vpop.permute.xlu0 %494
      %496 = vset.pattern.permute.xlu0 0
      %497 = vperm.xlu0 %496, %v426
      %v498 = vpop.permute.xlu0 %497
      %499 = vset.pattern.permute.xlu0 0
      %500 = vperm.xlu0 %499, %v427
      %v501 = vpop.permute.xlu0 %500
      %502 = vset.pattern.permute.xlu0 0
      %503 = vperm.xlu0 %502, %v428
      %v504 = vpop.permute.xlu0 %503
      %505 = vset.pattern.permute.xlu0 0
      %506 = vperm.xlu0 %505, %v429
      %v507 = vpop.permute.xlu0 %506
      %508 = vset.pattern.permute.xlu0 0
      %509 = vperm.xlu0 %508, %v430
      %v510 = vpop.permute.xlu0 %509
      %511 = vset.pattern.permute.xlu0 0
      %512 = vperm.xlu0 %511, %v431
      %v513 = vpop.permute.xlu0 %512
      %514 = vset.pattern.permute.xlu0 0
      %515 = vperm.xlu0 %514, %v432
      %v516 = vpop.permute.xlu0 %515
      %517 = vset.pattern.permute.xlu0 0
      %518 = vperm.xlu0 %517, %v433
      %v519 = vpop.permute.xlu0 %518
      %520 = vset.pattern.permute.xlu0 0
      %521 = vperm.xlu0 %520, %v434
      %v522 = vpop.permute.xlu0 %521
      %523 = vset.pattern.permute.xlu0 0
      %524 = vperm.xlu0 %523, %v435
      %v525 = vpop.permute.xlu0 %524
      %526 = vset.pattern.permute.xlu0 0
      %527 = vperm.xlu0 %526, %v436
      %v528 = vpop.permute.xlu0 %527
      %529 = vset.pattern.permute.xlu0 0
      %530 = vperm.xlu0 %529, %v437
      %v531 = vpop.permute.xlu0 %530
      %532 = vset.pattern.permute.xlu0 0
      %533 = vperm.xlu0 %532, %v438
      %v534 = vpop.permute.xlu0 %533
      %535 = vset.pattern.permute.xlu0 0
      %536 = vperm.xlu0 %535, %v439
      %v537 = vpop.permute.xlu0 %536
      %538 = vset.pattern.permute.xlu0 0
      %539 = vperm.xlu0 %538, %v440
      %v540 = vpop.permute.xlu0 %539
      %541 = vset.pattern.permute.xlu0 0
      %542 = vperm.xlu0 %541, %v441
      %v543 = vpop.permute.xlu0 %542
      %544 = vset.pattern.permute.xlu0 0
      %545 = vperm.xlu0 %544, %v442
      %v546 = vpop.permute.xlu0 %545
      %547 = vset.pattern.permute.xlu0 0
      %548 = vperm.xlu0 %547, %v443
      %v549 = vpop.permute.xlu0 %548
      %550 = vset.pattern.permute.xlu0 0
      %551 = vperm.xlu0 %550, %v444
      %v552 = vpop.permute.xlu0 %551
      %553 = vset.pattern.permute.xlu0 0
      %554 = vperm.xlu0 %553, %v445
      %v555 = vpop.permute.xlu0 %554
      %556 = vset.pattern.permute.xlu0 0
      %557 = vperm.xlu0 %556, %v446
      %v558 = vpop.permute.xlu0 %557
      %559 = vset.pattern.permute.xlu0 0
      %560 = vperm.xlu0 %559, %v447
      %v561 = vpop.permute.xlu0 %560
      %562 = vset.pattern.permute.xlu0 0
      %563 = vperm.xlu0 %562, %v448
      %v564 = vpop.permute.xlu0 %563
      %565 = vset.pattern.permute.xlu0 0
      %566 = vperm.xlu0 %565, %v449
      %v567 = vpop.permute.xlu0 %566
      %568 = vset.pattern.permute.xlu0 0
      %569 = vperm.xlu0 %568, %v450
      %v570 = vpop.permute.xlu0 %569
      %571 = vset.pattern.permute.xlu0 0
      %572 = vperm.xlu0 %571, %v451
      %v573 = vpop.permute.xlu0 %572
      %574 = vset.pattern.permute.xlu0 0
      %575 = vperm.xlu0 %574, %v452
      %v576 = vpop.permute.xlu0 %575
      %577 = vset.pattern.permute.xlu0 0
      %578 = vperm.xlu0 %577, %v453
      %v579 = vpop.permute.xlu0 %578
      %580 = vset.pattern.permute.xlu0 0
      %581 = vperm.xlu0 %580, %v454
      %v582 = vpop.permute.xlu0 %581
      %583 = vset.pattern.permute.xlu0 0
      %584 = vperm.xlu0 %583, %v455
      %v585 = vpop.permute.xlu0 %584
      %586 = vset.pattern.permute.xlu0 0
      %587 = vperm.xlu0 %586, %v456
      %v588 = vpop.permute.xlu0 %587
      %589 = vset.pattern.permute.xlu0 0
      %590 = vperm.xlu0 %589, %v457
      %v591 = vpop.permute.xlu0 %590
      %592 = vset.pattern.permute.xlu0 0
      %593 = vperm.xlu0 %592, %v458
      %v594 = vpop.permute.xlu0 %593
      %595 = vset.pattern.permute.xlu0 0
      %596 = vperm.xlu0 %595, %v459
      %v597 = vpop.permute.xlu0 %596
      %598 = vset.pattern.permute.xlu0 0
      %599 = vperm.xlu0 %598, %v460
      %v600 = vpop.permute.xlu0 %599
      %601 = vset.pattern.permute.xlu0 0
      %602 = vperm.xlu0 %601, %v461
      %v603 = vpop.permute.xlu0 %602
      %604 = vset.pattern.permute.xlu0 0
      %605 = vperm.xlu0 %604, %v462
      %v606 = vpop.permute.xlu0 %605
      %607 = vset.pattern.permute.xlu0 0
      %608 = vperm.xlu0 %607, %v463
      %v609 = vpop.permute.xlu0 %608
      %610 = vset.pattern.permute.xlu0 0
      %611 = vperm.xlu0 %610, %v464
      %v612 = vpop.permute.xlu0 %611
      %613 = vset.pattern.permute.xlu0 0
      %614 = vperm.xlu0 %613, %v465
      %v615 = vpop.permute.xlu0 %614
      %616 = vset.pattern.permute.xlu0 0
      %617 = vperm.xlu0 %616, %v466
      %v618 = vpop.permute.xlu0 %617
      %619 = vset.pattern.permute.xlu0 0
      %620 = vperm.xlu0 %619, %v467
      %v621 = vpop.permute.xlu0 %620
      %622 = vset.pattern.permute.xlu0 0
      %623 = vperm.xlu0 %622, %v468
      %v624 = vpop.permute.xlu0 %623
      %625 = vset.pattern.permute.xlu0 0
      %626 = vperm.xlu0 %625, %v469
      %v627 = vpop.permute.xlu0 %626
      %628 = vset.pattern.permute.xlu0 0
      %629 = vperm.xlu0 %628, %v470
      %v630 = vpop.permute.xlu0 %629
      %631 = vset.pattern.permute.xlu0 0
      %632 = vperm.xlu0 %631, %v471
      %v633 = vpop.permute.xlu0 %632
      %634 = vset.pattern.permute.xlu0 0
      %635 = vperm.xlu0 %634, %v472
      %v636 = vpop.permute.xlu0 %635
      %637 = vset.pattern.permute.xlu0 0
      %638 = vperm.xlu0 %637, %v473
      %v639 = vpop.permute.xlu0 %638
      %640 = vset.pattern.permute.xlu0 0
      %641 = vperm.xlu0 %640, %v474
      %v642 = vpop.permute.xlu0 %641
      %643 = vset.pattern.permute.xlu0 0
      %644 = vperm.xlu0 %643, %v475
      %v645 = vpop.permute.xlu0 %644
      %646 = vset.pattern.permute.xlu0 0
      %647 = vperm.xlu0 %646, %v476
      %v648 = vpop.permute.xlu0 %647
      %649 = vset.pattern.permute.xlu0 0
      %650 = vperm.xlu0 %649, %v477
      %v651 = vpop.permute.xlu0 %650
      %652 = vset.pattern.permute.xlu0 0
      %653 = vperm.xlu0 %652, %v478
      %v654 = vpop.permute.xlu0 %653
      %655 = vset.pattern.permute.xlu0 0
      %656 = vperm.xlu0 %655, %v479
      %v657 = vpop.permute.xlu0 %656
      %658 = vset.pattern.permute.xlu0 0
      %659 = vperm.xlu0 %658, %v480
      %v660 = vpop.permute.xlu0 %659
      %661 = vset.pattern.permute.xlu0 0
      %662 = vperm.xlu0 %661, %v481
      %v663 = vpop.permute.xlu0 %662
      %664 = vset.pattern.permute.xlu0 0
      %665 = vperm.xlu0 %664, %v482
      %v666 = vpop.permute.xlu0 %665
      %667 = vset.pattern.permute.xlu0 0
      %668 = vperm.xlu0 %667, %v483
      %v669 = vpop.permute.xlu0 %668
      %670 = vset.pattern.permute.xlu0 0
      %671 = vperm.xlu0 %670, %v484
      %v672 = vpop.permute.xlu0 %671
      %673 = vset.pattern.permute.xlu0 0
      %674 = vperm.xlu0 %673, %v485
      %v675 = vpop.permute.xlu0 %674
      %676 = vset.pattern.permute.xlu0 0
      %677 = vperm.xlu0 %676, %v486
      %v678 = vpop.permute.xlu0 %677
      %679 = vset.pattern.permute.xlu0 0
      %680 = vperm.xlu0 %679, %v487
      %v681 = vpop.permute.xlu0 %680
      %vm682 = vcmp.eq.s32.totalorder %v492, %v489
      %vm683 = vcmp.eq.s32.totalorder %v495, %v489
      %vm684 = vcmp.eq.s32.totalorder %v498, %v489
      %vm685 = vcmp.eq.s32.totalorder %v501, %v489
      %vm686 = vcmp.eq.s32.totalorder %v504, %v489
      %vm687 = vcmp.eq.s32.totalorder %v507, %v489
      %vm688 = vcmp.eq.s32.totalorder %v510, %v489
      %vm689 = vcmp.eq.s32.totalorder %v513, %v489
      %vm690 = vcmp.eq.s32.totalorder %v516, %v489
      %vm691 = vcmp.eq.s32.totalorder %v519, %v489
      %vm692 = vcmp.eq.s32.totalorder %v522, %v489
      %vm693 = vcmp.eq.s32.totalorder %v525, %v489
      %vm694 = vcmp.eq.s32.totalorder %v528, %v489
      %vm695 = vcmp.eq.s32.totalorder %v531, %v489
      %vm696 = vcmp.eq.s32.totalorder %v534, %v489
      %vm697 = vcmp.eq.s32.totalorder %v537, %v489
      %vm698 = vcmp.eq.s32.totalorder %v540, %v489
      %vm699 = vcmp.eq.s32.totalorder %v543, %v489
      %vm700 = vcmp.eq.s32.totalorder %v546, %v489
      %vm701 = vcmp.eq.s32.totalorder %v549, %v489
      %vm702 = vcmp.eq.s32.totalorder %v552, %v489
      %vm703 = vcmp.eq.s32.totalorder %v555, %v489
      %vm704 = vcmp.eq.s32.totalorder %v558, %v489
      %vm705 = vcmp.eq.s32.totalorder %v561, %v489
      %vm706 = vcmp.eq.s32.totalorder %v564, %v489
      %vm707 = vcmp.eq.s32.totalorder %v567, %v489
      %vm708 = vcmp.eq.s32.totalorder %v570, %v489
      %vm709 = vcmp.eq.s32.totalorder %v573, %v489
      %vm710 = vcmp.eq.s32.totalorder %v576, %v489
      %vm711 = vcmp.eq.s32.totalorder %v579, %v489
      %vm712 = vcmp.eq.s32.totalorder %v582, %v489
      %vm713 = vcmp.eq.s32.totalorder %v585, %v489
      %vm714 = vcmp.eq.s32.totalorder %v588, %v489
      %vm715 = vcmp.eq.s32.totalorder %v591, %v489
      %vm716 = vcmp.eq.s32.totalorder %v594, %v489
      %vm717 = vcmp.eq.s32.totalorder %v597, %v489
      %vm718 = vcmp.eq.s32.totalorder %v600, %v489
      %vm719 = vcmp.eq.s32.totalorder %v603, %v489
      %vm720 = vcmp.eq.s32.totalorder %v606, %v489
      %vm721 = vcmp.eq.s32.totalorder %v609, %v489
      %vm722 = vcmp.eq.s32.totalorder %v612, %v489
      %vm723 = vcmp.eq.s32.totalorder %v615, %v489
      %vm724 = vcmp.eq.s32.totalorder %v618, %v489
      %vm725 = vcmp.eq.s32.totalorder %v621, %v489
      %vm726 = vcmp.eq.s32.totalorder %v624, %v489
      %vm727 = vcmp.eq.s32.totalorder %v627, %v489
      %vm728 = vcmp.eq.s32.totalorder %v630, %v489
      %vm729 = vcmp.eq.s32.totalorder %v633, %v489
      %vm730 = vcmp.eq.s32.totalorder %v636, %v489
      %vm731 = vcmp.eq.s32.totalorder %v639, %v489
      %vm732 = vcmp.eq.s32.totalorder %v642, %v489
      %vm733 = vcmp.eq.s32.totalorder %v645, %v489
      %vm734 = vcmp.eq.s32.totalorder %v648, %v489
      %vm735 = vcmp.eq.s32.totalorder %v651, %v489
      %vm736 = vcmp.eq.s32.totalorder %v654, %v489
      %vm737 = vcmp.eq.s32.totalorder %v657, %v489
      %vm738 = vcmp.eq.s32.totalorder %v660, %v489
      %vm739 = vcmp.eq.s32.totalorder %v663, %v489
      %vm740 = vcmp.eq.s32.totalorder %v666, %v489
      %vm741 = vcmp.eq.s32.totalorder %v669, %v489
      %vm742 = vcmp.eq.s32.totalorder %v672, %v489
      %vm743 = vcmp.eq.s32.totalorder %v675, %v489
      %vm744 = vcmp.eq.s32.totalorder %v678, %v489
      %vm745 = vcmp.eq.s32.totalorder %v681, %v489
      %v746 = vsel %vm682, 1.0, 0.0
      %v747 = vsel %vm683, 1.0, 0.0
      %v748 = vsel %vm684, 1.0, 0.0
      %v749 = vsel %vm685, 1.0, 0.0
      %v750 = vsel %vm686, 1.0, 0.0
      %v751 = vsel %vm687, 1.0, 0.0
      %v752 = vsel %vm688, 1.0, 0.0
      %v753 = vsel %vm689, 1.0, 0.0
      %v754 = vsel %vm690, 1.0, 0.0
      %v755 = vsel %vm691, 1.0, 0.0
      %v756 = vsel %vm692, 1.0, 0.0
      %v757 = vsel %vm693, 1.0, 0.0
      %v758 = vsel %vm694, 1.0, 0.0
      %v759 = vsel %vm695, 1.0, 0.0
      %v760 = vsel %vm696, 1.0, 0.0
      %v761 = vsel %vm697, 1.0, 0.0
      %v762 = vsel %vm698, 1.0, 0.0
      %v763 = vsel %vm699, 1.0, 0.0
      %v764 = vsel %vm700, 1.0, 0.0
      %v765 = vsel %vm701, 1.0, 0.0
      %v766 = vsel %vm702, 1.0, 0.0
      %v767 = vsel %vm703, 1.0, 0.0
      %v768 = vsel %vm704, 1.0, 0.0
      %v769 = vsel %vm705, 1.0, 0.0
      %v770 = vsel %vm706, 1.0, 0.0
      %v771 = vsel %vm707, 1.0, 0.0
      %v772 = vsel %vm708, 1.0, 0.0
      %v773 = vsel %vm709, 1.0, 0.0
      %v774 = vsel %vm710, 1.0, 0.0
      %v775 = vsel %vm711, 1.0, 0.0
      %v776 = vsel %vm712, 1.0, 0.0
      %v777 = vsel %vm713, 1.0, 0.0
      %v778 = vsel %vm714, 1.0, 0.0
      %v779 = vsel %vm715, 1.0, 0.0
      %v780 = vsel %vm716, 1.0, 0.0
      %v781 = vsel %vm717, 1.0, 0.0
      %v782 = vsel %vm718, 1.0, 0.0
      %v783 = vsel %vm719, 1.0, 0.0
      %v784 = vsel %vm720, 1.0, 0.0
      %v785 = vsel %vm721, 1.0, 0.0
      %v786 = vsel %vm722, 1.0, 0.0
      %v787 = vsel %vm723, 1.0, 0.0
      %v788 = vsel %vm724, 1.0, 0.0
      %v789 = vsel %vm725, 1.0, 0.0
      %v790 = vsel %vm726, 1.0, 0.0
      %v791 = vsel %vm727, 1.0, 0.0
      %v792 = vsel %vm728, 1.0, 0.0
      %v793 = vsel %vm729, 1.0, 0.0
      %v794 = vsel %vm730, 1.0, 0.0
      %v795 = vsel %vm731, 1.0, 0.0
      %v796 = vsel %vm732, 1.0, 0.0
      %v797 = vsel %vm733, 1.0, 0.0
      %v798 = vsel %vm734, 1.0, 0.0
      %v799 = vsel %vm735, 1.0, 0.0
      %v800 = vsel %vm736, 1.0, 0.0
      %v801 = vsel %vm737, 1.0, 0.0
      %v802 = vsel %vm738, 1.0, 0.0
      %v803 = vsel %vm739, 1.0, 0.0
      %v804 = vsel %vm740, 1.0, 0.0
      %v805 = vsel %vm741, 1.0, 0.0
      %v806 = vsel %vm742, 1.0, 0.0
      %v807 = vsel %vm743, 1.0, 0.0
      %v808 = vsel %vm744, 1.0, 0.0
      %v809 = vsel %vm745, 1.0, 0.0
      %v810 = vld [vmem:[%s414] sm:$0xff]
      %v811 = vld [vmem:[%s414 + $0x8] sm:$0xff]
      %v812 = vld [vmem:[%s414 + $0x10] sm:$0xff]
      %v813 = vld [vmem:[%s414 + $0x18] sm:$0xff]
      %v814 = vld [vmem:[%s414 + $0x20] sm:$0xff]
      %v815 = vld [vmem:[%s414 + $0x28] sm:$0xff]
      %v816 = vld [vmem:[%s414 + $0x30] sm:$0xff]
      %v817 = vld [vmem:[%s414 + $0x38] sm:$0xff]
      %v818 = vld [vmem:[%s414 + $0x40] sm:$0xff]
      %v819 = vld [vmem:[%s414 + $0x48] sm:$0xff]
      %v820 = vld [vmem:[%s414 + $0x50] sm:$0xff]
      %v821 = vld [vmem:[%s414 + $0x58] sm:$0xff]
      %v822 = vld [vmem:[%s414 + $0x60] sm:$0xff]
      %v823 = vld [vmem:[%s414 + $0x68] sm:$0xff]
      %v824 = vld [vmem:[%s414 + $0x70] sm:$0xff]
      %v825 = vld [vmem:[%s414 + $0x78] sm:$0xff]
      %v826 = vld [vmem:[%s414 + $0x80] sm:$0xff]
      %v827 = vld [vmem:[%s414 + $0x88] sm:$0xff]
      %v828 = vld [vmem:[%s414 + $0x90] sm:$0xff]
      %v829 = vld [vmem:[%s414 + $0x98] sm:$0xff]
      %v830 = vld [vmem:[%s414 + $0xa0] sm:$0xff]
      %v831 = vld [vmem:[%s414 + $0xa8] sm:$0xff]
      %v832 = vld [vmem:[%s414 + $0xb0] sm:$0xff]
      %v833 = vld [vmem:[%s414 + $0xb8] sm:$0xff]
      %v834 = vld [vmem:[%s414 + $0xc0] sm:$0xff]
      %v835 = vld [vmem:[%s414 + $0xc8] sm:$0xff]
      %v836 = vld [vmem:[%s414 + $0xd0] sm:$0xff]
      %v837 = vld [vmem:[%s414 + $0xd8] sm:$0xff]
      %v838 = vld [vmem:[%s414 + $0xe0] sm:$0xff]
      %v839 = vld [vmem:[%s414 + $0xe8] sm:$0xff]
      %v840 = vld [vmem:[%s414 + $0xf0] sm:$0xff]
      %v841 = vld [vmem:[%s414 + $0xf8] sm:$0xff]
      %v842 = vld [vmem:[%s414 + $0x100] sm:$0xff]
      %v843 = vld [vmem:[%s414 + $0x108] sm:$0xff]
      %v844 = vld [vmem:[%s414 + $0x110] sm:$0xff]
      %v845 = vld [vmem:[%s414 + $0x118] sm:$0xff]
      %v846 = vld [vmem:[%s414 + $0x120] sm:$0xff]
      %v847 = vld [vmem:[%s414 + $0x128] sm:$0xff]
      %v848 = vld [vmem:[%s414 + $0x130] sm:$0xff]
      %v849 = vld [vmem:[%s414 + $0x138] sm:$0xff]
      %v850 = vld [vmem:[%s414 + $0x140] sm:$0xff]
      %v851 = vld [vmem:[%s414 + $0x148] sm:$0xff]
      %v852 = vld [vmem:[%s414 + $0x150] sm:$0xff]
      %v853 = vld [vmem:[%s414 + $0x158] sm:$0xff]
      %v854 = vld [vmem:[%s414 + $0x160] sm:$0xff]
      %v855 = vld [vmem:[%s414 + $0x168] sm:$0xff]
      %v856 = vld [vmem:[%s414 + $0x170] sm:$0xff]
      %v857 = vld [vmem:[%s414 + $0x178] sm:$0xff]
      %v858 = vld [vmem:[%s414 + $0x180] sm:$0xff]
      %v859 = vld [vmem:[%s414 + $0x188] sm:$0xff]
      %v860 = vld [vmem:[%s414 + $0x190] sm:$0xff]
      %v861 = vld [vmem:[%s414 + $0x198] sm:$0xff]
      %v862 = vld [vmem:[%s414 + $0x1a0] sm:$0xff]
      %v863 = vld [vmem:[%s414 + $0x1a8] sm:$0xff]
      %v864 = vld [vmem:[%s414 + $0x1b0] sm:$0xff]
      %v865 = vld [vmem:[%s414 + $0x1b8] sm:$0xff]
      %v866 = vld [vmem:[%s414 + $0x1c0] sm:$0xff]
      %v867 = vld [vmem:[%s414 + $0x1c8] sm:$0xff]
      %v868 = vld [vmem:[%s414 + $0x1d0] sm:$0xff]
      %v869 = vld [vmem:[%s414 + $0x1d8] sm:$0xff]
      %v870 = vld [vmem:[%s414 + $0x1e0] sm:$0xff]
      %v871 = vld [vmem:[%s414 + $0x1e8] sm:$0xff]
      %v872 = vld [vmem:[%s414 + $0x1f0] sm:$0xff]
      %v873 = vld [vmem:[%s414 + $0x1f8] sm:$0xff]
      %v874 = vld [vmem:[%s3] sm:$0xff]
      %v875 = vld [vmem:[%s3 + $0x8] sm:$0x3]
      %v876 = vpack.c.bf16 %v811, %v810
      %v877 = vpack.c.bf16 %v813, %v812
      %v878 = vpack.c.bf16 %v815, %v814
      %v879 = vpack.c.bf16 %v817, %v816
      %v880 = vpack.c.bf16 %v819, %v818
      %v881 = vpack.c.bf16 %v821, %v820
      %v882 = vpack.c.bf16 %v823, %v822
      %v883 = vpack.c.bf16 %v825, %v824
      %v884 = vpack.c.bf16 %v827, %v826
      %v885 = vpack.c.bf16 %v829, %v828
      %v886 = vpack.c.bf16 %v831, %v830
      %v887 = vpack.c.bf16 %v833, %v832
      %v888 = vpack.c.bf16 %v835, %v834
      %v889 = vpack.c.bf16 %v837, %v836
      %v890 = vpack.c.bf16 %v839, %v838
      %v891 = vpack.c.bf16 %v841, %v840
      %v892 = vpack.c.bf16 %v843, %v842
      %v893 = vpack.c.bf16 %v845, %v844
      %v894 = vpack.c.bf16 %v847, %v846
      %v895 = vpack.c.bf16 %v849, %v848
      %v896 = vpack.c.bf16 %v851, %v850
      %v897 = vpack.c.bf16 %v853, %v852
      %v898 = vpack.c.bf16 %v855, %v854
      %v899 = vpack.c.bf16 %v857, %v856
      %v900 = vpack.c.bf16 %v859, %v858
      %v901 = vpack.c.bf16 %v861, %v860
      %v902 = vpack.c.bf16 %v863, %v862
      %v903 = vpack.c.bf16 %v865, %v864
      %v904 = vpack.c.bf16 %v867, %v866
      %v905 = vpack.c.bf16 %v869, %v868
      %v906 = vpack.c.bf16 %v871, %v870
      %v907 = vpack.c.bf16 %v873, %v872
      %v908 = vpack.c.bf16 %v875, %v874
      %v909 = vld [vmem:[%s4] sm:$0x1]
      %v911 = vlaneseq
      %v912 = vshrl.u32 %v911, 7
      %v913 = vsub.s32 0, %v912
      %v914 = vrot.slane %v909, %v913
      %vm916 = vcmask 80896
      %v918 = vsel %vm916, %v876, 0
      %v921 = vsel %vm916, %v877, 0
      %v924 = vsel %vm916, %v878, 0
      %v927 = vsel %vm916, %v879, 0
      %v930 = vsel %vm916, %v880, 0
      %v933 = vsel %vm916, %v881, 0
      %v936 = vsel %vm916, %v882, 0
      %v939 = vsel %vm916, %v883, 0
      %v942 = vsel %vm916, %v884, 0
      %v945 = vsel %vm916, %v885, 0
      %v948 = vsel %vm916, %v886, 0
      %v951 = vsel %vm916, %v887, 0
      %v954 = vsel %vm916, %v888, 0
      %v957 = vsel %vm916, %v889, 0
      %v960 = vsel %vm916, %v890, 0
      %v963 = vsel %vm916, %v891, 0
      %v966 = vsel %vm916, %v892, 0
      %v969 = vsel %vm916, %v893, 0
      %v972 = vsel %vm916, %v894, 0
      %v975 = vsel %vm916, %v895, 0
      %v978 = vsel %vm916, %v896, 0
      %v981 = vsel %vm916, %v897, 0
      %v984 = vsel %vm916, %v898, 0
      %v987 = vsel %vm916, %v899, 0
      %v990 = vsel %vm916, %v900, 0
      %v993 = vsel %vm916, %v901, 0
      %v996 = vsel %vm916, %v902, 0
      %v999 = vsel %vm916, %v903, 0
      %v1002 = vsel %vm916, %v904, 0
      %v1005 = vsel %vm916, %v905, 0
      %v1008 = vsel %vm916, %v906, 0
      %v1011 = vsel %vm916, %v907, 0
      %vm1013 = vcmask 1044480
      %v1015 = vsel %vm1013, %v908, 0
      %1017 = vmatprep.subr.bf16.mxu0 0
      %1018 = vmatpush1.bf16.msra.mxu0 %v1015
      %1019 = vmatprep.subr.bf16.mxu0 0
      %1020 = vmatpush1.bf16.msra.mxu0 0
      %1021 = vmatprep.subr.bf16.mxu0 0
      %1022 = vmatpush1.bf16.msra.mxu0 0
      %1023 = vmatprep.subr.bf16.mxu0 0
      %1024 = vmatpush1.bf16.msra.mxu0 0
      %1025 = vmatprep.subr.bf16.mxu0 0
      %1026 = vmatpush1.bf16.msra.mxu0 0
      %1027 = vmatprep.subr.bf16.mxu0 0
      %1028 = vmatpush1.bf16.msra.mxu0 0
      %1029 = vmatprep.subr.bf16.mxu0 0
      %1030 = vmatpush1.bf16.msra.mxu0 0
      %1031 = vmatprep.subr.bf16.mxu0 0
      %1032 = vmatpush1.bf16.msra.mxu0 0
      %1033 = vmatprep.subr.bf16.mxu0 0
      %1034 = vmatpush1.bf16.msra.mxu0 0
      %1035 = vmatprep.subr.bf16.mxu0 0
      %1036 = vmatpush1.bf16.msra.mxu0 0
      %1037 = vmatprep.subr.bf16.mxu0 0
      %1038 = vmatpush1.bf16.msra.mxu0 0
      %1039 = vmatprep.subr.bf16.mxu0 0
      %1040 = vmatpush1.bf16.msra.mxu0 0
      %1041 = vmatprep.subr.bf16.mxu0 0
      %1042 = vmatpush1.bf16.msra.mxu0 0
      %1043 = vmatprep.subr.bf16.mxu0 0
      %1044 = vmatpush1.bf16.msra.mxu0 0
      %1045 = vmatprep.subr.bf16.mxu0 0
      %1046 = vmatpush1.bf16.msra.mxu0 0
      %1047 = vmatprep.subr.bf16.mxu0 0
      %1048 = vmatpush1.bf16.msra.mxu0 0
      %1049 = vmatprep.mubr.bf16.mxu0 0
      %1050 = vmatmul.mubr.bf16.gmra.mrb[0].mxu0 %v918
      %v1051 = vpop.f32.mrb[0].mxu0
      %v1052 = vadd.f32 %v914, %v1051
      %v1053 = vpop.f32.mrb[0].mxu0
      %v1054 = vpop.f32.mrb[0].mxu0
      %v1055 = vadd.f32 %v914, %v1054
      %v1056 = vpop.f32.mrb[0].mxu0
      %1057 = vmatprep.mubr.bf16.mxu0 0
      %1058 = vmatmul.mubr.bf16.gmra.mrb[0].mxu0 %v921
      %v1059 = vpop.f32.mrb[0].mxu0
      %v1060 = vadd.f32 %v914, %v1059
      %v1061 = vpop.f32.mrb[0].mxu0
      %v1062 = vpop.f32.mrb[0].mxu0
      %v1063 = vadd.f32 %v914, %v1062
      %v1064 = vpop.f32.mrb[0].mxu0
      %1065 = vmatprep.mubr.bf16.mxu0 0
      %1066 = vmatmul.mubr.bf16.gmra.mrb[0].mxu0 %v924
      %v1067 = vpop.f32.mrb[0].mxu0
      %v1068 = vadd.f32 %v914, %v1067
      %v1069 = vpop.f32.mrb[0].mxu0
      %v1070 = vpop.f32.mrb[0].mxu0
      %v1071 = vadd.f32 %v914, %v1070
      %v1072 = vpop.f32.mrb[0].mxu0
      %1073 = vmatprep.mubr.bf16.mxu0 0
      %1074 = vmatmul.mubr.bf16.gmra.mrb[0].mxu0 %v927
      %v1075 = vpop.f32.mrb[0].mxu0
      %v1076 = vadd.f32 %v914, %v1075
      %v1077 = vpop.f32.mrb[0].mxu0
      %v1078 = vpop.f32.mrb[0].mxu0
      %v1079 = vadd.f32 %v914, %v1078
      %v1080 = vpop.f32.mrb[0].mxu0
      %1081 = vmatprep.mubr.bf16.mxu0 0
      %1082 = vmatmul.mubr.bf16.gmra.mrb[0].mxu0 %v930
      %v1083 = vpop.f32.mrb[0].mxu0
      %v1084 = vadd.f32 %v914, %v1083
      %v1085 = vpop.f32.mrb[0].mxu0
      %v1086 = vpop.f32.mrb[0].mxu0
      %v1087 = vadd.f32 %v914, %v1086
      %v1088 = vpop.f32.mrb[0].mxu0
      %1089 = vmatprep.mubr.bf16.mxu0 0
      %1090 = vmatmul.mubr.bf16.gmra.mrb[0].mxu0 %v933
      %v1091 = vpop.f32.mrb[0].mxu0
      %v1092 = vadd.f32 %v914, %v1091
      %v1093 = vpop.f32.mrb[0].mxu0
      %v1094 = vpop.f32.mrb[0].mxu0
      %v1095 = vadd.f32 %v914, %v1094
      %v1096 = vpop.f32.mrb[0].mxu0
      %1097 = vmatprep.mubr.bf16.mxu0 0
      %1098 = vmatmul.mubr.bf16.gmra.mrb[0].mxu0 %v936
      %v1099 = vpop.f32.mrb[0].mxu0
      %v1100 = vadd.f32 %v914, %v1099
      %v1101 = vpop.f32.mrb[0].mxu0
      %v1102 = vpop.f32.mrb[0].mxu0
      %v1103 = vadd.f32 %v914, %v1102
      %v1104 = vpop.f32.mrb[0].mxu0
      %1105 = vmatprep.mubr.bf16.mxu0 0
      %1106 = vmatmul.mubr.bf16.gmra.mrb[0].mxu0 %v939
      %v1107 = vpop.f32.mrb[0].mxu0
      %v1108 = vadd.f32 %v914, %v1107
      %v1109 = vpop.f32.mrb[0].mxu0
      %v1110 = vpop.f32.mrb[0].mxu0
      %v1111 = vadd.f32 %v914, %v1110
      %v1112 = vpop.f32.mrb[0].mxu0
      %1113 = vmatprep.mubr.bf16.mxu0 0
      %1114 = vmatmul.mubr.bf16.gmra.mrb[0].mxu0 %v942
      %v1115 = vpop.f32.mrb[0].mxu0
      %v1116 = vadd.f32 %v914, %v1115
      %v1117 = vpop.f32.mrb[0].mxu0
      %v1118 = vpop.f32.mrb[0].mxu0
      %v1119 = vadd.f32 %v914, %v1118
      %v1120 = vpop.f32.mrb[0].mxu0
      %1121 = vmatprep.mubr.bf16.mxu0 0
      %1122 = vmatmul.mubr.bf16.gmra.mrb[0].mxu0 %v945
      %v1123 = vpop.f32.mrb[0].mxu0
      %v1124 = vadd.f32 %v914, %v1123
      %v1125 = vpop.f32.mrb[0].mxu0
      %v1126 = vpop.f32.mrb[0].mxu0
      %v1127 = vadd.f32 %v914, %v1126
      %v1128 = vpop.f32.mrb[0].mxu0
      %1129 = vmatprep.mubr.bf16.mxu0 0
      %1130 = vmatmul.mubr.bf16.gmra.mrb[0].mxu0 %v948
      %v1131 = vpop.f32.mrb[0].mxu0
      %v1132 = vadd.f32 %v914, %v1131
      %v1133 = vpop.f32.mrb[0].mxu0
      %v1134 = vpop.f32.mrb[0].mxu0
      %v1135 = vadd.f32 %v914, %v1134
      %v1136 = vpop.f32.mrb[0].mxu0
      %1137 = vmatprep.mubr.bf16.mxu0 0
      %1138 = vmatmul.mubr.bf16.gmra.mrb[0].mxu0 %v951
      %v1139 = vpop.f32.mrb[0].mxu0
      %v1140 = vadd.f32 %v914, %v1139
      %v1141 = vpop.f32.mrb[0].mxu0
      %v1142 = vpop.f32.mrb[0].mxu0
      %v1143 = vadd.f32 %v914, %v1142
      %v1144 = vpop.f32.mrb[0].mxu0
      %1145 = vmatprep.mubr.bf16.mxu0 0
      %1146 = vmatmul.mubr.bf16.gmra.mrb[0].mxu0 %v954
      %v1147 = vpop.f32.mrb[0].mxu0
      %v1148 = vadd.f32 %v914, %v1147
      %v1149 = vpop.f32.mrb[0].mxu0
      %v1150 = vpop.f32.mrb[0].mxu0
      %v1151 = vadd.f32 %v914, %v1150
      %v1152 = vpop.f32.mrb[0].mxu0
      %1153 = vmatprep.mubr.bf16.mxu0 0
      %1154 = vmatmul.mubr.bf16.gmra.mrb[0].mxu0 %v957
      %v1155 = vpop.f32.mrb[0].mxu0
      %v1156 = vadd.f32 %v914, %v1155
      %v1157 = vpop.f32.mrb[0].mxu0
      %v1158 = vpop.f32.mrb[0].mxu0
      %v1159 = vadd.f32 %v914, %v1158
      %v1160 = vpop.f32.mrb[0].mxu0
      %1161 = vmatprep.mubr.bf16.mxu0 0
      %1162 = vmatmul.mubr.bf16.gmra.mrb[0].mxu0 %v960
      %v1163 = vpop.f32.mrb[0].mxu0
      %v1164 = vadd.f32 %v914, %v1163
      %v1165 = vpop.f32.mrb[0].mxu0
      %v1166 = vpop.f32.mrb[0].mxu0
      %v1167 = vadd.f32 %v914, %v1166
      %v1168 = vpop.f32.mrb[0].mxu0
      %1169 = vmatprep.mubr.bf16.mxu0 0
      %1170 = vmatmul.mubr.bf16.gmra.mrb[0].mxu0 %v963
      %v1171 = vpop.f32.mrb[0].mxu0
      %v1172 = vadd.f32 %v914, %v1171
      %v1173 = vpop.f32.mrb[0].mxu0
      %v1174 = vpop.f32.mrb[0].mxu0
      %v1175 = vadd.f32 %v914, %v1174
      %v1176 = vpop.f32.mrb[0].mxu0
      %1177 = vmatprep.mubr.bf16.mxu0 0
      %1178 = vmatmul.mubr.bf16.gmra.mrb[0].mxu0 %v966
      %v1179 = vpop.f32.mrb[0].mxu0
      %v1180 = vadd.f32 %v914, %v1179
      %v1181 = vpop.f32.mrb[0].mxu0
      %v1182 = vpop.f32.mrb[0].mxu0
      %v1183 = vadd.f32 %v914, %v1182
      %v1184 = vpop.f32.mrb[0].mxu0
      %1185 = vmatprep.mubr.bf16.mxu0 0
      %1186 = vmatmul.mubr.bf16.gmra.mrb[0].mxu0 %v969
      %v1187 = vpop.f32.mrb[0].mxu0
      %v1188 = vadd.f32 %v914, %v1187
      %v1189 = vpop.f32.mrb[0].mxu0
      %v1190 = vpop.f32.mrb[0].mxu0
      %v1191 = vadd.f32 %v914, %v1190
      %v1192 = vpop.f32.mrb[0].mxu0
      %1193 = vmatprep.mubr.bf16.mxu0 0
      %1194 = vmatmul.mubr.bf16.gmra.mrb[0].mxu0 %v972
      %v1195 = vpop.f32.mrb[0].mxu0
      %v1196 = vadd.f32 %v914, %v1195
      %v1197 = vpop.f32.mrb[0].mxu0
      %v1198 = vpop.f32.mrb[0].mxu0
      %v1199 = vadd.f32 %v914, %v1198
      %v1200 = vpop.f32.mrb[0].mxu0
      %1201 = vmatprep.mubr.bf16.mxu0 0
      %1202 = vmatmul.mubr.bf16.gmra.mrb[0].mxu0 %v975
      %v1203 = vpop.f32.mrb[0].mxu0
      %v1204 = vadd.f32 %v914, %v1203
      %v1205 = vpop.f32.mrb[0].mxu0
      %v1206 = vpop.f32.mrb[0].mxu0
      %v1207 = vadd.f32 %v914, %v1206
      %v1208 = vpop.f32.mrb[0].mxu0
      %1209 = vmatprep.mubr.bf16.mxu0 0
      %1210 = vmatmul.mubr.bf16.gmra.mrb[0].mxu0 %v978
      %v1211 = vpop.f32.mrb[0].mxu0
      %v1212 = vadd.f32 %v914, %v1211
      %v1213 = vpop.f32.mrb[0].mxu0
      %v1214 = vpop.f32.mrb[0].mxu0
      %v1215 = vadd.f32 %v914, %v1214
      %v1216 = vpop.f32.mrb[0].mxu0
      %1217 = vmatprep.mubr.bf16.mxu0 0
      %1218 = vmatmul.mubr.bf16.gmra.mrb[0].mxu0 %v981
      %v1219 = vpop.f32.mrb[0].mxu0
      %v1220 = vadd.f32 %v914, %v1219
      %v1221 = vpop.f32.mrb[0].mxu0
      %v1222 = vpop.f32.mrb[0].mxu0
      %v1223 = vadd.f32 %v914, %v1222
      %v1224 = vpop.f32.mrb[0].mxu0
      %1225 = vmatprep.mubr.bf16.mxu0 0
      %1226 = vmatmul.mubr.bf16.gmra.mrb[0].mxu0 %v984
      %v1227 = vpop.f32.mrb[0].mxu0
      %v1228 = vadd.f32 %v914, %v1227
      %v1229 = vpop.f32.mrb[0].mxu0
      %v1230 = vpop.f32.mrb[0].mxu0
      %v1231 = vadd.f32 %v914, %v1230
      %v1232 = vpop.f32.mrb[0].mxu0
      %1233 = vmatprep.mubr.bf16.mxu0 0
      %1234 = vmatmul.mubr.bf16.gmra.mrb[0].mxu0 %v987
      %v1235 = vpop.f32.mrb[0].mxu0
      %v1236 = vadd.f32 %v914, %v1235
      %v1237 = vpop.f32.mrb[0].mxu0
      %v1238 = vpop.f32.mrb[0].mxu0
      %v1239 = vadd.f32 %v914, %v1238
      %v1240 = vpop.f32.mrb[0].mxu0
      %1241 = vmatprep.mubr.bf16.mxu0 0
      %1242 = vmatmul.mubr.bf16.gmra.mrb[0].mxu0 %v990
      %v1243 = vpop.f32.mrb[0].mxu0
      %v1244 = vadd.f32 %v914, %v1243
      %v1245 = vpop.f32.mrb[0].mxu0
      %v1246 = vpop.f32.mrb[0].mxu0
      %v1247 = vadd.f32 %v914, %v1246
      %v1248 = vpop.f32.mrb[0].mxu0
      %1249 = vmatprep.mubr.bf16.mxu0 0
      %1250 = vmatmul.mubr.bf16.gmra.mrb[0].mxu0 %v993
      %v1251 = vpop.f32.mrb[0].mxu0
      %v1252 = vadd.f32 %v914, %v1251
      %v1253 = vpop.f32.mrb[0].mxu0
      %v1254 = vpop.f32.mrb[0].mxu0
      %v1255 = vadd.f32 %v914, %v1254
      %v1256 = vpop.f32.mrb[0].mxu0
      %1257 = vmatprep.mubr.bf16.mxu0 0
      %1258 = vmatmul.mubr.bf16.gmra.mrb[0].mxu0 %v996
      %v1259 = vpop.f32.mrb[0].mxu0
      %v1260 = vadd.f32 %v914, %v1259
      %v1261 = vpop.f32.mrb[0].mxu0
      %v1262 = vpop.f32.mrb[0].mxu0
      %v1263 = vadd.f32 %v914, %v1262
      %v1264 = vpop.f32.mrb[0].mxu0
      %1265 = vmatprep.mubr.bf16.mxu0 0
      %1266 = vmatmul.mubr.bf16.gmra.mrb[0].mxu0 %v999
      %v1267 = vpop.f32.mrb[0].mxu0
      %v1268 = vadd.f32 %v914, %v1267
      %v1269 = vpop.f32.mrb[0].mxu0
      %v1270 = vpop.f32.mrb[0].mxu0
      %v1271 = vadd.f32 %v914, %v1270
      %v1272 = vpop.f32.mrb[0].mxu0
      %1273 = vmatprep.mubr.bf16.mxu0 0
      %1274 = vmatmul.mubr.bf16.gmra.mrb[0].mxu0 %v1002
      %v1275 = vpop.f32.mrb[0].mxu0
      %v1276 = vadd.f32 %v914, %v1275
      %v1277 = vpop.f32.mrb[0].mxu0
      %v1278 = vpop.f32.mrb[0].mxu0
      %v1279 = vadd.f32 %v914, %v1278
      %v1280 = vpop.f32.mrb[0].mxu0
      %1281 = vmatprep.mubr.bf16.mxu0 0
      %1282 = vmatmul.mubr.bf16.gmra.mrb[0].mxu0 %v1005
      %v1283 = vpop.f32.mrb[0].mxu0
      %v1284 = vadd.f32 %v914, %v1283
      %v1285 = vpop.f32.mrb[0].mxu0
      %v1286 = vpop.f32.mrb[0].mxu0
      %v1287 = vadd.f32 %v914, %v1286
      %v1288 = vpop.f32.mrb[0].mxu0
      %1289 = vmatprep.mubr.bf16.mxu0 0
      %1290 = vmatmul.mubr.bf16.gmra.mrb[0].mxu0 %v1008
      %v1291 = vpop.f32.mrb[0].mxu0
      %v1292 = vadd.f32 %v914, %v1291
      %v1293 = vpop.f32.mrb[0].mxu0
      %v1294 = vpop.f32.mrb[0].mxu0
      %v1295 = vadd.f32 %v914, %v1294
      %v1296 = vpop.f32.mrb[0].mxu0
      %1297 = vmatprep.mubr.bf16.mxu0 0
      %1298 = vmatmul.mubr.bf16.gmra.mrb[0].mxu0 %v1011
      %v1299 = vpop.f32.mrb[0].mxu0
      %v1300 = vadd.f32 %v914, %v1299
      %v1301 = vpop.f32.mrb[0].mxu0
      %v1302 = vpop.f32.mrb[0].mxu0
      %v1303 = vadd.f32 %v914, %v1302
      %v1304 = vpop.f32.mrb[0].mxu0
      %1305 = vdwg.mxu0
      %v1306 = vmax.f32 %v1052, 0.0
      %v1307 = vmax.f32 %v1055, 0.0
      %v1308 = vmax.f32 %v1060, 0.0
      %v1309 = vmax.f32 %v1063, 0.0
      %v1310 = vmax.f32 %v1068, 0.0
      %v1311 = vmax.f32 %v1071, 0.0
      %v1312 = vmax.f32 %v1076, 0.0
      %v1313 = vmax.f32 %v1079, 0.0
      %v1314 = vmax.f32 %v1084, 0.0
      %v1315 = vmax.f32 %v1087, 0.0
      %v1316 = vmax.f32 %v1092, 0.0
      %v1317 = vmax.f32 %v1095, 0.0
      %v1318 = vmax.f32 %v1100, 0.0
      %v1319 = vmax.f32 %v1103, 0.0
      %v1320 = vmax.f32 %v1108, 0.0
      %v1321 = vmax.f32 %v1111, 0.0
      %v1322 = vmax.f32 %v1116, 0.0
      %v1323 = vmax.f32 %v1119, 0.0
      %v1324 = vmax.f32 %v1124, 0.0
      %v1325 = vmax.f32 %v1127, 0.0
      %v1326 = vmax.f32 %v1132, 0.0
      %v1327 = vmax.f32 %v1135, 0.0
      %v1328 = vmax.f32 %v1140, 0.0
      %v1329 = vmax.f32 %v1143, 0.0
      %v1330 = vmax.f32 %v1148, 0.0
      %v1331 = vmax.f32 %v1151, 0.0
      %v1332 = vmax.f32 %v1156, 0.0
      %v1333 = vmax.f32 %v1159, 0.0
      %v1334 = vmax.f32 %v1164, 0.0
      %v1335 = vmax.f32 %v1167, 0.0
      %v1336 = vmax.f32 %v1172, 0.0
      %v1337 = vmax.f32 %v1175, 0.0
      %v1338 = vmax.f32 %v1180, 0.0
      %v1339 = vmax.f32 %v1183, 0.0
      %v1340 = vmax.f32 %v1188, 0.0
      %v1341 = vmax.f32 %v1191, 0.0
      %v1342 = vmax.f32 %v1196, 0.0
      %v1343 = vmax.f32 %v1199, 0.0
      %v1344 = vmax.f32 %v1204, 0.0
      %v1345 = vmax.f32 %v1207, 0.0
      %v1346 = vmax.f32 %v1212, 0.0
      %v1347 = vmax.f32 %v1215, 0.0
      %v1348 = vmax.f32 %v1220, 0.0
      %v1349 = vmax.f32 %v1223, 0.0
      %v1350 = vmax.f32 %v1228, 0.0
      %v1351 = vmax.f32 %v1231, 0.0
      %v1352 = vmax.f32 %v1236, 0.0
      %v1353 = vmax.f32 %v1239, 0.0
      %v1354 = vmax.f32 %v1244, 0.0
      %v1355 = vmax.f32 %v1247, 0.0
      %v1356 = vmax.f32 %v1252, 0.0
      %v1357 = vmax.f32 %v1255, 0.0
      %v1358 = vmax.f32 %v1260, 0.0
      %v1359 = vmax.f32 %v1263, 0.0
      %v1360 = vmax.f32 %v1268, 0.0
      %v1361 = vmax.f32 %v1271, 0.0
      %v1362 = vmax.f32 %v1276, 0.0
      %v1363 = vmax.f32 %v1279, 0.0
      %v1364 = vmax.f32 %v1284, 0.0
      %v1365 = vmax.f32 %v1287, 0.0
      %v1366 = vmax.f32 %v1292, 0.0
      %v1367 = vmax.f32 %v1295, 0.0
      %v1368 = vmax.f32 %v1300, 0.0
      %v1369 = vmax.f32 %v1303, 0.0
      %v1370 = vld [vmem:[%s419] sm:$0xff]
      %v1371 = vld [vmem:[%s419 + $0x8] sm:$0xff]
      %v1372 = vld [vmem:[%s419 + $0x10] sm:$0xff]
      %v1373 = vld [vmem:[%s419 + $0x18] sm:$0xff]
      %v1374 = vld [vmem:[%s419 + $0x20] sm:$0xff]
      %v1375 = vld [vmem:[%s419 + $0x28] sm:$0xff]
      %v1376 = vld [vmem:[%s419 + $0x30] sm:$0xff]
      %v1377 = vld [vmem:[%s419 + $0x38] sm:$0xff]
      %v1378 = vld [vmem:[%s5] sm:$0xff]
      %v1379 = vld [vmem:[%s5 + $0x8] sm:$0xff]
      %v1380 = vld [vmem:[%s5 + $0x10] sm:$0xff]
      %v1381 = vld [vmem:[%s5 + $0x18] sm:$0xff]
      %v1382 = vld [vmem:[%s5 + $0x20] sm:$0xff]
      %v1383 = vld [vmem:[%s5 + $0x28] sm:$0xff]
      %v1384 = vld [vmem:[%s5 + $0x30] sm:$0xff]
      %v1385 = vld [vmem:[%s5 + $0x38] sm:$0xff]
      %v1386 = vpack.c.bf16 %v1307, %v1306
      %v1387 = vpack.c.bf16 %v1309, %v1308
      %v1388 = vpack.c.bf16 %v1311, %v1310
      %v1389 = vpack.c.bf16 %v1313, %v1312
      %v1390 = vpack.c.bf16 %v1315, %v1314
      %v1391 = vpack.c.bf16 %v1317, %v1316
      %v1392 = vpack.c.bf16 %v1319, %v1318
      %v1393 = vpack.c.bf16 %v1321, %v1320
      %v1394 = vpack.c.bf16 %v1323, %v1322
      %v1395 = vpack.c.bf16 %v1325, %v1324
      %v1396 = vpack.c.bf16 %v1327, %v1326
      %v1397 = vpack.c.bf16 %v1329, %v1328
      %v1398 = vpack.c.bf16 %v1331, %v1330
      %v1399 = vpack.c.bf16 %v1333, %v1332
      %v1400 = vpack.c.bf16 %v1335, %v1334
      %v1401 = vpack.c.bf16 %v1337, %v1336
      %v1402 = vpack.c.bf16 %v1339, %v1338
      %v1403 = vpack.c.bf16 %v1341, %v1340
      %v1404 = vpack.c.bf16 %v1343, %v1342
      %v1405 = vpack.c.bf16 %v1345, %v1344
      %v1406 = vpack.c.bf16 %v1347, %v1346
      %v1407 = vpack.c.bf16 %v1349, %v1348
      %v1408 = vpack.c.bf16 %v1351, %v1350
      %v1409 = vpack.c.bf16 %v1353, %v1352
      %v1410 = vpack.c.bf16 %v1355, %v1354
      %v1411 = vpack.c.bf16 %v1357, %v1356
      %v1412 = vpack.c.bf16 %v1359, %v1358
      %v1413 = vpack.c.bf16 %v1361, %v1360
      %v1414 = vpack.c.bf16 %v1363, %v1362
      %v1415 = vpack.c.bf16 %v1365, %v1364
      %v1416 = vpack.c.bf16 %v1367, %v1366
      %v1417 = vpack.c.bf16 %v1369, %v1368
      %v1418 = vpack.c.bf16 %v1379, %v1378
      %v1419 = vpack.c.bf16 %v1381, %v1380
      %v1420 = vpack.c.bf16 %v1383, %v1382
      %v1421 = vpack.c.bf16 %v1385, %v1384
      %v1422 = vld [vmem:[%s6] sm:$0x1]
      %v1424 = vlaneseq
      %v1425 = vshrl.u32 %v1424, 7
      %v1426 = vsub.s32 0, %v1425
      %v1427 = vrot.slane %v1422, %v1426
      %vm1429 = vcmask 523264
      %v1431 = vsel %vm1429, %v1386, 0
      %v1434 = vsel %vm1429, %v1387, 0
      %v1437 = vsel %vm1429, %v1388, 0
      %v1440 = vsel %vm1429, %v1389, 0
      %v1443 = vsel %vm1429, %v1390, 0
      %v1446 = vsel %vm1429, %v1391, 0
      %v1449 = vsel %vm1429, %v1392, 0
      %v1452 = vsel %vm1429, %v1393, 0
      %v1455 = vsel %vm1429, %v1394, 0
      %v1458 = vsel %vm1429, %v1395, 0
      %v1461 = vsel %vm1429, %v1396, 0
      %v1464 = vsel %vm1429, %v1397, 0
      %v1467 = vsel %vm1429, %v1398, 0
      %v1470 = vsel %vm1429, %v1399, 0
      %v1473 = vsel %vm1429, %v1400, 0
      %v1476 = vsel %vm1429, %v1401, 0
      %v1479 = vsel %vm1429, %v1402, 0
      %v1482 = vsel %vm1429, %v1403, 0
      %v1485 = vsel %vm1429, %v1404, 0
      %v1488 = vsel %vm1429, %v1405, 0
      %v1491 = vsel %vm1429, %v1406, 0
      %v1494 = vsel %vm1429, %v1407, 0
      %v1497 = vsel %vm1429, %v1408, 0
      %v1500 = vsel %vm1429, %v1409, 0
      %v1503 = vsel %vm1429, %v1410, 0
      %v1506 = vsel %vm1429, %v1411, 0
      %v1509 = vsel %vm1429, %v1412, 0
      %v1512 = vsel %vm1429, %v1413, 0
      %v1515 = vsel %vm1429, %v1414, 0
      %v1518 = vsel %vm1429, %v1415, 0
      %v1521 = vsel %vm1429, %v1416, 0
      %v1524 = vsel %vm1429, %v1417, 0
      %1526 = vmatprep.subr.bf16.mxu0 0
      %1527 = vmatpush1.bf16.msra.mxu0 %v1418
      %1528 = vmatprep.subr.bf16.mxu0 0
      %1529 = vmatpush1.bf16.msra.mxu0 %v1419
      %1530 = vmatprep.subr.bf16.mxu0 0
      %1531 = vmatpush1.bf16.msra.mxu0 %v1420
      %1532 = vmatprep.subr.bf16.mxu0 0
      %1533 = vmatpush1.bf16.msra.mxu0 %v1421
      %1534 = vmatprep.subr.bf16.mxu0 0
      %1535 = vmatpush1.bf16.msra.mxu0 0
      %1536 = vmatprep.subr.bf16.mxu0 0
      %1537 = vmatpush1.bf16.msra.mxu0 0
      %1538 = vmatprep.subr.bf16.mxu0 0
      %1539 = vmatpush1.bf16.msra.mxu0 0
      %1540 = vmatprep.subr.bf16.mxu0 0
      %1541 = vmatpush1.bf16.msra.mxu0 0
      %1542 = vmatprep.subr.bf16.mxu0 0
      %1543 = vmatpush1.bf16.msra.mxu0 0
      %1544 = vmatprep.subr.bf16.mxu0 0
      %1545 = vmatpush1.bf16.msra.mxu0 0
      %1546 = vmatprep.subr.bf16.mxu0 0
      %1547 = vmatpush1.bf16.msra.mxu0 0
      %1548 = vmatprep.subr.bf16.mxu0 0
      %1549 = vmatpush1.bf16.msra.mxu0 0
      %1550 = vmatprep.subr.bf16.mxu0 0
      %1551 = vmatpush1.bf16.msra.mxu0 0
      %1552 = vmatprep.subr.bf16.mxu0 0
      %1553 = vmatpush1.bf16.msra.mxu0 0
      %1554 = vmatprep.subr.bf16.mxu0 0
      %1555 = vmatpush1.bf16.msra.mxu0 0
      %1556 = vmatprep.subr.bf16.mxu0 0
      %1557 = vmatpush1.bf16.msra.mxu0 0
      %1558 = vmatprep.mubr.bf16.mxu0 0
      %1559 = vmatmul.mubr.bf16.gmra.mrb[0].mxu0 %v1431
      %v1560 = vpop.f32.mrb[0].mxu0
      %v1561 = vadd.f32 %v1427, %v1560
      %v1562 = vpop.f32.mrb[0].mxu0
      %v1563 = vpop.f32.mrb[0].mxu0
      %v1564 = vadd.f32 %v1427, %v1563
      %v1565 = vpop.f32.mrb[0].mxu0
      %1566 = vmatprep.mubr.bf16.mxu0 0
      %1567 = vmatmul.mubr.bf16.gmra.mrb[0].mxu0 %v1434
      %v1568 = vpop.f32.mrb[0].mxu0
      %v1569 = vadd.f32 %v1427, %v1568
      %v1570 = vpop.f32.mrb[0].mxu0
      %v1571 = vpop.f32.mrb[0].mxu0
      %v1572 = vadd.f32 %v1427, %v1571
      %v1573 = vpop.f32.mrb[0].mxu0
      %1574 = vmatprep.mubr.bf16.mxu0 0
      %1575 = vmatmul.mubr.bf16.gmra.mrb[0].mxu0 %v1437
      %v1576 = vpop.f32.mrb[0].mxu0
      %v1577 = vadd.f32 %v1427, %v1576
      %v1578 = vpop.f32.mrb[0].mxu0
      %v1579 = vpop.f32.mrb[0].mxu0
      %v1580 = vadd.f32 %v1427, %v1579
      %v1581 = vpop.f32.mrb[0].mxu0
      %1582 = vmatprep.mubr.bf16.mxu0 0
      %1583 = vmatmul.mubr.bf16.gmra.mrb[0].mxu0 %v1440
      %v1584 = vpop.f32.mrb[0].mxu0
      %v1585 = vadd.f32 %v1427, %v1584
      %v1586 = vpop.f32.mrb[0].mxu0
      %v1587 = vpop.f32.mrb[0].mxu0
      %v1588 = vadd.f32 %v1427, %v1587
      %v1589 = vpop.f32.mrb[0].mxu0
      %1590 = vmatprep.mubr.bf16.mxu0 0
      %1591 = vmatmul.mubr.bf16.gmra.mrb[0].mxu0 %v1443
      %v1592 = vpop.f32.mrb[0].mxu0
      %v1593 = vadd.f32 %v1427, %v1592
      %v1594 = vpop.f32.mrb[0].mxu0
      %v1595 = vpop.f32.mrb[0].mxu0
      %v1596 = vadd.f32 %v1427, %v1595
      %v1597 = vpop.f32.mrb[0].mxu0
      %1598 = vmatprep.mubr.bf16.mxu0 0
      %1599 = vmatmul.mubr.bf16.gmra.mrb[0].mxu0 %v1446
      %v1600 = vpop.f32.mrb[0].mxu0
      %v1601 = vadd.f32 %v1427, %v1600
      %v1602 = vpop.f32.mrb[0].mxu0
      %v1603 = vpop.f32.mrb[0].mxu0
      %v1604 = vadd.f32 %v1427, %v1603
      %v1605 = vpop.f32.mrb[0].mxu0
      %1606 = vmatprep.mubr.bf16.mxu0 0
      %1607 = vmatmul.mubr.bf16.gmra.mrb[0].mxu0 %v1449
      %v1608 = vpop.f32.mrb[0].mxu0
      %v1609 = vadd.f32 %v1427, %v1608
      %v1610 = vpop.f32.mrb[0].mxu0
      %v1611 = vpop.f32.mrb[0].mxu0
      %v1612 = vadd.f32 %v1427, %v1611
      %v1613 = vpop.f32.mrb[0].mxu0
      %1614 = vmatprep.mubr.bf16.mxu0 0
      %1615 = vmatmul.mubr.bf16.gmra.mrb[0].mxu0 %v1452
      %v1616 = vpop.f32.mrb[0].mxu0
      %v1617 = vadd.f32 %v1427, %v1616
      %v1618 = vpop.f32.mrb[0].mxu0
      %v1619 = vpop.f32.mrb[0].mxu0
      %v1620 = vadd.f32 %v1427, %v1619
      %v1621 = vpop.f32.mrb[0].mxu0
      %1622 = vmatprep.mubr.bf16.mxu0 0
      %1623 = vmatmul.mubr.bf16.gmra.mrb[0].mxu0 %v1455
      %v1624 = vpop.f32.mrb[0].mxu0
      %v1625 = vadd.f32 %v1427, %v1624
      %v1626 = vpop.f32.mrb[0].mxu0
      %v1627 = vpop.f32.mrb[0].mxu0
      %v1628 = vadd.f32 %v1427, %v1627
      %v1629 = vpop.f32.mrb[0].mxu0
      %1630 = vmatprep.mubr.bf16.mxu0 0
      %1631 = vmatmul.mubr.bf16.gmra.mrb[0].mxu0 %v1458
      %v1632 = vpop.f32.mrb[0].mxu0
      %v1633 = vadd.f32 %v1427, %v1632
      %v1634 = vpop.f32.mrb[0].mxu0
      %v1635 = vpop.f32.mrb[0].mxu0
      %v1636 = vadd.f32 %v1427, %v1635
      %v1637 = vpop.f32.mrb[0].mxu0
      %1638 = vmatprep.mubr.bf16.mxu0 0
      %1639 = vmatmul.mubr.bf16.gmra.mrb[0].mxu0 %v1461
      %v1640 = vpop.f32.mrb[0].mxu0
      %v1641 = vadd.f32 %v1427, %v1640
      %v1642 = vpop.f32.mrb[0].mxu0
      %v1643 = vpop.f32.mrb[0].mxu0
      %v1644 = vadd.f32 %v1427, %v1643
      %v1645 = vpop.f32.mrb[0].mxu0
      %1646 = vmatprep.mubr.bf16.mxu0 0
      %1647 = vmatmul.mubr.bf16.gmra.mrb[0].mxu0 %v1464
      %v1648 = vpop.f32.mrb[0].mxu0
      %v1649 = vadd.f32 %v1427, %v1648
      %v1650 = vpop.f32.mrb[0].mxu0
      %v1651 = vpop.f32.mrb[0].mxu0
      %v1652 = vadd.f32 %v1427, %v1651
      %v1653 = vpop.f32.mrb[0].mxu0
      %1654 = vmatprep.mubr.bf16.mxu0 0
      %1655 = vmatmul.mubr.bf16.gmra.mrb[0].mxu0 %v1467
      %v1656 = vpop.f32.mrb[0].mxu0
      %v1657 = vadd.f32 %v1427, %v1656
      %v1658 = vpop.f32.mrb[0].mxu0
      %v1659 = vpop.f32.mrb[0].mxu0
      %v1660 = vadd.f32 %v1427, %v1659
      %v1661 = vpop.f32.mrb[0].mxu0
      %1662 = vmatprep.mubr.bf16.mxu0 0
      %1663 = vmatmul.mubr.bf16.gmra.mrb[0].mxu0 %v1470
      %v1664 = vpop.f32.mrb[0].mxu0
      %v1665 = vadd.f32 %v1427, %v1664
      %v1666 = vpop.f32.mrb[0].mxu0
      %v1667 = vpop.f32.mrb[0].mxu0
      %v1668 = vadd.f32 %v1427, %v1667
      %v1669 = vpop.f32.mrb[0].mxu0
      %1670 = vmatprep.mubr.bf16.mxu0 0
      %1671 = vmatmul.mubr.bf16.gmra.mrb[0].mxu0 %v1473
      %v1672 = vpop.f32.mrb[0].mxu0
      %v1673 = vadd.f32 %v1427, %v1672
      %v1674 = vpop.f32.mrb[0].mxu0
      %v1675 = vpop.f32.mrb[0].mxu0
      %v1676 = vadd.f32 %v1427, %v1675
      %v1677 = vpop.f32.mrb[0].mxu0
      %1678 = vmatprep.mubr.bf16.mxu0 0
      %1679 = vmatmul.mubr.bf16.gmra.mrb[0].mxu0 %v1476
      %v1680 = vpop.f32.mrb[0].mxu0
      %v1681 = vadd.f32 %v1427, %v1680
      %v1682 = vpop.f32.mrb[0].mxu0
      %v1683 = vpop.f32.mrb[0].mxu0
      %v1684 = vadd.f32 %v1427, %v1683
      %v1685 = vpop.f32.mrb[0].mxu0
      %1686 = vmatprep.mubr.bf16.mxu0 0
      %1687 = vmatmul.mubr.bf16.gmra.mrb[0].mxu0 %v1479
      %v1688 = vpop.f32.mrb[0].mxu0
      %v1689 = vadd.f32 %v1427, %v1688
      %v1690 = vpop.f32.mrb[0].mxu0
      %v1691 = vpop.f32.mrb[0].mxu0
      %v1692 = vadd.f32 %v1427, %v1691
      %v1693 = vpop.f32.mrb[0].mxu0
      %1694 = vmatprep.mubr.bf16.mxu0 0
      %1695 = vmatmul.mubr.bf16.gmra.mrb[0].mxu0 %v1482
      %v1696 = vpop.f32.mrb[0].mxu0
      %v1697 = vadd.f32 %v1427, %v1696
      %v1698 = vpop.f32.mrb[0].mxu0
      %v1699 = vpop.f32.mrb[0].mxu0
      %v1700 = vadd.f32 %v1427, %v1699
      %v1701 = vpop.f32.mrb[0].mxu0
      %1702 = vmatprep.mubr.bf16.mxu0 0
      %1703 = vmatmul.mubr.bf16.gmra.mrb[0].mxu0 %v1485
      %v1704 = vpop.f32.mrb[0].mxu0
      %v1705 = vadd.f32 %v1427, %v1704
      %v1706 = vpop.f32.mrb[0].mxu0
      %v1707 = vpop.f32.mrb[0].mxu0
      %v1708 = vadd.f32 %v1427, %v1707
      %v1709 = vpop.f32.mrb[0].mxu0
      %1710 = vmatprep.mubr.bf16.mxu0 0
      %1711 = vmatmul.mubr.bf16.gmra.mrb[0].mxu0 %v1488
      %v1712 = vpop.f32.mrb[0].mxu0
      %v1713 = vadd.f32 %v1427, %v1712
      %v1714 = vpop.f32.mrb[0].mxu0
      %v1715 = vpop.f32.mrb[0].mxu0
      %v1716 = vadd.f32 %v1427, %v1715
      %v1717 = vpop.f32.mrb[0].mxu0
      %1718 = vmatprep.mubr.bf16.mxu0 0
      %1719 = vmatmul.mubr.bf16.gmra.mrb[0].mxu0 %v1491
      %v1720 = vpop.f32.mrb[0].mxu0
      %v1721 = vadd.f32 %v1427, %v1720
      %v1722 = vpop.f32.mrb[0].mxu0
      %v1723 = vpop.f32.mrb[0].mxu0
      %v1724 = vadd.f32 %v1427, %v1723
      %v1725 = vpop.f32.mrb[0].mxu0
      %1726 = vmatprep.mubr.bf16.mxu0 0
      %1727 = vmatmul.mubr.bf16.gmra.mrb[0].mxu0 %v1494
      %v1728 = vpop.f32.mrb[0].mxu0
      %v1729 = vadd.f32 %v1427, %v1728
      %v1730 = vpop.f32.mrb[0].mxu0
      %v1731 = vpop.f32.mrb[0].mxu0
      %v1732 = vadd.f32 %v1427, %v1731
      %v1733 = vpop.f32.mrb[0].mxu0
      %1734 = vmatprep.mubr.bf16.mxu0 0
      %1735 = vmatmul.mubr.bf16.gmra.mrb[0].mxu0 %v1497
      %v1736 = vpop.f32.mrb[0].mxu0
      %v1737 = vadd.f32 %v1427, %v1736
      %v1738 = vpop.f32.mrb[0].mxu0
      %v1739 = vpop.f32.mrb[0].mxu0
      %v1740 = vadd.f32 %v1427, %v1739
      %v1741 = vpop.f32.mrb[0].mxu0
      %1742 = vmatprep.mubr.bf16.mxu0 0
      %1743 = vmatmul.mubr.bf16.gmra.mrb[0].mxu0 %v1500
      %v1744 = vpop.f32.mrb[0].mxu0
      %v1745 = vadd.f32 %v1427, %v1744
      %v1746 = vpop.f32.mrb[0].mxu0
      %v1747 = vpop.f32.mrb[0].mxu0
      %v1748 = vadd.f32 %v1427, %v1747
      %v1749 = vpop.f32.mrb[0].mxu0
      %1750 = vmatprep.mubr.bf16.mxu0 0
      %1751 = vmatmul.mubr.bf16.gmra.mrb[0].mxu0 %v1503
      %v1752 = vpop.f32.mrb[0].mxu0
      %v1753 = vadd.f32 %v1427, %v1752
      %v1754 = vpop.f32.mrb[0].mxu0
      %v1755 = vpop.f32.mrb[0].mxu0
      %v1756 = vadd.f32 %v1427, %v1755
      %v1757 = vpop.f32.mrb[0].mxu0
      %1758 = vmatprep.mubr.bf16.mxu0 0
      %1759 = vmatmul.mubr.bf16.gmra.mrb[0].mxu0 %v1506
      %v1760 = vpop.f32.mrb[0].mxu0
      %v1761 = vadd.f32 %v1427, %v1760
      %v1762 = vpop.f32.mrb[0].mxu0
      %v1763 = vpop.f32.mrb[0].mxu0
      %v1764 = vadd.f32 %v1427, %v1763
      %v1765 = vpop.f32.mrb[0].mxu0
      %1766 = vmatprep.mubr.bf16.mxu0 0
      %1767 = vmatmul.mubr.bf16.gmra.mrb[0].mxu0 %v1509
      %v1768 = vpop.f32.mrb[0].mxu0
      %v1769 = vadd.f32 %v1427, %v1768
      %v1770 = vpop.f32.mrb[0].mxu0
      %v1771 = vpop.f32.mrb[0].mxu0
      %v1772 = vadd.f32 %v1427, %v1771
      %v1773 = vpop.f32.mrb[0].mxu0
      %1774 = vmatprep.mubr.bf16.mxu0 0
      %1775 = vmatmul.mubr.bf16.gmra.mrb[0].mxu0 %v1512
      %v1776 = vpop.f32.mrb[0].mxu0
      %v1777 = vadd.f32 %v1427, %v1776
      %v1778 = vpop.f32.mrb[0].mxu0
      %v1779 = vpop.f32.mrb[0].mxu0
      %v1780 = vadd.f32 %v1427, %v1779
      %v1781 = vpop.f32.mrb[0].mxu0
      %1782 = vmatprep.mubr.bf16.mxu0 0
      %1783 = vmatmul.mubr.bf16.gmra.mrb[0].mxu0 %v1515
      %v1784 = vpop.f32.mrb[0].mxu0
      %v1785 = vadd.f32 %v1427, %v1784
      %v1786 = vpop.f32.mrb[0].mxu0
      %v1787 = vpop.f32.mrb[0].mxu0
      %v1788 = vadd.f32 %v1427, %v1787
      %v1789 = vpop.f32.mrb[0].mxu0
      %1790 = vmatprep.mubr.bf16.mxu0 0
      %1791 = vmatmul.mubr.bf16.gmra.mrb[0].mxu0 %v1518
      %v1792 = vpop.f32.mrb[0].mxu0
      %v1793 = vadd.f32 %v1427, %v1792
      %v1794 = vpop.f32.mrb[0].mxu0
      %v1795 = vpop.f32.mrb[0].mxu0
      %v1796 = vadd.f32 %v1427, %v1795
      %v1797 = vpop.f32.mrb[0].mxu0
      %1798 = vmatprep.mubr.bf16.mxu0 0
      %1799 = vmatmul.mubr.bf16.gmra.mrb[0].mxu0 %v1521
      %v1800 = vpop.f32.mrb[0].mxu0
      %v1801 = vadd.f32 %v1427, %v1800
      %v1802 = vpop.f32.mrb[0].mxu0
      %v1803 = vpop.f32.mrb[0].mxu0
      %v1804 = vadd.f32 %v1427, %v1803
      %v1805 = vpop.f32.mrb[0].mxu0
      %1806 = vmatprep.mubr.bf16.mxu0 0
      %1807 = vmatmul.mubr.bf16.gmra.mrb[0].mxu0 %v1524
      %v1808 = vpop.f32.mrb[0].mxu0
      %v1809 = vadd.f32 %v1427, %v1808
      %v1810 = vpop.f32.mrb[0].mxu0
      %v1811 = vpop.f32.mrb[0].mxu0
      %v1812 = vadd.f32 %v1427, %v1811
      %v1813 = vpop.f32.mrb[0].mxu0
      %1814 = vdwg.mxu0
      %v1816 = vsel %vm1429, %v746, 0
      %v1819 = vsel %vm1429, %v747, 0
      %v1822 = vsel %vm1429, %v748, 0
      %v1825 = vsel %vm1429, %v749, 0
      %v1828 = vsel %vm1429, %v750, 0
      %v1831 = vsel %vm1429, %v751, 0
      %v1834 = vsel %vm1429, %v752, 0
      %v1837 = vsel %vm1429, %v753, 0
      %v1840 = vsel %vm1429, %v754, 0
      %v1843 = vsel %vm1429, %v755, 0
      %v1846 = vsel %vm1429, %v756, 0
      %v1849 = vsel %vm1429, %v757, 0
      %v1852 = vsel %vm1429, %v758, 0
      %v1855 = vsel %vm1429, %v759, 0
      %v1858 = vsel %vm1429, %v760, 0
      %v1861 = vsel %vm1429, %v761, 0
      %v1864 = vsel %vm1429, %v762, 0
      %v1867 = vsel %vm1429, %v763, 0
      %v1870 = vsel %vm1429, %v764, 0
      %v1873 = vsel %vm1429, %v765, 0
      %v1876 = vsel %vm1429, %v766, 0
      %v1879 = vsel %vm1429, %v767, 0
      %v1882 = vsel %vm1429, %v768, 0
      %v1885 = vsel %vm1429, %v769, 0
      %v1888 = vsel %vm1429, %v770, 0
      %v1891 = vsel %vm1429, %v771, 0
      %v1894 = vsel %vm1429, %v772, 0
      %v1897 = vsel %vm1429, %v773, 0
      %v1900 = vsel %vm1429, %v774, 0
      %v1903 = vsel %vm1429, %v775, 0
      %v1906 = vsel %vm1429, %v776, 0
      %v1909 = vsel %vm1429, %v777, 0
      %v1912 = vsel %vm1429, %v778, 0
      %v1915 = vsel %vm1429, %v779, 0
      %v1918 = vsel %vm1429, %v780, 0
      %v1921 = vsel %vm1429, %v781, 0
      %v1924 = vsel %vm1429, %v782, 0
      %v1927 = vsel %vm1429, %v783, 0
      %v1930 = vsel %vm1429, %v784, 0
      %v1933 = vsel %vm1429, %v785, 0
      %v1936 = vsel %vm1429, %v786, 0
      %v1939 = vsel %vm1429, %v787, 0
      %v1942 = vsel %vm1429, %v788, 0
      %v1945 = vsel %vm1429, %v789, 0
      %v1948 = vsel %vm1429, %v790, 0
      %v1951 = vsel %vm1429, %v791, 0
      %v1954 = vsel %vm1429, %v792, 0
      %v1957 = vsel %vm1429, %v793, 0
      %v1960 = vsel %vm1429, %v794, 0
      %v1963 = vsel %vm1429, %v795, 0
      %v1966 = vsel %vm1429, %v796, 0
      %v1969 = vsel %vm1429, %v797, 0
      %v1972 = vsel %vm1429, %v798, 0
      %v1975 = vsel %vm1429, %v799, 0
      %v1978 = vsel %vm1429, %v800, 0
      %v1981 = vsel %vm1429, %v801, 0
      %v1984 = vsel %vm1429, %v802, 0
      %v1987 = vsel %vm1429, %v803, 0
      %v1990 = vsel %vm1429, %v804, 0
      %v1993 = vsel %vm1429, %v805, 0
      %v1996 = vsel %vm1429, %v806, 0
      %v1999 = vsel %vm1429, %v807, 0
      %v2002 = vsel %vm1429, %v808, 0
      %v2005 = vsel %vm1429, %v809, 0
      %2007 = vmatprep.subr.mxu0 0.0
      %2008 = vmatpush1.msra.mxu0 %v1370
      %2009 = vmatprep.subr.mxu0 0.0
      %2010 = vmatpush1.msra.mxu0 %v1371
      %2011 = vmatprep.subr.mxu0 0.0
      %2012 = vmatpush1.msra.mxu0 %v1372
      %2013 = vmatprep.subr.mxu0 0.0
      %2014 = vmatpush1.msra.mxu0 %v1373
      %2015 = vmatprep.subr.mxu0 0.0
      %2016 = vmatpush1.msra.mxu0 %v1374
      %2017 = vmatprep.subr.mxu0 0.0
      %2018 = vmatpush1.msra.mxu0 %v1375
      %2019 = vmatprep.subr.mxu0 0.0
      %2020 = vmatpush1.msra.mxu0 %v1376
      %2021 = vmatprep.subr.mxu0 0.0
      %2022 = vmatpush1.msra.mxu0 %v1377
      %2023 = vmatprep.subr.mxu0 0.0
      %2024 = vmatpush1.msra.mxu0 0.0
      %2025 = vmatprep.subr.mxu0 0.0
      %2026 = vmatpush1.msra.mxu0 0.0
      %2027 = vmatprep.subr.mxu0 0.0
      %2028 = vmatpush1.msra.mxu0 0.0
      %2029 = vmatprep.subr.mxu0 0.0
      %2030 = vmatpush1.msra.mxu0 0.0
      %2031 = vmatprep.subr.mxu0 0.0
      %2032 = vmatpush1.msra.mxu0 0.0
      %2033 = vmatprep.subr.mxu0 0.0
      %2034 = vmatpush1.msra.mxu0 0.0
      %2035 = vmatprep.subr.mxu0 0.0
      %2036 = vmatpush1.msra.mxu0 0.0
      %2037 = vmatprep.subr.mxu0 0.0
      %2038 = vmatpush1.msra.mxu0 0.0
      %2039 = vmatprep.subr.mxu0 0.0
      %2040 = vmatpush1.msra.mxu0 0.0
      %2041 = vmatprep.subr.mxu0 0.0
      %2042 = vmatpush1.msra.mxu0 0.0
      %2043 = vmatprep.subr.mxu0 0.0
      %2044 = vmatpush1.msra.mxu0 0.0
      %2045 = vmatprep.subr.mxu0 0.0
      %2046 = vmatpush1.msra.mxu0 0.0
      %2047 = vmatprep.subr.mxu0 0.0
      %2048 = vmatpush1.msra.mxu0 0.0
      %2049 = vmatprep.subr.mxu0 0.0
      %2050 = vmatpush1.msra.mxu0 0.0
      %2051 = vmatprep.subr.mxu0 0.0
      %2052 = vmatpush1.msra.mxu0 0.0
      %2053 = vmatprep.subr.mxu0 0.0
      %2054 = vmatpush1.msra.mxu0 0.0
      %2055 = vmatprep.subr.mxu0 0.0
      %2056 = vmatpush1.msra.mxu0 0.0
      %2057 = vmatprep.subr.mxu0 0.0
      %2058 = vmatpush1.msra.mxu0 0.0
      %2059 = vmatprep.subr.mxu0 0.0
      %2060 = vmatpush1.msra.mxu0 0.0
      %2061 = vmatprep.subr.mxu0 0.0
      %2062 = vmatpush1.msra.mxu0 0.0
      %2063 = vmatprep.subr.mxu0 0.0
      %2064 = vmatpush1.msra.mxu0 0.0
      %2065 = vmatprep.subr.mxu0 0.0
      %2066 = vmatpush1.msra.mxu0 0.0
      %2067 = vmatprep.subr.mxu0 0.0
      %2068 = vmatpush1.msra.mxu0 0.0
      %2069 = vmatprep.subr.mxu0 0.0
      %2070 = vmatpush1.msra.mxu0 0.0
      %2071 = vmatprep.mubr.f32.mxu0 0.0
      %2072 = vmatmul.mubr.f32.gmra.mrb[0].mxu0 %v1816
      %v2073 = vpop.f32.mrb[0].mxu0
      %v2074 = vadd.f32 0.0, %v2073
      %v2075 = vpop.f32.mrb[0].mxu0
      %2076 = vmatprep.mubr.f32.mxu0 0.0
      %2077 = vmatmul.mubr.f32.gmra.mrb[0].mxu0 %v1819
      %v2078 = vpop.f32.mrb[0].mxu0
      %v2079 = vadd.f32 0.0, %v2078
      %v2080 = vpop.f32.mrb[0].mxu0
      %2081 = vmatprep.mubr.f32.mxu0 0.0
      %2082 = vmatmul.mubr.f32.gmra.mrb[0].mxu0 %v1822
      %v2083 = vpop.f32.mrb[0].mxu0
      %v2084 = vadd.f32 0.0, %v2083
      %v2085 = vpop.f32.mrb[0].mxu0
      %2086 = vmatprep.mubr.f32.mxu0 0.0
      %2087 = vmatmul.mubr.f32.gmra.mrb[0].mxu0 %v1825
      %v2088 = vpop.f32.mrb[0].mxu0
      %v2089 = vadd.f32 0.0, %v2088
      %v2090 = vpop.f32.mrb[0].mxu0
      %2091 = vmatprep.mubr.f32.mxu0 0.0
      %2092 = vmatmul.mubr.f32.gmra.mrb[0].mxu0 %v1828
      %v2093 = vpop.f32.mrb[0].mxu0
      %v2094 = vadd.f32 0.0, %v2093
      %v2095 = vpop.f32.mrb[0].mxu0
      %2096 = vmatprep.mubr.f32.mxu0 0.0
      %2097 = vmatmul.mubr.f32.gmra.mrb[0].mxu0 %v1831
      %v2098 = vpop.f32.mrb[0].mxu0
      %v2099 = vadd.f32 0.0, %v2098
      %v2100 = vpop.f32.mrb[0].mxu0
      %2101 = vmatprep.mubr.f32.mxu0 0.0
      %2102 = vmatmul.mubr.f32.gmra.mrb[0].mxu0 %v1834
      %v2103 = vpop.f32.mrb[0].mxu0
      %v2104 = vadd.f32 0.0, %v2103
      %v2105 = vpop.f32.mrb[0].mxu0
      %2106 = vmatprep.mubr.f32.mxu0 0.0
      %2107 = vmatmul.mubr.f32.gmra.mrb[0].mxu0 %v1837
      %v2108 = vpop.f32.mrb[0].mxu0
      %v2109 = vadd.f32 0.0, %v2108
      %v2110 = vpop.f32.mrb[0].mxu0
      %2111 = vmatprep.mubr.f32.mxu0 0.0
      %2112 = vmatmul.mubr.f32.gmra.mrb[0].mxu0 %v1840
      %v2113 = vpop.f32.mrb[0].mxu0
      %v2114 = vadd.f32 0.0, %v2113
      %v2115 = vpop.f32.mrb[0].mxu0
      %2116 = vmatprep.mubr.f32.mxu0 0.0
      %2117 = vmatmul.mubr.f32.gmra.mrb[0].mxu0 %v1843
      %v2118 = vpop.f32.mrb[0].mxu0
      %v2119 = vadd.f32 0.0, %v2118
      %v2120 = vpop.f32.mrb[0].mxu0
      %2121 = vmatprep.mubr.f32.mxu0 0.0
      %2122 = vmatmul.mubr.f32.gmra.mrb[0].mxu0 %v1846
      %v2123 = vpop.f32.mrb[0].mxu0
      %v2124 = vadd.f32 0.0, %v2123
      %v2125 = vpop.f32.mrb[0].mxu0
      %2126 = vmatprep.mubr.f32.mxu0 0.0
      %2127 = vmatmul.mubr.f32.gmra.mrb[0].mxu0 %v1849
      %v2128 = vpop.f32.mrb[0].mxu0
      %v2129 = vadd.f32 0.0, %v2128
      %v2130 = vpop.f32.mrb[0].mxu0
      %2131 = vmatprep.mubr.f32.mxu0 0.0
      %2132 = vmatmul.mubr.f32.gmra.mrb[0].mxu0 %v1852
      %v2133 = vpop.f32.mrb[0].mxu0
      %v2134 = vadd.f32 0.0, %v2133
      %v2135 = vpop.f32.mrb[0].mxu0
      %2136 = vmatprep.mubr.f32.mxu0 0.0
      %2137 = vmatmul.mubr.f32.gmra.mrb[0].mxu0 %v1855
      %v2138 = vpop.f32.mrb[0].mxu0
      %v2139 = vadd.f32 0.0, %v2138
      %v2140 = vpop.f32.mrb[0].mxu0
      %2141 = vmatprep.mubr.f32.mxu0 0.0
      %2142 = vmatmul.mubr.f32.gmra.mrb[0].mxu0 %v1858
      %v2143 = vpop.f32.mrb[0].mxu0
      %v2144 = vadd.f32 0.0, %v2143
      %v2145 = vpop.f32.mrb[0].mxu0
      %2146 = vmatprep.mubr.f32.mxu0 0.0
      %2147 = vmatmul.mubr.f32.gmra.mrb[0].mxu0 %v1861
      %v2148 = vpop.f32.mrb[0].mxu0
      %v2149 = vadd.f32 0.0, %v2148
      %v2150 = vpop.f32.mrb[0].mxu0
      %2151 = vmatprep.mubr.f32.mxu0 0.0
      %2152 = vmatmul.mubr.f32.gmra.mrb[0].mxu0 %v1864
      %v2153 = vpop.f32.mrb[0].mxu0
      %v2154 = vadd.f32 0.0, %v2153
      %v2155 = vpop.f32.mrb[0].mxu0
      %2156 = vmatprep.mubr.f32.mxu0 0.0
      %2157 = vmatmul.mubr.f32.gmra.mrb[0].mxu0 %v1867
      %v2158 = vpop.f32.mrb[0].mxu0
      %v2159 = vadd.f32 0.0, %v2158
      %v2160 = vpop.f32.mrb[0].mxu0
      %2161 = vmatprep.mubr.f32.mxu0 0.0
      %2162 = vmatmul.mubr.f32.gmra.mrb[0].mxu0 %v1870
      %v2163 = vpop.f32.mrb[0].mxu0
      %v2164 = vadd.f32 0.0, %v2163
      %v2165 = vpop.f32.mrb[0].mxu0
      %2166 = vmatprep.mubr.f32.mxu0 0.0
      %2167 = vmatmul.mubr.f32.gmra.mrb[0].mxu0 %v1873
      %v2168 = vpop.f32.mrb[0].mxu0
      %v2169 = vadd.f32 0.0, %v2168
      %v2170 = vpop.f32.mrb[0].mxu0
      %2171 = vmatprep.mubr.f32.mxu0 0.0
      %2172 = vmatmul.mubr.f32.gmra.mrb[0].mxu0 %v1876
      %v2173 = vpop.f32.mrb[0].mxu0
      %v2174 = vadd.f32 0.0, %v2173
      %v2175 = vpop.f32.mrb[0].mxu0
      %2176 = vmatprep.mubr.f32.mxu0 0.0
      %2177 = vmatmul.mubr.f32.gmra.mrb[0].mxu0 %v1879
      %v2178 = vpop.f32.mrb[0].mxu0
      %v2179 = vadd.f32 0.0, %v2178
      %v2180 = vpop.f32.mrb[0].mxu0
      %2181 = vmatprep.mubr.f32.mxu0 0.0
      %2182 = vmatmul.mubr.f32.gmra.mrb[0].mxu0 %v1882
      %v2183 = vpop.f32.mrb[0].mxu0
      %v2184 = vadd.f32 0.0, %v2183
      %v2185 = vpop.f32.mrb[0].mxu0
      %2186 = vmatprep.mubr.f32.mxu0 0.0
      %2187 = vmatmul.mubr.f32.gmra.mrb[0].mxu0 %v1885
      %v2188 = vpop.f32.mrb[0].mxu0
      %v2189 = vadd.f32 0.0, %v2188
      %v2190 = vpop.f32.mrb[0].mxu0
      %2191 = vmatprep.mubr.f32.mxu0 0.0
      %2192 = vmatmul.mubr.f32.gmra.mrb[0].mxu0 %v1888
      %v2193 = vpop.f32.mrb[0].mxu0
      %v2194 = vadd.f32 0.0, %v2193
      %v2195 = vpop.f32.mrb[0].mxu0
      %2196 = vmatprep.mubr.f32.mxu0 0.0
      %2197 = vmatmul.mubr.f32.gmra.mrb[0].mxu0 %v1891
      %v2198 = vpop.f32.mrb[0].mxu0
      %v2199 = vadd.f32 0.0, %v2198
      %v2200 = vpop.f32.mrb[0].mxu0
      %2201 = vmatprep.mubr.f32.mxu0 0.0
      %2202 = vmatmul.mubr.f32.gmra.mrb[0].mxu0 %v1894
      %v2203 = vpop.f32.mrb[0].mxu0
      %v2204 = vadd.f32 0.0, %v2203
      %v2205 = vpop.f32.mrb[0].mxu0
      %2206 = vmatprep.mubr.f32.mxu0 0.0
      %2207 = vmatmul.mubr.f32.gmra.mrb[0].mxu0 %v1897
      %v2208 = vpop.f32.mrb[0].mxu0
      %v2209 = vadd.f32 0.0, %v2208
      %v2210 = vpop.f32.mrb[0].mxu0
      %2211 = vmatprep.mubr.f32.mxu0 0.0
      %2212 = vmatmul.mubr.f32.gmra.mrb[0].mxu0 %v1900
      %v2213 = vpop.f32.mrb[0].mxu0
      %v2214 = vadd.f32 0.0, %v2213
      %v2215 = vpop.f32.mrb[0].mxu0
      %2216 = vmatprep.mubr.f32.mxu0 0.0
      %2217 = vmatmul.mubr.f32.gmra.mrb[0].mxu0 %v1903
      %v2218 = vpop.f32.mrb[0].mxu0
      %v2219 = vadd.f32 0.0, %v2218
      %v2220 = vpop.f32.mrb[0].mxu0
      %2221 = vmatprep.mubr.f32.mxu0 0.0
      %2222 = vmatmul.mubr.f32.gmra.mrb[0].mxu0 %v1906
      %v2223 = vpop.f32.mrb[0].mxu0
      %v2224 = vadd.f32 0.0, %v2223
      %v2225 = vpop.f32.mrb[0].mxu0
      %2226 = vmatprep.mubr.f32.mxu0 0.0
      %2227 = vmatmul.mubr.f32.gmra.mrb[0].mxu0 %v1909
      %v2228 = vpop.f32.mrb[0].mxu0
      %v2229 = vadd.f32 0.0, %v2228
      %v2230 = vpop.f32.mrb[0].mxu0
      %2231 = vmatprep.mubr.f32.mxu0 0.0
      %2232 = vmatmul.mubr.f32.gmra.mrb[0].mxu0 %v1912
      %v2233 = vpop.f32.mrb[0].mxu0
      %v2234 = vadd.f32 0.0, %v2233
      %v2235 = vpop.f32.mrb[0].mxu0
      %2236 = vmatprep.mubr.f32.mxu0 0.0
      %2237 = vmatmul.mubr.f32.gmra.mrb[0].mxu0 %v1915
      %v2238 = vpop.f32.mrb[0].mxu0
      %v2239 = vadd.f32 0.0, %v2238
      %v2240 = vpop.f32.mrb[0].mxu0
      %2241 = vmatprep.mubr.f32.mxu0 0.0
      %2242 = vmatmul.mubr.f32.gmra.mrb[0].mxu0 %v1918
      %v2243 = vpop.f32.mrb[0].mxu0
      %v2244 = vadd.f32 0.0, %v2243
      %v2245 = vpop.f32.mrb[0].mxu0
      %2246 = vmatprep.mubr.f32.mxu0 0.0
      %2247 = vmatmul.mubr.f32.gmra.mrb[0].mxu0 %v1921
      %v2248 = vpop.f32.mrb[0].mxu0
      %v2249 = vadd.f32 0.0, %v2248
      %v2250 = vpop.f32.mrb[0].mxu0
      %2251 = vmatprep.mubr.f32.mxu0 0.0
      %2252 = vmatmul.mubr.f32.gmra.mrb[0].mxu0 %v1924
      %v2253 = vpop.f32.mrb[0].mxu0
      %v2254 = vadd.f32 0.0, %v2253
      %v2255 = vpop.f32.mrb[0].mxu0
      %2256 = vmatprep.mubr.f32.mxu0 0.0
      %2257 = vmatmul.mubr.f32.gmra.mrb[0].mxu0 %v1927
      %v2258 = vpop.f32.mrb[0].mxu0
      %v2259 = vadd.f32 0.0, %v2258
      %v2260 = vpop.f32.mrb[0].mxu0
      %2261 = vmatprep.mubr.f32.mxu0 0.0
      %2262 = vmatmul.mubr.f32.gmra.mrb[0].mxu0 %v1930
      %v2263 = vpop.f32.mrb[0].mxu0
      %v2264 = vadd.f32 0.0, %v2263
      %v2265 = vpop.f32.mrb[0].mxu0
      %2266 = vmatprep.mubr.f32.mxu0 0.0
      %2267 = vmatmul.mubr.f32.gmra.mrb[0].mxu0 %v1933
      %v2268 = vpop.f32.mrb[0].mxu0
      %v2269 = vadd.f32 0.0, %v2268
      %v2270 = vpop.f32.mrb[0].mxu0
      %2271 = vmatprep.mubr.f32.mxu0 0.0
      %2272 = vmatmul.mubr.f32.gmra.mrb[0].mxu0 %v1936
      %v2273 = vpop.f32.mrb[0].mxu0
      %v2274 = vadd.f32 0.0, %v2273
      %v2275 = vpop.f32.mrb[0].mxu0
      %2276 = vmatprep.mubr.f32.mxu0 0.0
      %2277 = vmatmul.mubr.f32.gmra.mrb[0].mxu0 %v1939
      %v2278 = vpop.f32.mrb[0].mxu0
      %v2279 = vadd.f32 0.0, %v2278
      %v2280 = vpop.f32.mrb[0].mxu0
      %2281 = vmatprep.mubr.f32.mxu0 0.0
      %2282 = vmatmul.mubr.f32.gmra.mrb[0].mxu0 %v1942
      %v2283 = vpop.f32.mrb[0].mxu0
      %v2284 = vadd.f32 0.0, %v2283
      %v2285 = vpop.f32.mrb[0].mxu0
      %2286 = vmatprep.mubr.f32.mxu0 0.0
      %2287 = vmatmul.mubr.f32.gmra.mrb[0].mxu0 %v1945
      %v2288 = vpop.f32.mrb[0].mxu0
      %v2289 = vadd.f32 0.0, %v2288
      %v2290 = vpop.f32.mrb[0].mxu0
      %2291 = vmatprep.mubr.f32.mxu0 0.0
      %2292 = vmatmul.mubr.f32.gmra.mrb[0].mxu0 %v1948
      %v2293 = vpop.f32.mrb[0].mxu0
      %v2294 = vadd.f32 0.0, %v2293
      %v2295 = vpop.f32.mrb[0].mxu0
      %2296 = vmatprep.mubr.f32.mxu0 0.0
      %2297 = vmatmul.mubr.f32.gmra.mrb[0].mxu0 %v1951
      %v2298 = vpop.f32.mrb[0].mxu0
      %v2299 = vadd.f32 0.0, %v2298
      %v2300 = vpop.f32.mrb[0].mxu0
      %2301 = vmatprep.mubr.f32.mxu0 0.0
      %2302 = vmatmul.mubr.f32.gmra.mrb[0].mxu0 %v1954
      %v2303 = vpop.f32.mrb[0].mxu0
      %v2304 = vadd.f32 0.0, %v2303
      %v2305 = vpop.f32.mrb[0].mxu0
      %2306 = vmatprep.mubr.f32.mxu0 0.0
      %2307 = vmatmul.mubr.f32.gmra.mrb[0].mxu0 %v1957
      %v2308 = vpop.f32.mrb[0].mxu0
      %v2309 = vadd.f32 0.0, %v2308
      %v2310 = vpop.f32.mrb[0].mxu0
      %2311 = vmatprep.mubr.f32.mxu0 0.0
      %2312 = vmatmul.mubr.f32.gmra.mrb[0].mxu0 %v1960
      %v2313 = vpop.f32.mrb[0].mxu0
      %v2314 = vadd.f32 0.0, %v2313
      %v2315 = vpop.f32.mrb[0].mxu0
      %2316 = vmatprep.mubr.f32.mxu0 0.0
      %2317 = vmatmul.mubr.f32.gmra.mrb[0].mxu0 %v1963
      %v2318 = vpop.f32.mrb[0].mxu0
      %v2319 = vadd.f32 0.0, %v2318
      %v2320 = vpop.f32.mrb[0].mxu0
      %2321 = vmatprep.mubr.f32.mxu0 0.0
      %2322 = vmatmul.mubr.f32.gmra.mrb[0].mxu0 %v1966
      %v2323 = vpop.f32.mrb[0].mxu0
      %v2324 = vadd.f32 0.0, %v2323
      %v2325 = vpop.f32.mrb[0].mxu0
      %2326 = vmatprep.mubr.f32.mxu0 0.0
      %2327 = vmatmul.mubr.f32.gmra.mrb[0].mxu0 %v1969
      %v2328 = vpop.f32.mrb[0].mxu0
      %v2329 = vadd.f32 0.0, %v2328
      %v2330 = vpop.f32.mrb[0].mxu0
      %2331 = vmatprep.mubr.f32.mxu0 0.0
      %2332 = vmatmul.mubr.f32.gmra.mrb[0].mxu0 %v1972
      %v2333 = vpop.f32.mrb[0].mxu0
      %v2334 = vadd.f32 0.0, %v2333
      %v2335 = vpop.f32.mrb[0].mxu0
      %2336 = vmatprep.mubr.f32.mxu0 0.0
      %2337 = vmatmul.mubr.f32.gmra.mrb[0].mxu0 %v1975
      %v2338 = vpop.f32.mrb[0].mxu0
      %v2339 = vadd.f32 0.0, %v2338
      %v2340 = vpop.f32.mrb[0].mxu0
      %2341 = vmatprep.mubr.f32.mxu0 0.0
      %2342 = vmatmul.mubr.f32.gmra.mrb[0].mxu0 %v1978
      %v2343 = vpop.f32.mrb[0].mxu0
      %v2344 = vadd.f32 0.0, %v2343
      %v2345 = vpop.f32.mrb[0].mxu0
      %2346 = vmatprep.mubr.f32.mxu0 0.0
      %2347 = vmatmul.mubr.f32.gmra.mrb[0].mxu0 %v1981
      %v2348 = vpop.f32.mrb[0].mxu0
      %v2349 = vadd.f32 0.0, %v2348
      %v2350 = vpop.f32.mrb[0].mxu0
      %2351 = vmatprep.mubr.f32.mxu0 0.0
      %2352 = vmatmul.mubr.f32.gmra.mrb[0].mxu0 %v1984
      %v2353 = vpop.f32.mrb[0].mxu0
      %v2354 = vadd.f32 0.0, %v2353
      %v2355 = vpop.f32.mrb[0].mxu0
      %2356 = vmatprep.mubr.f32.mxu0 0.0
      %2357 = vmatmul.mubr.f32.gmra.mrb[0].mxu0 %v1987
      %v2358 = vpop.f32.mrb[0].mxu0
      %v2359 = vadd.f32 0.0, %v2358
      %v2360 = vpop.f32.mrb[0].mxu0
      %2361 = vmatprep.mubr.f32.mxu0 0.0
      %2362 = vmatmul.mubr.f32.gmra.mrb[0].mxu0 %v1990
      %v2363 = vpop.f32.mrb[0].mxu0
      %v2364 = vadd.f32 0.0, %v2363
      %v2365 = vpop.f32.mrb[0].mxu0
      %2366 = vmatprep.mubr.f32.mxu0 0.0
      %2367 = vmatmul.mubr.f32.gmra.mrb[0].mxu0 %v1993
      %v2368 = vpop.f32.mrb[0].mxu0
      %v2369 = vadd.f32 0.0, %v2368
      %v2370 = vpop.f32.mrb[0].mxu0
      %2371 = vmatprep.mubr.f32.mxu0 0.0
      %2372 = vmatmul.mubr.f32.gmra.mrb[0].mxu0 %v1996
      %v2373 = vpop.f32.mrb[0].mxu0
      %v2374 = vadd.f32 0.0, %v2373
      %v2375 = vpop.f32.mrb[0].mxu0
      %2376 = vmatprep.mubr.f32.mxu0 0.0
      %2377 = vmatmul.mubr.f32.gmra.mrb[0].mxu0 %v1999
      %v2378 = vpop.f32.mrb[0].mxu0
      %v2379 = vadd.f32 0.0, %v2378
      %v2380 = vpop.f32.mrb[0].mxu0
      %2381 = vmatprep.mubr.f32.mxu0 0.0
      %2382 = vmatmul.mubr.f32.gmra.mrb[0].mxu0 %v2002
      %v2383 = vpop.f32.mrb[0].mxu0
      %v2384 = vadd.f32 0.0, %v2383
      %v2385 = vpop.f32.mrb[0].mxu0
      %2386 = vmatprep.mubr.f32.mxu0 0.0
      %2387 = vmatmul.mubr.f32.gmra.mrb[0].mxu0 %v2005
      %v2388 = vpop.f32.mrb[0].mxu0
      %v2389 = vadd.f32 0.0, %v2388
      %v2390 = vpop.f32.mrb[0].mxu0
      %2391 = vdwg.mxu0
      %v2392 = vmul.f32 %v1561, %v2074
      %v2393 = vmul.f32 %v1564, %v2079
      %v2394 = vmul.f32 %v1569, %v2084
      %v2395 = vmul.f32 %v1572, %v2089
      %v2396 = vmul.f32 %v1577, %v2094
      %v2397 = vmul.f32 %v1580, %v2099
      %v2398 = vmul.f32 %v1585, %v2104
      %v2399 = vmul.f32 %v1588, %v2109
      %v2400 = vmul.f32 %v1593, %v2114
      %v2401 = vmul.f32 %v1596, %v2119
      %v2402 = vmul.f32 %v1601, %v2124
      %v2403 = vmul.f32 %v1604, %v2129
      %v2404 = vmul.f32 %v1609, %v2134
      %v2405 = vmul.f32 %v1612, %v2139
      %v2406 = vmul.f32 %v1617, %v2144
      %v2407 = vmul.f32 %v1620, %v2149
      %v2408 = vmul.f32 %v1625, %v2154
      %v2409 = vmul.f32 %v1628, %v2159
      %v2410 = vmul.f32 %v1633, %v2164
      %v2411 = vmul.f32 %v1636, %v2169
      %v2412 = vmul.f32 %v1641, %v2174
      %v2413 = vmul.f32 %v1644, %v2179
      %v2414 = vmul.f32 %v1649, %v2184
      %v2415 = vmul.f32 %v1652, %v2189
      %v2416 = vmul.f32 %v1657, %v2194
      %v2417 = vmul.f32 %v1660, %v2199
      %v2418 = vmul.f32 %v1665, %v2204
      %v2419 = vmul.f32 %v1668, %v2209
      %v2420 = vmul.f32 %v1673, %v2214
      %v2421 = vmul.f32 %v1676, %v2219
      %v2422 = vmul.f32 %v1681, %v2224
      %v2423 = vmul.f32 %v1684, %v2229
      %v2424 = vmul.f32 %v1689, %v2234
      %v2425 = vmul.f32 %v1692, %v2239
      %v2426 = vmul.f32 %v1697, %v2244
      %v2427 = vmul.f32 %v1700, %v2249
      %v2428 = vmul.f32 %v1705, %v2254
      %v2429 = vmul.f32 %v1708, %v2259
      %v2430 = vmul.f32 %v1713, %v2264
      %v2431 = vmul.f32 %v1716, %v2269
      %v2432 = vmul.f32 %v1721, %v2274
      %v2433 = vmul.f32 %v1724, %v2279
      %v2434 = vmul.f32 %v1729, %v2284
      %v2435 = vmul.f32 %v1732, %v2289
      %v2436 = vmul.f32 %v1737, %v2294
      %v2437 = vmul.f32 %v1740, %v2299
      %v2438 = vmul.f32 %v1745, %v2304
      %v2439 = vmul.f32 %v1748, %v2309
      %v2440 = vmul.f32 %v1753, %v2314
      %v2441 = vmul.f32 %v1756, %v2319
      %v2442 = vmul.f32 %v1761, %v2324
      %v2443 = vmul.f32 %v1764, %v2329
      %v2444 = vmul.f32 %v1769, %v2334
      %v2445 = vmul.f32 %v1772, %v2339
      %v2446 = vmul.f32 %v1777, %v2344
      %v2447 = vmul.f32 %v1780, %v2349
      %v2448 = vmul.f32 %v1785, %v2354
      %v2449 = vmul.f32 %v1788, %v2359
      %v2450 = vmul.f32 %v1793, %v2364
      %v2451 = vmul.f32 %v1796, %v2369
      %v2452 = vmul.f32 %v1801, %v2374
      %v2453 = vmul.f32 %v1804, %v2379
      %v2454 = vmul.f32 %v1809, %v2384
      %v2455 = vmul.f32 %v1812, %v2389
      %v2456 = vsel %vm1429, %v2392, -inf
      %v2457 = vrot.slane %v2456, 4
      %v2458 = vmax.f32 %v2456, %v2457
      %v2459 = vrot.slane %v2458, 2
      %v2460 = vmax.f32 %v2458, %v2459
      %v2461 = vrot.slane %v2460, 1
      %v2462 = vmax.f32 %v2460, %v2461
      %v2463 = vsel %vm1429, %v2393, -inf
      %v2464 = vrot.slane %v2463, 4
      %v2465 = vmax.f32 %v2463, %v2464
      %v2466 = vrot.slane %v2465, 2
      %v2467 = vmax.f32 %v2465, %v2466
      %v2468 = vrot.slane %v2467, 1
      %v2469 = vmax.f32 %v2467, %v2468
      %v2470 = vsel %vm1429, %v2394, -inf
      %v2471 = vrot.slane %v2470, 4
      %v2472 = vmax.f32 %v2470, %v2471
      %v2473 = vrot.slane %v2472, 2
      %v2474 = vmax.f32 %v2472, %v2473
      %v2475 = vrot.slane %v2474, 1
      %v2476 = vmax.f32 %v2474, %v2475
      %v2477 = vsel %vm1429, %v2395, -inf
      %v2478 = vrot.slane %v2477, 4
      %v2479 = vmax.f32 %v2477, %v2478
      %v2480 = vrot.slane %v2479, 2
      %v2481 = vmax.f32 %v2479, %v2480
      %v2482 = vrot.slane %v2481, 1
      %v2483 = vmax.f32 %v2481, %v2482
      %v2484 = vsel %vm1429, %v2396, -inf
      %v2485 = vrot.slane %v2484, 4
      %v2486 = vmax.f32 %v2484, %v2485
      %v2487 = vrot.slane %v2486, 2
      %v2488 = vmax.f32 %v2486, %v2487
      %v2489 = vrot.slane %v2488, 1
      %v2490 = vmax.f32 %v2488, %v2489
      %v2491 = vsel %vm1429, %v2397, -inf
      %v2492 = vrot.slane %v2491, 4
      %v2493 = vmax.f32 %v2491, %v2492
      %v2494 = vrot.slane %v2493, 2
      %v2495 = vmax.f32 %v2493, %v2494
      %v2496 = vrot.slane %v2495, 1
      %v2497 = vmax.f32 %v2495, %v2496
      %v2498 = vsel %vm1429, %v2398, -inf
      %v2499 = vrot.slane %v2498, 4
      %v2500 = vmax.f32 %v2498, %v2499
      %v2501 = vrot.slane %v2500, 2
      %v2502 = vmax.f32 %v2500, %v2501
      %v2503 = vrot.slane %v2502, 1
      %v2504 = vmax.f32 %v2502, %v2503
      %v2505 = vsel %vm1429, %v2399, -inf
      %v2506 = vrot.slane %v2505, 4
      %v2507 = vmax.f32 %v2505, %v2506
      %v2508 = vrot.slane %v2507, 2
      %v2509 = vmax.f32 %v2507, %v2508
      %v2510 = vrot.slane %v2509, 1
      %v2511 = vmax.f32 %v2509, %v2510
      %v2512 = vsel %vm1429, %v2400, -inf
      %v2513 = vrot.slane %v2512, 4
      %v2514 = vmax.f32 %v2512, %v2513
      %v2515 = vrot.slane %v2514, 2
      %v2516 = vmax.f32 %v2514, %v2515
      %v2517 = vrot.slane %v2516, 1
      %v2518 = vmax.f32 %v2516, %v2517
      %v2519 = vsel %vm1429, %v2401, -inf
      %v2520 = vrot.slane %v2519, 4
      %v2521 = vmax.f32 %v2519, %v2520
      %v2522 = vrot.slane %v2521, 2
      %v2523 = vmax.f32 %v2521, %v2522
      %v2524 = vrot.slane %v2523, 1
      %v2525 = vmax.f32 %v2523, %v2524
      %v2526 = vsel %vm1429, %v2402, -inf
      %v2527 = vrot.slane %v2526, 4
      %v2528 = vmax.f32 %v2526, %v2527
      %v2529 = vrot.slane %v2528, 2
      %v2530 = vmax.f32 %v2528, %v2529
      %v2531 = vrot.slane %v2530, 1
      %v2532 = vmax.f32 %v2530, %v2531
      %v2533 = vsel %vm1429, %v2403, -inf
      %v2534 = vrot.slane %v2533, 4
      %v2535 = vmax.f32 %v2533, %v2534
      %v2536 = vrot.slane %v2535, 2
      %v2537 = vmax.f32 %v2535, %v2536
      %v2538 = vrot.slane %v2537, 1
      %v2539 = vmax.f32 %v2537, %v2538
      %v2540 = vsel %vm1429, %v2404, -inf
      %v2541 = vrot.slane %v2540, 4
      %v2542 = vmax.f32 %v2540, %v2541
      %v2543 = vrot.slane %v2542, 2
      %v2544 = vmax.f32 %v2542, %v2543
      %v2545 = vrot.slane %v2544, 1
      %v2546 = vmax.f32 %v2544, %v2545
      %v2547 = vsel %vm1429, %v2405, -inf
      %v2548 = vrot.slane %v2547, 4
      %v2549 = vmax.f32 %v2547, %v2548
      %v2550 = vrot.slane %v2549, 2
      %v2551 = vmax.f32 %v2549, %v2550
      %v2552 = vrot.slane %v2551, 1
      %v2553 = vmax.f32 %v2551, %v2552
      %v2554 = vsel %vm1429, %v2406, -inf
      %v2555 = vrot.slane %v2554, 4
      %v2556 = vmax.f32 %v2554, %v2555
      %v2557 = vrot.slane %v2556, 2
      %v2558 = vmax.f32 %v2556, %v2557
      %v2559 = vrot.slane %v2558, 1
      %v2560 = vmax.f32 %v2558, %v2559
      %v2561 = vsel %vm1429, %v2407, -inf
      %v2562 = vrot.slane %v2561, 4
      %v2563 = vmax.f32 %v2561, %v2562
      %v2564 = vrot.slane %v2563, 2
      %v2565 = vmax.f32 %v2563, %v2564
      %v2566 = vrot.slane %v2565, 1
      %v2567 = vmax.f32 %v2565, %v2566
      %v2568 = vsel %vm1429, %v2408, -inf
      %v2569 = vrot.slane %v2568, 4
      %v2570 = vmax.f32 %v2568, %v2569
      %v2571 = vrot.slane %v2570, 2
      %v2572 = vmax.f32 %v2570, %v2571
      %v2573 = vrot.slane %v2572, 1
      %v2574 = vmax.f32 %v2572, %v2573
      %v2575 = vsel %vm1429, %v2409, -inf
      %v2576 = vrot.slane %v2575, 4
      %v2577 = vmax.f32 %v2575, %v2576
      %v2578 = vrot.slane %v2577, 2
      %v2579 = vmax.f32 %v2577, %v2578
      %v2580 = vrot.slane %v2579, 1
      %v2581 = vmax.f32 %v2579, %v2580
      %v2582 = vsel %vm1429, %v2410, -inf
      %v2583 = vrot.slane %v2582, 4
      %v2584 = vmax.f32 %v2582, %v2583
      %v2585 = vrot.slane %v2584, 2
      %v2586 = vmax.f32 %v2584, %v2585
      %v2587 = vrot.slane %v2586, 1
      %v2588 = vmax.f32 %v2586, %v2587
      %v2589 = vsel %vm1429, %v2411, -inf
      %v2590 = vrot.slane %v2589, 4
      %v2591 = vmax.f32 %v2589, %v2590
      %v2592 = vrot.slane %v2591, 2
      %v2593 = vmax.f32 %v2591, %v2592
      %v2594 = vrot.slane %v2593, 1
      %v2595 = vmax.f32 %v2593, %v2594
      %v2596 = vsel %vm1429, %v2412, -inf
      %v2597 = vrot.slane %v2596, 4
      %v2598 = vmax.f32 %v2596, %v2597
      %v2599 = vrot.slane %v2598, 2
      %v2600 = vmax.f32 %v2598, %v2599
      %v2601 = vrot.slane %v2600, 1
      %v2602 = vmax.f32 %v2600, %v2601
      %v2603 = vsel %vm1429, %v2413, -inf
      %v2604 = vrot.slane %v2603, 4
      %v2605 = vmax.f32 %v2603, %v2604
      %v2606 = vrot.slane %v2605, 2
      %v2607 = vmax.f32 %v2605, %v2606
      %v2608 = vrot.slane %v2607, 1
      %v2609 = vmax.f32 %v2607, %v2608
      %v2610 = vsel %vm1429, %v2414, -inf
      %v2611 = vrot.slane %v2610, 4
      %v2612 = vmax.f32 %v2610, %v2611
      %v2613 = vrot.slane %v2612, 2
      %v2614 = vmax.f32 %v2612, %v2613
      %v2615 = vrot.slane %v2614, 1
      %v2616 = vmax.f32 %v2614, %v2615
      %v2617 = vsel %vm1429, %v2415, -inf
      %v2618 = vrot.slane %v2617, 4
      %v2619 = vmax.f32 %v2617, %v2618
      %v2620 = vrot.slane %v2619, 2
      %v2621 = vmax.f32 %v2619, %v2620
      %v2622 = vrot.slane %v2621, 1
      %v2623 = vmax.f32 %v2621, %v2622
      %v2624 = vsel %vm1429, %v2416, -inf
      %v2625 = vrot.slane %v2624, 4
      %v2626 = vmax.f32 %v2624, %v2625
      %v2627 = vrot.slane %v2626, 2
      %v2628 = vmax.f32 %v2626, %v2627
      %v2629 = vrot.slane %v2628, 1
      %v2630 = vmax.f32 %v2628, %v2629
      %v2631 = vsel %vm1429, %v2417, -inf
      %v2632 = vrot.slane %v2631, 4
      %v2633 = vmax.f32 %v2631, %v2632
      %v2634 = vrot.slane %v2633, 2
      %v2635 = vmax.f32 %v2633, %v2634
      %v2636 = vrot.slane %v2635, 1
      %v2637 = vmax.f32 %v2635, %v2636
      %v2638 = vsel %vm1429, %v2418, -inf
      %v2639 = vrot.slane %v2638, 4
      %v2640 = vmax.f32 %v2638, %v2639
      %v2641 = vrot.slane %v2640, 2
      %v2642 = vmax.f32 %v2640, %v2641
      %v2643 = vrot.slane %v2642, 1
      %v2644 = vmax.f32 %v2642, %v2643
      %v2645 = vsel %vm1429, %v2419, -inf
      %v2646 = vrot.slane %v2645, 4
      %v2647 = vmax.f32 %v2645, %v2646
      %v2648 = vrot.slane %v2647, 2
      %v2649 = vmax.f32 %v2647, %v2648
      %v2650 = vrot.slane %v2649, 1
      %v2651 = vmax.f32 %v2649, %v2650
      %v2652 = vsel %vm1429, %v2420, -inf
      %v2653 = vrot.slane %v2652, 4
      %v2654 = vmax.f32 %v2652, %v2653
      %v2655 = vrot.slane %v2654, 2
      %v2656 = vmax.f32 %v2654, %v2655
      %v2657 = vrot.slane %v2656, 1
      %v2658 = vmax.f32 %v2656, %v2657
      %v2659 = vsel %vm1429, %v2421, -inf
      %v2660 = vrot.slane %v2659, 4
      %v2661 = vmax.f32 %v2659, %v2660
      %v2662 = vrot.slane %v2661, 2
      %v2663 = vmax.f32 %v2661, %v2662
      %v2664 = vrot.slane %v2663, 1
      %v2665 = vmax.f32 %v2663, %v2664
      %v2666 = vsel %vm1429, %v2422, -inf
      %v2667 = vrot.slane %v2666, 4
      %v2668 = vmax.f32 %v2666, %v2667
      %v2669 = vrot.slane %v2668, 2
      %v2670 = vmax.f32 %v2668, %v2669
      %v2671 = vrot.slane %v2670, 1
      %v2672 = vmax.f32 %v2670, %v2671
      %v2673 = vsel %vm1429, %v2423, -inf
      %v2674 = vrot.slane %v2673, 4
      %v2675 = vmax.f32 %v2673, %v2674
      %v2676 = vrot.slane %v2675, 2
      %v2677 = vmax.f32 %v2675, %v2676
      %v2678 = vrot.slane %v2677, 1
      %v2679 = vmax.f32 %v2677, %v2678
      %v2680 = vsel %vm1429, %v2424, -inf
      %v2681 = vrot.slane %v2680, 4
      %v2682 = vmax.f32 %v2680, %v2681
      %v2683 = vrot.slane %v2682, 2
      %v2684 = vmax.f32 %v2682, %v2683
      %v2685 = vrot.slane %v2684, 1
      %v2686 = vmax.f32 %v2684, %v2685
      %v2687 = vsel %vm1429, %v2425, -inf
      %v2688 = vrot.slane %v2687, 4
      %v2689 = vmax.f32 %v2687, %v2688
      %v2690 = vrot.slane %v2689, 2
      %v2691 = vmax.f32 %v2689, %v2690
      %v2692 = vrot.slane %v2691, 1
      %v2693 = vmax.f32 %v2691, %v2692
      %v2694 = vsel %vm1429, %v2426, -inf
      %v2695 = vrot.slane %v2694, 4
      %v2696 = vmax.f32 %v2694, %v2695
      %v2697 = vrot.slane %v2696, 2
      %v2698 = vmax.f32 %v2696, %v2697
      %v2699 = vrot.slane %v2698, 1
      %v2700 = vmax.f32 %v2698, %v2699
      %v2701 = vsel %vm1429, %v2427, -inf
      %v2702 = vrot.slane %v2701, 4
      %v2703 = vmax.f32 %v2701, %v2702
      %v2704 = vrot.slane %v2703, 2
      %v2705 = vmax.f32 %v2703, %v2704
      %v2706 = vrot.slane %v2705, 1
      %v2707 = vmax.f32 %v2705, %v2706
      %v2708 = vsel %vm1429, %v2428, -inf
      %v2709 = vrot.slane %v2708, 4
      %v2710 = vmax.f32 %v2708, %v2709
      %v2711 = vrot.slane %v2710, 2
      %v2712 = vmax.f32 %v2710, %v2711
      %v2713 = vrot.slane %v2712, 1
      %v2714 = vmax.f32 %v2712, %v2713
      %v2715 = vsel %vm1429, %v2429, -inf
      %v2716 = vrot.slane %v2715, 4
      %v2717 = vmax.f32 %v2715, %v2716
      %v2718 = vrot.slane %v2717, 2
      %v2719 = vmax.f32 %v2717, %v2718
      %v2720 = vrot.slane %v2719, 1
      %v2721 = vmax.f32 %v2719, %v2720
      %v2722 = vsel %vm1429, %v2430, -inf
      %v2723 = vrot.slane %v2722, 4
      %v2724 = vmax.f32 %v2722, %v2723
      %v2725 = vrot.slane %v2724, 2
      %v2726 = vmax.f32 %v2724, %v2725
      %v2727 = vrot.slane %v2726, 1
      %v2728 = vmax.f32 %v2726, %v2727
      %v2729 = vsel %vm1429, %v2431, -inf
      %v2730 = vrot.slane %v2729, 4
      %v2731 = vmax.f32 %v2729, %v2730
      %v2732 = vrot.slane %v2731, 2
      %v2733 = vmax.f32 %v2731, %v2732
      %v2734 = vrot.slane %v2733, 1
      %v2735 = vmax.f32 %v2733, %v2734
      %v2736 = vsel %vm1429, %v2432, -inf
      %v2737 = vrot.slane %v2736, 4
      %v2738 = vmax.f32 %v2736, %v2737
      %v2739 = vrot.slane %v2738, 2
      %v2740 = vmax.f32 %v2738, %v2739
      %v2741 = vrot.slane %v2740, 1
      %v2742 = vmax.f32 %v2740, %v2741
      %v2743 = vsel %vm1429, %v2433, -inf
      %v2744 = vrot.slane %v2743, 4
      %v2745 = vmax.f32 %v2743, %v2744
      %v2746 = vrot.slane %v2745, 2
      %v2747 = vmax.f32 %v2745, %v2746
      %v2748 = vrot.slane %v2747, 1
      %v2749 = vmax.f32 %v2747, %v2748
      %v2750 = vsel %vm1429, %v2434, -inf
      %v2751 = vrot.slane %v2750, 4
      %v2752 = vmax.f32 %v2750, %v2751
      %v2753 = vrot.slane %v2752, 2
      %v2754 = vmax.f32 %v2752, %v2753
      %v2755 = vrot.slane %v2754, 1
      %v2756 = vmax.f32 %v2754, %v2755
      %v2757 = vsel %vm1429, %v2435, -inf
      %v2758 = vrot.slane %v2757, 4
      %v2759 = vmax.f32 %v2757, %v2758
      %v2760 = vrot.slane %v2759, 2
      %v2761 = vmax.f32 %v2759, %v2760
      %v2762 = vrot.slane %v2761, 1
      %v2763 = vmax.f32 %v2761, %v2762
      %v2764 = vsel %vm1429, %v2436, -inf
      %v2765 = vrot.slane %v2764, 4
      %v2766 = vmax.f32 %v2764, %v2765
      %v2767 = vrot.slane %v2766, 2
      %v2768 = vmax.f32 %v2766, %v2767
      %v2769 = vrot.slane %v2768, 1
      %v2770 = vmax.f32 %v2768, %v2769
      %v2771 = vsel %vm1429, %v2437, -inf
      %v2772 = vrot.slane %v2771, 4
      %v2773 = vmax.f32 %v2771, %v2772
      %v2774 = vrot.slane %v2773, 2
      %v2775 = vmax.f32 %v2773, %v2774
      %v2776 = vrot.slane %v2775, 1
      %v2777 = vmax.f32 %v2775, %v2776
      %v2778 = vsel %vm1429, %v2438, -inf
      %v2779 = vrot.slane %v2778, 4
      %v2780 = vmax.f32 %v2778, %v2779
      %v2781 = vrot.slane %v2780, 2
      %v2782 = vmax.f32 %v2780, %v2781
      %v2783 = vrot.slane %v2782, 1
      %v2784 = vmax.f32 %v2782, %v2783
      %v2785 = vsel %vm1429, %v2439, -inf
      %v2786 = vrot.slane %v2785, 4
      %v2787 = vmax.f32 %v2785, %v2786
      %v2788 = vrot.slane %v2787, 2
      %v2789 = vmax.f32 %v2787, %v2788
      %v2790 = vrot.slane %v2789, 1
      %v2791 = vmax.f32 %v2789, %v2790
      %v2792 = vsel %vm1429, %v2440, -inf
      %v2793 = vrot.slane %v2792, 4
      %v2794 = vmax.f32 %v2792, %v2793
      %v2795 = vrot.slane %v2794, 2
      %v2796 = vmax.f32 %v2794, %v2795
      %v2797 = vrot.slane %v2796, 1
      %v2798 = vmax.f32 %v2796, %v2797
      %v2799 = vsel %vm1429, %v2441, -inf
      %v2800 = vrot.slane %v2799, 4
      %v2801 = vmax.f32 %v2799, %v2800
      %v2802 = vrot.slane %v2801, 2
      %v2803 = vmax.f32 %v2801, %v2802
      %v2804 = vrot.slane %v2803, 1
      %v2805 = vmax.f32 %v2803, %v2804
      %v2806 = vsel %vm1429, %v2442, -inf
      %v2807 = vrot.slane %v2806, 4
      %v2808 = vmax.f32 %v2806, %v2807
      %v2809 = vrot.slane %v2808, 2
      %v2810 = vmax.f32 %v2808, %v2809
      %v2811 = vrot.slane %v2810, 1
      %v2812 = vmax.f32 %v2810, %v2811
      %v2813 = vsel %vm1429, %v2443, -inf
      %v2814 = vrot.slane %v2813, 4
      %v2815 = vmax.f32 %v2813, %v2814
      %v2816 = vrot.slane %v2815, 2
      %v2817 = vmax.f32 %v2815, %v2816
      %v2818 = vrot.slane %v2817, 1
      %v2819 = vmax.f32 %v2817, %v2818
      %v2820 = vsel %vm1429, %v2444, -inf
      %v2821 = vrot.slane %v2820, 4
      %v2822 = vmax.f32 %v2820, %v2821
      %v2823 = vrot.slane %v2822, 2
      %v2824 = vmax.f32 %v2822, %v2823
      %v2825 = vrot.slane %v2824, 1
      %v2826 = vmax.f32 %v2824, %v2825
      %v2827 = vsel %vm1429, %v2445, -inf
      %v2828 = vrot.slane %v2827, 4
      %v2829 = vmax.f32 %v2827, %v2828
      %v2830 = vrot.slane %v2829, 2
      %v2831 = vmax.f32 %v2829, %v2830
      %v2832 = vrot.slane %v2831, 1
      %v2833 = vmax.f32 %v2831, %v2832
      %v2834 = vsel %vm1429, %v2446, -inf
      %v2835 = vrot.slane %v2834, 4
      %v2836 = vmax.f32 %v2834, %v2835
      %v2837 = vrot.slane %v2836, 2
      %v2838 = vmax.f32 %v2836, %v2837
      %v2839 = vrot.slane %v2838, 1
      %v2840 = vmax.f32 %v2838, %v2839
      %v2841 = vsel %vm1429, %v2447, -inf
      %v2842 = vrot.slane %v2841, 4
      %v2843 = vmax.f32 %v2841, %v2842
      %v2844 = vrot.slane %v2843, 2
      %v2845 = vmax.f32 %v2843, %v2844
      %v2846 = vrot.slane %v2845, 1
      %v2847 = vmax.f32 %v2845, %v2846
      %v2848 = vsel %vm1429, %v2448, -inf
      %v2849 = vrot.slane %v2848, 4
      %v2850 = vmax.f32 %v2848, %v2849
      %v2851 = vrot.slane %v2850, 2
      %v2852 = vmax.f32 %v2850, %v2851
      %v2853 = vrot.slane %v2852, 1
      %v2854 = vmax.f32 %v2852, %v2853
      %v2855 = vsel %vm1429, %v2449, -inf
      %v2856 = vrot.slane %v2855, 4
      %v2857 = vmax.f32 %v2855, %v2856
      %v2858 = vrot.slane %v2857, 2
      %v2859 = vmax.f32 %v2857, %v2858
      %v2860 = vrot.slane %v2859, 1
      %v2861 = vmax.f32 %v2859, %v2860
      %v2862 = vsel %vm1429, %v2450, -inf
      %v2863 = vrot.slane %v2862, 4
      %v2864 = vmax.f32 %v2862, %v2863
      %v2865 = vrot.slane %v2864, 2
      %v2866 = vmax.f32 %v2864, %v2865
      %v2867 = vrot.slane %v2866, 1
      %v2868 = vmax.f32 %v2866, %v2867
      %v2869 = vsel %vm1429, %v2451, -inf
      %v2870 = vrot.slane %v2869, 4
      %v2871 = vmax.f32 %v2869, %v2870
      %v2872 = vrot.slane %v2871, 2
      %v2873 = vmax.f32 %v2871, %v2872
      %v2874 = vrot.slane %v2873, 1
      %v2875 = vmax.f32 %v2873, %v2874
      %v2876 = vsel %vm1429, %v2452, -inf
      %v2877 = vrot.slane %v2876, 4
      %v2878 = vmax.f32 %v2876, %v2877
      %v2879 = vrot.slane %v2878, 2
      %v2880 = vmax.f32 %v2878, %v2879
      %v2881 = vrot.slane %v2880, 1
      %v2882 = vmax.f32 %v2880, %v2881
      %v2883 = vsel %vm1429, %v2453, -inf
      %v2884 = vrot.slane %v2883, 4
      %v2885 = vmax.f32 %v2883, %v2884
      %v2886 = vrot.slane %v2885, 2
      %v2887 = vmax.f32 %v2885, %v2886
      %v2888 = vrot.slane %v2887, 1
      %v2889 = vmax.f32 %v2887, %v2888
      %v2890 = vsel %vm1429, %v2454, -inf
      %v2891 = vrot.slane %v2890, 4
      %v2892 = vmax.f32 %v2890, %v2891
      %v2893 = vrot.slane %v2892, 2
      %v2894 = vmax.f32 %v2892, %v2893
      %v2895 = vrot.slane %v2894, 1
      %v2896 = vmax.f32 %v2894, %v2895
      %v2897 = vsel %vm1429, %v2455, -inf
      %v2898 = vrot.slane %v2897, 4
      %v2899 = vmax.f32 %v2897, %v2898
      %v2900 = vrot.slane %v2899, 2
      %v2901 = vmax.f32 %v2899, %v2900
      %v2902 = vrot.slane %v2901, 1
      %v2903 = vmax.f32 %v2901, %v2902
      %v2904 = vld [vmem:[%s7] sm:$0xff]
      %v2905 = vld [vmem:[%s7 + $0x8] sm:$0xff]
      %v2906 = vld [vmem:[%s7 + $0x10] sm:$0xff]
      %v2907 = vld [vmem:[%s7 + $0x18] sm:$0xff]
      %v2908 = vld [vmem:[%s7 + $0x20] sm:$0xff]
      %v2909 = vld [vmem:[%s7 + $0x28] sm:$0xff]
      %v2910 = vld [vmem:[%s7 + $0x30] sm:$0xff]
      %v2911 = vld [vmem:[%s7 + $0x38] sm:$0xff]
      %v2912 = vpack.c.bf16 %v2462, %v2462
      %v2913 = vpack.c.bf16 %v2469, %v2469
      %v2914 = vpack.c.bf16 %v2476, %v2476
      %v2915 = vpack.c.bf16 %v2483, %v2483
      %v2916 = vpack.c.bf16 %v2490, %v2490
      %v2917 = vpack.c.bf16 %v2497, %v2497
      %v2918 = vpack.c.bf16 %v2504, %v2504
      %v2919 = vpack.c.bf16 %v2511, %v2511
      %v2920 = vpack.c.bf16 %v2518, %v2518
      %v2921 = vpack.c.bf16 %v2525, %v2525
      %v2922 = vpack.c.bf16 %v2532, %v2532
      %v2923 = vpack.c.bf16 %v2539, %v2539
      %v2924 = vpack.c.bf16 %v2546, %v2546
      %v2925 = vpack.c.bf16 %v2553, %v2553
      %v2926 = vpack.c.bf16 %v2560, %v2560
      %v2927 = vpack.c.bf16 %v2567, %v2567
      %v2928 = vpack.c.bf16 %v2574, %v2574
      %v2929 = vpack.c.bf16 %v2581, %v2581
      %v2930 = vpack.c.bf16 %v2588, %v2588
      %v2931 = vpack.c.bf16 %v2595, %v2595
      %v2932 = vpack.c.bf16 %v2602, %v2602
      %v2933 = vpack.c.bf16 %v2609, %v2609
      %v2934 = vpack.c.bf16 %v2616, %v2616
      %v2935 = vpack.c.bf16 %v2623, %v2623
      %v2936 = vpack.c.bf16 %v2630, %v2630
      %v2937 = vpack.c.bf16 %v2637, %v2637
      %v2938 = vpack.c.bf16 %v2644, %v2644
      %v2939 = vpack.c.bf16 %v2651, %v2651
      %v2940 = vpack.c.bf16 %v2658, %v2658
      %v2941 = vpack.c.bf16 %v2665, %v2665
      %v2942 = vpack.c.bf16 %v2672, %v2672
      %v2943 = vpack.c.bf16 %v2679, %v2679
      %v2944 = vpack.c.bf16 %v2686, %v2686
      %v2945 = vpack.c.bf16 %v2693, %v2693
      %v2946 = vpack.c.bf16 %v2700, %v2700
      %v2947 = vpack.c.bf16 %v2707, %v2707
      %v2948 = vpack.c.bf16 %v2714, %v2714
      %v2949 = vpack.c.bf16 %v2721, %v2721
      %v2950 = vpack.c.bf16 %v2728, %v2728
      %v2951 = vpack.c.bf16 %v2735, %v2735
      %v2952 = vpack.c.bf16 %v2742, %v2742
      %v2953 = vpack.c.bf16 %v2749, %v2749
      %v2954 = vpack.c.bf16 %v2756, %v2756
      %v2955 = vpack.c.bf16 %v2763, %v2763
      %v2956 = vpack.c.bf16 %v2770, %v2770
      %v2957 = vpack.c.bf16 %v2777, %v2777
      %v2958 = vpack.c.bf16 %v2784, %v2784
      %v2959 = vpack.c.bf16 %v2791, %v2791
      %v2960 = vpack.c.bf16 %v2798, %v2798
      %v2961 = vpack.c.bf16 %v2805, %v2805
      %v2962 = vpack.c.bf16 %v2812, %v2812
      %v2963 = vpack.c.bf16 %v2819, %v2819
      %v2964 = vpack.c.bf16 %v2826, %v2826
      %v2965 = vpack.c.bf16 %v2833, %v2833
      %v2966 = vpack.c.bf16 %v2840, %v2840
      %v2967 = vpack.c.bf16 %v2847, %v2847
      %v2968 = vpack.c.bf16 %v2854, %v2854
      %v2969 = vpack.c.bf16 %v2861, %v2861
      %v2970 = vpack.c.bf16 %v2868, %v2868
      %v2971 = vpack.c.bf16 %v2875, %v2875
      %v2972 = vpack.c.bf16 %v2882, %v2882
      %v2973 = vpack.c.bf16 %v2889, %v2889
      %v2974 = vpack.c.bf16 %v2896, %v2896
      %v2975 = vpack.c.bf16 %v2903, %v2903
      %v2976 = vpack.c.bf16 %v2905, %v2904
      %v2977 = vpack.c.bf16 %v2907, %v2906
      %v2978 = vpack.c.bf16 %v2909, %v2908
      %v2979 = vpack.c.bf16 %v2911, %v2910
      %v2980 = vld [vmem:[%s8] sm:$0x1]
      %v2982 = vlaneseq
      %v2983 = vshrl.u32 %v2982, 7
      %v2984 = vsub.s32 0, %v2983
      %v2985 = vrot.slane %v2980, %v2984
      %v3051 = vunpack.c.l.b16 %v2912
      %v3052 = vunpack.c.l.b16 %v2913
      %v3053 = vunpack.c.l.b16 %v2914
      %v3054 = vunpack.c.l.b16 %v2915
      %v3055 = vunpack.c.l.b16 %v2916
      %v3056 = vunpack.c.l.b16 %v2917
      %v3057 = vunpack.c.l.b16 %v2918
      %v3058 = vunpack.c.l.b16 %v2919
      %v3059 = vunpack.c.l.b16 %v2920
      %v3060 = vunpack.c.l.b16 %v2921
      %v3061 = vunpack.c.l.b16 %v2922
      %v3062 = vunpack.c.l.b16 %v2923
      %v3063 = vunpack.c.l.b16 %v2924
      %v3064 = vunpack.c.l.b16 %v2925
      %v3065 = vunpack.c.l.b16 %v2926
      %v3066 = vunpack.c.l.b16 %v2927
      %v3067 = vunpack.c.l.b16 %v2928
      %v3068 = vunpack.c.l.b16 %v2929
      %v3069 = vunpack.c.l.b16 %v2930
      %v3070 = vunpack.c.l.b16 %v2931
      %v3071 = vunpack.c.l.b16 %v2932
      %v3072 = vunpack.c.l.b16 %v2933
      %v3073 = vunpack.c.l.b16 %v2934
      %v3074 = vunpack.c.l.b16 %v2935
      %v3075 = vunpack.c.l.b16 %v2936
      %v3076 = vunpack.c.l.b16 %v2937
      %v3077 = vunpack.c.l.b16 %v2938
      %v3078 = vunpack.c.l.b16 %v2939
      %v3079 = vunpack.c.l.b16 %v2940
      %v3080 = vunpack.c.l.b16 %v2941
      %v3081 = vunpack.c.l.b16 %v2942
      %v3082 = vunpack.c.l.b16 %v2943
      %v3083 = vunpack.c.l.b16 %v2944
      %v3084 = vunpack.c.l.b16 %v2945
      %v3085 = vunpack.c.l.b16 %v2946
      %v3086 = vunpack.c.l.b16 %v2947
      %v3087 = vunpack.c.l.b16 %v2948
      %v3088 = vunpack.c.l.b16 %v2949
      %v3089 = vunpack.c.l.b16 %v2950
      %v3090 = vunpack.c.l.b16 %v2951
      %v3091 = vunpack.c.l.b16 %v2952
      %v3092 = vunpack.c.l.b16 %v2953
      %v3093 = vunpack.c.l.b16 %v2954
      %v3094 = vunpack.c.l.b16 %v2955
      %v3095 = vunpack.c.l.b16 %v2956
      %v3096 = vunpack.c.l.b16 %v2957
      %v3097 = vunpack.c.l.b16 %v2958
      %v3098 = vunpack.c.l.b16 %v2959
      %v3099 = vunpack.c.l.b16 %v2960
      %v3100 = vunpack.c.l.b16 %v2961
      %v3101 = vunpack.c.l.b16 %v2962
      %v3102 = vunpack.c.l.b16 %v2963
      %v3103 = vunpack.c.l.b16 %v2964
      %v3104 = vunpack.c.l.b16 %v2965
      %v3105 = vunpack.c.l.b16 %v2966
      %v3106 = vunpack.c.l.b16 %v2967
      %v3107 = vunpack.c.l.b16 %v2968
      %v3108 = vunpack.c.l.b16 %v2969
      %v3109 = vunpack.c.l.b16 %v2970
      %v3110 = vunpack.c.l.b16 %v2971
      %v3111 = vunpack.c.l.b16 %v2972
      %v3112 = vunpack.c.l.b16 %v2973
      %v3113 = vunpack.c.l.b16 %v2974
      %v3114 = vunpack.c.l.b16 %v2975
      %vm3115 = vcmask 1041409
      %v3116 = vsel %vm3115, %v3052, %v3051
      %vm3117 = vcmask 1042434
      %v3118 = vsel %vm3117, %v3053, %v3116
      %vm3119 = vcmask 1043459
      %v3120 = vsel %vm3119, %v3054, %v3118
      %vm3121 = vcmask 1044484
      %v3122 = vsel %vm3121, %v3055, %v3120
      %vm3123 = vcmask 1045509
      %v3124 = vsel %vm3123, %v3056, %v3122
      %vm3125 = vcmask 1046534
      %v3126 = vsel %vm3125, %v3057, %v3124
      %vm3127 = vcmask 1047559
      %v3128 = vsel %vm3127, %v3058, %v3126
      %v3129 = vsel %vm3115, %v3060, %v3059
      %v3130 = vsel %vm3117, %v3061, %v3129
      %v3131 = vsel %vm3119, %v3062, %v3130
      %v3132 = vsel %vm3121, %v3063, %v3131
      %v3133 = vsel %vm3123, %v3064, %v3132
      %v3134 = vsel %vm3125, %v3065, %v3133
      %v3135 = vsel %vm3127, %v3066, %v3134
      %v3136 = vsel %vm3115, %v3068, %v3067
      %v3137 = vsel %vm3117, %v3069, %v3136
      %v3138 = vsel %vm3119, %v3070, %v3137
      %v3139 = vsel %vm3121, %v3071, %v3138
      %v3140 = vsel %vm3123, %v3072, %v3139
      %v3141 = vsel %vm3125, %v3073, %v3140
      %v3142 = vsel %vm3127, %v3074, %v3141
      %v3143 = vsel %vm3115, %v3076, %v3075
      %v3144 = vsel %vm3117, %v3077, %v3143
      %v3145 = vsel %vm3119, %v3078, %v3144
      %v3146 = vsel %vm3121, %v3079, %v3145
      %v3147 = vsel %vm3123, %v3080, %v3146
      %v3148 = vsel %vm3125, %v3081, %v3147
      %v3149 = vsel %vm3127, %v3082, %v3148
      %v3150 = vsel %vm3115, %v3084, %v3083
      %v3151 = vsel %vm3117, %v3085, %v3150
      %v3152 = vsel %vm3119, %v3086, %v3151
      %v3153 = vsel %vm3121, %v3087, %v3152
      %v3154 = vsel %vm3123, %v3088, %v3153
      %v3155 = vsel %vm3125, %v3089, %v3154
      %v3156 = vsel %vm3127, %v3090, %v3155
      %v3157 = vsel %vm3115, %v3092, %v3091
      %v3158 = vsel %vm3117, %v3093, %v3157
      %v3159 = vsel %vm3119, %v3094, %v3158
      %v3160 = vsel %vm3121, %v3095, %v3159
      %v3161 = vsel %vm3123, %v3096, %v3160
      %v3162 = vsel %vm3125, %v3097, %v3161
      %v3163 = vsel %vm3127, %v3098, %v3162
      %v3164 = vsel %vm3115, %v3100, %v3099
      %v3165 = vsel %vm3117, %v3101, %v3164
      %v3166 = vsel %vm3119, %v3102, %v3165
      %v3167 = vsel %vm3121, %v3103, %v3166
      %v3168 = vsel %vm3123, %v3104, %v3167
      %v3169 = vsel %vm3125, %v3105, %v3168
      %v3170 = vsel %vm3127, %v3106, %v3169
      %v3171 = vsel %vm3115, %v3108, %v3107
      %v3172 = vsel %vm3117, %v3109, %v3171
      %v3173 = vsel %vm3119, %v3110, %v3172
      %v3174 = vsel %vm3121, %v3111, %v3173
      %v3175 = vsel %vm3123, %v3112, %v3174
      %v3176 = vsel %vm3125, %v3113, %v3175
      %v3177 = vsel %vm3127, %v3114, %v3176
      %v3178 = vpack.c.b16 %v3135, %v3128
      %v3179 = vpack.c.b16 %v3149, %v3142
      %v3180 = vpack.c.b16 %v3163, %v3156
      %v3181 = vpack.c.b16 %v3177, %v3170
      %v3183 = vsel %vm1429, %v3178, 0
      %v3186 = vsel %vm1429, %v3179, 0
      %v3189 = vsel %vm1429, %v3180, 0
      %v3192 = vsel %vm1429, %v3181, 0
      %3194 = vmatprep.subr.bf16.mxu0 0
      %3195 = vmatpush1.bf16.msra.mxu0 %v2976
      %3196 = vmatprep.subr.bf16.mxu0 0
      %3197 = vmatpush1.bf16.msra.mxu0 %v2977
      %3198 = vmatprep.subr.bf16.mxu0 0
      %3199 = vmatpush1.bf16.msra.mxu0 %v2978
      %3200 = vmatprep.subr.bf16.mxu0 0
      %3201 = vmatpush1.bf16.msra.mxu0 %v2979
      %3202 = vmatprep.subr.bf16.mxu0 0
      %3203 = vmatpush1.bf16.msra.mxu0 0
      %3204 = vmatprep.subr.bf16.mxu0 0
      %3205 = vmatpush1.bf16.msra.mxu0 0
      %3206 = vmatprep.subr.bf16.mxu0 0
      %3207 = vmatpush1.bf16.msra.mxu0 0
      %3208 = vmatprep.subr.bf16.mxu0 0
      %3209 = vmatpush1.bf16.msra.mxu0 0
      %3210 = vmatprep.subr.bf16.mxu0 0
      %3211 = vmatpush1.bf16.msra.mxu0 0
      %3212 = vmatprep.subr.bf16.mxu0 0
      %3213 = vmatpush1.bf16.msra.mxu0 0
      %3214 = vmatprep.subr.bf16.mxu0 0
      %3215 = vmatpush1.bf16.msra.mxu0 0
      %3216 = vmatprep.subr.bf16.mxu0 0
      %3217 = vmatpush1.bf16.msra.mxu0 0
      %3218 = vmatprep.subr.bf16.mxu0 0
      %3219 = vmatpush1.bf16.msra.mxu0 0
      %3220 = vmatprep.subr.bf16.mxu0 0
      %3221 = vmatpush1.bf16.msra.mxu0 0
      %3222 = vmatprep.subr.bf16.mxu0 0
      %3223 = vmatpush1.bf16.msra.mxu0 0
      %3224 = vmatprep.subr.bf16.mxu0 0
      %3225 = vmatpush1.bf16.msra.mxu0 0
      %3226 = vmatprep.mubr.bf16.mxu0 0
      %3227 = vmatmul.mubr.bf16.gmra.mrb[0].mxu0 %v3183
      %v3228 = vpop.f32.mrb[0].mxu0
      %v3229 = vadd.f32 %v2985, %v3228
      %v3230 = vpop.f32.mrb[0].mxu0
      %v3231 = vpop.f32.mrb[0].mxu0
      %v3232 = vadd.f32 %v2985, %v3231
      %v3233 = vpop.f32.mrb[0].mxu0
      %3234 = vmatprep.mubr.bf16.mxu0 0
      %3235 = vmatmul.mubr.bf16.gmra.mrb[0].mxu0 %v3186
      %v3236 = vpop.f32.mrb[0].mxu0
      %v3237 = vadd.f32 %v2985, %v3236
      %v3238 = vpop.f32.mrb[0].mxu0
      %v3239 = vpop.f32.mrb[0].mxu0
      %v3240 = vadd.f32 %v2985, %v3239
      %v3241 = vpop.f32.mrb[0].mxu0
      %3242 = vmatprep.mubr.bf16.mxu0 0
      %3243 = vmatmul.mubr.bf16.gmra.mrb[0].mxu0 %v3189
      %v3244 = vpop.f32.mrb[0].mxu0
      %v3245 = vadd.f32 %v2985, %v3244
      %v3246 = vpop.f32.mrb[0].mxu0
      %v3247 = vpop.f32.mrb[0].mxu0
      %v3248 = vadd.f32 %v2985, %v3247
      %v3249 = vpop.f32.mrb[0].mxu0
      %3250 = vmatprep.mubr.bf16.mxu0 0
      %3251 = vmatmul.mubr.bf16.gmra.mrb[0].mxu0 %v3192
      %v3252 = vpop.f32.mrb[0].mxu0
      %v3253 = vadd.f32 %v2985, %v3252
      %v3254 = vpop.f32.mrb[0].mxu0
      %v3255 = vpop.f32.mrb[0].mxu0
      %v3256 = vadd.f32 %v2985, %v3255
      %v3257 = vpop.f32.mrb[0].mxu0
      %3258 = vdwg.mxu0
      %v3259 = vmax.f32 %v3229, 0.0
      %v3260 = vmax.f32 %v3232, 0.0
      %v3261 = vmax.f32 %v3237, 0.0
      %v3262 = vmax.f32 %v3240, 0.0
      %v3263 = vmax.f32 %v3245, 0.0
      %v3264 = vmax.f32 %v3248, 0.0
      %v3265 = vmax.f32 %v3253, 0.0
      %v3266 = vmax.f32 %v3256, 0.0
      %s3267 = scalar_lea.vmem %s5, 64
      %v3268 = vld [vmem:[%s3267] sm:$0xff]
      %v3269 = vld [vmem:[%s3267 + $0x8] sm:$0xff]
      %v3270 = vld [vmem:[%s3267 + $0x10] sm:$0xff]
      %v3271 = vld [vmem:[%s3267 + $0x18] sm:$0xff]
      %v3272 = vld [vmem:[%s3267 + $0x20] sm:$0xff]
      %v3273 = vld [vmem:[%s3267 + $0x28] sm:$0xff]
      %v3274 = vld [vmem:[%s3267 + $0x30] sm:$0xff]
      %v3275 = vld [vmem:[%s3267 + $0x38] sm:$0xff]
      %v3276 = vpack.c.bf16 %v3269, %v3268
      %v3277 = vpack.c.bf16 %v3271, %v3270
      %v3278 = vpack.c.bf16 %v3273, %v3272
      %v3279 = vpack.c.bf16 %v3275, %v3274
      %s3280 = scalar_lea.vmem %s6, 1
      %v3281 = vld [vmem:[%s3280] sm:$0x1]
      %v3283 = vlaneseq
      %v3284 = vshrl.u32 %v3283, 7
      %v3285 = vsub.s32 0, %v3284
      %v3286 = vrot.slane %v3281, %v3285
      %3288 = vmatprep.subr.bf16.mxu0 0
      %3289 = vmatpush1.bf16.msra.mxu0 %v3276
      %3290 = vmatprep.subr.bf16.mxu0 0
      %3291 = vmatpush1.bf16.msra.mxu0 %v3277
      %3292 = vmatprep.subr.bf16.mxu0 0
      %3293 = vmatpush1.bf16.msra.mxu0 %v3278
      %3294 = vmatprep.subr.bf16.mxu0 0
      %3295 = vmatpush1.bf16.msra.mxu0 %v3279
      %3296 = vmatprep.subr.bf16.mxu0 0
      %3297 = vmatpush1.bf16.msra.mxu0 0
      %3298 = vmatprep.subr.bf16.mxu0 0
      %3299 = vmatpush1.bf16.msra.mxu0 0
      %3300 = vmatprep.subr.bf16.mxu0 0
      %3301 = vmatpush1.bf16.msra.mxu0 0
      %3302 = vmatprep.subr.bf16.mxu0 0
      %3303 = vmatpush1.bf16.msra.mxu0 0
      %3304 = vmatprep.subr.bf16.mxu0 0
      %3305 = vmatpush1.bf16.msra.mxu0 0
      %3306 = vmatprep.subr.bf16.mxu0 0
      %3307 = vmatpush1.bf16.msra.mxu0 0
      %3308 = vmatprep.subr.bf16.mxu0 0
      %3309 = vmatpush1.bf16.msra.mxu0 0
      %3310 = vmatprep.subr.bf16.mxu0 0
      %3311 = vmatpush1.bf16.msra.mxu0 0
      %3312 = vmatprep.subr.bf16.mxu0 0
      %3313 = vmatpush1.bf16.msra.mxu0 0
      %3314 = vmatprep.subr.bf16.mxu0 0
      %3315 = vmatpush1.bf16.msra.mxu0 0
      %3316 = vmatprep.subr.bf16.mxu0 0
      %3317 = vmatpush1.bf16.msra.mxu0 0
      %3318 = vmatprep.subr.bf16.mxu0 0
      %3319 = vmatpush1.bf16.msra.mxu0 0
      %3320 = vmatprep.mubr.bf16.mxu0 0
      %3321 = vmatmul.mubr.bf16.gmra.mrb[0].mxu0 %v1431
      %v3322 = vpop.f32.mrb[0].mxu0
      %v3323 = vadd.f32 %v3286, %v3322
      %v3324 = vpop.f32.mrb[0].mxu0
      %v3325 = vpop.f32.mrb[0].mxu0
      %v3326 = vadd.f32 %v3286, %v3325
      %v3327 = vpop.f32.mrb[0].mxu0
      %3328 = vmatprep.mubr.bf16.mxu0 0
      %3329 = vmatmul.mubr.bf16.gmra.mrb[0].mxu0 %v1434
      %v3330 = vpop.f32.mrb[0].mxu0
      %v3331 = vadd.f32 %v3286, %v3330
      %v3332 = vpop.f32.mrb[0].mxu0
      %v3333 = vpop.f32.mrb[0].mxu0
      %v3334 = vadd.f32 %v3286, %v3333
      %v3335 = vpop.f32.mrb[0].mxu0
      %3336 = vmatprep.mubr.bf16.mxu0 0
      %3337 = vmatmul.mubr.bf16.gmra.mrb[0].mxu0 %v1437
      %v3338 = vpop.f32.mrb[0].mxu0
      %v3339 = vadd.f32 %v3286, %v3338
      %v3340 = vpop.f32.mrb[0].mxu0
      %v3341 = vpop.f32.mrb[0].mxu0
      %v3342 = vadd.f32 %v3286, %v3341
      %v3343 = vpop.f32.mrb[0].mxu0
      %3344 = vmatprep.mubr.bf16.mxu0 0
      %3345 = vmatmul.mubr.bf16.gmra.mrb[0].mxu0 %v1440
      %v3346 = vpop.f32.mrb[0].mxu0
      %v3347 = vadd.f32 %v3286, %v3346
      %v3348 = vpop.f32.mrb[0].mxu0
      %v3349 = vpop.f32.mrb[0].mxu0
      %v3350 = vadd.f32 %v3286, %v3349
      %v3351 = vpop.f32.mrb[0].mxu0
      %3352 = vmatprep.mubr.bf16.mxu0 0
      %3353 = vmatmul.mubr.bf16.gmra.mrb[0].mxu0 %v1443
      %v3354 = vpop.f32.mrb[0].mxu0
      %v3355 = vadd.f32 %v3286, %v3354
      %v3356 = vpop.f32.mrb[0].mxu0
      %v3357 = vpop.f32.mrb[0].mxu0
      %v3358 = vadd.f32 %v3286, %v3357
      %v3359 = vpop.f32.mrb[0].mxu0
      %3360 = vmatprep.mubr.bf16.mxu0 0
      %3361 = vmatmul.mubr.bf16.gmra.mrb[0].mxu0 %v1446
      %v3362 = vpop.f32.mrb[0].mxu0
      %v3363 = vadd.f32 %v3286, %v3362
      %v3364 = vpop.f32.mrb[0].mxu0
      %v3365 = vpop.f32.mrb[0].mxu0
      %v3366 = vadd.f32 %v3286, %v3365
      %v3367 = vpop.f32.mrb[0].mxu0
      %3368 = vmatprep.mubr.bf16.mxu0 0
      %3369 = vmatmul.mubr.bf16.gmra.mrb[0].mxu0 %v1449
      %v3370 = vpop.f32.mrb[0].mxu0
      %v3371 = vadd.f32 %v3286, %v3370
      %v3372 = vpop.f32.mrb[0].mxu0
      %v3373 = vpop.f32.mrb[0].mxu0
      %v3374 = vadd.f32 %v3286, %v3373
      %v3375 = vpop.f32.mrb[0].mxu0
      %3376 = vmatprep.mubr.bf16.mxu0 0
      %3377 = vmatmul.mubr.bf16.gmra.mrb[0].mxu0 %v1452
      %v3378 = vpop.f32.mrb[0].mxu0
      %v3379 = vadd.f32 %v3286, %v3378
      %v3380 = vpop.f32.mrb[0].mxu0
      %v3381 = vpop.f32.mrb[0].mxu0
      %v3382 = vadd.f32 %v3286, %v3381
      %v3383 = vpop.f32.mrb[0].mxu0
      %3384 = vmatprep.mubr.bf16.mxu0 0
      %3385 = vmatmul.mubr.bf16.gmra.mrb[0].mxu0 %v1455
      %v3386 = vpop.f32.mrb[0].mxu0
      %v3387 = vadd.f32 %v3286, %v3386
      %v3388 = vpop.f32.mrb[0].mxu0
      %v3389 = vpop.f32.mrb[0].mxu0
      %v3390 = vadd.f32 %v3286, %v3389
      %v3391 = vpop.f32.mrb[0].mxu0
      %3392 = vmatprep.mubr.bf16.mxu0 0
      %3393 = vmatmul.mubr.bf16.gmra.mrb[0].mxu0 %v1458
      %v3394 = vpop.f32.mrb[0].mxu0
      %v3395 = vadd.f32 %v3286, %v3394
      %v3396 = vpop.f32.mrb[0].mxu0
      %v3397 = vpop.f32.mrb[0].mxu0
      %v3398 = vadd.f32 %v3286, %v3397
      %v3399 = vpop.f32.mrb[0].mxu0
      %3400 = vmatprep.mubr.bf16.mxu0 0
      %3401 = vmatmul.mubr.bf16.gmra.mrb[0].mxu0 %v1461
      %v3402 = vpop.f32.mrb[0].mxu0
      %v3403 = vadd.f32 %v3286, %v3402
      %v3404 = vpop.f32.mrb[0].mxu0
      %v3405 = vpop.f32.mrb[0].mxu0
      %v3406 = vadd.f32 %v3286, %v3405
      %v3407 = vpop.f32.mrb[0].mxu0
      %3408 = vmatprep.mubr.bf16.mxu0 0
      %3409 = vmatmul.mubr.bf16.gmra.mrb[0].mxu0 %v1464
      %v3410 = vpop.f32.mrb[0].mxu0
      %v3411 = vadd.f32 %v3286, %v3410
      %v3412 = vpop.f32.mrb[0].mxu0
      %v3413 = vpop.f32.mrb[0].mxu0
      %v3414 = vadd.f32 %v3286, %v3413
      %v3415 = vpop.f32.mrb[0].mxu0
      %3416 = vmatprep.mubr.bf16.mxu0 0
      %3417 = vmatmul.mubr.bf16.gmra.mrb[0].mxu0 %v1467
      %v3418 = vpop.f32.mrb[0].mxu0
      %v3419 = vadd.f32 %v3286, %v3418
      %v3420 = vpop.f32.mrb[0].mxu0
      %v3421 = vpop.f32.mrb[0].mxu0
      %v3422 = vadd.f32 %v3286, %v3421
      %v3423 = vpop.f32.mrb[0].mxu0
      %3424 = vmatprep.mubr.bf16.mxu0 0
      %3425 = vmatmul.mubr.bf16.gmra.mrb[0].mxu0 %v1470
      %v3426 = vpop.f32.mrb[0].mxu0
      %v3427 = vadd.f32 %v3286, %v3426
      %v3428 = vpop.f32.mrb[0].mxu0
      %v3429 = vpop.f32.mrb[0].mxu0
      %v3430 = vadd.f32 %v3286, %v3429
      %v3431 = vpop.f32.mrb[0].mxu0
      %3432 = vmatprep.mubr.bf16.mxu0 0
      %3433 = vmatmul.mubr.bf16.gmra.mrb[0].mxu0 %v1473
      %v3434 = vpop.f32.mrb[0].mxu0
      %v3435 = vadd.f32 %v3286, %v3434
      %v3436 = vpop.f32.mrb[0].mxu0
      %v3437 = vpop.f32.mrb[0].mxu0
      %v3438 = vadd.f32 %v3286, %v3437
      %v3439 = vpop.f32.mrb[0].mxu0
      %3440 = vmatprep.mubr.bf16.mxu0 0
      %3441 = vmatmul.mubr.bf16.gmra.mrb[0].mxu0 %v1476
      %v3442 = vpop.f32.mrb[0].mxu0
      %v3443 = vadd.f32 %v3286, %v3442
      %v3444 = vpop.f32.mrb[0].mxu0
      %v3445 = vpop.f32.mrb[0].mxu0
      %v3446 = vadd.f32 %v3286, %v3445
      %v3447 = vpop.f32.mrb[0].mxu0
      %3448 = vmatprep.mubr.bf16.mxu0 0
      %3449 = vmatmul.mubr.bf16.gmra.mrb[0].mxu0 %v1479
      %v3450 = vpop.f32.mrb[0].mxu0
      %v3451 = vadd.f32 %v3286, %v3450
      %v3452 = vpop.f32.mrb[0].mxu0
      %v3453 = vpop.f32.mrb[0].mxu0
      %v3454 = vadd.f32 %v3286, %v3453
      %v3455 = vpop.f32.mrb[0].mxu0
      %3456 = vmatprep.mubr.bf16.mxu0 0
      %3457 = vmatmul.mubr.bf16.gmra.mrb[0].mxu0 %v1482
      %v3458 = vpop.f32.mrb[0].mxu0
      %v3459 = vadd.f32 %v3286, %v3458
      %v3460 = vpop.f32.mrb[0].mxu0
      %v3461 = vpop.f32.mrb[0].mxu0
      %v3462 = vadd.f32 %v3286, %v3461
      %v3463 = vpop.f32.mrb[0].mxu0
      %3464 = vmatprep.mubr.bf16.mxu0 0
      %3465 = vmatmul.mubr.bf16.gmra.mrb[0].mxu0 %v1485
      %v3466 = vpop.f32.mrb[0].mxu0
      %v3467 = vadd.f32 %v3286, %v3466
      %v3468 = vpop.f32.mrb[0].mxu0
      %v3469 = vpop.f32.mrb[0].mxu0
      %v3470 = vadd.f32 %v3286, %v3469
      %v3471 = vpop.f32.mrb[0].mxu0
      %3472 = vmatprep.mubr.bf16.mxu0 0
      %3473 = vmatmul.mubr.bf16.gmra.mrb[0].mxu0 %v1488
      %v3474 = vpop.f32.mrb[0].mxu0
      %v3475 = vadd.f32 %v3286, %v3474
      %v3476 = vpop.f32.mrb[0].mxu0
      %v3477 = vpop.f32.mrb[0].mxu0
      %v3478 = vadd.f32 %v3286, %v3477
      %v3479 = vpop.f32.mrb[0].mxu0
      %3480 = vmatprep.mubr.bf16.mxu0 0
      %3481 = vmatmul.mubr.bf16.gmra.mrb[0].mxu0 %v1491
      %v3482 = vpop.f32.mrb[0].mxu0
      %v3483 = vadd.f32 %v3286, %v3482
      %v3484 = vpop.f32.mrb[0].mxu0
      %v3485 = vpop.f32.mrb[0].mxu0
      %v3486 = vadd.f32 %v3286, %v3485
      %v3487 = vpop.f32.mrb[0].mxu0
      %3488 = vmatprep.mubr.bf16.mxu0 0
      %3489 = vmatmul.mubr.bf16.gmra.mrb[0].mxu0 %v1494
      %v3490 = vpop.f32.mrb[0].mxu0
      %v3491 = vadd.f32 %v3286, %v3490
      %v3492 = vpop.f32.mrb[0].mxu0
      %v3493 = vpop.f32.mrb[0].mxu0
      %v3494 = vadd.f32 %v3286, %v3493
      %v3495 = vpop.f32.mrb[0].mxu0
      %3496 = vmatprep.mubr.bf16.mxu0 0
      %3497 = vmatmul.mubr.bf16.gmra.mrb[0].mxu0 %v1497
      %v3498 = vpop.f32.mrb[0].mxu0
      %v3499 = vadd.f32 %v3286, %v3498
      %v3500 = vpop.f32.mrb[0].mxu0
      %v3501 = vpop.f32.mrb[0].mxu0
      %v3502 = vadd.f32 %v3286, %v3501
      %v3503 = vpop.f32.mrb[0].mxu0
      %3504 = vmatprep.mubr.bf16.mxu0 0
      %3505 = vmatmul.mubr.bf16.gmra.mrb[0].mxu0 %v1500
      %v3506 = vpop.f32.mrb[0].mxu0
      %v3507 = vadd.f32 %v3286, %v3506
      %v3508 = vpop.f32.mrb[0].mxu0
      %v3509 = vpop.f32.mrb[0].mxu0
      %v3510 = vadd.f32 %v3286, %v3509
      %v3511 = vpop.f32.mrb[0].mxu0
      %3512 = vmatprep.mubr.bf16.mxu0 0
      %3513 = vmatmul.mubr.bf16.gmra.mrb[0].mxu0 %v1503
      %v3514 = vpop.f32.mrb[0].mxu0
      %v3515 = vadd.f32 %v3286, %v3514
      %v3516 = vpop.f32.mrb[0].mxu0
      %v3517 = vpop.f32.mrb[0].mxu0
      %v3518 = vadd.f32 %v3286, %v3517
      %v3519 = vpop.f32.mrb[0].mxu0
      %3520 = vmatprep.mubr.bf16.mxu0 0
      %3521 = vmatmul.mubr.bf16.gmra.mrb[0].mxu0 %v1506
      %v3522 = vpop.f32.mrb[0].mxu0
      %v3523 = vadd.f32 %v3286, %v3522
      %v3524 = vpop.f32.mrb[0].mxu0
      %v3525 = vpop.f32.mrb[0].mxu0
      %v3526 = vadd.f32 %v3286, %v3525
      %v3527 = vpop.f32.mrb[0].mxu0
      %3528 = vmatprep.mubr.bf16.mxu0 0
      %3529 = vmatmul.mubr.bf16.gmra.mrb[0].mxu0 %v1509
      %v3530 = vpop.f32.mrb[0].mxu0
      %v3531 = vadd.f32 %v3286, %v3530
      %v3532 = vpop.f32.mrb[0].mxu0
      %v3533 = vpop.f32.mrb[0].mxu0
      %v3534 = vadd.f32 %v3286, %v3533
      %v3535 = vpop.f32.mrb[0].mxu0
      %3536 = vmatprep.mubr.bf16.mxu0 0
      %3537 = vmatmul.mubr.bf16.gmra.mrb[0].mxu0 %v1512
      %v3538 = vpop.f32.mrb[0].mxu0
      %v3539 = vadd.f32 %v3286, %v3538
      %v3540 = vpop.f32.mrb[0].mxu0
      %v3541 = vpop.f32.mrb[0].mxu0
      %v3542 = vadd.f32 %v3286, %v3541
      %v3543 = vpop.f32.mrb[0].mxu0
      %3544 = vmatprep.mubr.bf16.mxu0 0
      %3545 = vmatmul.mubr.bf16.gmra.mrb[0].mxu0 %v1515
      %v3546 = vpop.f32.mrb[0].mxu0
      %v3547 = vadd.f32 %v3286, %v3546
      %v3548 = vpop.f32.mrb[0].mxu0
      %v3549 = vpop.f32.mrb[0].mxu0
      %v3550 = vadd.f32 %v3286, %v3549
      %v3551 = vpop.f32.mrb[0].mxu0
      %3552 = vmatprep.mubr.bf16.mxu0 0
      %3553 = vmatmul.mubr.bf16.gmra.mrb[0].mxu0 %v1518
      %v3554 = vpop.f32.mrb[0].mxu0
      %v3555 = vadd.f32 %v3286, %v3554
      %v3556 = vpop.f32.mrb[0].mxu0
      %v3557 = vpop.f32.mrb[0].mxu0
      %v3558 = vadd.f32 %v3286, %v3557
      %v3559 = vpop.f32.mrb[0].mxu0
      %3560 = vmatprep.mubr.bf16.mxu0 0
      %3561 = vmatmul.mubr.bf16.gmra.mrb[0].mxu0 %v1521
      %v3562 = vpop.f32.mrb[0].mxu0
      %v3563 = vadd.f32 %v3286, %v3562
      %v3564 = vpop.f32.mrb[0].mxu0
      %v3565 = vpop.f32.mrb[0].mxu0
      %v3566 = vadd.f32 %v3286, %v3565
      %v3567 = vpop.f32.mrb[0].mxu0
      %3568 = vmatprep.mubr.bf16.mxu0 0
      %3569 = vmatmul.mubr.bf16.gmra.mrb[0].mxu0 %v1524
      %v3570 = vpop.f32.mrb[0].mxu0
      %v3571 = vadd.f32 %v3286, %v3570
      %v3572 = vpop.f32.mrb[0].mxu0
      %v3573 = vpop.f32.mrb[0].mxu0
      %v3574 = vadd.f32 %v3286, %v3573
      %v3575 = vpop.f32.mrb[0].mxu0
      %3576 = vdwg.mxu0
      %3577 = vmatprep.subr.mxu0 0.0
      %3578 = vmatpush1.msra.mxu0 %v3259
      %3579 = vmatprep.subr.mxu0 0.0
      %3580 = vmatpush1.msra.mxu0 %v3260
      %3581 = vmatprep.subr.mxu0 0.0
      %3582 = vmatpush1.msra.mxu0 %v3261
      %3583 = vmatprep.subr.mxu0 0.0
      %3584 = vmatpush1.msra.mxu0 %v3262
      %3585 = vmatprep.subr.mxu0 0.0
      %3586 = vmatpush1.msra.mxu0 %v3263
      %3587 = vmatprep.subr.mxu0 0.0
      %3588 = vmatpush1.msra.mxu0 %v3264
      %3589 = vmatprep.subr.mxu0 0.0
      %3590 = vmatpush1.msra.mxu0 %v3265
      %3591 = vmatprep.subr.mxu0 0.0
      %3592 = vmatpush1.msra.mxu0 %v3266
      %3593 = vmatprep.subr.mxu0 0.0
      %3594 = vmatpush1.msra.mxu0 0.0
      %3595 = vmatprep.subr.mxu0 0.0
      %3596 = vmatpush1.msra.mxu0 0.0
      %3597 = vmatprep.subr.mxu0 0.0
      %3598 = vmatpush1.msra.mxu0 0.0
      %3599 = vmatprep.subr.mxu0 0.0
      %3600 = vmatpush1.msra.mxu0 0.0
      %3601 = vmatprep.subr.mxu0 0.0
      %3602 = vmatpush1.msra.mxu0 0.0
      %3603 = vmatprep.subr.mxu0 0.0
      %3604 = vmatpush1.msra.mxu0 0.0
      %3605 = vmatprep.subr.mxu0 0.0
      %3606 = vmatpush1.msra.mxu0 0.0
      %3607 = vmatprep.subr.mxu0 0.0
      %3608 = vmatpush1.msra.mxu0 0.0
      %3609 = vmatprep.subr.mxu0 0.0
      %3610 = vmatpush1.msra.mxu0 0.0
      %3611 = vmatprep.subr.mxu0 0.0
      %3612 = vmatpush1.msra.mxu0 0.0
      %3613 = vmatprep.subr.mxu0 0.0
      %3614 = vmatpush1.msra.mxu0 0.0
      %3615 = vmatprep.subr.mxu0 0.0
      %3616 = vmatpush1.msra.mxu0 0.0
      %3617 = vmatprep.subr.mxu0 0.0
      %3618 = vmatpush1.msra.mxu0 0.0
      %3619 = vmatprep.subr.mxu0 0.0
      %3620 = vmatpush1.msra.mxu0 0.0
      %3621 = vmatprep.subr.mxu0 0.0
      %3622 = vmatpush1.msra.mxu0 0.0
      %3623 = vmatprep.subr.mxu0 0.0
      %3624 = vmatpush1.msra.mxu0 0.0
      %3625 = vmatprep.subr.mxu0 0.0
      %3626 = vmatpush1.msra.mxu0 0.0
      %3627 = vmatprep.subr.mxu0 0.0
      %3628 = vmatpush1.msra.mxu0 0.0
      %3629 = vmatprep.subr.mxu0 0.0
      %3630 = vmatpush1.msra.mxu0 0.0
      %3631 = vmatprep.subr.mxu0 0.0
      %3632 = vmatpush1.msra.mxu0 0.0
      %3633 = vmatprep.subr.mxu0 0.0
      %3634 = vmatpush1.msra.mxu0 0.0
      %3635 = vmatprep.subr.mxu0 0.0
      %3636 = vmatpush1.msra.mxu0 0.0
      %3637 = vmatprep.subr.mxu0 0.0
      %3638 = vmatpush1.msra.mxu0 0.0
      %3639 = vmatprep.subr.mxu0 0.0
      %3640 = vmatpush1.msra.mxu0 0.0
      %3641 = vmatprep.mubr.f32.mxu0 0.0
      %3642 = vmatmul.mubr.f32.gmra.mrb[0].mxu0 %v1816
      %v3643 = vpop.f32.mrb[0].mxu0
      %v3644 = vadd.f32 0.0, %v3643
      %v3645 = vpop.f32.mrb[0].mxu0
      %3646 = vmatprep.mubr.f32.mxu0 0.0
      %3647 = vmatmul.mubr.f32.gmra.mrb[0].mxu0 %v1819
      %v3648 = vpop.f32.mrb[0].mxu0
      %v3649 = vadd.f32 0.0, %v3648
      %v3650 = vpop.f32.mrb[0].mxu0
      %3651 = vmatprep.mubr.f32.mxu0 0.0
      %3652 = vmatmul.mubr.f32.gmra.mrb[0].mxu0 %v1822
      %v3653 = vpop.f32.mrb[0].mxu0
      %v3654 = vadd.f32 0.0, %v3653
      %v3655 = vpop.f32.mrb[0].mxu0
      %3656 = vmatprep.mubr.f32.mxu0 0.0
      %3657 = vmatmul.mubr.f32.gmra.mrb[0].mxu0 %v1825
      %v3658 = vpop.f32.mrb[0].mxu0
      %v3659 = vadd.f32 0.0, %v3658
      %v3660 = vpop.f32.mrb[0].mxu0
      %3661 = vmatprep.mubr.f32.mxu0 0.0
      %3662 = vmatmul.mubr.f32.gmra.mrb[0].mxu0 %v1828
      %v3663 = vpop.f32.mrb[0].mxu0
      %v3664 = vadd.f32 0.0, %v3663
      %v3665 = vpop.f32.mrb[0].mxu0
      %3666 = vmatprep.mubr.f32.mxu0 0.0
      %3667 = vmatmul.mubr.f32.gmra.mrb[0].mxu0 %v1831
      %v3668 = vpop.f32.mrb[0].mxu0
      %v3669 = vadd.f32 0.0, %v3668
      %v3670 = vpop.f32.mrb[0].mxu0
      %3671 = vmatprep.mubr.f32.mxu0 0.0
      %3672 = vmatmul.mubr.f32.gmra.mrb[0].mxu0 %v1834
      %v3673 = vpop.f32.mrb[0].mxu0
      %v3674 = vadd.f32 0.0, %v3673
      %v3675 = vpop.f32.mrb[0].mxu0
      %3676 = vmatprep.mubr.f32.mxu0 0.0
      %3677 = vmatmul.mubr.f32.gmra.mrb[0].mxu0 %v1837
      %v3678 = vpop.f32.mrb[0].mxu0
      %v3679 = vadd.f32 0.0, %v3678
      %v3680 = vpop.f32.mrb[0].mxu0
      %3681 = vmatprep.mubr.f32.mxu0 0.0
      %3682 = vmatmul.mubr.f32.gmra.mrb[0].mxu0 %v1840
      %v3683 = vpop.f32.mrb[0].mxu0
      %v3684 = vadd.f32 0.0, %v3683
      %v3685 = vpop.f32.mrb[0].mxu0
      %3686 = vmatprep.mubr.f32.mxu0 0.0
      %3687 = vmatmul.mubr.f32.gmra.mrb[0].mxu0 %v1843
      %v3688 = vpop.f32.mrb[0].mxu0
      %v3689 = vadd.f32 0.0, %v3688
      %v3690 = vpop.f32.mrb[0].mxu0
      %3691 = vmatprep.mubr.f32.mxu0 0.0
      %3692 = vmatmul.mubr.f32.gmra.mrb[0].mxu0 %v1846
      %v3693 = vpop.f32.mrb[0].mxu0
      %v3694 = vadd.f32 0.0, %v3693
      %v3695 = vpop.f32.mrb[0].mxu0
      %3696 = vmatprep.mubr.f32.mxu0 0.0
      %3697 = vmatmul.mubr.f32.gmra.mrb[0].mxu0 %v1849
      %v3698 = vpop.f32.mrb[0].mxu0
      %v3699 = vadd.f32 0.0, %v3698
      %v3700 = vpop.f32.mrb[0].mxu0
      %3701 = vmatprep.mubr.f32.mxu0 0.0
      %3702 = vmatmul.mubr.f32.gmra.mrb[0].mxu0 %v1852
      %v3703 = vpop.f32.mrb[0].mxu0
      %v3704 = vadd.f32 0.0, %v3703
      %v3705 = vpop.f32.mrb[0].mxu0
      %3706 = vmatprep.mubr.f32.mxu0 0.0
      %3707 = vmatmul.mubr.f32.gmra.mrb[0].mxu0 %v1855
      %v3708 = vpop.f32.mrb[0].mxu0
      %v3709 = vadd.f32 0.0, %v3708
      %v3710 = vpop.f32.mrb[0].mxu0
      %3711 = vmatprep.mubr.f32.mxu0 0.0
      %3712 = vmatmul.mubr.f32.gmra.mrb[0].mxu0 %v1858
      %v3713 = vpop.f32.mrb[0].mxu0
      %v3714 = vadd.f32 0.0, %v3713
      %v3715 = vpop.f32.mrb[0].mxu0
      %3716 = vmatprep.mubr.f32.mxu0 0.0
      %3717 = vmatmul.mubr.f32.gmra.mrb[0].mxu0 %v1861
      %v3718 = vpop.f32.mrb[0].mxu0
      %v3719 = vadd.f32 0.0, %v3718
      %v3720 = vpop.f32.mrb[0].mxu0
      %3721 = vmatprep.mubr.f32.mxu0 0.0
      %3722 = vmatmul.mubr.f32.gmra.mrb[0].mxu0 %v1864
      %v3723 = vpop.f32.mrb[0].mxu0
      %v3724 = vadd.f32 0.0, %v3723
      %v3725 = vpop.f32.mrb[0].mxu0
      %3726 = vmatprep.mubr.f32.mxu0 0.0
      %3727 = vmatmul.mubr.f32.gmra.mrb[0].mxu0 %v1867
      %v3728 = vpop.f32.mrb[0].mxu0
      %v3729 = vadd.f32 0.0, %v3728
      %v3730 = vpop.f32.mrb[0].mxu0
      %3731 = vmatprep.mubr.f32.mxu0 0.0
      %3732 = vmatmul.mubr.f32.gmra.mrb[0].mxu0 %v1870
      %v3733 = vpop.f32.mrb[0].mxu0
      %v3734 = vadd.f32 0.0, %v3733
      %v3735 = vpop.f32.mrb[0].mxu0
      %3736 = vmatprep.mubr.f32.mxu0 0.0
      %3737 = vmatmul.mubr.f32.gmra.mrb[0].mxu0 %v1873
      %v3738 = vpop.f32.mrb[0].mxu0
      %v3739 = vadd.f32 0.0, %v3738
      %v3740 = vpop.f32.mrb[0].mxu0
      %3741 = vmatprep.mubr.f32.mxu0 0.0
      %3742 = vmatmul.mubr.f32.gmra.mrb[0].mxu0 %v1876
      %v3743 = vpop.f32.mrb[0].mxu0
      %v3744 = vadd.f32 0.0, %v3743
      %v3745 = vpop.f32.mrb[0].mxu0
      %3746 = vmatprep.mubr.f32.mxu0 0.0
      %3747 = vmatmul.mubr.f32.gmra.mrb[0].mxu0 %v1879
      %v3748 = vpop.f32.mrb[0].mxu0
      %v3749 = vadd.f32 0.0, %v3748
      %v3750 = vpop.f32.mrb[0].mxu0
      %3751 = vmatprep.mubr.f32.mxu0 0.0
      %3752 = vmatmul.mubr.f32.gmra.mrb[0].mxu0 %v1882
      %v3753 = vpop.f32.mrb[0].mxu0
      %v3754 = vadd.f32 0.0, %v3753
      %v3755 = vpop.f32.mrb[0].mxu0
      %3756 = vmatprep.mubr.f32.mxu0 0.0
      %3757 = vmatmul.mubr.f32.gmra.mrb[0].mxu0 %v1885
      %v3758 = vpop.f32.mrb[0].mxu0
      %v3759 = vadd.f32 0.0, %v3758
      %v3760 = vpop.f32.mrb[0].mxu0
      %3761 = vmatprep.mubr.f32.mxu0 0.0
      %3762 = vmatmul.mubr.f32.gmra.mrb[0].mxu0 %v1888
      %v3763 = vpop.f32.mrb[0].mxu0
      %v3764 = vadd.f32 0.0, %v3763
      %v3765 = vpop.f32.mrb[0].mxu0
      %3766 = vmatprep.mubr.f32.mxu0 0.0
      %3767 = vmatmul.mubr.f32.gmra.mrb[0].mxu0 %v1891
      %v3768 = vpop.f32.mrb[0].mxu0
      %v3769 = vadd.f32 0.0, %v3768
      %v3770 = vpop.f32.mrb[0].mxu0
      %3771 = vmatprep.mubr.f32.mxu0 0.0
      %3772 = vmatmul.mubr.f32.gmra.mrb[0].mxu0 %v1894
      %v3773 = vpop.f32.mrb[0].mxu0
      %v3774 = vadd.f32 0.0, %v3773
      %v3775 = vpop.f32.mrb[0].mxu0
      %3776 = vmatprep.mubr.f32.mxu0 0.0
      %3777 = vmatmul.mubr.f32.gmra.mrb[0].mxu0 %v1897
      %v3778 = vpop.f32.mrb[0].mxu0
      %v3779 = vadd.f32 0.0, %v3778
      %v3780 = vpop.f32.mrb[0].mxu0
      %3781 = vmatprep.mubr.f32.mxu0 0.0
      %3782 = vmatmul.mubr.f32.gmra.mrb[0].mxu0 %v1900
      %v3783 = vpop.f32.mrb[0].mxu0
      %v3784 = vadd.f32 0.0, %v3783
      %v3785 = vpop.f32.mrb[0].mxu0
      %3786 = vmatprep.mubr.f32.mxu0 0.0
      %3787 = vmatmul.mubr.f32.gmra.mrb[0].mxu0 %v1903
      %v3788 = vpop.f32.mrb[0].mxu0
      %v3789 = vadd.f32 0.0, %v3788
      %v3790 = vpop.f32.mrb[0].mxu0
      %3791 = vmatprep.mubr.f32.mxu0 0.0
      %3792 = vmatmul.mubr.f32.gmra.mrb[0].mxu0 %v1906
      %v3793 = vpop.f32.mrb[0].mxu0
      %v3794 = vadd.f32 0.0, %v3793
      %v3795 = vpop.f32.mrb[0].mxu0
      %3796 = vmatprep.mubr.f32.mxu0 0.0
      %3797 = vmatmul.mubr.f32.gmra.mrb[0].mxu0 %v1909
      %v3798 = vpop.f32.mrb[0].mxu0
      %v3799 = vadd.f32 0.0, %v3798
      %v3800 = vpop.f32.mrb[0].mxu0
      %3801 = vmatprep.mubr.f32.mxu0 0.0
      %3802 = vmatmul.mubr.f32.gmra.mrb[0].mxu0 %v1912
      %v3803 = vpop.f32.mrb[0].mxu0
      %v3804 = vadd.f32 0.0, %v3803
      %v3805 = vpop.f32.mrb[0].mxu0
      %3806 = vmatprep.mubr.f32.mxu0 0.0
      %3807 = vmatmul.mubr.f32.gmra.mrb[0].mxu0 %v1915
      %v3808 = vpop.f32.mrb[0].mxu0
      %v3809 = vadd.f32 0.0, %v3808
      %v3810 = vpop.f32.mrb[0].mxu0
      %3811 = vmatprep.mubr.f32.mxu0 0.0
      %3812 = vmatmul.mubr.f32.gmra.mrb[0].mxu0 %v1918
      %v3813 = vpop.f32.mrb[0].mxu0
      %v3814 = vadd.f32 0.0, %v3813
      %v3815 = vpop.f32.mrb[0].mxu0
      %3816 = vmatprep.mubr.f32.mxu0 0.0
      %3817 = vmatmul.mubr.f32.gmra.mrb[0].mxu0 %v1921
      %v3818 = vpop.f32.mrb[0].mxu0
      %v3819 = vadd.f32 0.0, %v3818
      %v3820 = vpop.f32.mrb[0].mxu0
      %3821 = vmatprep.mubr.f32.mxu0 0.0
      %3822 = vmatmul.mubr.f32.gmra.mrb[0].mxu0 %v1924
      %v3823 = vpop.f32.mrb[0].mxu0
      %v3824 = vadd.f32 0.0, %v3823
      %v3825 = vpop.f32.mrb[0].mxu0
      %3826 = vmatprep.mubr.f32.mxu0 0.0
      %3827 = vmatmul.mubr.f32.gmra.mrb[0].mxu0 %v1927
      %v3828 = vpop.f32.mrb[0].mxu0
      %v3829 = vadd.f32 0.0, %v3828
      %v3830 = vpop.f32.mrb[0].mxu0
      %3831 = vmatprep.mubr.f32.mxu0 0.0
      %3832 = vmatmul.mubr.f32.gmra.mrb[0].mxu0 %v1930
      %v3833 = vpop.f32.mrb[0].mxu0
      %v3834 = vadd.f32 0.0, %v3833
      %v3835 = vpop.f32.mrb[0].mxu0
      %3836 = vmatprep.mubr.f32.mxu0 0.0
      %3837 = vmatmul.mubr.f32.gmra.mrb[0].mxu0 %v1933
      %v3838 = vpop.f32.mrb[0].mxu0
      %v3839 = vadd.f32 0.0, %v3838
      %v3840 = vpop.f32.mrb[0].mxu0
      %3841 = vmatprep.mubr.f32.mxu0 0.0
      %3842 = vmatmul.mubr.f32.gmra.mrb[0].mxu0 %v1936
      %v3843 = vpop.f32.mrb[0].mxu0
      %v3844 = vadd.f32 0.0, %v3843
      %v3845 = vpop.f32.mrb[0].mxu0
      %3846 = vmatprep.mubr.f32.mxu0 0.0
      %3847 = vmatmul.mubr.f32.gmra.mrb[0].mxu0 %v1939
      %v3848 = vpop.f32.mrb[0].mxu0
      %v3849 = vadd.f32 0.0, %v3848
      %v3850 = vpop.f32.mrb[0].mxu0
      %3851 = vmatprep.mubr.f32.mxu0 0.0
      %3852 = vmatmul.mubr.f32.gmra.mrb[0].mxu0 %v1942
      %v3853 = vpop.f32.mrb[0].mxu0
      %v3854 = vadd.f32 0.0, %v3853
      %v3855 = vpop.f32.mrb[0].mxu0
      %3856 = vmatprep.mubr.f32.mxu0 0.0
      %3857 = vmatmul.mubr.f32.gmra.mrb[0].mxu0 %v1945
      %v3858 = vpop.f32.mrb[0].mxu0
      %v3859 = vadd.f32 0.0, %v3858
      %v3860 = vpop.f32.mrb[0].mxu0
      %3861 = vmatprep.mubr.f32.mxu0 0.0
      %3862 = vmatmul.mubr.f32.gmra.mrb[0].mxu0 %v1948
      %v3863 = vpop.f32.mrb[0].mxu0
      %v3864 = vadd.f32 0.0, %v3863
      %v3865 = vpop.f32.mrb[0].mxu0
      %3866 = vmatprep.mubr.f32.mxu0 0.0
      %3867 = vmatmul.mubr.f32.gmra.mrb[0].mxu0 %v1951
      %v3868 = vpop.f32.mrb[0].mxu0
      %v3869 = vadd.f32 0.0, %v3868
      %v3870 = vpop.f32.mrb[0].mxu0
      %3871 = vmatprep.mubr.f32.mxu0 0.0
      %3872 = vmatmul.mubr.f32.gmra.mrb[0].mxu0 %v1954
      %v3873 = vpop.f32.mrb[0].mxu0
      %v3874 = vadd.f32 0.0, %v3873
      %v3875 = vpop.f32.mrb[0].mxu0
      %3876 = vmatprep.mubr.f32.mxu0 0.0
      %3877 = vmatmul.mubr.f32.gmra.mrb[0].mxu0 %v1957
      %v3878 = vpop.f32.mrb[0].mxu0
      %v3879 = vadd.f32 0.0, %v3878
      %v3880 = vpop.f32.mrb[0].mxu0
      %3881 = vmatprep.mubr.f32.mxu0 0.0
      %3882 = vmatmul.mubr.f32.gmra.mrb[0].mxu0 %v1960
      %v3883 = vpop.f32.mrb[0].mxu0
      %v3884 = vadd.f32 0.0, %v3883
      %v3885 = vpop.f32.mrb[0].mxu0
      %3886 = vmatprep.mubr.f32.mxu0 0.0
      %3887 = vmatmul.mubr.f32.gmra.mrb[0].mxu0 %v1963
      %v3888 = vpop.f32.mrb[0].mxu0
      %v3889 = vadd.f32 0.0, %v3888
      %v3890 = vpop.f32.mrb[0].mxu0
      %3891 = vmatprep.mubr.f32.mxu0 0.0
      %3892 = vmatmul.mubr.f32.gmra.mrb[0].mxu0 %v1966
      %v3893 = vpop.f32.mrb[0].mxu0
      %v3894 = vadd.f32 0.0, %v3893
      %v3895 = vpop.f32.mrb[0].mxu0
      %3896 = vmatprep.mubr.f32.mxu0 0.0
      %3897 = vmatmul.mubr.f32.gmra.mrb[0].mxu0 %v1969
      %v3898 = vpop.f32.mrb[0].mxu0
      %v3899 = vadd.f32 0.0, %v3898
      %v3900 = vpop.f32.mrb[0].mxu0
      %3901 = vmatprep.mubr.f32.mxu0 0.0
      %3902 = vmatmul.mubr.f32.gmra.mrb[0].mxu0 %v1972
      %v3903 = vpop.f32.mrb[0].mxu0
      %v3904 = vadd.f32 0.0, %v3903
      %v3905 = vpop.f32.mrb[0].mxu0
      %3906 = vmatprep.mubr.f32.mxu0 0.0
      %3907 = vmatmul.mubr.f32.gmra.mrb[0].mxu0 %v1975
      %v3908 = vpop.f32.mrb[0].mxu0
      %v3909 = vadd.f32 0.0, %v3908
      %v3910 = vpop.f32.mrb[0].mxu0
      %3911 = vmatprep.mubr.f32.mxu0 0.0
      %3912 = vmatmul.mubr.f32.gmra.mrb[0].mxu0 %v1978
      %v3913 = vpop.f32.mrb[0].mxu0
      %v3914 = vadd.f32 0.0, %v3913
      %v3915 = vpop.f32.mrb[0].mxu0
      %3916 = vmatprep.mubr.f32.mxu0 0.0
      %3917 = vmatmul.mubr.f32.gmra.mrb[0].mxu0 %v1981
      %v3918 = vpop.f32.mrb[0].mxu0
      %v3919 = vadd.f32 0.0, %v3918
      %v3920 = vpop.f32.mrb[0].mxu0
      %3921 = vmatprep.mubr.f32.mxu0 0.0
      %3922 = vmatmul.mubr.f32.gmra.mrb[0].mxu0 %v1984
      %v3923 = vpop.f32.mrb[0].mxu0
      %v3924 = vadd.f32 0.0, %v3923
      %v3925 = vpop.f32.mrb[0].mxu0
      %3926 = vmatprep.mubr.f32.mxu0 0.0
      %3927 = vmatmul.mubr.f32.gmra.mrb[0].mxu0 %v1987
      %v3928 = vpop.f32.mrb[0].mxu0
      %v3929 = vadd.f32 0.0, %v3928
      %v3930 = vpop.f32.mrb[0].mxu0
      %3931 = vmatprep.mubr.f32.mxu0 0.0
      %3932 = vmatmul.mubr.f32.gmra.mrb[0].mxu0 %v1990
      %v3933 = vpop.f32.mrb[0].mxu0
      %v3934 = vadd.f32 0.0, %v3933
      %v3935 = vpop.f32.mrb[0].mxu0
      %3936 = vmatprep.mubr.f32.mxu0 0.0
      %3937 = vmatmul.mubr.f32.gmra.mrb[0].mxu0 %v1993
      %v3938 = vpop.f32.mrb[0].mxu0
      %v3939 = vadd.f32 0.0, %v3938
      %v3940 = vpop.f32.mrb[0].mxu0
      %3941 = vmatprep.mubr.f32.mxu0 0.0
      %3942 = vmatmul.mubr.f32.gmra.mrb[0].mxu0 %v1996
      %v3943 = vpop.f32.mrb[0].mxu0
      %v3944 = vadd.f32 0.0, %v3943
      %v3945 = vpop.f32.mrb[0].mxu0
      %3946 = vmatprep.mubr.f32.mxu0 0.0
      %3947 = vmatmul.mubr.f32.gmra.mrb[0].mxu0 %v1999
      %v3948 = vpop.f32.mrb[0].mxu0
      %v3949 = vadd.f32 0.0, %v3948
      %v3950 = vpop.f32.mrb[0].mxu0
      %3951 = vmatprep.mubr.f32.mxu0 0.0
      %3952 = vmatmul.mubr.f32.gmra.mrb[0].mxu0 %v2002
      %v3953 = vpop.f32.mrb[0].mxu0
      %v3954 = vadd.f32 0.0, %v3953
      %v3955 = vpop.f32.mrb[0].mxu0
      %3956 = vmatprep.mubr.f32.mxu0 0.0
      %3957 = vmatmul.mubr.f32.gmra.mrb[0].mxu0 %v2005
      %v3958 = vpop.f32.mrb[0].mxu0
      %v3959 = vadd.f32 0.0, %v3958
      %v3960 = vpop.f32.mrb[0].mxu0
      %3961 = vdwg.mxu0
      %v3962 = vmul.f32 %v3323, %v3644
      %v3963 = vmul.f32 %v3326, %v3649
      %v3964 = vmul.f32 %v3331, %v3654
      %v3965 = vmul.f32 %v3334, %v3659
      %v3966 = vmul.f32 %v3339, %v3664
      %v3967 = vmul.f32 %v3342, %v3669
      %v3968 = vmul.f32 %v3347, %v3674
      %v3969 = vmul.f32 %v3350, %v3679
      %v3970 = vmul.f32 %v3355, %v3684
      %v3971 = vmul.f32 %v3358, %v3689
      %v3972 = vmul.f32 %v3363, %v3694
      %v3973 = vmul.f32 %v3366, %v3699
      %v3974 = vmul.f32 %v3371, %v3704
      %v3975 = vmul.f32 %v3374, %v3709
      %v3976 = vmul.f32 %v3379, %v3714
      %v3977 = vmul.f32 %v3382, %v3719
      %v3978 = vmul.f32 %v3387, %v3724
      %v3979 = vmul.f32 %v3390, %v3729
      %v3980 = vmul.f32 %v3395, %v3734
      %v3981 = vmul.f32 %v3398, %v3739
      %v3982 = vmul.f32 %v3403, %v3744
      %v3983 = vmul.f32 %v3406, %v3749
      %v3984 = vmul.f32 %v3411, %v3754
      %v3985 = vmul.f32 %v3414, %v3759
      %v3986 = vmul.f32 %v3419, %v3764
      %v3987 = vmul.f32 %v3422, %v3769
      %v3988 = vmul.f32 %v3427, %v3774
      %v3989 = vmul.f32 %v3430, %v3779
      %v3990 = vmul.f32 %v3435, %v3784
      %v3991 = vmul.f32 %v3438, %v3789
      %v3992 = vmul.f32 %v3443, %v3794
      %v3993 = vmul.f32 %v3446, %v3799
      %v3994 = vmul.f32 %v3451, %v3804
      %v3995 = vmul.f32 %v3454, %v3809
      %v3996 = vmul.f32 %v3459, %v3814
      %v3997 = vmul.f32 %v3462, %v3819
      %v3998 = vmul.f32 %v3467, %v3824
      %v3999 = vmul.f32 %v3470, %v3829
      %v4000 = vmul.f32 %v3475, %v3834
      %v4001 = vmul.f32 %v3478, %v3839
      %v4002 = vmul.f32 %v3483, %v3844
      %v4003 = vmul.f32 %v3486, %v3849
      %v4004 = vmul.f32 %v3491, %v3854
      %v4005 = vmul.f32 %v3494, %v3859
      %v4006 = vmul.f32 %v3499, %v3864
      %v4007 = vmul.f32 %v3502, %v3869
      %v4008 = vmul.f32 %v3507, %v3874
      %v4009 = vmul.f32 %v3510, %v3879
      %v4010 = vmul.f32 %v3515, %v3884
      %v4011 = vmul.f32 %v3518, %v3889
      %v4012 = vmul.f32 %v3523, %v3894
      %v4013 = vmul.f32 %v3526, %v3899
      %v4014 = vmul.f32 %v3531, %v3904
      %v4015 = vmul.f32 %v3534, %v3909
      %v4016 = vmul.f32 %v3539, %v3914
      %v4017 = vmul.f32 %v3542, %v3919
      %v4018 = vmul.f32 %v3547, %v3924
      %v4019 = vmul.f32 %v3550, %v3929
      %v4020 = vmul.f32 %v3555, %v3934
      %v4021 = vmul.f32 %v3558, %v3939
      %v4022 = vmul.f32 %v3563, %v3944
      %v4023 = vmul.f32 %v3566, %v3949
      %v4024 = vmul.f32 %v3571, %v3954
      %v4025 = vmul.f32 %v3574, %v3959
      %v4026 = vsel %vm1429, %v3962, -inf
      %v4027 = vrot.slane %v4026, 4
      %v4028 = vmax.f32 %v4026, %v4027
      %v4029 = vrot.slane %v4028, 2
      %v4030 = vmax.f32 %v4028, %v4029
      %v4031 = vrot.slane %v4030, 1
      %v4032 = vmax.f32 %v4030, %v4031
      %v4033 = vsel %vm1429, %v3963, -inf
      %v4034 = vrot.slane %v4033, 4
      %v4035 = vmax.f32 %v4033, %v4034
      %v4036 = vrot.slane %v4035, 2
      %v4037 = vmax.f32 %v4035, %v4036
      %v4038 = vrot.slane %v4037, 1
      %v4039 = vmax.f32 %v4037, %v4038
      %v4040 = vsel %vm1429, %v3964, -inf
      %v4041 = vrot.slane %v4040, 4
      %v4042 = vmax.f32 %v4040, %v4041
      %v4043 = vrot.slane %v4042, 2
      %v4044 = vmax.f32 %v4042, %v4043
      %v4045 = vrot.slane %v4044, 1
      %v4046 = vmax.f32 %v4044, %v4045
      %v4047 = vsel %vm1429, %v3965, -inf
      %v4048 = vrot.slane %v4047, 4
      %v4049 = vmax.f32 %v4047, %v4048
      %v4050 = vrot.slane %v4049, 2
      %v4051 = vmax.f32 %v4049, %v4050
      %v4052 = vrot.slane %v4051, 1
      %v4053 = vmax.f32 %v4051, %v4052
      %v4054 = vsel %vm1429, %v3966, -inf
      %v4055 = vrot.slane %v4054, 4
      %v4056 = vmax.f32 %v4054, %v4055
      %v4057 = vrot.slane %v4056, 2
      %v4058 = vmax.f32 %v4056, %v4057
      %v4059 = vrot.slane %v4058, 1
      %v4060 = vmax.f32 %v4058, %v4059
      %v4061 = vsel %vm1429, %v3967, -inf
      %v4062 = vrot.slane %v4061, 4
      %v4063 = vmax.f32 %v4061, %v4062
      %v4064 = vrot.slane %v4063, 2
      %v4065 = vmax.f32 %v4063, %v4064
      %v4066 = vrot.slane %v4065, 1
      %v4067 = vmax.f32 %v4065, %v4066
      %v4068 = vsel %vm1429, %v3968, -inf
      %v4069 = vrot.slane %v4068, 4
      %v4070 = vmax.f32 %v4068, %v4069
      %v4071 = vrot.slane %v4070, 2
      %v4072 = vmax.f32 %v4070, %v4071
      %v4073 = vrot.slane %v4072, 1
      %v4074 = vmax.f32 %v4072, %v4073
      %v4075 = vsel %vm1429, %v3969, -inf
      %v4076 = vrot.slane %v4075, 4
      %v4077 = vmax.f32 %v4075, %v4076
      %v4078 = vrot.slane %v4077, 2
      %v4079 = vmax.f32 %v4077, %v4078
      %v4080 = vrot.slane %v4079, 1
      %v4081 = vmax.f32 %v4079, %v4080
      %v4082 = vsel %vm1429, %v3970, -inf
      %v4083 = vrot.slane %v4082, 4
      %v4084 = vmax.f32 %v4082, %v4083
      %v4085 = vrot.slane %v4084, 2
      %v4086 = vmax.f32 %v4084, %v4085
      %v4087 = vrot.slane %v4086, 1
      %v4088 = vmax.f32 %v4086, %v4087
      %v4089 = vsel %vm1429, %v3971, -inf
      %v4090 = vrot.slane %v4089, 4
      %v4091 = vmax.f32 %v4089, %v4090
      %v4092 = vrot.slane %v4091, 2
      %v4093 = vmax.f32 %v4091, %v4092
      %v4094 = vrot.slane %v4093, 1
      %v4095 = vmax.f32 %v4093, %v4094
      %v4096 = vsel %vm1429, %v3972, -inf
      %v4097 = vrot.slane %v4096, 4
      %v4098 = vmax.f32 %v4096, %v4097
      %v4099 = vrot.slane %v4098, 2
      %v4100 = vmax.f32 %v4098, %v4099
      %v4101 = vrot.slane %v4100, 1
      %v4102 = vmax.f32 %v4100, %v4101
      %v4103 = vsel %vm1429, %v3973, -inf
      %v4104 = vrot.slane %v4103, 4
      %v4105 = vmax.f32 %v4103, %v4104
      %v4106 = vrot.slane %v4105, 2
      %v4107 = vmax.f32 %v4105, %v4106
      %v4108 = vrot.slane %v4107, 1
      %v4109 = vmax.f32 %v4107, %v4108
      %v4110 = vsel %vm1429, %v3974, -inf
      %v4111 = vrot.slane %v4110, 4
      %v4112 = vmax.f32 %v4110, %v4111
      %v4113 = vrot.slane %v4112, 2
      %v4114 = vmax.f32 %v4112, %v4113
      %v4115 = vrot.slane %v4114, 1
      %v4116 = vmax.f32 %v4114, %v4115
      %v4117 = vsel %vm1429, %v3975, -inf
      %v4118 = vrot.slane %v4117, 4
      %v4119 = vmax.f32 %v4117, %v4118
      %v4120 = vrot.slane %v4119, 2
      %v4121 = vmax.f32 %v4119, %v4120
      %v4122 = vrot.slane %v4121, 1
      %v4123 = vmax.f32 %v4121, %v4122
      %v4124 = vsel %vm1429, %v3976, -inf
      %v4125 = vrot.slane %v4124, 4
      %v4126 = vmax.f32 %v4124, %v4125
      %v4127 = vrot.slane %v4126, 2
      %v4128 = vmax.f32 %v4126, %v4127
      %v4129 = vrot.slane %v4128, 1
      %v4130 = vmax.f32 %v4128, %v4129
      %v4131 = vsel %vm1429, %v3977, -inf
      %v4132 = vrot.slane %v4131, 4
      %v4133 = vmax.f32 %v4131, %v4132
      %v4134 = vrot.slane %v4133, 2
      %v4135 = vmax.f32 %v4133, %v4134
      %v4136 = vrot.slane %v4135, 1
      %v4137 = vmax.f32 %v4135, %v4136
      %v4138 = vsel %vm1429, %v3978, -inf
      %v4139 = vrot.slane %v4138, 4
      %v4140 = vmax.f32 %v4138, %v4139
      %v4141 = vrot.slane %v4140, 2
      %v4142 = vmax.f32 %v4140, %v4141
      %v4143 = vrot.slane %v4142, 1
      %v4144 = vmax.f32 %v4142, %v4143
      %v4145 = vsel %vm1429, %v3979, -inf
      %v4146 = vrot.slane %v4145, 4
      %v4147 = vmax.f32 %v4145, %v4146
      %v4148 = vrot.slane %v4147, 2
      %v4149 = vmax.f32 %v4147, %v4148
      %v4150 = vrot.slane %v4149, 1
      %v4151 = vmax.f32 %v4149, %v4150
      %v4152 = vsel %vm1429, %v3980, -inf
      %v4153 = vrot.slane %v4152, 4
      %v4154 = vmax.f32 %v4152, %v4153
      %v4155 = vrot.slane %v4154, 2
      %v4156 = vmax.f32 %v4154, %v4155
      %v4157 = vrot.slane %v4156, 1
      %v4158 = vmax.f32 %v4156, %v4157
      %v4159 = vsel %vm1429, %v3981, -inf
      %v4160 = vrot.slane %v4159, 4
      %v4161 = vmax.f32 %v4159, %v4160
      %v4162 = vrot.slane %v4161, 2
      %v4163 = vmax.f32 %v4161, %v4162
      %v4164 = vrot.slane %v4163, 1
      %v4165 = vmax.f32 %v4163, %v4164
      %v4166 = vsel %vm1429, %v3982, -inf
      %v4167 = vrot.slane %v4166, 4
      %v4168 = vmax.f32 %v4166, %v4167
      %v4169 = vrot.slane %v4168, 2
      %v4170 = vmax.f32 %v4168, %v4169
      %v4171 = vrot.slane %v4170, 1
      %v4172 = vmax.f32 %v4170, %v4171
      %v4173 = vsel %vm1429, %v3983, -inf
      %v4174 = vrot.slane %v4173, 4
      %v4175 = vmax.f32 %v4173, %v4174
      %v4176 = vrot.slane %v4175, 2
      %v4177 = vmax.f32 %v4175, %v4176
      %v4178 = vrot.slane %v4177, 1
      %v4179 = vmax.f32 %v4177, %v4178
      %v4180 = vsel %vm1429, %v3984, -inf
      %v4181 = vrot.slane %v4180, 4
      %v4182 = vmax.f32 %v4180, %v4181
      %v4183 = vrot.slane %v4182, 2
      %v4184 = vmax.f32 %v4182, %v4183
      %v4185 = vrot.slane %v4184, 1
      %v4186 = vmax.f32 %v4184, %v4185
      %v4187 = vsel %vm1429, %v3985, -inf
      %v4188 = vrot.slane %v4187, 4
      %v4189 = vmax.f32 %v4187, %v4188
      %v4190 = vrot.slane %v4189, 2
      %v4191 = vmax.f32 %v4189, %v4190
      %v4192 = vrot.slane %v4191, 1
      %v4193 = vmax.f32 %v4191, %v4192
      %v4194 = vsel %vm1429, %v3986, -inf
      %v4195 = vrot.slane %v4194, 4
      %v4196 = vmax.f32 %v4194, %v4195
      %v4197 = vrot.slane %v4196, 2
      %v4198 = vmax.f32 %v4196, %v4197
      %v4199 = vrot.slane %v4198, 1
      %v4200 = vmax.f32 %v4198, %v4199
      %v4201 = vsel %vm1429, %v3987, -inf
      %v4202 = vrot.slane %v4201, 4
      %v4203 = vmax.f32 %v4201, %v4202
      %v4204 = vrot.slane %v4203, 2
      %v4205 = vmax.f32 %v4203, %v4204
      %v4206 = vrot.slane %v4205, 1
      %v4207 = vmax.f32 %v4205, %v4206
      %v4208 = vsel %vm1429, %v3988, -inf
      %v4209 = vrot.slane %v4208, 4
      %v4210 = vmax.f32 %v4208, %v4209
      %v4211 = vrot.slane %v4210, 2
      %v4212 = vmax.f32 %v4210, %v4211
      %v4213 = vrot.slane %v4212, 1
      %v4214 = vmax.f32 %v4212, %v4213
      %v4215 = vsel %vm1429, %v3989, -inf
      %v4216 = vrot.slane %v4215, 4
      %v4217 = vmax.f32 %v4215, %v4216
      %v4218 = vrot.slane %v4217, 2
      %v4219 = vmax.f32 %v4217, %v4218
      %v4220 = vrot.slane %v4219, 1
      %v4221 = vmax.f32 %v4219, %v4220
      %v4222 = vsel %vm1429, %v3990, -inf
      %v4223 = vrot.slane %v4222, 4
      %v4224 = vmax.f32 %v4222, %v4223
      %v4225 = vrot.slane %v4224, 2
      %v4226 = vmax.f32 %v4224, %v4225
      %v4227 = vrot.slane %v4226, 1
      %v4228 = vmax.f32 %v4226, %v4227
      %v4229 = vsel %vm1429, %v3991, -inf
      %v4230 = vrot.slane %v4229, 4
      %v4231 = vmax.f32 %v4229, %v4230
      %v4232 = vrot.slane %v4231, 2
      %v4233 = vmax.f32 %v4231, %v4232
      %v4234 = vrot.slane %v4233, 1
      %v4235 = vmax.f32 %v4233, %v4234
      %v4236 = vsel %vm1429, %v3992, -inf
      %v4237 = vrot.slane %v4236, 4
      %v4238 = vmax.f32 %v4236, %v4237
      %v4239 = vrot.slane %v4238, 2
      %v4240 = vmax.f32 %v4238, %v4239
      %v4241 = vrot.slane %v4240, 1
      %v4242 = vmax.f32 %v4240, %v4241
      %v4243 = vsel %vm1429, %v3993, -inf
      %v4244 = vrot.slane %v4243, 4
      %v4245 = vmax.f32 %v4243, %v4244
      %v4246 = vrot.slane %v4245, 2
      %v4247 = vmax.f32 %v4245, %v4246
      %v4248 = vrot.slane %v4247, 1
      %v4249 = vmax.f32 %v4247, %v4248
      %v4250 = vsel %vm1429, %v3994, -inf
      %v4251 = vrot.slane %v4250, 4
      %v4252 = vmax.f32 %v4250, %v4251
      %v4253 = vrot.slane %v4252, 2
      %v4254 = vmax.f32 %v4252, %v4253
      %v4255 = vrot.slane %v4254, 1
      %v4256 = vmax.f32 %v4254, %v4255
      %v4257 = vsel %vm1429, %v3995, -inf
      %v4258 = vrot.slane %v4257, 4
      %v4259 = vmax.f32 %v4257, %v4258
      %v4260 = vrot.slane %v4259, 2
      %v4261 = vmax.f32 %v4259, %v4260
      %v4262 = vrot.slane %v4261, 1
      %v4263 = vmax.f32 %v4261, %v4262
      %v4264 = vsel %vm1429, %v3996, -inf
      %v4265 = vrot.slane %v4264, 4
      %v4266 = vmax.f32 %v4264, %v4265
      %v4267 = vrot.slane %v4266, 2
      %v4268 = vmax.f32 %v4266, %v4267
      %v4269 = vrot.slane %v4268, 1
      %v4270 = vmax.f32 %v4268, %v4269
      %v4271 = vsel %vm1429, %v3997, -inf
      %v4272 = vrot.slane %v4271, 4
      %v4273 = vmax.f32 %v4271, %v4272
      %v4274 = vrot.slane %v4273, 2
      %v4275 = vmax.f32 %v4273, %v4274
      %v4276 = vrot.slane %v4275, 1
      %v4277 = vmax.f32 %v4275, %v4276
      %v4278 = vsel %vm1429, %v3998, -inf
      %v4279 = vrot.slane %v4278, 4
      %v4280 = vmax.f32 %v4278, %v4279
      %v4281 = vrot.slane %v4280, 2
      %v4282 = vmax.f32 %v4280, %v4281
      %v4283 = vrot.slane %v4282, 1
      %v4284 = vmax.f32 %v4282, %v4283
      %v4285 = vsel %vm1429, %v3999, -inf
      %v4286 = vrot.slane %v4285, 4
      %v4287 = vmax.f32 %v4285, %v4286
      %v4288 = vrot.slane %v4287, 2
      %v4289 = vmax.f32 %v4287, %v4288
      %v4290 = vrot.slane %v4289, 1
      %v4291 = vmax.f32 %v4289, %v4290
      %v4292 = vsel %vm1429, %v4000, -inf
      %v4293 = vrot.slane %v4292, 4
      %v4294 = vmax.f32 %v4292, %v4293
      %v4295 = vrot.slane %v4294, 2
      %v4296 = vmax.f32 %v4294, %v4295
      %v4297 = vrot.slane %v4296, 1
      %v4298 = vmax.f32 %v4296, %v4297
      %v4299 = vsel %vm1429, %v4001, -inf
      %v4300 = vrot.slane %v4299, 4
      %v4301 = vmax.f32 %v4299, %v4300
      %v4302 = vrot.slane %v4301, 2
      %v4303 = vmax.f32 %v4301, %v4302
      %v4304 = vrot.slane %v4303, 1
      %v4305 = vmax.f32 %v4303, %v4304
      %v4306 = vsel %vm1429, %v4002, -inf
      %v4307 = vrot.slane %v4306, 4
      %v4308 = vmax.f32 %v4306, %v4307
      %v4309 = vrot.slane %v4308, 2
      %v4310 = vmax.f32 %v4308, %v4309
      %v4311 = vrot.slane %v4310, 1
      %v4312 = vmax.f32 %v4310, %v4311
      %v4313 = vsel %vm1429, %v4003, -inf
      %v4314 = vrot.slane %v4313, 4
      %v4315 = vmax.f32 %v4313, %v4314
      %v4316 = vrot.slane %v4315, 2
      %v4317 = vmax.f32 %v4315, %v4316
      %v4318 = vrot.slane %v4317, 1
      %v4319 = vmax.f32 %v4317, %v4318
      %v4320 = vsel %vm1429, %v4004, -inf
      %v4321 = vrot.slane %v4320, 4
      %v4322 = vmax.f32 %v4320, %v4321
      %v4323 = vrot.slane %v4322, 2
      %v4324 = vmax.f32 %v4322, %v4323
      %v4325 = vrot.slane %v4324, 1
      %v4326 = vmax.f32 %v4324, %v4325
      %v4327 = vsel %vm1429, %v4005, -inf
      %v4328 = vrot.slane %v4327, 4
      %v4329 = vmax.f32 %v4327, %v4328
      %v4330 = vrot.slane %v4329, 2
      %v4331 = vmax.f32 %v4329, %v4330
      %v4332 = vrot.slane %v4331, 1
      %v4333 = vmax.f32 %v4331, %v4332
      %v4334 = vsel %vm1429, %v4006, -inf
      %v4335 = vrot.slane %v4334, 4
      %v4336 = vmax.f32 %v4334, %v4335
      %v4337 = vrot.slane %v4336, 2
      %v4338 = vmax.f32 %v4336, %v4337
      %v4339 = vrot.slane %v4338, 1
      %v4340 = vmax.f32 %v4338, %v4339
      %v4341 = vsel %vm1429, %v4007, -inf
      %v4342 = vrot.slane %v4341, 4
      %v4343 = vmax.f32 %v4341, %v4342
      %v4344 = vrot.slane %v4343, 2
      %v4345 = vmax.f32 %v4343, %v4344
      %v4346 = vrot.slane %v4345, 1
      %v4347 = vmax.f32 %v4345, %v4346
      %v4348 = vsel %vm1429, %v4008, -inf
      %v4349 = vrot.slane %v4348, 4
      %v4350 = vmax.f32 %v4348, %v4349
      %v4351 = vrot.slane %v4350, 2
      %v4352 = vmax.f32 %v4350, %v4351
      %v4353 = vrot.slane %v4352, 1
      %v4354 = vmax.f32 %v4352, %v4353
      %v4355 = vsel %vm1429, %v4009, -inf
      %v4356 = vrot.slane %v4355, 4
      %v4357 = vmax.f32 %v4355, %v4356
      %v4358 = vrot.slane %v4357, 2
      %v4359 = vmax.f32 %v4357, %v4358
      %v4360 = vrot.slane %v4359, 1
      %v4361 = vmax.f32 %v4359, %v4360
      %v4362 = vsel %vm1429, %v4010, -inf
      %v4363 = vrot.slane %v4362, 4
      %v4364 = vmax.f32 %v4362, %v4363
      %v4365 = vrot.slane %v4364, 2
      %v4366 = vmax.f32 %v4364, %v4365
      %v4367 = vrot.slane %v4366, 1
      %v4368 = vmax.f32 %v4366, %v4367
      %v4369 = vsel %vm1429, %v4011, -inf
      %v4370 = vrot.slane %v4369, 4
      %v4371 = vmax.f32 %v4369, %v4370
      %v4372 = vrot.slane %v4371, 2
      %v4373 = vmax.f32 %v4371, %v4372
      %v4374 = vrot.slane %v4373, 1
      %v4375 = vmax.f32 %v4373, %v4374
      %v4376 = vsel %vm1429, %v4012, -inf
      %v4377 = vrot.slane %v4376, 4
      %v4378 = vmax.f32 %v4376, %v4377
      %v4379 = vrot.slane %v4378, 2
      %v4380 = vmax.f32 %v4378, %v4379
      %v4381 = vrot.slane %v4380, 1
      %v4382 = vmax.f32 %v4380, %v4381
      %v4383 = vsel %vm1429, %v4013, -inf
      %v4384 = vrot.slane %v4383, 4
      %v4385 = vmax.f32 %v4383, %v4384
      %v4386 = vrot.slane %v4385, 2
      %v4387 = vmax.f32 %v4385, %v4386
      %v4388 = vrot.slane %v4387, 1
      %v4389 = vmax.f32 %v4387, %v4388
      %v4390 = vsel %vm1429, %v4014, -inf
      %v4391 = vrot.slane %v4390, 4
      %v4392 = vmax.f32 %v4390, %v4391
      %v4393 = vrot.slane %v4392, 2
      %v4394 = vmax.f32 %v4392, %v4393
      %v4395 = vrot.slane %v4394, 1
      %v4396 = vmax.f32 %v4394, %v4395
      %v4397 = vsel %vm1429, %v4015, -inf
      %v4398 = vrot.slane %v4397, 4
      %v4399 = vmax.f32 %v4397, %v4398
      %v4400 = vrot.slane %v4399, 2
      %v4401 = vmax.f32 %v4399, %v4400
      %v4402 = vrot.slane %v4401, 1
      %v4403 = vmax.f32 %v4401, %v4402
      %v4404 = vsel %vm1429, %v4016, -inf
      %v4405 = vrot.slane %v4404, 4
      %v4406 = vmax.f32 %v4404, %v4405
      %v4407 = vrot.slane %v4406, 2
      %v4408 = vmax.f32 %v4406, %v4407
      %v4409 = vrot.slane %v4408, 1
      %v4410 = vmax.f32 %v4408, %v4409
      %v4411 = vsel %vm1429, %v4017, -inf
      %v4412 = vrot.slane %v4411, 4
      %v4413 = vmax.f32 %v4411, %v4412
      %v4414 = vrot.slane %v4413, 2
      %v4415 = vmax.f32 %v4413, %v4414
      %v4416 = vrot.slane %v4415, 1
      %v4417 = vmax.f32 %v4415, %v4416
      %v4418 = vsel %vm1429, %v4018, -inf
      %v4419 = vrot.slane %v4418, 4
      %v4420 = vmax.f32 %v4418, %v4419
      %v4421 = vrot.slane %v4420, 2
      %v4422 = vmax.f32 %v4420, %v4421
      %v4423 = vrot.slane %v4422, 1
      %v4424 = vmax.f32 %v4422, %v4423
      %v4425 = vsel %vm1429, %v4019, -inf
      %v4426 = vrot.slane %v4425, 4
      %v4427 = vmax.f32 %v4425, %v4426
      %v4428 = vrot.slane %v4427, 2
      %v4429 = vmax.f32 %v4427, %v4428
      %v4430 = vrot.slane %v4429, 1
      %v4431 = vmax.f32 %v4429, %v4430
      %v4432 = vsel %vm1429, %v4020, -inf
      %v4433 = vrot.slane %v4432, 4
      %v4434 = vmax.f32 %v4432, %v4433
      %v4435 = vrot.slane %v4434, 2
      %v4436 = vmax.f32 %v4434, %v4435
      %v4437 = vrot.slane %v4436, 1
      %v4438 = vmax.f32 %v4436, %v4437
      %v4439 = vsel %vm1429, %v4021, -inf
      %v4440 = vrot.slane %v4439, 4
      %v4441 = vmax.f32 %v4439, %v4440
      %v4442 = vrot.slane %v4441, 2
      %v4443 = vmax.f32 %v4441, %v4442
      %v4444 = vrot.slane %v4443, 1
      %v4445 = vmax.f32 %v4443, %v4444
      %v4446 = vsel %vm1429, %v4022, -inf
      %v4447 = vrot.slane %v4446, 4
      %v4448 = vmax.f32 %v4446, %v4447
      %v4449 = vrot.slane %v4448, 2
      %v4450 = vmax.f32 %v4448, %v4449
      %v4451 = vrot.slane %v4450, 1
      %v4452 = vmax.f32 %v4450, %v4451
      %v4453 = vsel %vm1429, %v4023, -inf
      %v4454 = vrot.slane %v4453, 4
      %v4455 = vmax.f32 %v4453, %v4454
      %v4456 = vrot.slane %v4455, 2
      %v4457 = vmax.f32 %v4455, %v4456
      %v4458 = vrot.slane %v4457, 1
      %v4459 = vmax.f32 %v4457, %v4458
      %v4460 = vsel %vm1429, %v4024, -inf
      %v4461 = vrot.slane %v4460, 4
      %v4462 = vmax.f32 %v4460, %v4461
      %v4463 = vrot.slane %v4462, 2
      %v4464 = vmax.f32 %v4462, %v4463
      %v4465 = vrot.slane %v4464, 1
      %v4466 = vmax.f32 %v4464, %v4465
      %v4467 = vsel %vm1429, %v4025, -inf
      %v4468 = vrot.slane %v4467, 4
      %v4469 = vmax.f32 %v4467, %v4468
      %v4470 = vrot.slane %v4469, 2
      %v4471 = vmax.f32 %v4469, %v4470
      %v4472 = vrot.slane %v4471, 1
      %v4473 = vmax.f32 %v4471, %v4472
      %s4474 = scalar_lea.vmem %s7, 64
      %v4475 = vld [vmem:[%s4474] sm:$0xff]
      %v4476 = vld [vmem:[%s4474 + $0x8] sm:$0xff]
      %v4477 = vld [vmem:[%s4474 + $0x10] sm:$0xff]
      %v4478 = vld [vmem:[%s4474 + $0x18] sm:$0xff]
      %v4479 = vld [vmem:[%s4474 + $0x20] sm:$0xff]
      %v4480 = vld [vmem:[%s4474 + $0x28] sm:$0xff]
      %v4481 = vld [vmem:[%s4474 + $0x30] sm:$0xff]
      %v4482 = vld [vmem:[%s4474 + $0x38] sm:$0xff]
      %v4483 = vpack.c.bf16 %v4032, %v4032
      %v4484 = vpack.c.bf16 %v4039, %v4039
      %v4485 = vpack.c.bf16 %v4046, %v4046
      %v4486 = vpack.c.bf16 %v4053, %v4053
      %v4487 = vpack.c.bf16 %v4060, %v4060
      %v4488 = vpack.c.bf16 %v4067, %v4067
      %v4489 = vpack.c.bf16 %v4074, %v4074
      %v4490 = vpack.c.bf16 %v4081, %v4081
      %v4491 = vpack.c.bf16 %v4088, %v4088
      %v4492 = vpack.c.bf16 %v4095, %v4095
      %v4493 = vpack.c.bf16 %v4102, %v4102
      %v4494 = vpack.c.bf16 %v4109, %v4109
      %v4495 = vpack.c.bf16 %v4116, %v4116
      %v4496 = vpack.c.bf16 %v4123, %v4123
      %v4497 = vpack.c.bf16 %v4130, %v4130
      %v4498 = vpack.c.bf16 %v4137, %v4137
      %v4499 = vpack.c.bf16 %v4144, %v4144
      %v4500 = vpack.c.bf16 %v4151, %v4151
      %v4501 = vpack.c.bf16 %v4158, %v4158
      %v4502 = vpack.c.bf16 %v4165, %v4165
      %v4503 = vpack.c.bf16 %v4172, %v4172
      %v4504 = vpack.c.bf16 %v4179, %v4179
      %v4505 = vpack.c.bf16 %v4186, %v4186
      %v4506 = vpack.c.bf16 %v4193, %v4193
      %v4507 = vpack.c.bf16 %v4200, %v4200
      %v4508 = vpack.c.bf16 %v4207, %v4207
      %v4509 = vpack.c.bf16 %v4214, %v4214
      %v4510 = vpack.c.bf16 %v4221, %v4221
      %v4511 = vpack.c.bf16 %v4228, %v4228
      %v4512 = vpack.c.bf16 %v4235, %v4235
      %v4513 = vpack.c.bf16 %v4242, %v4242
      %v4514 = vpack.c.bf16 %v4249, %v4249
      %v4515 = vpack.c.bf16 %v4256, %v4256
      %v4516 = vpack.c.bf16 %v4263, %v4263
      %v4517 = vpack.c.bf16 %v4270, %v4270
      %v4518 = vpack.c.bf16 %v4277, %v4277
      %v4519 = vpack.c.bf16 %v4284, %v4284
      %v4520 = vpack.c.bf16 %v4291, %v4291
      %v4521 = vpack.c.bf16 %v4298, %v4298
      %v4522 = vpack.c.bf16 %v4305, %v4305
      %v4523 = vpack.c.bf16 %v4312, %v4312
      %v4524 = vpack.c.bf16 %v4319, %v4319
      %v4525 = vpack.c.bf16 %v4326, %v4326
      %v4526 = vpack.c.bf16 %v4333, %v4333
      %v4527 = vpack.c.bf16 %v4340, %v4340
      %v4528 = vpack.c.bf16 %v4347, %v4347
      %v4529 = vpack.c.bf16 %v4354, %v4354
      %v4530 = vpack.c.bf16 %v4361, %v4361
      %v4531 = vpack.c.bf16 %v4368, %v4368
      %v4532 = vpack.c.bf16 %v4375, %v4375
      %v4533 = vpack.c.bf16 %v4382, %v4382
      %v4534 = vpack.c.bf16 %v4389, %v4389
      %v4535 = vpack.c.bf16 %v4396, %v4396
      %v4536 = vpack.c.bf16 %v4403, %v4403
      %v4537 = vpack.c.bf16 %v4410, %v4410
      %v4538 = vpack.c.bf16 %v4417, %v4417
      %v4539 = vpack.c.bf16 %v4424, %v4424
      %v4540 = vpack.c.bf16 %v4431, %v4431
      %v4541 = vpack.c.bf16 %v4438, %v4438
      %v4542 = vpack.c.bf16 %v4445, %v4445
      %v4543 = vpack.c.bf16 %v4452, %v4452
      %v4544 = vpack.c.bf16 %v4459, %v4459
      %v4545 = vpack.c.bf16 %v4466, %v4466
      %v4546 = vpack.c.bf16 %v4473, %v4473
      %v4547 = vpack.c.bf16 %v4476, %v4475
      %v4548 = vpack.c.bf16 %v4478, %v4477
      %v4549 = vpack.c.bf16 %v4480, %v4479
      %v4550 = vpack.c.bf16 %v4482, %v4481
      %s4551 = scalar_lea.vmem %s8, 1
      %v4552 = vld [vmem:[%s4551] sm:$0x1]
      %v4554 = vlaneseq
      %v4555 = vshrl.u32 %v4554, 7
      %v4556 = vsub.s32 0, %v4555
      %v4557 = vrot.slane %v4552, %v4556
      %v4623 = vunpack.c.l.b16 %v4483
      %v4624 = vunpack.c.l.b16 %v4484
      %v4625 = vunpack.c.l.b16 %v4485
      %v4626 = vunpack.c.l.b16 %v4486
      %v4627 = vunpack.c.l.b16 %v4487
      %v4628 = vunpack.c.l.b16 %v4488
      %v4629 = vunpack.c.l.b16 %v4489
      %v4630 = vunpack.c.l.b16 %v4490
      %v4631 = vunpack.c.l.b16 %v4491
      %v4632 = vunpack.c.l.b16 %v4492
      %v4633 = vunpack.c.l.b16 %v4493
      %v4634 = vunpack.c.l.b16 %v4494
      %v4635 = vunpack.c.l.b16 %v4495
      %v4636 = vunpack.c.l.b16 %v4496
      %v4637 = vunpack.c.l.b16 %v4497
      %v4638 = vunpack.c.l.b16 %v4498
      %v4639 = vunpack.c.l.b16 %v4499
      %v4640 = vunpack.c.l.b16 %v4500
      %v4641 = vunpack.c.l.b16 %v4501
      %v4642 = vunpack.c.l.b16 %v4502
      %v4643 = vunpack.c.l.b16 %v4503
      %v4644 = vunpack.c.l.b16 %v4504
      %v4645 = vunpack.c.l.b16 %v4505
      %v4646 = vunpack.c.l.b16 %v4506
      %v4647 = vunpack.c.l.b16 %v4507
      %v4648 = vunpack.c.l.b16 %v4508
      %v4649 = vunpack.c.l.b16 %v4509
      %v4650 = vunpack.c.l.b16 %v4510
      %v4651 = vunpack.c.l.b16 %v4511
      %v4652 = vunpack.c.l.b16 %v4512
      %v4653 = vunpack.c.l.b16 %v4513
      %v4654 = vunpack.c.l.b16 %v4514
      %v4655 = vunpack.c.l.b16 %v4515
      %v4656 = vunpack.c.l.b16 %v4516
      %v4657 = vunpack.c.l.b16 %v4517
      %v4658 = vunpack.c.l.b16 %v4518
      %v4659 = vunpack.c.l.b16 %v4519
      %v4660 = vunpack.c.l.b16 %v4520
      %v4661 = vunpack.c.l.b16 %v4521
      %v4662 = vunpack.c.l.b16 %v4522
      %v4663 = vunpack.c.l.b16 %v4523
      %v4664 = vunpack.c.l.b16 %v4524
      %v4665 = vunpack.c.l.b16 %v4525
      %v4666 = vunpack.c.l.b16 %v4526
      %v4667 = vunpack.c.l.b16 %v4527
      %v4668 = vunpack.c.l.b16 %v4528
      %v4669 = vunpack.c.l.b16 %v4529
      %v4670 = vunpack.c.l.b16 %v4530
      %v4671 = vunpack.c.l.b16 %v4531
      %v4672 = vunpack.c.l.b16 %v4532
      %v4673 = vunpack.c.l.b16 %v4533
      %v4674 = vunpack.c.l.b16 %v4534
      %v4675 = vunpack.c.l.b16 %v4535
      %v4676 = vunpack.c.l.b16 %v4536
      %v4677 = vunpack.c.l.b16 %v4537
      %v4678 = vunpack.c.l.b16 %v4538
      %v4679 = vunpack.c.l.b16 %v4539
      %v4680 = vunpack.c.l.b16 %v4540
      %v4681 = vunpack.c.l.b16 %v4541
      %v4682 = vunpack.c.l.b16 %v4542
      %v4683 = vunpack.c.l.b16 %v4543
      %v4684 = vunpack.c.l.b16 %v4544
      %v4685 = vunpack.c.l.b16 %v4545
      %v4686 = vunpack.c.l.b16 %v4546
      %v4687 = vsel %vm3115, %v4624, %v4623
      %v4688 = vsel %vm3117, %v4625, %v4687
      %v4689 = vsel %vm3119, %v4626, %v4688
      %v4690 = vsel %vm3121, %v4627, %v4689
      %v4691 = vsel %vm3123, %v4628, %v4690
      %v4692 = vsel %vm3125, %v4629, %v4691
      %v4693 = vsel %vm3127, %v4630, %v4692
      %v4694 = vsel %vm3115, %v4632, %v4631
      %v4695 = vsel %vm3117, %v4633, %v4694
      %v4696 = vsel %vm3119, %v4634, %v4695
      %v4697 = vsel %vm3121, %v4635, %v4696
      %v4698 = vsel %vm3123, %v4636, %v4697
      %v4699 = vsel %vm3125, %v4637, %v4698
      %v4700 = vsel %vm3127, %v4638, %v4699
      %v4701 = vsel %vm3115, %v4640, %v4639
      %v4702 = vsel %vm3117, %v4641, %v4701
      %v4703 = vsel %vm3119, %v4642, %v4702
      %v4704 = vsel %vm3121, %v4643, %v4703
      %v4705 = vsel %vm3123, %v4644, %v4704
      %v4706 = vsel %vm3125, %v4645, %v4705
      %v4707 = vsel %vm3127, %v4646, %v4706
      %v4708 = vsel %vm3115, %v4648, %v4647
      %v4709 = vsel %vm3117, %v4649, %v4708
      %v4710 = vsel %vm3119, %v4650, %v4709
      %v4711 = vsel %vm3121, %v4651, %v4710
      %v4712 = vsel %vm3123, %v4652, %v4711
      %v4713 = vsel %vm3125, %v4653, %v4712
      %v4714 = vsel %vm3127, %v4654, %v4713
      %v4715 = vsel %vm3115, %v4656, %v4655
      %v4716 = vsel %vm3117, %v4657, %v4715
      %v4717 = vsel %vm3119, %v4658, %v4716
      %v4718 = vsel %vm3121, %v4659, %v4717
      %v4719 = vsel %vm3123, %v4660, %v4718
      %v4720 = vsel %vm3125, %v4661, %v4719
      %v4721 = vsel %vm3127, %v4662, %v4720
      %v4722 = vsel %vm3115, %v4664, %v4663
      %v4723 = vsel %vm3117, %v4665, %v4722
      %v4724 = vsel %vm3119, %v4666, %v4723
      %v4725 = vsel %vm3121, %v4667, %v4724
      %v4726 = vsel %vm3123, %v4668, %v4725
      %v4727 = vsel %vm3125, %v4669, %v4726
      %v4728 = vsel %vm3127, %v4670, %v4727
      %v4729 = vsel %vm3115, %v4672, %v4671
      %v4730 = vsel %vm3117, %v4673, %v4729
      %v4731 = vsel %vm3119, %v4674, %v4730
      %v4732 = vsel %vm3121, %v4675, %v4731
      %v4733 = vsel %vm3123, %v4676, %v4732
      %v4734 = vsel %vm3125, %v4677, %v4733
      %v4735 = vsel %vm3127, %v4678, %v4734
      %v4736 = vsel %vm3115, %v4680, %v4679
      %v4737 = vsel %vm3117, %v4681, %v4736
      %v4738 = vsel %vm3119, %v4682, %v4737
      %v4739 = vsel %vm3121, %v4683, %v4738
      %v4740 = vsel %vm3123, %v4684, %v4739
      %v4741 = vsel %vm3125, %v4685, %v4740
      %v4742 = vsel %vm3127, %v4686, %v4741
      %v4743 = vpack.c.b16 %v4700, %v4693
      %v4744 = vpack.c.b16 %v4714, %v4707
      %v4745 = vpack.c.b16 %v4728, %v4721
      %v4746 = vpack.c.b16 %v4742, %v4735
      %v4748 = vsel %vm1429, %v4743, 0
      %v4751 = vsel %vm1429, %v4744, 0
      %v4754 = vsel %vm1429, %v4745, 0
      %v4757 = vsel %vm1429, %v4746, 0
      %4759 = vmatprep.subr.bf16.mxu0 0
      %4760 = vmatpush1.bf16.msra.mxu0 %v4547
      %4761 = vmatprep.subr.bf16.mxu0 0
      %4762 = vmatpush1.bf16.msra.mxu0 %v4548
      %4763 = vmatprep.subr.bf16.mxu0 0
      %4764 = vmatpush1.bf16.msra.mxu0 %v4549
      %4765 = vmatprep.subr.bf16.mxu0 0
      %4766 = vmatpush1.bf16.msra.mxu0 %v4550
      %4767 = vmatprep.subr.bf16.mxu0 0
      %4768 = vmatpush1.bf16.msra.mxu0 0
      %4769 = vmatprep.subr.bf16.mxu0 0
      %4770 = vmatpush1.bf16.msra.mxu0 0
      %4771 = vmatprep.subr.bf16.mxu0 0
      %4772 = vmatpush1.bf16.msra.mxu0 0
      %4773 = vmatprep.subr.bf16.mxu0 0
      %4774 = vmatpush1.bf16.msra.mxu0 0
      %4775 = vmatprep.subr.bf16.mxu0 0
      %4776 = vmatpush1.bf16.msra.mxu0 0
      %4777 = vmatprep.subr.bf16.mxu0 0
      %4778 = vmatpush1.bf16.msra.mxu0 0
      %4779 = vmatprep.subr.bf16.mxu0 0
      %4780 = vmatpush1.bf16.msra.mxu0 0
      %4781 = vmatprep.subr.bf16.mxu0 0
      %4782 = vmatpush1.bf16.msra.mxu0 0
      %4783 = vmatprep.subr.bf16.mxu0 0
      %4784 = vmatpush1.bf16.msra.mxu0 0
      %4785 = vmatprep.subr.bf16.mxu0 0
      %4786 = vmatpush1.bf16.msra.mxu0 0
      %4787 = vmatprep.subr.bf16.mxu0 0
      %4788 = vmatpush1.bf16.msra.mxu0 0
      %4789 = vmatprep.subr.bf16.mxu0 0
      %4790 = vmatpush1.bf16.msra.mxu0 0
      %4791 = vmatprep.mubr.bf16.mxu0 0
      %4792 = vmatmul.mubr.bf16.gmra.mrb[0].mxu0 %v4748
      %v4793 = vpop.f32.mrb[0].mxu0
      %v4794 = vadd.f32 %v4557, %v4793
      %v4795 = vpop.f32.mrb[0].mxu0
      %v4796 = vpop.f32.mrb[0].mxu0
      %v4797 = vadd.f32 %v4557, %v4796
      %v4798 = vpop.f32.mrb[0].mxu0
      %4799 = vmatprep.mubr.bf16.mxu0 0
      %4800 = vmatmul.mubr.bf16.gmra.mrb[0].mxu0 %v4751
      %v4801 = vpop.f32.mrb[0].mxu0
      %v4802 = vadd.f32 %v4557, %v4801
      %v4803 = vpop.f32.mrb[0].mxu0
      %v4804 = vpop.f32.mrb[0].mxu0
      %v4805 = vadd.f32 %v4557, %v4804
      %v4806 = vpop.f32.mrb[0].mxu0
      %4807 = vmatprep.mubr.bf16.mxu0 0
      %4808 = vmatmul.mubr.bf16.gmra.mrb[0].mxu0 %v4754
      %v4809 = vpop.f32.mrb[0].mxu0
      %v4810 = vadd.f32 %v4557, %v4809
      %v4811 = vpop.f32.mrb[0].mxu0
      %v4812 = vpop.f32.mrb[0].mxu0
      %v4813 = vadd.f32 %v4557, %v4812
      %v4814 = vpop.f32.mrb[0].mxu0
      %4815 = vmatprep.mubr.bf16.mxu0 0
      %4816 = vmatmul.mubr.bf16.gmra.mrb[0].mxu0 %v4757
      %v4817 = vpop.f32.mrb[0].mxu0
      %v4818 = vadd.f32 %v4557, %v4817
      %v4819 = vpop.f32.mrb[0].mxu0
      %v4820 = vpop.f32.mrb[0].mxu0
      %v4821 = vadd.f32 %v4557, %v4820
      %v4822 = vpop.f32.mrb[0].mxu0
      %4823 = vdwg.mxu0
      %v4824 = vmax.f32 %v4794, 0.0
      %v4825 = vmax.f32 %v4797, 0.0
      %v4826 = vmax.f32 %v4802, 0.0
      %v4827 = vmax.f32 %v4805, 0.0
      %v4828 = vmax.f32 %v4810, 0.0
      %v4829 = vmax.f32 %v4813, 0.0
      %v4830 = vmax.f32 %v4818, 0.0
      %v4831 = vmax.f32 %v4821, 0.0
      %s4832 = scalar_lea.vmem %s5, 128
      %v4833 = vld [vmem:[%s4832] sm:$0xff]
      %v4834 = vld [vmem:[%s4832 + $0x8] sm:$0xff]
      %v4835 = vld [vmem:[%s4832 + $0x10] sm:$0xff]
      %v4836 = vld [vmem:[%s4832 + $0x18] sm:$0xff]
      %v4837 = vld [vmem:[%s4832 + $0x20] sm:$0xff]
      %v4838 = vld [vmem:[%s4832 + $0x28] sm:$0xff]
      %v4839 = vld [vmem:[%s4832 + $0x30] sm:$0xff]
      %v4840 = vld [vmem:[%s4832 + $0x38] sm:$0xff]
      %v4841 = vpack.c.bf16 %v4834, %v4833
      %v4842 = vpack.c.bf16 %v4836, %v4835
      %v4843 = vpack.c.bf16 %v4838, %v4837
      %v4844 = vpack.c.bf16 %v4840, %v4839
      %s4845 = scalar_lea.vmem %s6, 2
      %v4846 = vld [vmem:[%s4845] sm:$0x1]
      %v4848 = vlaneseq
      %v4849 = vshrl.u32 %v4848, 7
      %v4850 = vsub.s32 0, %v4849
      %v4851 = vrot.slane %v4846, %v4850
      %4853 = vmatprep.subr.bf16.mxu0 0
      %4854 = vmatpush1.bf16.msra.mxu0 %v4841
      %4855 = vmatprep.subr.bf16.mxu0 0
      %4856 = vmatpush1.bf16.msra.mxu0 %v4842
      %4857 = vmatprep.subr.bf16.mxu0 0
      %4858 = vmatpush1.bf16.msra.mxu0 %v4843
      %4859 = vmatprep.subr.bf16.mxu0 0
      %4860 = vmatpush1.bf16.msra.mxu0 %v4844
      %4861 = vmatprep.subr.bf16.mxu0 0
      %4862 = vmatpush1.bf16.msra.mxu0 0
      %4863 = vmatprep.subr.bf16.mxu0 0
      %4864 = vmatpush1.bf16.msra.mxu0 0
      %4865 = vmatprep.subr.bf16.mxu0 0
      %4866 = vmatpush1.bf16.msra.mxu0 0
      %4867 = vmatprep.subr.bf16.mxu0 0
      %4868 = vmatpush1.bf16.msra.mxu0 0
      %4869 = vmatprep.subr.bf16.mxu0 0
      %4870 = vmatpush1.bf16.msra.mxu0 0
      %4871 = vmatprep.subr.bf16.mxu0 0
      %4872 = vmatpush1.bf16.msra.mxu0 0
      %4873 = vmatprep.subr.bf16.mxu0 0
      %4874 = vmatpush1.bf16.msra.mxu0 0
      %4875 = vmatprep.subr.bf16.mxu0 0
      %4876 = vmatpush1.bf16.msra.mxu0 0
      %4877 = vmatprep.subr.bf16.mxu0 0
      %4878 = vmatpush1.bf16.msra.mxu0 0
      %4879 = vmatprep.subr.bf16.mxu0 0
      %4880 = vmatpush1.bf16.msra.mxu0 0
      %4881 = vmatprep.subr.bf16.mxu0 0
      %4882 = vmatpush1.bf16.msra.mxu0 0
      %4883 = vmatprep.subr.bf16.mxu0 0
      %4884 = vmatpush1.bf16.msra.mxu0 0
      %4885 = vmatprep.mubr.bf16.mxu0 0
      %4886 = vmatmul.mubr.bf16.gmra.mrb[0].mxu0 %v1431
      %v4887 = vpop.f32.mrb[0].mxu0
      %v4888 = vadd.f32 %v4851, %v4887
      %v4889 = vpop.f32.mrb[0].mxu0
      %v4890 = vpop.f32.mrb[0].mxu0
      %v4891 = vadd.f32 %v4851, %v4890
      %v4892 = vpop.f32.mrb[0].mxu0
      %4893 = vmatprep.mubr.bf16.mxu0 0
      %4894 = vmatmul.mubr.bf16.gmra.mrb[0].mxu0 %v1434
      %v4895 = vpop.f32.mrb[0].mxu0
      %v4896 = vadd.f32 %v4851, %v4895
      %v4897 = vpop.f32.mrb[0].mxu0
      %v4898 = vpop.f32.mrb[0].mxu0
      %v4899 = vadd.f32 %v4851, %v4898
      %v4900 = vpop.f32.mrb[0].mxu0
      %4901 = vmatprep.mubr.bf16.mxu0 0
      %4902 = vmatmul.mubr.bf16.gmra.mrb[0].mxu0 %v1437
      %v4903 = vpop.f32.mrb[0].mxu0
      %v4904 = vadd.f32 %v4851, %v4903
      %v4905 = vpop.f32.mrb[0].mxu0
      %v4906 = vpop.f32.mrb[0].mxu0
      %v4907 = vadd.f32 %v4851, %v4906
      %v4908 = vpop.f32.mrb[0].mxu0
      %4909 = vmatprep.mubr.bf16.mxu0 0
      %4910 = vmatmul.mubr.bf16.gmra.mrb[0].mxu0 %v1440
      %v4911 = vpop.f32.mrb[0].mxu0
      %v4912 = vadd.f32 %v4851, %v4911
      %v4913 = vpop.f32.mrb[0].mxu0
      %v4914 = vpop.f32.mrb[0].mxu0
      %v4915 = vadd.f32 %v4851, %v4914
      %v4916 = vpop.f32.mrb[0].mxu0
      %4917 = vmatprep.mubr.bf16.mxu0 0
      %4918 = vmatmul.mubr.bf16.gmra.mrb[0].mxu0 %v1443
      %v4919 = vpop.f32.mrb[0].mxu0
      %v4920 = vadd.f32 %v4851, %v4919
      %v4921 = vpop.f32.mrb[0].mxu0
      %v4922 = vpop.f32.mrb[0].mxu0
      %v4923 = vadd.f32 %v4851, %v4922
      %v4924 = vpop.f32.mrb[0].mxu0
      %4925 = vmatprep.mubr.bf16.mxu0 0
      %4926 = vmatmul.mubr.bf16.gmra.mrb[0].mxu0 %v1446
      %v4927 = vpop.f32.mrb[0].mxu0
      %v4928 = vadd.f32 %v4851, %v4927
      %v4929 = vpop.f32.mrb[0].mxu0
      %v4930 = vpop.f32.mrb[0].mxu0
      %v4931 = vadd.f32 %v4851, %v4930
      %v4932 = vpop.f32.mrb[0].mxu0
      %4933 = vmatprep.mubr.bf16.mxu0 0
      %4934 = vmatmul.mubr.bf16.gmra.mrb[0].mxu0 %v1449
      %v4935 = vpop.f32.mrb[0].mxu0
      %v4936 = vadd.f32 %v4851, %v4935
      %v4937 = vpop.f32.mrb[0].mxu0
      %v4938 = vpop.f32.mrb[0].mxu0
      %v4939 = vadd.f32 %v4851, %v4938
      %v4940 = vpop.f32.mrb[0].mxu0
      %4941 = vmatprep.mubr.bf16.mxu0 0
      %4942 = vmatmul.mubr.bf16.gmra.mrb[0].mxu0 %v1452
      %v4943 = vpop.f32.mrb[0].mxu0
      %v4944 = vadd.f32 %v4851, %v4943
      %v4945 = vpop.f32.mrb[0].mxu0
      %v4946 = vpop.f32.mrb[0].mxu0
      %v4947 = vadd.f32 %v4851, %v4946
      %v4948 = vpop.f32.mrb[0].mxu0
      %4949 = vmatprep.mubr.bf16.mxu0 0
      %4950 = vmatmul.mubr.bf16.gmra.mrb[0].mxu0 %v1455
      %v4951 = vpop.f32.mrb[0].mxu0
      %v4952 = vadd.f32 %v4851, %v4951
      %v4953 = vpop.f32.mrb[0].mxu0
      %v4954 = vpop.f32.mrb[0].mxu0
      %v4955 = vadd.f32 %v4851, %v4954
      %v4956 = vpop.f32.mrb[0].mxu0
      %4957 = vmatprep.mubr.bf16.mxu0 0
      %4958 = vmatmul.mubr.bf16.gmra.mrb[0].mxu0 %v1458
      %v4959 = vpop.f32.mrb[0].mxu0
      %v4960 = vadd.f32 %v4851, %v4959
      %v4961 = vpop.f32.mrb[0].mxu0
      %v4962 = vpop.f32.mrb[0].mxu0
      %v4963 = vadd.f32 %v4851, %v4962
      %v4964 = vpop.f32.mrb[0].mxu0
      %4965 = vmatprep.mubr.bf16.mxu0 0
      %4966 = vmatmul.mubr.bf16.gmra.mrb[0].mxu0 %v1461
      %v4967 = vpop.f32.mrb[0].mxu0
      %v4968 = vadd.f32 %v4851, %v4967
      %v4969 = vpop.f32.mrb[0].mxu0
      %v4970 = vpop.f32.mrb[0].mxu0
      %v4971 = vadd.f32 %v4851, %v4970
      %v4972 = vpop.f32.mrb[0].mxu0
      %4973 = vmatprep.mubr.bf16.mxu0 0
      %4974 = vmatmul.mubr.bf16.gmra.mrb[0].mxu0 %v1464
      %v4975 = vpop.f32.mrb[0].mxu0
      %v4976 = vadd.f32 %v4851, %v4975
      %v4977 = vpop.f32.mrb[0].mxu0
      %v4978 = vpop.f32.mrb[0].mxu0
      %v4979 = vadd.f32 %v4851, %v4978
      %v4980 = vpop.f32.mrb[0].mxu0
      %4981 = vmatprep.mubr.bf16.mxu0 0
      %4982 = vmatmul.mubr.bf16.gmra.mrb[0].mxu0 %v1467
      %v4983 = vpop.f32.mrb[0].mxu0
      %v4984 = vadd.f32 %v4851, %v4983
      %v4985 = vpop.f32.mrb[0].mxu0
      %v4986 = vpop.f32.mrb[0].mxu0
      %v4987 = vadd.f32 %v4851, %v4986
      %v4988 = vpop.f32.mrb[0].mxu0
      %4989 = vmatprep.mubr.bf16.mxu0 0
      %4990 = vmatmul.mubr.bf16.gmra.mrb[0].mxu0 %v1470
      %v4991 = vpop.f32.mrb[0].mxu0
      %v4992 = vadd.f32 %v4851, %v4991
      %v4993 = vpop.f32.mrb[0].mxu0
      %v4994 = vpop.f32.mrb[0].mxu0
      %v4995 = vadd.f32 %v4851, %v4994
      %v4996 = vpop.f32.mrb[0].mxu0
      %4997 = vmatprep.mubr.bf16.mxu0 0
      %4998 = vmatmul.mubr.bf16.gmra.mrb[0].mxu0 %v1473
      %v4999 = vpop.f32.mrb[0].mxu0
      %v5000 = vadd.f32 %v4851, %v4999
      %v5001 = vpop.f32.mrb[0].mxu0
      %v5002 = vpop.f32.mrb[0].mxu0
      %v5003 = vadd.f32 %v4851, %v5002
      %v5004 = vpop.f32.mrb[0].mxu0
      %5005 = vmatprep.mubr.bf16.mxu0 0
      %5006 = vmatmul.mubr.bf16.gmra.mrb[0].mxu0 %v1476
      %v5007 = vpop.f32.mrb[0].mxu0
      %v5008 = vadd.f32 %v4851, %v5007
      %v5009 = vpop.f32.mrb[0].mxu0
      %v5010 = vpop.f32.mrb[0].mxu0
      %v5011 = vadd.f32 %v4851, %v5010
      %v5012 = vpop.f32.mrb[0].mxu0
      %5013 = vmatprep.mubr.bf16.mxu0 0
      %5014 = vmatmul.mubr.bf16.gmra.mrb[0].mxu0 %v1479
      %v5015 = vpop.f32.mrb[0].mxu0
      %v5016 = vadd.f32 %v4851, %v5015
      %v5017 = vpop.f32.mrb[0].mxu0
      %v5018 = vpop.f32.mrb[0].mxu0
      %v5019 = vadd.f32 %v4851, %v5018
      %v5020 = vpop.f32.mrb[0].mxu0
      %5021 = vmatprep.mubr.bf16.mxu0 0
      %5022 = vmatmul.mubr.bf16.gmra.mrb[0].mxu0 %v1482
      %v5023 = vpop.f32.mrb[0].mxu0
      %v5024 = vadd.f32 %v4851, %v5023
      %v5025 = vpop.f32.mrb[0].mxu0
      %v5026 = vpop.f32.mrb[0].mxu0
      %v5027 = vadd.f32 %v4851, %v5026
      %v5028 = vpop.f32.mrb[0].mxu0
      %5029 = vmatprep.mubr.bf16.mxu0 0
      %5030 = vmatmul.mubr.bf16.gmra.mrb[0].mxu0 %v1485
      %v5031 = vpop.f32.mrb[0].mxu0
      %v5032 = vadd.f32 %v4851, %v5031
      %v5033 = vpop.f32.mrb[0].mxu0
      %v5034 = vpop.f32.mrb[0].mxu0
      %v5035 = vadd.f32 %v4851, %v5034
      %v5036 = vpop.f32.mrb[0].mxu0
      %5037 = vmatprep.mubr.bf16.mxu0 0
      %5038 = vmatmul.mubr.bf16.gmra.mrb[0].mxu0 %v1488
      %v5039 = vpop.f32.mrb[0].mxu0
      %v5040 = vadd.f32 %v4851, %v5039
      %v5041 = vpop.f32.mrb[0].mxu0
      %v5042 = vpop.f32.mrb[0].mxu0
      %v5043 = vadd.f32 %v4851, %v5042
      %v5044 = vpop.f32.mrb[0].mxu0
      %5045 = vmatprep.mubr.bf16.mxu0 0
      %5046 = vmatmul.mubr.bf16.gmra.mrb[0].mxu0 %v1491
      %v5047 = vpop.f32.mrb[0].mxu0
      %v5048 = vadd.f32 %v4851, %v5047
      %v5049 = vpop.f32.mrb[0].mxu0
      %v5050 = vpop.f32.mrb[0].mxu0
      %v5051 = vadd.f32 %v4851, %v5050
      %v5052 = vpop.f32.mrb[0].mxu0
      %5053 = vmatprep.mubr.bf16.mxu0 0
      %5054 = vmatmul.mubr.bf16.gmra.mrb[0].mxu0 %v1494
      %v5055 = vpop.f32.mrb[0].mxu0
      %v5056 = vadd.f32 %v4851, %v5055
      %v5057 = vpop.f32.mrb[0].mxu0
      %v5058 = vpop.f32.mrb[0].mxu0
      %v5059 = vadd.f32 %v4851, %v5058
      %v5060 = vpop.f32.mrb[0].mxu0
      %5061 = vmatprep.mubr.bf16.mxu0 0
      %5062 = vmatmul.mubr.bf16.gmra.mrb[0].mxu0 %v1497
      %v5063 = vpop.f32.mrb[0].mxu0
      %v5064 = vadd.f32 %v4851, %v5063
      %v5065 = vpop.f32.mrb[0].mxu0
      %v5066 = vpop.f32.mrb[0].mxu0
      %v5067 = vadd.f32 %v4851, %v5066
      %v5068 = vpop.f32.mrb[0].mxu0
      %5069 = vmatprep.mubr.bf16.mxu0 0
      %5070 = vmatmul.mubr.bf16.gmra.mrb[0].mxu0 %v1500
      %v5071 = vpop.f32.mrb[0].mxu0
      %v5072 = vadd.f32 %v4851, %v5071
      %v5073 = vpop.f32.mrb[0].mxu0
      %v5074 = vpop.f32.mrb[0].mxu0
      %v5075 = vadd.f32 %v4851, %v5074
      %v5076 = vpop.f32.mrb[0].mxu0
      %5077 = vmatprep.mubr.bf16.mxu0 0
      %5078 = vmatmul.mubr.bf16.gmra.mrb[0].mxu0 %v1503
      %v5079 = vpop.f32.mrb[0].mxu0
      %v5080 = vadd.f32 %v4851, %v5079
      %v5081 = vpop.f32.mrb[0].mxu0
      %v5082 = vpop.f32.mrb[0].mxu0
      %v5083 = vadd.f32 %v4851, %v5082
      %v5084 = vpop.f32.mrb[0].mxu0
      %5085 = vmatprep.mubr.bf16.mxu0 0
      %5086 = vmatmul.mubr.bf16.gmra.mrb[0].mxu0 %v1506
      %v5087 = vpop.f32.mrb[0].mxu0
      %v5088 = vadd.f32 %v4851, %v5087
      %v5089 = vpop.f32.mrb[0].mxu0
      %v5090 = vpop.f32.mrb[0].mxu0
      %v5091 = vadd.f32 %v4851, %v5090
      %v5092 = vpop.f32.mrb[0].mxu0
      %5093 = vmatprep.mubr.bf16.mxu0 0
      %5094 = vmatmul.mubr.bf16.gmra.mrb[0].mxu0 %v1509
      %v5095 = vpop.f32.mrb[0].mxu0
      %v5096 = vadd.f32 %v4851, %v5095
      %v5097 = vpop.f32.mrb[0].mxu0
      %v5098 = vpop.f32.mrb[0].mxu0
      %v5099 = vadd.f32 %v4851, %v5098
      %v5100 = vpop.f32.mrb[0].mxu0
      %5101 = vmatprep.mubr.bf16.mxu0 0
      %5102 = vmatmul.mubr.bf16.gmra.mrb[0].mxu0 %v1512
      %v5103 = vpop.f32.mrb[0].mxu0
      %v5104 = vadd.f32 %v4851, %v5103
      %v5105 = vpop.f32.mrb[0].mxu0
      %v5106 = vpop.f32.mrb[0].mxu0
      %v5107 = vadd.f32 %v4851, %v5106
      %v5108 = vpop.f32.mrb[0].mxu0
      %5109 = vmatprep.mubr.bf16.mxu0 0
      %5110 = vmatmul.mubr.bf16.gmra.mrb[0].mxu0 %v1515
      %v5111 = vpop.f32.mrb[0].mxu0
      %v5112 = vadd.f32 %v4851, %v5111
      %v5113 = vpop.f32.mrb[0].mxu0
      %v5114 = vpop.f32.mrb[0].mxu0
      %v5115 = vadd.f32 %v4851, %v5114
      %v5116 = vpop.f32.mrb[0].mxu0
      %5117 = vmatprep.mubr.bf16.mxu0 0
      %5118 = vmatmul.mubr.bf16.gmra.mrb[0].mxu0 %v1518
      %v5119 = vpop.f32.mrb[0].mxu0
      %v5120 = vadd.f32 %v4851, %v5119
      %v5121 = vpop.f32.mrb[0].mxu0
      %v5122 = vpop.f32.mrb[0].mxu0
      %v5123 = vadd.f32 %v4851, %v5122
      %v5124 = vpop.f32.mrb[0].mxu0
      %5125 = vmatprep.mubr.bf16.mxu0 0
      %5126 = vmatmul.mubr.bf16.gmra.mrb[0].mxu0 %v1521
      %v5127 = vpop.f32.mrb[0].mxu0
      %v5128 = vadd.f32 %v4851, %v5127
      %v5129 = vpop.f32.mrb[0].mxu0
      %v5130 = vpop.f32.mrb[0].mxu0
      %v5131 = vadd.f32 %v4851, %v5130
      %v5132 = vpop.f32.mrb[0].mxu0
      %5133 = vmatprep.mubr.bf16.mxu0 0
      %5134 = vmatmul.mubr.bf16.gmra.mrb[0].mxu0 %v1524
      %v5135 = vpop.f32.mrb[0].mxu0
      %v5136 = vadd.f32 %v4851, %v5135
      %v5137 = vpop.f32.mrb[0].mxu0
      %v5138 = vpop.f32.mrb[0].mxu0
      %v5139 = vadd.f32 %v4851, %v5138
      %v5140 = vpop.f32.mrb[0].mxu0
      %5141 = vdwg.mxu0
      %5142 = vmatprep.subr.mxu0 0.0
      %5143 = vmatpush1.msra.mxu0 %v4824
      %5144 = vmatprep.subr.mxu0 0.0
      %5145 = vmatpush1.msra.mxu0 %v4825
      %5146 = vmatprep.subr.mxu0 0.0
      %5147 = vmatpush1.msra.mxu0 %v4826
      %5148 = vmatprep.subr.mxu0 0.0
      %5149 = vmatpush1.msra.mxu0 %v4827
      %5150 = vmatprep.subr.mxu0 0.0
      %5151 = vmatpush1.msra.mxu0 %v4828
      %5152 = vmatprep.subr.mxu0 0.0
      %5153 = vmatpush1.msra.mxu0 %v4829
      %5154 = vmatprep.subr.mxu0 0.0
      %5155 = vmatpush1.msra.mxu0 %v4830
      %5156 = vmatprep.subr.mxu0 0.0
      %5157 = vmatpush1.msra.mxu0 %v4831
      %5158 = vmatprep.subr.mxu0 0.0
      %5159 = vmatpush1.msra.mxu0 0.0
      %5160 = vmatprep.subr.mxu0 0.0
      %5161 = vmatpush1.msra.mxu0 0.0
      %5162 = vmatprep.subr.mxu0 0.0
      %5163 = vmatpush1.msra.mxu0 0.0
      %5164 = vmatprep.subr.mxu0 0.0
      %5165 = vmatpush1.msra.mxu0 0.0
      %5166 = vmatprep.subr.mxu0 0.0
      %5167 = vmatpush1.msra.mxu0 0.0
      %5168 = vmatprep.subr.mxu0 0.0
      %5169 = vmatpush1.msra.mxu0 0.0
      %5170 = vmatprep.subr.mxu0 0.0
      %5171 = vmatpush1.msra.mxu0 0.0
      %5172 = vmatprep.subr.mxu0 0.0
      %5173 = vmatpush1.msra.mxu0 0.0
      %5174 = vmatprep.subr.mxu0 0.0
      %5175 = vmatpush1.msra.mxu0 0.0
      %5176 = vmatprep.subr.mxu0 0.0
      %5177 = vmatpush1.msra.mxu0 0.0
      %5178 = vmatprep.subr.mxu0 0.0
      %5179 = vmatpush1.msra.mxu0 0.0
      %5180 = vmatprep.subr.mxu0 0.0
      %5181 = vmatpush1.msra.mxu0 0.0
      %5182 = vmatprep.subr.mxu0 0.0
      %5183 = vmatpush1.msra.mxu0 0.0
      %5184 = vmatprep.subr.mxu0 0.0
      %5185 = vmatpush1.msra.mxu0 0.0
      %5186 = vmatprep.subr.mxu0 0.0
      %5187 = vmatpush1.msra.mxu0 0.0
      %5188 = vmatprep.subr.mxu0 0.0
      %5189 = vmatpush1.msra.mxu0 0.0
      %5190 = vmatprep.subr.mxu0 0.0
      %5191 = vmatpush1.msra.mxu0 0.0
      %5192 = vmatprep.subr.mxu0 0.0
      %5193 = vmatpush1.msra.mxu0 0.0
      %5194 = vmatprep.subr.mxu0 0.0
      %5195 = vmatpush1.msra.mxu0 0.0
      %5196 = vmatprep.subr.mxu0 0.0
      %5197 = vmatpush1.msra.mxu0 0.0
      %5198 = vmatprep.subr.mxu0 0.0
      %5199 = vmatpush1.msra.mxu0 0.0
      %5200 = vmatprep.subr.mxu0 0.0
      %5201 = vmatpush1.msra.mxu0 0.0
      %5202 = vmatprep.subr.mxu0 0.0
      %5203 = vmatpush1.msra.mxu0 0.0
      %5204 = vmatprep.subr.mxu0 0.0
      %5205 = vmatpush1.msra.mxu0 0.0
      %5206 = vmatprep.mubr.f32.mxu0 0.0
      %5207 = vmatmul.mubr.f32.gmra.mrb[0].mxu0 %v1816
      %v5208 = vpop.f32.mrb[0].mxu0
      %v5209 = vadd.f32 0.0, %v5208
      %v5210 = vpop.f32.mrb[0].mxu0
      %5211 = vmatprep.mubr.f32.mxu0 0.0
      %5212 = vmatmul.mubr.f32.gmra.mrb[0].mxu0 %v1819
      %v5213 = vpop.f32.mrb[0].mxu0
      %v5214 = vadd.f32 0.0, %v5213
      %v5215 = vpop.f32.mrb[0].mxu0
      %5216 = vmatprep.mubr.f32.mxu0 0.0
      %5217 = vmatmul.mubr.f32.gmra.mrb[0].mxu0 %v1822
      %v5218 = vpop.f32.mrb[0].mxu0
      %v5219 = vadd.f32 0.0, %v5218
      %v5220 = vpop.f32.mrb[0].mxu0
      %5221 = vmatprep.mubr.f32.mxu0 0.0
      %5222 = vmatmul.mubr.f32.gmra.mrb[0].mxu0 %v1825
      %v5223 = vpop.f32.mrb[0].mxu0
      %v5224 = vadd.f32 0.0, %v5223
      %v5225 = vpop.f32.mrb[0].mxu0
      %5226 = vmatprep.mubr.f32.mxu0 0.0
      %5227 = vmatmul.mubr.f32.gmra.mrb[0].mxu0 %v1828
      %v5228 = vpop.f32.mrb[0].mxu0
      %v5229 = vadd.f32 0.0, %v5228
      %v5230 = vpop.f32.mrb[0].mxu0
      %5231 = vmatprep.mubr.f32.mxu0 0.0
      %5232 = vmatmul.mubr.f32.gmra.mrb[0].mxu0 %v1831
      %v5233 = vpop.f32.mrb[0].mxu0
      %v5234 = vadd.f32 0.0, %v5233
      %v5235 = vpop.f32.mrb[0].mxu0
      %5236 = vmatprep.mubr.f32.mxu0 0.0
      %5237 = vmatmul.mubr.f32.gmra.mrb[0].mxu0 %v1834
      %v5238 = vpop.f32.mrb[0].mxu0
      %v5239 = vadd.f32 0.0, %v5238
      %v5240 = vpop.f32.mrb[0].mxu0
      %5241 = vmatprep.mubr.f32.mxu0 0.0
      %5242 = vmatmul.mubr.f32.gmra.mrb[0].mxu0 %v1837
      %v5243 = vpop.f32.mrb[0].mxu0
      %v5244 = vadd.f32 0.0, %v5243
      %v5245 = vpop.f32.mrb[0].mxu0
      %5246 = vmatprep.mubr.f32.mxu0 0.0
      %5247 = vmatmul.mubr.f32.gmra.mrb[0].mxu0 %v1840
      %v5248 = vpop.f32.mrb[0].mxu0
      %v5249 = vadd.f32 0.0, %v5248
      %v5250 = vpop.f32.mrb[0].mxu0
      %5251 = vmatprep.mubr.f32.mxu0 0.0
      %5252 = vmatmul.mubr.f32.gmra.mrb[0].mxu0 %v1843
      %v5253 = vpop.f32.mrb[0].mxu0
      %v5254 = vadd.f32 0.0, %v5253
      %v5255 = vpop.f32.mrb[0].mxu0
      %5256 = vmatprep.mubr.f32.mxu0 0.0
      %5257 = vmatmul.mubr.f32.gmra.mrb[0].mxu0 %v1846
      %v5258 = vpop.f32.mrb[0].mxu0
      %v5259 = vadd.f32 0.0, %v5258
      %v5260 = vpop.f32.mrb[0].mxu0
      %5261 = vmatprep.mubr.f32.mxu0 0.0
      %5262 = vmatmul.mubr.f32.gmra.mrb[0].mxu0 %v1849
      %v5263 = vpop.f32.mrb[0].mxu0
      %v5264 = vadd.f32 0.0, %v5263
      %v5265 = vpop.f32.mrb[0].mxu0
      %5266 = vmatprep.mubr.f32.mxu0 0.0
      %5267 = vmatmul.mubr.f32.gmra.mrb[0].mxu0 %v1852
      %v5268 = vpop.f32.mrb[0].mxu0
      %v5269 = vadd.f32 0.0, %v5268
      %v5270 = vpop.f32.mrb[0].mxu0
      %5271 = vmatprep.mubr.f32.mxu0 0.0
      %5272 = vmatmul.mubr.f32.gmra.mrb[0].mxu0 %v1855
      %v5273 = vpop.f32.mrb[0].mxu0
      %v5274 = vadd.f32 0.0, %v5273
      %v5275 = vpop.f32.mrb[0].mxu0
      %5276 = vmatprep.mubr.f32.mxu0 0.0
      %5277 = vmatmul.mubr.f32.gmra.mrb[0].mxu0 %v1858
      %v5278 = vpop.f32.mrb[0].mxu0
      %v5279 = vadd.f32 0.0, %v5278
      %v5280 = vpop.f32.mrb[0].mxu0
      %5281 = vmatprep.mubr.f32.mxu0 0.0
      %5282 = vmatmul.mubr.f32.gmra.mrb[0].mxu0 %v1861
      %v5283 = vpop.f32.mrb[0].mxu0
      %v5284 = vadd.f32 0.0, %v5283
      %v5285 = vpop.f32.mrb[0].mxu0
      %5286 = vmatprep.mubr.f32.mxu0 0.0
      %5287 = vmatmul.mubr.f32.gmra.mrb[0].mxu0 %v1864
      %v5288 = vpop.f32.mrb[0].mxu0
      %v5289 = vadd.f32 0.0, %v5288
      %v5290 = vpop.f32.mrb[0].mxu0
      %5291 = vmatprep.mubr.f32.mxu0 0.0
      %5292 = vmatmul.mubr.f32.gmra.mrb[0].mxu0 %v1867
      %v5293 = vpop.f32.mrb[0].mxu0
      %v5294 = vadd.f32 0.0, %v5293
      %v5295 = vpop.f32.mrb[0].mxu0
      %5296 = vmatprep.mubr.f32.mxu0 0.0
      %5297 = vmatmul.mubr.f32.gmra.mrb[0].mxu0 %v1870
      %v5298 = vpop.f32.mrb[0].mxu0
      %v5299 = vadd.f32 0.0, %v5298
      %v5300 = vpop.f32.mrb[0].mxu0
      %5301 = vmatprep.mubr.f32.mxu0 0.0
      %5302 = vmatmul.mubr.f32.gmra.mrb[0].mxu0 %v1873
      %v5303 = vpop.f32.mrb[0].mxu0
      %v5304 = vadd.f32 0.0, %v5303
      %v5305 = vpop.f32.mrb[0].mxu0
      %5306 = vmatprep.mubr.f32.mxu0 0.0
      %5307 = vmatmul.mubr.f32.gmra.mrb[0].mxu0 %v1876
      %v5308 = vpop.f32.mrb[0].mxu0
      %v5309 = vadd.f32 0.0, %v5308
      %v5310 = vpop.f32.mrb[0].mxu0
      %5311 = vmatprep.mubr.f32.mxu0 0.0
      %5312 = vmatmul.mubr.f32.gmra.mrb[0].mxu0 %v1879
      %v5313 = vpop.f32.mrb[0].mxu0
      %v5314 = vadd.f32 0.0, %v5313
      %v5315 = vpop.f32.mrb[0].mxu0
      %5316 = vmatprep.mubr.f32.mxu0 0.0
      %5317 = vmatmul.mubr.f32.gmra.mrb[0].mxu0 %v1882
      %v5318 = vpop.f32.mrb[0].mxu0
      %v5319 = vadd.f32 0.0, %v5318
      %v5320 = vpop.f32.mrb[0].mxu0
      %5321 = vmatprep.mubr.f32.mxu0 0.0
      %5322 = vmatmul.mubr.f32.gmra.mrb[0].mxu0 %v1885
      %v5323 = vpop.f32.mrb[0].mxu0
      %v5324 = vadd.f32 0.0, %v5323
      %v5325 = vpop.f32.mrb[0].mxu0
      %5326 = vmatprep.mubr.f32.mxu0 0.0
      %5327 = vmatmul.mubr.f32.gmra.mrb[0].mxu0 %v1888
      %v5328 = vpop.f32.mrb[0].mxu0
      %v5329 = vadd.f32 0.0, %v5328
      %v5330 = vpop.f32.mrb[0].mxu0
      %5331 = vmatprep.mubr.f32.mxu0 0.0
      %5332 = vmatmul.mubr.f32.gmra.mrb[0].mxu0 %v1891
      %v5333 = vpop.f32.mrb[0].mxu0
      %v5334 = vadd.f32 0.0, %v5333
      %v5335 = vpop.f32.mrb[0].mxu0
      %5336 = vmatprep.mubr.f32.mxu0 0.0
      %5337 = vmatmul.mubr.f32.gmra.mrb[0].mxu0 %v1894
      %v5338 = vpop.f32.mrb[0].mxu0
      %v5339 = vadd.f32 0.0, %v5338
      %v5340 = vpop.f32.mrb[0].mxu0
      %5341 = vmatprep.mubr.f32.mxu0 0.0
      %5342 = vmatmul.mubr.f32.gmra.mrb[0].mxu0 %v1897
      %v5343 = vpop.f32.mrb[0].mxu0
      %v5344 = vadd.f32 0.0, %v5343
      %v5345 = vpop.f32.mrb[0].mxu0
      %5346 = vmatprep.mubr.f32.mxu0 0.0
      %5347 = vmatmul.mubr.f32.gmra.mrb[0].mxu0 %v1900
      %v5348 = vpop.f32.mrb[0].mxu0
      %v5349 = vadd.f32 0.0, %v5348
      %v5350 = vpop.f32.mrb[0].mxu0
      %5351 = vmatprep.mubr.f32.mxu0 0.0
      %5352 = vmatmul.mubr.f32.gmra.mrb[0].mxu0 %v1903
      %v5353 = vpop.f32.mrb[0].mxu0
      %v5354 = vadd.f32 0.0, %v5353
      %v5355 = vpop.f32.mrb[0].mxu0
      %5356 = vmatprep.mubr.f32.mxu0 0.0
      %5357 = vmatmul.mubr.f32.gmra.mrb[0].mxu0 %v1906
      %v5358 = vpop.f32.mrb[0].mxu0
      %v5359 = vadd.f32 0.0, %v5358
      %v5360 = vpop.f32.mrb[0].mxu0
      %5361 = vmatprep.mubr.f32.mxu0 0.0
      %5362 = vmatmul.mubr.f32.gmra.mrb[0].mxu0 %v1909
      %v5363 = vpop.f32.mrb[0].mxu0
      %v5364 = vadd.f32 0.0, %v5363
      %v5365 = vpop.f32.mrb[0].mxu0
      %5366 = vmatprep.mubr.f32.mxu0 0.0
      %5367 = vmatmul.mubr.f32.gmra.mrb[0].mxu0 %v1912
      %v5368 = vpop.f32.mrb[0].mxu0
      %v5369 = vadd.f32 0.0, %v5368
      %v5370 = vpop.f32.mrb[0].mxu0
      %5371 = vmatprep.mubr.f32.mxu0 0.0
      %5372 = vmatmul.mubr.f32.gmra.mrb[0].mxu0 %v1915
      %v5373 = vpop.f32.mrb[0].mxu0
      %v5374 = vadd.f32 0.0, %v5373
      %v5375 = vpop.f32.mrb[0].mxu0
      %5376 = vmatprep.mubr.f32.mxu0 0.0
      %5377 = vmatmul.mubr.f32.gmra.mrb[0].mxu0 %v1918
      %v5378 = vpop.f32.mrb[0].mxu0
      %v5379 = vadd.f32 0.0, %v5378
      %v5380 = vpop.f32.mrb[0].mxu0
      %5381 = vmatprep.mubr.f32.mxu0 0.0
      %5382 = vmatmul.mubr.f32.gmra.mrb[0].mxu0 %v1921
      %v5383 = vpop.f32.mrb[0].mxu0
      %v5384 = vadd.f32 0.0, %v5383
      %v5385 = vpop.f32.mrb[0].mxu0
      %5386 = vmatprep.mubr.f32.mxu0 0.0
      %5387 = vmatmul.mubr.f32.gmra.mrb[0].mxu0 %v1924
      %v5388 = vpop.f32.mrb[0].mxu0
      %v5389 = vadd.f32 0.0, %v5388
      %v5390 = vpop.f32.mrb[0].mxu0
      %5391 = vmatprep.mubr.f32.mxu0 0.0
      %5392 = vmatmul.mubr.f32.gmra.mrb[0].mxu0 %v1927
      %v5393 = vpop.f32.mrb[0].mxu0
      %v5394 = vadd.f32 0.0, %v5393
      %v5395 = vpop.f32.mrb[0].mxu0
      %5396 = vmatprep.mubr.f32.mxu0 0.0
      %5397 = vmatmul.mubr.f32.gmra.mrb[0].mxu0 %v1930
      %v5398 = vpop.f32.mrb[0].mxu0
      %v5399 = vadd.f32 0.0, %v5398
      %v5400 = vpop.f32.mrb[0].mxu0
      %5401 = vmatprep.mubr.f32.mxu0 0.0
      %5402 = vmatmul.mubr.f32.gmra.mrb[0].mxu0 %v1933
      %v5403 = vpop.f32.mrb[0].mxu0
      %v5404 = vadd.f32 0.0, %v5403
      %v5405 = vpop.f32.mrb[0].mxu0
      %5406 = vmatprep.mubr.f32.mxu0 0.0
      %5407 = vmatmul.mubr.f32.gmra.mrb[0].mxu0 %v1936
      %v5408 = vpop.f32.mrb[0].mxu0
      %v5409 = vadd.f32 0.0, %v5408
      %v5410 = vpop.f32.mrb[0].mxu0
      %5411 = vmatprep.mubr.f32.mxu0 0.0
      %5412 = vmatmul.mubr.f32.gmra.mrb[0].mxu0 %v1939
      %v5413 = vpop.f32.mrb[0].mxu0
      %v5414 = vadd.f32 0.0, %v5413
      %v5415 = vpop.f32.mrb[0].mxu0
      %5416 = vmatprep.mubr.f32.mxu0 0.0
      %5417 = vmatmul.mubr.f32.gmra.mrb[0].mxu0 %v1942
      %v5418 = vpop.f32.mrb[0].mxu0
      %v5419 = vadd.f32 0.0, %v5418
      %v5420 = vpop.f32.mrb[0].mxu0
      %5421 = vmatprep.mubr.f32.mxu0 0.0
      %5422 = vmatmul.mubr.f32.gmra.mrb[0].mxu0 %v1945
      %v5423 = vpop.f32.mrb[0].mxu0
      %v5424 = vadd.f32 0.0, %v5423
      %v5425 = vpop.f32.mrb[0].mxu0
      %5426 = vmatprep.mubr.f32.mxu0 0.0
      %5427 = vmatmul.mubr.f32.gmra.mrb[0].mxu0 %v1948
      %v5428 = vpop.f32.mrb[0].mxu0
      %v5429 = vadd.f32 0.0, %v5428
      %v5430 = vpop.f32.mrb[0].mxu0
      %5431 = vmatprep.mubr.f32.mxu0 0.0
      %5432 = vmatmul.mubr.f32.gmra.mrb[0].mxu0 %v1951
      %v5433 = vpop.f32.mrb[0].mxu0
      %v5434 = vadd.f32 0.0, %v5433
      %v5435 = vpop.f32.mrb[0].mxu0
      %5436 = vmatprep.mubr.f32.mxu0 0.0
      %5437 = vmatmul.mubr.f32.gmra.mrb[0].mxu0 %v1954
      %v5438 = vpop.f32.mrb[0].mxu0
      %v5439 = vadd.f32 0.0, %v5438
      %v5440 = vpop.f32.mrb[0].mxu0
      %5441 = vmatprep.mubr.f32.mxu0 0.0
      %5442 = vmatmul.mubr.f32.gmra.mrb[0].mxu0 %v1957
      %v5443 = vpop.f32.mrb[0].mxu0
      %v5444 = vadd.f32 0.0, %v5443
      %v5445 = vpop.f32.mrb[0].mxu0
      %5446 = vmatprep.mubr.f32.mxu0 0.0
      %5447 = vmatmul.mubr.f32.gmra.mrb[0].mxu0 %v1960
      %v5448 = vpop.f32.mrb[0].mxu0
      %v5449 = vadd.f32 0.0, %v5448
      %v5450 = vpop.f32.mrb[0].mxu0
      %5451 = vmatprep.mubr.f32.mxu0 0.0
      %5452 = vmatmul.mubr.f32.gmra.mrb[0].mxu0 %v1963
      %v5453 = vpop.f32.mrb[0].mxu0
      %v5454 = vadd.f32 0.0, %v5453
      %v5455 = vpop.f32.mrb[0].mxu0
      %5456 = vmatprep.mubr.f32.mxu0 0.0
      %5457 = vmatmul.mubr.f32.gmra.mrb[0].mxu0 %v1966
      %v5458 = vpop.f32.mrb[0].mxu0
      %v5459 = vadd.f32 0.0, %v5458
      %v5460 = vpop.f32.mrb[0].mxu0
      %5461 = vmatprep.mubr.f32.mxu0 0.0
      %5462 = vmatmul.mubr.f32.gmra.mrb[0].mxu0 %v1969
      %v5463 = vpop.f32.mrb[0].mxu0
      %v5464 = vadd.f32 0.0, %v5463
      %v5465 = vpop.f32.mrb[0].mxu0
      %5466 = vmatprep.mubr.f32.mxu0 0.0
      %5467 = vmatmul.mubr.f32.gmra.mrb[0].mxu0 %v1972
      %v5468 = vpop.f32.mrb[0].mxu0
      %v5469 = vadd.f32 0.0, %v5468
      %v5470 = vpop.f32.mrb[0].mxu0
      %5471 = vmatprep.mubr.f32.mxu0 0.0
      %5472 = vmatmul.mubr.f32.gmra.mrb[0].mxu0 %v1975
      %v5473 = vpop.f32.mrb[0].mxu0
      %v5474 = vadd.f32 0.0, %v5473
      %v5475 = vpop.f32.mrb[0].mxu0
      %5476 = vmatprep.mubr.f32.mxu0 0.0
      %5477 = vmatmul.mubr.f32.gmra.mrb[0].mxu0 %v1978
      %v5478 = vpop.f32.mrb[0].mxu0
      %v5479 = vadd.f32 0.0, %v5478
      %v5480 = vpop.f32.mrb[0].mxu0
      %5481 = vmatprep.mubr.f32.mxu0 0.0
      %5482 = vmatmul.mubr.f32.gmra.mrb[0].mxu0 %v1981
      %v5483 = vpop.f32.mrb[0].mxu0
      %v5484 = vadd.f32 0.0, %v5483
      %v5485 = vpop.f32.mrb[0].mxu0
      %5486 = vmatprep.mubr.f32.mxu0 0.0
      %5487 = vmatmul.mubr.f32.gmra.mrb[0].mxu0 %v1984
      %v5488 = vpop.f32.mrb[0].mxu0
      %v5489 = vadd.f32 0.0, %v5488
      %v5490 = vpop.f32.mrb[0].mxu0
      %5491 = vmatprep.mubr.f32.mxu0 0.0
      %5492 = vmatmul.mubr.f32.gmra.mrb[0].mxu0 %v1987
      %v5493 = vpop.f32.mrb[0].mxu0
      %v5494 = vadd.f32 0.0, %v5493
      %v5495 = vpop.f32.mrb[0].mxu0
      %5496 = vmatprep.mubr.f32.mxu0 0.0
      %5497 = vmatmul.mubr.f32.gmra.mrb[0].mxu0 %v1990
      %v5498 = vpop.f32.mrb[0].mxu0
      %v5499 = vadd.f32 0.0, %v5498
      %v5500 = vpop.f32.mrb[0].mxu0
      %5501 = vmatprep.mubr.f32.mxu0 0.0
      %5502 = vmatmul.mubr.f32.gmra.mrb[0].mxu0 %v1993
      %v5503 = vpop.f32.mrb[0].mxu0
      %v5504 = vadd.f32 0.0, %v5503
      %v5505 = vpop.f32.mrb[0].mxu0
      %5506 = vmatprep.mubr.f32.mxu0 0.0
      %5507 = vmatmul.mubr.f32.gmra.mrb[0].mxu0 %v1996
      %v5508 = vpop.f32.mrb[0].mxu0
      %v5509 = vadd.f32 0.0, %v5508
      %v5510 = vpop.f32.mrb[0].mxu0
      %5511 = vmatprep.mubr.f32.mxu0 0.0
      %5512 = vmatmul.mubr.f32.gmra.mrb[0].mxu0 %v1999
      %v5513 = vpop.f32.mrb[0].mxu0
      %v5514 = vadd.f32 0.0, %v5513
      %v5515 = vpop.f32.mrb[0].mxu0
      %5516 = vmatprep.mubr.f32.mxu0 0.0
      %5517 = vmatmul.mubr.f32.gmra.mrb[0].mxu0 %v2002
      %v5518 = vpop.f32.mrb[0].mxu0
      %v5519 = vadd.f32 0.0, %v5518
      %v5520 = vpop.f32.mrb[0].mxu0
      %5521 = vmatprep.mubr.f32.mxu0 0.0
      %5522 = vmatmul.mubr.f32.gmra.mrb[0].mxu0 %v2005
      %v5523 = vpop.f32.mrb[0].mxu0
      %v5524 = vadd.f32 0.0, %v5523
      %v5525 = vpop.f32.mrb[0].mxu0
      %5526 = vdwg.mxu0
      %v5527 = vmul.f32 %v4888, %v5209
      %v5528 = vmul.f32 %v4891, %v5214
      %v5529 = vmul.f32 %v4896, %v5219
      %v5530 = vmul.f32 %v4899, %v5224
      %v5531 = vmul.f32 %v4904, %v5229
      %v5532 = vmul.f32 %v4907, %v5234
      %v5533 = vmul.f32 %v4912, %v5239
      %v5534 = vmul.f32 %v4915, %v5244
      %v5535 = vmul.f32 %v4920, %v5249
      %v5536 = vmul.f32 %v4923, %v5254
      %v5537 = vmul.f32 %v4928, %v5259
      %v5538 = vmul.f32 %v4931, %v5264
      %v5539 = vmul.f32 %v4936, %v5269
      %v5540 = vmul.f32 %v4939, %v5274
      %v5541 = vmul.f32 %v4944, %v5279
      %v5542 = vmul.f32 %v4947, %v5284
      %v5543 = vmul.f32 %v4952, %v5289
      %v5544 = vmul.f32 %v4955, %v5294
      %v5545 = vmul.f32 %v4960, %v5299
      %v5546 = vmul.f32 %v4963, %v5304
      %v5547 = vmul.f32 %v4968, %v5309
      %v5548 = vmul.f32 %v4971, %v5314
      %v5549 = vmul.f32 %v4976, %v5319
      %v5550 = vmul.f32 %v4979, %v5324
      %v5551 = vmul.f32 %v4984, %v5329
      %v5552 = vmul.f32 %v4987, %v5334
      %v5553 = vmul.f32 %v4992, %v5339
      %v5554 = vmul.f32 %v4995, %v5344
      %v5555 = vmul.f32 %v5000, %v5349
      %v5556 = vmul.f32 %v5003, %v5354
      %v5557 = vmul.f32 %v5008, %v5359
      %v5558 = vmul.f32 %v5011, %v5364
      %v5559 = vmul.f32 %v5016, %v5369
      %v5560 = vmul.f32 %v5019, %v5374
      %v5561 = vmul.f32 %v5024, %v5379
      %v5562 = vmul.f32 %v5027, %v5384
      %v5563 = vmul.f32 %v5032, %v5389
      %v5564 = vmul.f32 %v5035, %v5394
      %v5565 = vmul.f32 %v5040, %v5399
      %v5566 = vmul.f32 %v5043, %v5404
      %v5567 = vmul.f32 %v5048, %v5409
      %v5568 = vmul.f32 %v5051, %v5414
      %v5569 = vmul.f32 %v5056, %v5419
      %v5570 = vmul.f32 %v5059, %v5424
      %v5571 = vmul.f32 %v5064, %v5429
      %v5572 = vmul.f32 %v5067, %v5434
      %v5573 = vmul.f32 %v5072, %v5439
      %v5574 = vmul.f32 %v5075, %v5444
      %v5575 = vmul.f32 %v5080, %v5449
      %v5576 = vmul.f32 %v5083, %v5454
      %v5577 = vmul.f32 %v5088, %v5459
      %v5578 = vmul.f32 %v5091, %v5464
      %v5579 = vmul.f32 %v5096, %v5469
      %v5580 = vmul.f32 %v5099, %v5474
      %v5581 = vmul.f32 %v5104, %v5479
      %v5582 = vmul.f32 %v5107, %v5484
      %v5583 = vmul.f32 %v5112, %v5489
      %v5584 = vmul.f32 %v5115, %v5494
      %v5585 = vmul.f32 %v5120, %v5499
      %v5586 = vmul.f32 %v5123, %v5504
      %v5587 = vmul.f32 %v5128, %v5509
      %v5588 = vmul.f32 %v5131, %v5514
      %v5589 = vmul.f32 %v5136, %v5519
      %v5590 = vmul.f32 %v5139, %v5524
      %v5591 = vsel %vm1429, %v5527, -inf
      %v5592 = vrot.slane %v5591, 4
      %v5593 = vmax.f32 %v5591, %v5592
      %v5594 = vrot.slane %v5593, 2
      %v5595 = vmax.f32 %v5593, %v5594
      %v5596 = vrot.slane %v5595, 1
      %v5597 = vmax.f32 %v5595, %v5596
      %v5598 = vsel %vm1429, %v5528, -inf
      %v5599 = vrot.slane %v5598, 4
      %v5600 = vmax.f32 %v5598, %v5599
      %v5601 = vrot.slane %v5600, 2
      %v5602 = vmax.f32 %v5600, %v5601
      %v5603 = vrot.slane %v5602, 1
      %v5604 = vmax.f32 %v5602, %v5603
      %v5605 = vsel %vm1429, %v5529, -inf
      %v5606 = vrot.slane %v5605, 4
      %v5607 = vmax.f32 %v5605, %v5606
      %v5608 = vrot.slane %v5607, 2
      %v5609 = vmax.f32 %v5607, %v5608
      %v5610 = vrot.slane %v5609, 1
      %v5611 = vmax.f32 %v5609, %v5610
      %v5612 = vsel %vm1429, %v5530, -inf
      %v5613 = vrot.slane %v5612, 4
      %v5614 = vmax.f32 %v5612, %v5613
      %v5615 = vrot.slane %v5614, 2
      %v5616 = vmax.f32 %v5614, %v5615
      %v5617 = vrot.slane %v5616, 1
      %v5618 = vmax.f32 %v5616, %v5617
      %v5619 = vsel %vm1429, %v5531, -inf
      %v5620 = vrot.slane %v5619, 4
      %v5621 = vmax.f32 %v5619, %v5620
      %v5622 = vrot.slane %v5621, 2
      %v5623 = vmax.f32 %v5621, %v5622
      %v5624 = vrot.slane %v5623, 1
      %v5625 = vmax.f32 %v5623, %v5624
      %v5626 = vsel %vm1429, %v5532, -inf
      %v5627 = vrot.slane %v5626, 4
      %v5628 = vmax.f32 %v5626, %v5627
      %v5629 = vrot.slane %v5628, 2
      %v5630 = vmax.f32 %v5628, %v5629
      %v5631 = vrot.slane %v5630, 1
      %v5632 = vmax.f32 %v5630, %v5631
      %v5633 = vsel %vm1429, %v5533, -inf
      %v5634 = vrot.slane %v5633, 4
      %v5635 = vmax.f32 %v5633, %v5634
      %v5636 = vrot.slane %v5635, 2
      %v5637 = vmax.f32 %v5635, %v5636
      %v5638 = vrot.slane %v5637, 1
      %v5639 = vmax.f32 %v5637, %v5638
      %v5640 = vsel %vm1429, %v5534, -inf
      %v5641 = vrot.slane %v5640, 4
      %v5642 = vmax.f32 %v5640, %v5641
      %v5643 = vrot.slane %v5642, 2
      %v5644 = vmax.f32 %v5642, %v5643
      %v5645 = vrot.slane %v5644, 1
      %v5646 = vmax.f32 %v5644, %v5645
      %v5647 = vsel %vm1429, %v5535, -inf
      %v5648 = vrot.slane %v5647, 4
      %v5649 = vmax.f32 %v5647, %v5648
      %v5650 = vrot.slane %v5649, 2
      %v5651 = vmax.f32 %v5649, %v5650
      %v5652 = vrot.slane %v5651, 1
      %v5653 = vmax.f32 %v5651, %v5652
      %v5654 = vsel %vm1429, %v5536, -inf
      %v5655 = vrot.slane %v5654, 4
      %v5656 = vmax.f32 %v5654, %v5655
      %v5657 = vrot.slane %v5656, 2
      %v5658 = vmax.f32 %v5656, %v5657
      %v5659 = vrot.slane %v5658, 1
      %v5660 = vmax.f32 %v5658, %v5659
      %v5661 = vsel %vm1429, %v5537, -inf
      %v5662 = vrot.slane %v5661, 4
      %v5663 = vmax.f32 %v5661, %v5662
      %v5664 = vrot.slane %v5663, 2
      %v5665 = vmax.f32 %v5663, %v5664
      %v5666 = vrot.slane %v5665, 1
      %v5667 = vmax.f32 %v5665, %v5666
      %v5668 = vsel %vm1429, %v5538, -inf
      %v5669 = vrot.slane %v5668, 4
      %v5670 = vmax.f32 %v5668, %v5669
      %v5671 = vrot.slane %v5670, 2
      %v5672 = vmax.f32 %v5670, %v5671
      %v5673 = vrot.slane %v5672, 1
      %v5674 = vmax.f32 %v5672, %v5673
      %v5675 = vsel %vm1429, %v5539, -inf
      %v5676 = vrot.slane %v5675, 4
      %v5677 = vmax.f32 %v5675, %v5676
      %v5678 = vrot.slane %v5677, 2
      %v5679 = vmax.f32 %v5677, %v5678
      %v5680 = vrot.slane %v5679, 1
      %v5681 = vmax.f32 %v5679, %v5680
      %v5682 = vsel %vm1429, %v5540, -inf
      %v5683 = vrot.slane %v5682, 4
      %v5684 = vmax.f32 %v5682, %v5683
      %v5685 = vrot.slane %v5684, 2
      %v5686 = vmax.f32 %v5684, %v5685
      %v5687 = vrot.slane %v5686, 1
      %v5688 = vmax.f32 %v5686, %v5687
      %v5689 = vsel %vm1429, %v5541, -inf
      %v5690 = vrot.slane %v5689, 4
      %v5691 = vmax.f32 %v5689, %v5690
      %v5692 = vrot.slane %v5691, 2
      %v5693 = vmax.f32 %v5691, %v5692
      %v5694 = vrot.slane %v5693, 1
      %v5695 = vmax.f32 %v5693, %v5694
      %v5696 = vsel %vm1429, %v5542, -inf
      %v5697 = vrot.slane %v5696, 4
      %v5698 = vmax.f32 %v5696, %v5697
      %v5699 = vrot.slane %v5698, 2
      %v5700 = vmax.f32 %v5698, %v5699
      %v5701 = vrot.slane %v5700, 1
      %v5702 = vmax.f32 %v5700, %v5701
      %v5703 = vsel %vm1429, %v5543, -inf
      %v5704 = vrot.slane %v5703, 4
      %v5705 = vmax.f32 %v5703, %v5704
      %v5706 = vrot.slane %v5705, 2
      %v5707 = vmax.f32 %v5705, %v5706
      %v5708 = vrot.slane %v5707, 1
      %v5709 = vmax.f32 %v5707, %v5708
      %v5710 = vsel %vm1429, %v5544, -inf
      %v5711 = vrot.slane %v5710, 4
      %v5712 = vmax.f32 %v5710, %v5711
      %v5713 = vrot.slane %v5712, 2
      %v5714 = vmax.f32 %v5712, %v5713
      %v5715 = vrot.slane %v5714, 1
      %v5716 = vmax.f32 %v5714, %v5715
      %v5717 = vsel %vm1429, %v5545, -inf
      %v5718 = vrot.slane %v5717, 4
      %v5719 = vmax.f32 %v5717, %v5718
      %v5720 = vrot.slane %v5719, 2
      %v5721 = vmax.f32 %v5719, %v5720
      %v5722 = vrot.slane %v5721, 1
      %v5723 = vmax.f32 %v5721, %v5722
      %v5724 = vsel %vm1429, %v5546, -inf
      %v5725 = vrot.slane %v5724, 4
      %v5726 = vmax.f32 %v5724, %v5725
      %v5727 = vrot.slane %v5726, 2
      %v5728 = vmax.f32 %v5726, %v5727
      %v5729 = vrot.slane %v5728, 1
      %v5730 = vmax.f32 %v5728, %v5729
      %v5731 = vsel %vm1429, %v5547, -inf
      %v5732 = vrot.slane %v5731, 4
      %v5733 = vmax.f32 %v5731, %v5732
      %v5734 = vrot.slane %v5733, 2
      %v5735 = vmax.f32 %v5733, %v5734
      %v5736 = vrot.slane %v5735, 1
      %v5737 = vmax.f32 %v5735, %v5736
      %v5738 = vsel %vm1429, %v5548, -inf
      %v5739 = vrot.slane %v5738, 4
      %v5740 = vmax.f32 %v5738, %v5739
      %v5741 = vrot.slane %v5740, 2
      %v5742 = vmax.f32 %v5740, %v5741
      %v5743 = vrot.slane %v5742, 1
      %v5744 = vmax.f32 %v5742, %v5743
      %v5745 = vsel %vm1429, %v5549, -inf
      %v5746 = vrot.slane %v5745, 4
      %v5747 = vmax.f32 %v5745, %v5746
      %v5748 = vrot.slane %v5747, 2
      %v5749 = vmax.f32 %v5747, %v5748
      %v5750 = vrot.slane %v5749, 1
      %v5751 = vmax.f32 %v5749, %v5750
      %v5752 = vsel %vm1429, %v5550, -inf
      %v5753 = vrot.slane %v5752, 4
      %v5754 = vmax.f32 %v5752, %v5753
      %v5755 = vrot.slane %v5754, 2
      %v5756 = vmax.f32 %v5754, %v5755
      %v5757 = vrot.slane %v5756, 1
      %v5758 = vmax.f32 %v5756, %v5757
      %v5759 = vsel %vm1429, %v5551, -inf
      %v5760 = vrot.slane %v5759, 4
      %v5761 = vmax.f32 %v5759, %v5760
      %v5762 = vrot.slane %v5761, 2
      %v5763 = vmax.f32 %v5761, %v5762
      %v5764 = vrot.slane %v5763, 1
      %v5765 = vmax.f32 %v5763, %v5764
      %v5766 = vsel %vm1429, %v5552, -inf
      %v5767 = vrot.slane %v5766, 4
      %v5768 = vmax.f32 %v5766, %v5767
      %v5769 = vrot.slane %v5768, 2
      %v5770 = vmax.f32 %v5768, %v5769
      %v5771 = vrot.slane %v5770, 1
      %v5772 = vmax.f32 %v5770, %v5771
      %v5773 = vsel %vm1429, %v5553, -inf
      %v5774 = vrot.slane %v5773, 4
      %v5775 = vmax.f32 %v5773, %v5774
      %v5776 = vrot.slane %v5775, 2
      %v5777 = vmax.f32 %v5775, %v5776
      %v5778 = vrot.slane %v5777, 1
      %v5779 = vmax.f32 %v5777, %v5778
      %v5780 = vsel %vm1429, %v5554, -inf
      %v5781 = vrot.slane %v5780, 4
      %v5782 = vmax.f32 %v5780, %v5781
      %v5783 = vrot.slane %v5782, 2
      %v5784 = vmax.f32 %v5782, %v5783
      %v5785 = vrot.slane %v5784, 1
      %v5786 = vmax.f32 %v5784, %v5785
      %v5787 = vsel %vm1429, %v5555, -inf
      %v5788 = vrot.slane %v5787, 4
      %v5789 = vmax.f32 %v5787, %v5788
      %v5790 = vrot.slane %v5789, 2
      %v5791 = vmax.f32 %v5789, %v5790
      %v5792 = vrot.slane %v5791, 1
      %v5793 = vmax.f32 %v5791, %v5792
      %v5794 = vsel %vm1429, %v5556, -inf
      %v5795 = vrot.slane %v5794, 4
      %v5796 = vmax.f32 %v5794, %v5795
      %v5797 = vrot.slane %v5796, 2
      %v5798 = vmax.f32 %v5796, %v5797
      %v5799 = vrot.slane %v5798, 1
      %v5800 = vmax.f32 %v5798, %v5799
      %v5801 = vsel %vm1429, %v5557, -inf
      %v5802 = vrot.slane %v5801, 4
      %v5803 = vmax.f32 %v5801, %v5802
      %v5804 = vrot.slane %v5803, 2
      %v5805 = vmax.f32 %v5803, %v5804
      %v5806 = vrot.slane %v5805, 1
      %v5807 = vmax.f32 %v5805, %v5806
      %v5808 = vsel %vm1429, %v5558, -inf
      %v5809 = vrot.slane %v5808, 4
      %v5810 = vmax.f32 %v5808, %v5809
      %v5811 = vrot.slane %v5810, 2
      %v5812 = vmax.f32 %v5810, %v5811
      %v5813 = vrot.slane %v5812, 1
      %v5814 = vmax.f32 %v5812, %v5813
      %v5815 = vsel %vm1429, %v5559, -inf
      %v5816 = vrot.slane %v5815, 4
      %v5817 = vmax.f32 %v5815, %v5816
      %v5818 = vrot.slane %v5817, 2
      %v5819 = vmax.f32 %v5817, %v5818
      %v5820 = vrot.slane %v5819, 1
      %v5821 = vmax.f32 %v5819, %v5820
      %v5822 = vsel %vm1429, %v5560, -inf
      %v5823 = vrot.slane %v5822, 4
      %v5824 = vmax.f32 %v5822, %v5823
      %v5825 = vrot.slane %v5824, 2
      %v5826 = vmax.f32 %v5824, %v5825
      %v5827 = vrot.slane %v5826, 1
      %v5828 = vmax.f32 %v5826, %v5827
      %v5829 = vsel %vm1429, %v5561, -inf
      %v5830 = vrot.slane %v5829, 4
      %v5831 = vmax.f32 %v5829, %v5830
      %v5832 = vrot.slane %v5831, 2
      %v5833 = vmax.f32 %v5831, %v5832
      %v5834 = vrot.slane %v5833, 1
      %v5835 = vmax.f32 %v5833, %v5834
      %v5836 = vsel %vm1429, %v5562, -inf
      %v5837 = vrot.slane %v5836, 4
      %v5838 = vmax.f32 %v5836, %v5837
      %v5839 = vrot.slane %v5838, 2
      %v5840 = vmax.f32 %v5838, %v5839
      %v5841 = vrot.slane %v5840, 1
      %v5842 = vmax.f32 %v5840, %v5841
      %v5843 = vsel %vm1429, %v5563, -inf
      %v5844 = vrot.slane %v5843, 4
      %v5845 = vmax.f32 %v5843, %v5844
      %v5846 = vrot.slane %v5845, 2
      %v5847 = vmax.f32 %v5845, %v5846
      %v5848 = vrot.slane %v5847, 1
      %v5849 = vmax.f32 %v5847, %v5848
      %v5850 = vsel %vm1429, %v5564, -inf
      %v5851 = vrot.slane %v5850, 4
      %v5852 = vmax.f32 %v5850, %v5851
      %v5853 = vrot.slane %v5852, 2
      %v5854 = vmax.f32 %v5852, %v5853
      %v5855 = vrot.slane %v5854, 1
      %v5856 = vmax.f32 %v5854, %v5855
      %v5857 = vsel %vm1429, %v5565, -inf
      %v5858 = vrot.slane %v5857, 4
      %v5859 = vmax.f32 %v5857, %v5858
      %v5860 = vrot.slane %v5859, 2
      %v5861 = vmax.f32 %v5859, %v5860
      %v5862 = vrot.slane %v5861, 1
      %v5863 = vmax.f32 %v5861, %v5862
      %v5864 = vsel %vm1429, %v5566, -inf
      %v5865 = vrot.slane %v5864, 4
      %v5866 = vmax.f32 %v5864, %v5865
      %v5867 = vrot.slane %v5866, 2
      %v5868 = vmax.f32 %v5866, %v5867
      %v5869 = vrot.slane %v5868, 1
      %v5870 = vmax.f32 %v5868, %v5869
      %v5871 = vsel %vm1429, %v5567, -inf
      %v5872 = vrot.slane %v5871, 4
      %v5873 = vmax.f32 %v5871, %v5872
      %v5874 = vrot.slane %v5873, 2
      %v5875 = vmax.f32 %v5873, %v5874
      %v5876 = vrot.slane %v5875, 1
      %v5877 = vmax.f32 %v5875, %v5876
      %v5878 = vsel %vm1429, %v5568, -inf
      %v5879 = vrot.slane %v5878, 4
      %v5880 = vmax.f32 %v5878, %v5879
      %v5881 = vrot.slane %v5880, 2
      %v5882 = vmax.f32 %v5880, %v5881
      %v5883 = vrot.slane %v5882, 1
      %v5884 = vmax.f32 %v5882, %v5883
      %v5885 = vsel %vm1429, %v5569, -inf
      %v5886 = vrot.slane %v5885, 4
      %v5887 = vmax.f32 %v5885, %v5886
      %v5888 = vrot.slane %v5887, 2
      %v5889 = vmax.f32 %v5887, %v5888
      %v5890 = vrot.slane %v5889, 1
      %v5891 = vmax.f32 %v5889, %v5890
      %v5892 = vsel %vm1429, %v5570, -inf
      %v5893 = vrot.slane %v5892, 4
      %v5894 = vmax.f32 %v5892, %v5893
      %v5895 = vrot.slane %v5894, 2
      %v5896 = vmax.f32 %v5894, %v5895
      %v5897 = vrot.slane %v5896, 1
      %v5898 = vmax.f32 %v5896, %v5897
      %v5899 = vsel %vm1429, %v5571, -inf
      %v5900 = vrot.slane %v5899, 4
      %v5901 = vmax.f32 %v5899, %v5900
      %v5902 = vrot.slane %v5901, 2
      %v5903 = vmax.f32 %v5901, %v5902
      %v5904 = vrot.slane %v5903, 1
      %v5905 = vmax.f32 %v5903, %v5904
      %v5906 = vsel %vm1429, %v5572, -inf
      %v5907 = vrot.slane %v5906, 4
      %v5908 = vmax.f32 %v5906, %v5907
      %v5909 = vrot.slane %v5908, 2
      %v5910 = vmax.f32 %v5908, %v5909
      %v5911 = vrot.slane %v5910, 1
      %v5912 = vmax.f32 %v5910, %v5911
      %v5913 = vsel %vm1429, %v5573, -inf
      %v5914 = vrot.slane %v5913, 4
      %v5915 = vmax.f32 %v5913, %v5914
      %v5916 = vrot.slane %v5915, 2
      %v5917 = vmax.f32 %v5915, %v5916
      %v5918 = vrot.slane %v5917, 1
      %v5919 = vmax.f32 %v5917, %v5918
      %v5920 = vsel %vm1429, %v5574, -inf
      %v5921 = vrot.slane %v5920, 4
      %v5922 = vmax.f32 %v5920, %v5921
      %v5923 = vrot.slane %v5922, 2
      %v5924 = vmax.f32 %v5922, %v5923
      %v5925 = vrot.slane %v5924, 1
      %v5926 = vmax.f32 %v5924, %v5925
      %v5927 = vsel %vm1429, %v5575, -inf
      %v5928 = vrot.slane %v5927, 4
      %v5929 = vmax.f32 %v5927, %v5928
      %v5930 = vrot.slane %v5929, 2
      %v5931 = vmax.f32 %v5929, %v5930
      %v5932 = vrot.slane %v5931, 1
      %v5933 = vmax.f32 %v5931, %v5932
      %v5934 = vsel %vm1429, %v5576, -inf
      %v5935 = vrot.slane %v5934, 4
      %v5936 = vmax.f32 %v5934, %v5935
      %v5937 = vrot.slane %v5936, 2
      %v5938 = vmax.f32 %v5936, %v5937
      %v5939 = vrot.slane %v5938, 1
      %v5940 = vmax.f32 %v5938, %v5939
      %v5941 = vsel %vm1429, %v5577, -inf
      %v5942 = vrot.slane %v5941, 4
      %v5943 = vmax.f32 %v5941, %v5942
      %v5944 = vrot.slane %v5943, 2
      %v5945 = vmax.f32 %v5943, %v5944
      %v5946 = vrot.slane %v5945, 1
      %v5947 = vmax.f32 %v5945, %v5946
      %v5948 = vsel %vm1429, %v5578, -inf
      %v5949 = vrot.slane %v5948, 4
      %v5950 = vmax.f32 %v5948, %v5949
      %v5951 = vrot.slane %v5950, 2
      %v5952 = vmax.f32 %v5950, %v5951
      %v5953 = vrot.slane %v5952, 1
      %v5954 = vmax.f32 %v5952, %v5953
      %v5955 = vsel %vm1429, %v5579, -inf
      %v5956 = vrot.slane %v5955, 4
      %v5957 = vmax.f32 %v5955, %v5956
      %v5958 = vrot.slane %v5957, 2
      %v5959 = vmax.f32 %v5957, %v5958
      %v5960 = vrot.slane %v5959, 1
      %v5961 = vmax.f32 %v5959, %v5960
      %v5962 = vsel %vm1429, %v5580, -inf
      %v5963 = vrot.slane %v5962, 4
      %v5964 = vmax.f32 %v5962, %v5963
      %v5965 = vrot.slane %v5964, 2
      %v5966 = vmax.f32 %v5964, %v5965
      %v5967 = vrot.slane %v5966, 1
      %v5968 = vmax.f32 %v5966, %v5967
      %v5969 = vsel %vm1429, %v5581, -inf
      %v5970 = vrot.slane %v5969, 4
      %v5971 = vmax.f32 %v5969, %v5970
      %v5972 = vrot.slane %v5971, 2
      %v5973 = vmax.f32 %v5971, %v5972
      %v5974 = vrot.slane %v5973, 1
      %v5975 = vmax.f32 %v5973, %v5974
      %v5976 = vsel %vm1429, %v5582, -inf
      %v5977 = vrot.slane %v5976, 4
      %v5978 = vmax.f32 %v5976, %v5977
      %v5979 = vrot.slane %v5978, 2
      %v5980 = vmax.f32 %v5978, %v5979
      %v5981 = vrot.slane %v5980, 1
      %v5982 = vmax.f32 %v5980, %v5981
      %v5983 = vsel %vm1429, %v5583, -inf
      %v5984 = vrot.slane %v5983, 4
      %v5985 = vmax.f32 %v5983, %v5984
      %v5986 = vrot.slane %v5985, 2
      %v5987 = vmax.f32 %v5985, %v5986
      %v5988 = vrot.slane %v5987, 1
      %v5989 = vmax.f32 %v5987, %v5988
      %v5990 = vsel %vm1429, %v5584, -inf
      %v5991 = vrot.slane %v5990, 4
      %v5992 = vmax.f32 %v5990, %v5991
      %v5993 = vrot.slane %v5992, 2
      %v5994 = vmax.f32 %v5992, %v5993
      %v5995 = vrot.slane %v5994, 1
      %v5996 = vmax.f32 %v5994, %v5995
      %v5997 = vsel %vm1429, %v5585, -inf
      %v5998 = vrot.slane %v5997, 4
      %v5999 = vmax.f32 %v5997, %v5998
      %v6000 = vrot.slane %v5999, 2
      %v6001 = vmax.f32 %v5999, %v6000
      %v6002 = vrot.slane %v6001, 1
      %v6003 = vmax.f32 %v6001, %v6002
      %v6004 = vsel %vm1429, %v5586, -inf
      %v6005 = vrot.slane %v6004, 4
      %v6006 = vmax.f32 %v6004, %v6005
      %v6007 = vrot.slane %v6006, 2
      %v6008 = vmax.f32 %v6006, %v6007
      %v6009 = vrot.slane %v6008, 1
      %v6010 = vmax.f32 %v6008, %v6009
      %v6011 = vsel %vm1429, %v5587, -inf
      %v6012 = vrot.slane %v6011, 4
      %v6013 = vmax.f32 %v6011, %v6012
      %v6014 = vrot.slane %v6013, 2
      %v6015 = vmax.f32 %v6013, %v6014
      %v6016 = vrot.slane %v6015, 1
      %v6017 = vmax.f32 %v6015, %v6016
      %v6018 = vsel %vm1429, %v5588, -inf
      %v6019 = vrot.slane %v6018, 4
      %v6020 = vmax.f32 %v6018, %v6019
      %v6021 = vrot.slane %v6020, 2
      %v6022 = vmax.f32 %v6020, %v6021
      %v6023 = vrot.slane %v6022, 1
      %v6024 = vmax.f32 %v6022, %v6023
      %v6025 = vsel %vm1429, %v5589, -inf
      %v6026 = vrot.slane %v6025, 4
      %v6027 = vmax.f32 %v6025, %v6026
      %v6028 = vrot.slane %v6027, 2
      %v6029 = vmax.f32 %v6027, %v6028
      %v6030 = vrot.slane %v6029, 1
      %v6031 = vmax.f32 %v6029, %v6030
      %v6032 = vsel %vm1429, %v5590, -inf
      %v6033 = vrot.slane %v6032, 4
      %v6034 = vmax.f32 %v6032, %v6033
      %v6035 = vrot.slane %v6034, 2
      %v6036 = vmax.f32 %v6034, %v6035
      %v6037 = vrot.slane %v6036, 1
      %v6038 = vmax.f32 %v6036, %v6037
      %s6039 = scalar_lea.vmem %s7, 128
      %v6040 = vld [vmem:[%s6039] sm:$0xff]
      %v6041 = vld [vmem:[%s6039 + $0x8] sm:$0xff]
      %v6042 = vld [vmem:[%s6039 + $0x10] sm:$0xff]
      %v6043 = vld [vmem:[%s6039 + $0x18] sm:$0xff]
      %v6044 = vld [vmem:[%s6039 + $0x20] sm:$0xff]
      %v6045 = vld [vmem:[%s6039 + $0x28] sm:$0xff]
      %v6046 = vld [vmem:[%s6039 + $0x30] sm:$0xff]
      %v6047 = vld [vmem:[%s6039 + $0x38] sm:$0xff]
      %v6048 = vpack.c.bf16 %v5597, %v5597
      %v6049 = vpack.c.bf16 %v5604, %v5604
      %v6050 = vpack.c.bf16 %v5611, %v5611
      %v6051 = vpack.c.bf16 %v5618, %v5618
      %v6052 = vpack.c.bf16 %v5625, %v5625
      %v6053 = vpack.c.bf16 %v5632, %v5632
      %v6054 = vpack.c.bf16 %v5639, %v5639
      %v6055 = vpack.c.bf16 %v5646, %v5646
      %v6056 = vpack.c.bf16 %v5653, %v5653
      %v6057 = vpack.c.bf16 %v5660, %v5660
      %v6058 = vpack.c.bf16 %v5667, %v5667
      %v6059 = vpack.c.bf16 %v5674, %v5674
      %v6060 = vpack.c.bf16 %v5681, %v5681
      %v6061 = vpack.c.bf16 %v5688, %v5688
      %v6062 = vpack.c.bf16 %v5695, %v5695
      %v6063 = vpack.c.bf16 %v5702, %v5702
      %v6064 = vpack.c.bf16 %v5709, %v5709
      %v6065 = vpack.c.bf16 %v5716, %v5716
      %v6066 = vpack.c.bf16 %v5723, %v5723
      %v6067 = vpack.c.bf16 %v5730, %v5730
      %v6068 = vpack.c.bf16 %v5737, %v5737
      %v6069 = vpack.c.bf16 %v5744, %v5744
      %v6070 = vpack.c.bf16 %v5751, %v5751
      %v6071 = vpack.c.bf16 %v5758, %v5758
      %v6072 = vpack.c.bf16 %v5765, %v5765
      %v6073 = vpack.c.bf16 %v5772, %v5772
      %v6074 = vpack.c.bf16 %v5779, %v5779
      %v6075 = vpack.c.bf16 %v5786, %v5786
      %v6076 = vpack.c.bf16 %v5793, %v5793
      %v6077 = vpack.c.bf16 %v5800, %v5800
      %v6078 = vpack.c.bf16 %v5807, %v5807
      %v6079 = vpack.c.bf16 %v5814, %v5814
      %v6080 = vpack.c.bf16 %v5821, %v5821
      %v6081 = vpack.c.bf16 %v5828, %v5828
      %v6082 = vpack.c.bf16 %v5835, %v5835
      %v6083 = vpack.c.bf16 %v5842, %v5842
      %v6084 = vpack.c.bf16 %v5849, %v5849
      %v6085 = vpack.c.bf16 %v5856, %v5856
      %v6086 = vpack.c.bf16 %v5863, %v5863
      %v6087 = vpack.c.bf16 %v5870, %v5870
      %v6088 = vpack.c.bf16 %v5877, %v5877
      %v6089 = vpack.c.bf16 %v5884, %v5884
      %v6090 = vpack.c.bf16 %v5891, %v5891
      %v6091 = vpack.c.bf16 %v5898, %v5898
      %v6092 = vpack.c.bf16 %v5905, %v5905
      %v6093 = vpack.c.bf16 %v5912, %v5912
      %v6094 = vpack.c.bf16 %v5919, %v5919
      %v6095 = vpack.c.bf16 %v5926, %v5926
      %v6096 = vpack.c.bf16 %v5933, %v5933
      %v6097 = vpack.c.bf16 %v5940, %v5940
      %v6098 = vpack.c.bf16 %v5947, %v5947
      %v6099 = vpack.c.bf16 %v5954, %v5954
      %v6100 = vpack.c.bf16 %v5961, %v5961
      %v6101 = vpack.c.bf16 %v5968, %v5968
      %v6102 = vpack.c.bf16 %v5975, %v5975
      %v6103 = vpack.c.bf16 %v5982, %v5982
      %v6104 = vpack.c.bf16 %v5989, %v5989
      %v6105 = vpack.c.bf16 %v5996, %v5996
      %v6106 = vpack.c.bf16 %v6003, %v6003
      %v6107 = vpack.c.bf16 %v6010, %v6010
      %v6108 = vpack.c.bf16 %v6017, %v6017
      %v6109 = vpack.c.bf16 %v6024, %v6024
      %v6110 = vpack.c.bf16 %v6031, %v6031
      %v6111 = vpack.c.bf16 %v6038, %v6038
      %v6112 = vpack.c.bf16 %v6041, %v6040
      %v6113 = vpack.c.bf16 %v6043, %v6042
      %v6114 = vpack.c.bf16 %v6045, %v6044
      %v6115 = vpack.c.bf16 %v6047, %v6046
      %s6116 = scalar_lea.vmem %s8, 2
      %v6117 = vld [vmem:[%s6116] sm:$0x1]
      %v6119 = vlaneseq
      %v6120 = vshrl.u32 %v6119, 7
      %v6121 = vsub.s32 0, %v6120
      %v6122 = vrot.slane %v6117, %v6121
      %v6188 = vunpack.c.l.b16 %v6048
      %v6189 = vunpack.c.l.b16 %v6049
      %v6190 = vunpack.c.l.b16 %v6050
      %v6191 = vunpack.c.l.b16 %v6051
      %v6192 = vunpack.c.l.b16 %v6052
      %v6193 = vunpack.c.l.b16 %v6053
      %v6194 = vunpack.c.l.b16 %v6054
      %v6195 = vunpack.c.l.b16 %v6055
      %v6196 = vunpack.c.l.b16 %v6056
      %v6197 = vunpack.c.l.b16 %v6057
      %v6198 = vunpack.c.l.b16 %v6058
      %v6199 = vunpack.c.l.b16 %v6059
      %v6200 = vunpack.c.l.b16 %v6060
      %v6201 = vunpack.c.l.b16 %v6061
      %v6202 = vunpack.c.l.b16 %v6062
      %v6203 = vunpack.c.l.b16 %v6063
      %v6204 = vunpack.c.l.b16 %v6064
      %v6205 = vunpack.c.l.b16 %v6065
      %v6206 = vunpack.c.l.b16 %v6066
      %v6207 = vunpack.c.l.b16 %v6067
      %v6208 = vunpack.c.l.b16 %v6068
      %v6209 = vunpack.c.l.b16 %v6069
      %v6210 = vunpack.c.l.b16 %v6070
      %v6211 = vunpack.c.l.b16 %v6071
      %v6212 = vunpack.c.l.b16 %v6072
      %v6213 = vunpack.c.l.b16 %v6073
      %v6214 = vunpack.c.l.b16 %v6074
      %v6215 = vunpack.c.l.b16 %v6075
      %v6216 = vunpack.c.l.b16 %v6076
      %v6217 = vunpack.c.l.b16 %v6077
      %v6218 = vunpack.c.l.b16 %v6078
      %v6219 = vunpack.c.l.b16 %v6079
      %v6220 = vunpack.c.l.b16 %v6080
      %v6221 = vunpack.c.l.b16 %v6081
      %v6222 = vunpack.c.l.b16 %v6082
      %v6223 = vunpack.c.l.b16 %v6083
      %v6224 = vunpack.c.l.b16 %v6084
      %v6225 = vunpack.c.l.b16 %v6085
      %v6226 = vunpack.c.l.b16 %v6086
      %v6227 = vunpack.c.l.b16 %v6087
      %v6228 = vunpack.c.l.b16 %v6088
      %v6229 = vunpack.c.l.b16 %v6089
      %v6230 = vunpack.c.l.b16 %v6090
      %v6231 = vunpack.c.l.b16 %v6091
      %v6232 = vunpack.c.l.b16 %v6092
      %v6233 = vunpack.c.l.b16 %v6093
      %v6234 = vunpack.c.l.b16 %v6094
      %v6235 = vunpack.c.l.b16 %v6095
      %v6236 = vunpack.c.l.b16 %v6096
      %v6237 = vunpack.c.l.b16 %v6097
      %v6238 = vunpack.c.l.b16 %v6098
      %v6239 = vunpack.c.l.b16 %v6099
      %v6240 = vunpack.c.l.b16 %v6100
      %v6241 = vunpack.c.l.b16 %v6101
      %v6242 = vunpack.c.l.b16 %v6102
      %v6243 = vunpack.c.l.b16 %v6103
      %v6244 = vunpack.c.l.b16 %v6104
      %v6245 = vunpack.c.l.b16 %v6105
      %v6246 = vunpack.c.l.b16 %v6106
      %v6247 = vunpack.c.l.b16 %v6107
      %v6248 = vunpack.c.l.b16 %v6108
      %v6249 = vunpack.c.l.b16 %v6109
      %v6250 = vunpack.c.l.b16 %v6110
      %v6251 = vunpack.c.l.b16 %v6111
      %v6252 = vsel %vm3115, %v6189, %v6188
      %v6253 = vsel %vm3117, %v6190, %v6252
      %v6254 = vsel %vm3119, %v6191, %v6253
      %v6255 = vsel %vm3121, %v6192, %v6254
      %v6256 = vsel %vm3123, %v6193, %v6255
      %v6257 = vsel %vm3125, %v6194, %v6256
      %v6258 = vsel %vm3127, %v6195, %v6257
      %v6259 = vsel %vm3115, %v6197, %v6196
      %v6260 = vsel %vm3117, %v6198, %v6259
      %v6261 = vsel %vm3119, %v6199, %v6260
      %v6262 = vsel %vm3121, %v6200, %v6261
      %v6263 = vsel %vm3123, %v6201, %v6262
      %v6264 = vsel %vm3125, %v6202, %v6263
      %v6265 = vsel %vm3127, %v6203, %v6264
      %v6266 = vsel %vm3115, %v6205, %v6204
      %v6267 = vsel %vm3117, %v6206, %v6266
      %v6268 = vsel %vm3119, %v6207, %v6267
      %v6269 = vsel %vm3121, %v6208, %v6268
      %v6270 = vsel %vm3123, %v6209, %v6269
      %v6271 = vsel %vm3125, %v6210, %v6270
      %v6272 = vsel %vm3127, %v6211, %v6271
      %v6273 = vsel %vm3115, %v6213, %v6212
      %v6274 = vsel %vm3117, %v6214, %v6273
      %v6275 = vsel %vm3119, %v6215, %v6274
      %v6276 = vsel %vm3121, %v6216, %v6275
      %v6277 = vsel %vm3123, %v6217, %v6276
      %v6278 = vsel %vm3125, %v6218, %v6277
      %v6279 = vsel %vm3127, %v6219, %v6278
      %v6280 = vsel %vm3115, %v6221, %v6220
      %v6281 = vsel %vm3117, %v6222, %v6280
      %v6282 = vsel %vm3119, %v6223, %v6281
      %v6283 = vsel %vm3121, %v6224, %v6282
      %v6284 = vsel %vm3123, %v6225, %v6283
      %v6285 = vsel %vm3125, %v6226, %v6284
      %v6286 = vsel %vm3127, %v6227, %v6285
      %v6287 = vsel %vm3115, %v6229, %v6228
      %v6288 = vsel %vm3117, %v6230, %v6287
      %v6289 = vsel %vm3119, %v6231, %v6288
      %v6290 = vsel %vm3121, %v6232, %v6289
      %v6291 = vsel %vm3123, %v6233, %v6290
      %v6292 = vsel %vm3125, %v6234, %v6291
      %v6293 = vsel %vm3127, %v6235, %v6292
      %v6294 = vsel %vm3115, %v6237, %v6236
      %v6295 = vsel %vm3117, %v6238, %v6294
      %v6296 = vsel %vm3119, %v6239, %v6295
      %v6297 = vsel %vm3121, %v6240, %v6296
      %v6298 = vsel %vm3123, %v6241, %v6297
      %v6299 = vsel %vm3125, %v6242, %v6298
      %v6300 = vsel %vm3127, %v6243, %v6299
      %v6301 = vsel %vm3115, %v6245, %v6244
      %v6302 = vsel %vm3117, %v6246, %v6301
      %v6303 = vsel %vm3119, %v6247, %v6302
      %v6304 = vsel %vm3121, %v6248, %v6303
      %v6305 = vsel %vm3123, %v6249, %v6304
      %v6306 = vsel %vm3125, %v6250, %v6305
      %v6307 = vsel %vm3127, %v6251, %v6306
      %v6308 = vpack.c.b16 %v6265, %v6258
      %v6309 = vpack.c.b16 %v6279, %v6272
      %v6310 = vpack.c.b16 %v6293, %v6286
      %v6311 = vpack.c.b16 %v6307, %v6300
      %v6313 = vsel %vm1429, %v6308, 0
      %v6316 = vsel %vm1429, %v6309, 0
      %v6319 = vsel %vm1429, %v6310, 0
      %v6322 = vsel %vm1429, %v6311, 0
      %6324 = vmatprep.subr.bf16.mxu0 0
      %6325 = vmatpush1.bf16.msra.mxu0 %v6112
      %6326 = vmatprep.subr.bf16.mxu0 0
      %6327 = vmatpush1.bf16.msra.mxu0 %v6113
      %6328 = vmatprep.subr.bf16.mxu0 0
      %6329 = vmatpush1.bf16.msra.mxu0 %v6114
      %6330 = vmatprep.subr.bf16.mxu0 0
      %6331 = vmatpush1.bf16.msra.mxu0 %v6115
      %6332 = vmatprep.subr.bf16.mxu0 0
      %6333 = vmatpush1.bf16.msra.mxu0 0
      %6334 = vmatprep.subr.bf16.mxu0 0
      %6335 = vmatpush1.bf16.msra.mxu0 0
      %6336 = vmatprep.subr.bf16.mxu0 0
      %6337 = vmatpush1.bf16.msra.mxu0 0
      %6338 = vmatprep.subr.bf16.mxu0 0
      %6339 = vmatpush1.bf16.msra.mxu0 0
      %6340 = vmatprep.subr.bf16.mxu0 0
      %6341 = vmatpush1.bf16.msra.mxu0 0
      %6342 = vmatprep.subr.bf16.mxu0 0
      %6343 = vmatpush1.bf16.msra.mxu0 0
      %6344 = vmatprep.subr.bf16.mxu0 0
      %6345 = vmatpush1.bf16.msra.mxu0 0
      %6346 = vmatprep.subr.bf16.mxu0 0
      %6347 = vmatpush1.bf16.msra.mxu0 0
      %6348 = vmatprep.subr.bf16.mxu0 0
      %6349 = vmatpush1.bf16.msra.mxu0 0
      %6350 = vmatprep.subr.bf16.mxu0 0
      %6351 = vmatpush1.bf16.msra.mxu0 0
      %6352 = vmatprep.subr.bf16.mxu0 0
      %6353 = vmatpush1.bf16.msra.mxu0 0
      %6354 = vmatprep.subr.bf16.mxu0 0
      %6355 = vmatpush1.bf16.msra.mxu0 0
      %6356 = vmatprep.mubr.bf16.mxu0 0
      %6357 = vmatmul.mubr.bf16.gmra.mrb[0].mxu0 %v6313
      %v6358 = vpop.f32.mrb[0].mxu0
      %v6359 = vadd.f32 %v6122, %v6358
      %v6360 = vpop.f32.mrb[0].mxu0
      %v6361 = vpop.f32.mrb[0].mxu0
      %v6362 = vadd.f32 %v6122, %v6361
      %v6363 = vpop.f32.mrb[0].mxu0
      %6364 = vmatprep.mubr.bf16.mxu0 0
      %6365 = vmatmul.mubr.bf16.gmra.mrb[0].mxu0 %v6316
      %v6366 = vpop.f32.mrb[0].mxu0
      %v6367 = vadd.f32 %v6122, %v6366
      %v6368 = vpop.f32.mrb[0].mxu0
      %v6369 = vpop.f32.mrb[0].mxu0
      %v6370 = vadd.f32 %v6122, %v6369
      %v6371 = vpop.f32.mrb[0].mxu0
      %6372 = vmatprep.mubr.bf16.mxu0 0
      %6373 = vmatmul.mubr.bf16.gmra.mrb[0].mxu0 %v6319
      %v6374 = vpop.f32.mrb[0].mxu0
      %v6375 = vadd.f32 %v6122, %v6374
      %v6376 = vpop.f32.mrb[0].mxu0
      %v6377 = vpop.f32.mrb[0].mxu0
      %v6378 = vadd.f32 %v6122, %v6377
      %v6379 = vpop.f32.mrb[0].mxu0
      %6380 = vmatprep.mubr.bf16.mxu0 0
      %6381 = vmatmul.mubr.bf16.gmra.mrb[0].mxu0 %v6322
      %v6382 = vpop.f32.mrb[0].mxu0
      %v6383 = vadd.f32 %v6122, %v6382
      %v6384 = vpop.f32.mrb[0].mxu0
      %v6385 = vpop.f32.mrb[0].mxu0
      %v6386 = vadd.f32 %v6122, %v6385
      %v6387 = vpop.f32.mrb[0].mxu0
      %6388 = vdwg.mxu0
      %v6389 = vmax.f32 %v6359, 0.0
      %v6390 = vmax.f32 %v6362, 0.0
      %v6391 = vmax.f32 %v6367, 0.0
      %v6392 = vmax.f32 %v6370, 0.0
      %v6393 = vmax.f32 %v6375, 0.0
      %v6394 = vmax.f32 %v6378, 0.0
      %v6395 = vmax.f32 %v6383, 0.0
      %v6396 = vmax.f32 %v6386, 0.0
      %s6397 = scalar_lea.vmem %s5, 192
      %v6398 = vld [vmem:[%s6397] sm:$0xff]
      %v6399 = vld [vmem:[%s6397 + $0x8] sm:$0xff]
      %v6400 = vld [vmem:[%s6397 + $0x10] sm:$0xff]
      %v6401 = vld [vmem:[%s6397 + $0x18] sm:$0xff]
      %v6402 = vld [vmem:[%s6397 + $0x20] sm:$0xff]
      %v6403 = vld [vmem:[%s6397 + $0x28] sm:$0xff]
      %v6404 = vld [vmem:[%s6397 + $0x30] sm:$0xff]
      %v6405 = vld [vmem:[%s6397 + $0x38] sm:$0xff]
      %v6406 = vpack.c.bf16 %v6399, %v6398
      %v6407 = vpack.c.bf16 %v6401, %v6400
      %v6408 = vpack.c.bf16 %v6403, %v6402
      %v6409 = vpack.c.bf16 %v6405, %v6404
      %s6410 = scalar_lea.vmem %s6, 3
      %v6411 = vld [vmem:[%s6410] sm:$0x1]
      %v6413 = vlaneseq
      %v6414 = vshrl.u32 %v6413, 7
      %v6415 = vsub.s32 0, %v6414
      %v6416 = vrot.slane %v6411, %v6415
      %6418 = vmatprep.subr.bf16.mxu0 0
      %6419 = vmatpush1.bf16.msra.mxu0 %v6406
      %6420 = vmatprep.subr.bf16.mxu0 0
      %6421 = vmatpush1.bf16.msra.mxu0 %v6407
      %6422 = vmatprep.subr.bf16.mxu0 0
      %6423 = vmatpush1.bf16.msra.mxu0 %v6408
      %6424 = vmatprep.subr.bf16.mxu0 0
      %6425 = vmatpush1.bf16.msra.mxu0 %v6409
      %6426 = vmatprep.subr.bf16.mxu0 0
      %6427 = vmatpush1.bf16.msra.mxu0 0
      %6428 = vmatprep.subr.bf16.mxu0 0
      %6429 = vmatpush1.bf16.msra.mxu0 0
      %6430 = vmatprep.subr.bf16.mxu0 0
      %6431 = vmatpush1.bf16.msra.mxu0 0
      %6432 = vmatprep.subr.bf16.mxu0 0
      %6433 = vmatpush1.bf16.msra.mxu0 0
      %6434 = vmatprep.subr.bf16.mxu0 0
      %6435 = vmatpush1.bf16.msra.mxu0 0
      %6436 = vmatprep.subr.bf16.mxu0 0
      %6437 = vmatpush1.bf16.msra.mxu0 0
      %6438 = vmatprep.subr.bf16.mxu0 0
      %6439 = vmatpush1.bf16.msra.mxu0 0
      %6440 = vmatprep.subr.bf16.mxu0 0
      %6441 = vmatpush1.bf16.msra.mxu0 0
      %6442 = vmatprep.subr.bf16.mxu0 0
      %6443 = vmatpush1.bf16.msra.mxu0 0
      %6444 = vmatprep.subr.bf16.mxu0 0
      %6445 = vmatpush1.bf16.msra.mxu0 0
      %6446 = vmatprep.subr.bf16.mxu0 0
      %6447 = vmatpush1.bf16.msra.mxu0 0
      %6448 = vmatprep.subr.bf16.mxu0 0
      %6449 = vmatpush1.bf16.msra.mxu0 0
      %6450 = vmatprep.mubr.bf16.mxu0 0
      %6451 = vmatmul.mubr.bf16.gmra.mrb[0].mxu0 %v1431
      %v6452 = vpop.f32.mrb[0].mxu0
      %v6453 = vadd.f32 %v6416, %v6452
      %v6454 = vpop.f32.mrb[0].mxu0
      %v6455 = vpop.f32.mrb[0].mxu0
      %v6456 = vadd.f32 %v6416, %v6455
      %v6457 = vpop.f32.mrb[0].mxu0
      %6458 = vmatprep.mubr.bf16.mxu0 0
      %6459 = vmatmul.mubr.bf16.gmra.mrb[0].mxu0 %v1434
      %v6460 = vpop.f32.mrb[0].mxu0
      %v6461 = vadd.f32 %v6416, %v6460
      %v6462 = vpop.f32.mrb[0].mxu0
      %v6463 = vpop.f32.mrb[0].mxu0
      %v6464 = vadd.f32 %v6416, %v6463
      %v6465 = vpop.f32.mrb[0].mxu0
      %6466 = vmatprep.mubr.bf16.mxu0 0
      %6467 = vmatmul.mubr.bf16.gmra.mrb[0].mxu0 %v1437
      %v6468 = vpop.f32.mrb[0].mxu0
      %v6469 = vadd.f32 %v6416, %v6468
      %v6470 = vpop.f32.mrb[0].mxu0
      %v6471 = vpop.f32.mrb[0].mxu0
      %v6472 = vadd.f32 %v6416, %v6471
      %v6473 = vpop.f32.mrb[0].mxu0
      %6474 = vmatprep.mubr.bf16.mxu0 0
      %6475 = vmatmul.mubr.bf16.gmra.mrb[0].mxu0 %v1440
      %v6476 = vpop.f32.mrb[0].mxu0
      %v6477 = vadd.f32 %v6416, %v6476
      %v6478 = vpop.f32.mrb[0].mxu0
      %v6479 = vpop.f32.mrb[0].mxu0
      %v6480 = vadd.f32 %v6416, %v6479
      %v6481 = vpop.f32.mrb[0].mxu0
      %6482 = vmatprep.mubr.bf16.mxu0 0
      %6483 = vmatmul.mubr.bf16.gmra.mrb[0].mxu0 %v1443
      %v6484 = vpop.f32.mrb[0].mxu0
      %v6485 = vadd.f32 %v6416, %v6484
      %v6486 = vpop.f32.mrb[0].mxu0
      %v6487 = vpop.f32.mrb[0].mxu0
      %v6488 = vadd.f32 %v6416, %v6487
      %v6489 = vpop.f32.mrb[0].mxu0
      %6490 = vmatprep.mubr.bf16.mxu0 0
      %6491 = vmatmul.mubr.bf16.gmra.mrb[0].mxu0 %v1446
      %v6492 = vpop.f32.mrb[0].mxu0
      %v6493 = vadd.f32 %v6416, %v6492
      %v6494 = vpop.f32.mrb[0].mxu0
      %v6495 = vpop.f32.mrb[0].mxu0
      %v6496 = vadd.f32 %v6416, %v6495
      %v6497 = vpop.f32.mrb[0].mxu0
      %6498 = vmatprep.mubr.bf16.mxu0 0
      %6499 = vmatmul.mubr.bf16.gmra.mrb[0].mxu0 %v1449
      %v6500 = vpop.f32.mrb[0].mxu0
      %v6501 = vadd.f32 %v6416, %v6500
      %v6502 = vpop.f32.mrb[0].mxu0
      %v6503 = vpop.f32.mrb[0].mxu0
      %v6504 = vadd.f32 %v6416, %v6503
      %v6505 = vpop.f32.mrb[0].mxu0
      %6506 = vmatprep.mubr.bf16.mxu0 0
      %6507 = vmatmul.mubr.bf16.gmra.mrb[0].mxu0 %v1452
      %v6508 = vpop.f32.mrb[0].mxu0
      %v6509 = vadd.f32 %v6416, %v6508
      %v6510 = vpop.f32.mrb[0].mxu0
      %v6511 = vpop.f32.mrb[0].mxu0
      %v6512 = vadd.f32 %v6416, %v6511
      %v6513 = vpop.f32.mrb[0].mxu0
      %6514 = vmatprep.mubr.bf16.mxu0 0
      %6515 = vmatmul.mubr.bf16.gmra.mrb[0].mxu0 %v1455
      %v6516 = vpop.f32.mrb[0].mxu0
      %v6517 = vadd.f32 %v6416, %v6516
      %v6518 = vpop.f32.mrb[0].mxu0
      %v6519 = vpop.f32.mrb[0].mxu0
      %v6520 = vadd.f32 %v6416, %v6519
      %v6521 = vpop.f32.mrb[0].mxu0
      %6522 = vmatprep.mubr.bf16.mxu0 0
      %6523 = vmatmul.mubr.bf16.gmra.mrb[0].mxu0 %v1458
      %v6524 = vpop.f32.mrb[0].mxu0
      %v6525 = vadd.f32 %v6416, %v6524
      %v6526 = vpop.f32.mrb[0].mxu0
      %v6527 = vpop.f32.mrb[0].mxu0
      %v6528 = vadd.f32 %v6416, %v6527
      %v6529 = vpop.f32.mrb[0].mxu0
      %6530 = vmatprep.mubr.bf16.mxu0 0
      %6531 = vmatmul.mubr.bf16.gmra.mrb[0].mxu0 %v1461
      %v6532 = vpop.f32.mrb[0].mxu0
      %v6533 = vadd.f32 %v6416, %v6532
      %v6534 = vpop.f32.mrb[0].mxu0
      %v6535 = vpop.f32.mrb[0].mxu0
      %v6536 = vadd.f32 %v6416, %v6535
      %v6537 = vpop.f32.mrb[0].mxu0
      %6538 = vmatprep.mubr.bf16.mxu0 0
      %6539 = vmatmul.mubr.bf16.gmra.mrb[0].mxu0 %v1464
      %v6540 = vpop.f32.mrb[0].mxu0
      %v6541 = vadd.f32 %v6416, %v6540
      %v6542 = vpop.f32.mrb[0].mxu0
      %v6543 = vpop.f32.mrb[0].mxu0
      %v6544 = vadd.f32 %v6416, %v6543
      %v6545 = vpop.f32.mrb[0].mxu0
      %6546 = vmatprep.mubr.bf16.mxu0 0
      %6547 = vmatmul.mubr.bf16.gmra.mrb[0].mxu0 %v1467
      %v6548 = vpop.f32.mrb[0].mxu0
      %v6549 = vadd.f32 %v6416, %v6548
      %v6550 = vpop.f32.mrb[0].mxu0
      %v6551 = vpop.f32.mrb[0].mxu0
      %v6552 = vadd.f32 %v6416, %v6551
      %v6553 = vpop.f32.mrb[0].mxu0
      %6554 = vmatprep.mubr.bf16.mxu0 0
      %6555 = vmatmul.mubr.bf16.gmra.mrb[0].mxu0 %v1470
      %v6556 = vpop.f32.mrb[0].mxu0
      %v6557 = vadd.f32 %v6416, %v6556
      %v6558 = vpop.f32.mrb[0].mxu0
      %v6559 = vpop.f32.mrb[0].mxu0
      %v6560 = vadd.f32 %v6416, %v6559
      %v6561 = vpop.f32.mrb[0].mxu0
      %6562 = vmatprep.mubr.bf16.mxu0 0
      %6563 = vmatmul.mubr.bf16.gmra.mrb[0].mxu0 %v1473
      %v6564 = vpop.f32.mrb[0].mxu0
      %v6565 = vadd.f32 %v6416, %v6564
      %v6566 = vpop.f32.mrb[0].mxu0
      %v6567 = vpop.f32.mrb[0].mxu0
      %v6568 = vadd.f32 %v6416, %v6567
      %v6569 = vpop.f32.mrb[0].mxu0
      %6570 = vmatprep.mubr.bf16.mxu0 0
      %6571 = vmatmul.mubr.bf16.gmra.mrb[0].mxu0 %v1476
      %v6572 = vpop.f32.mrb[0].mxu0
      %v6573 = vadd.f32 %v6416, %v6572
      %v6574 = vpop.f32.mrb[0].mxu0
      %v6575 = vpop.f32.mrb[0].mxu0
      %v6576 = vadd.f32 %v6416, %v6575
      %v6577 = vpop.f32.mrb[0].mxu0
      %6578 = vmatprep.mubr.bf16.mxu0 0
      %6579 = vmatmul.mubr.bf16.gmra.mrb[0].mxu0 %v1479
      %v6580 = vpop.f32.mrb[0].mxu0
      %v6581 = vadd.f32 %v6416, %v6580
      %v6582 = vpop.f32.mrb[0].mxu0
      %v6583 = vpop.f32.mrb[0].mxu0
      %v6584 = vadd.f32 %v6416, %v6583
      %v6585 = vpop.f32.mrb[0].mxu0
      %6586 = vmatprep.mubr.bf16.mxu0 0
      %6587 = vmatmul.mubr.bf16.gmra.mrb[0].mxu0 %v1482
      %v6588 = vpop.f32.mrb[0].mxu0
      %v6589 = vadd.f32 %v6416, %v6588
      %v6590 = vpop.f32.mrb[0].mxu0
      %v6591 = vpop.f32.mrb[0].mxu0
      %v6592 = vadd.f32 %v6416, %v6591
      %v6593 = vpop.f32.mrb[0].mxu0
      %6594 = vmatprep.mubr.bf16.mxu0 0
      %6595 = vmatmul.mubr.bf16.gmra.mrb[0].mxu0 %v1485
      %v6596 = vpop.f32.mrb[0].mxu0
      %v6597 = vadd.f32 %v6416, %v6596
      %v6598 = vpop.f32.mrb[0].mxu0
      %v6599 = vpop.f32.mrb[0].mxu0
      %v6600 = vadd.f32 %v6416, %v6599
      %v6601 = vpop.f32.mrb[0].mxu0
      %6602 = vmatprep.mubr.bf16.mxu0 0
      %6603 = vmatmul.mubr.bf16.gmra.mrb[0].mxu0 %v1488
      %v6604 = vpop.f32.mrb[0].mxu0
      %v6605 = vadd.f32 %v6416, %v6604
      %v6606 = vpop.f32.mrb[0].mxu0
      %v6607 = vpop.f32.mrb[0].mxu0
      %v6608 = vadd.f32 %v6416, %v6607
      %v6609 = vpop.f32.mrb[0].mxu0
      %6610 = vmatprep.mubr.bf16.mxu0 0
      %6611 = vmatmul.mubr.bf16.gmra.mrb[0].mxu0 %v1491
      %v6612 = vpop.f32.mrb[0].mxu0
      %v6613 = vadd.f32 %v6416, %v6612
      %v6614 = vpop.f32.mrb[0].mxu0
      %v6615 = vpop.f32.mrb[0].mxu0
      %v6616 = vadd.f32 %v6416, %v6615
      %v6617 = vpop.f32.mrb[0].mxu0
      %6618 = vmatprep.mubr.bf16.mxu0 0
      %6619 = vmatmul.mubr.bf16.gmra.mrb[0].mxu0 %v1494
      %v6620 = vpop.f32.mrb[0].mxu0
      %v6621 = vadd.f32 %v6416, %v6620
      %v6622 = vpop.f32.mrb[0].mxu0
      %v6623 = vpop.f32.mrb[0].mxu0
      %v6624 = vadd.f32 %v6416, %v6623
      %v6625 = vpop.f32.mrb[0].mxu0
      %6626 = vmatprep.mubr.bf16.mxu0 0
      %6627 = vmatmul.mubr.bf16.gmra.mrb[0].mxu0 %v1497
      %v6628 = vpop.f32.mrb[0].mxu0
      %v6629 = vadd.f32 %v6416, %v6628
      %v6630 = vpop.f32.mrb[0].mxu0
      %v6631 = vpop.f32.mrb[0].mxu0
      %v6632 = vadd.f32 %v6416, %v6631
      %v6633 = vpop.f32.mrb[0].mxu0
      %6634 = vmatprep.mubr.bf16.mxu0 0
      %6635 = vmatmul.mubr.bf16.gmra.mrb[0].mxu0 %v1500
      %v6636 = vpop.f32.mrb[0].mxu0
      %v6637 = vadd.f32 %v6416, %v6636
      %v6638 = vpop.f32.mrb[0].mxu0
      %v6639 = vpop.f32.mrb[0].mxu0
      %v6640 = vadd.f32 %v6416, %v6639
      %v6641 = vpop.f32.mrb[0].mxu0
      %6642 = vmatprep.mubr.bf16.mxu0 0
      %6643 = vmatmul.mubr.bf16.gmra.mrb[0].mxu0 %v1503
      %v6644 = vpop.f32.mrb[0].mxu0
      %v6645 = vadd.f32 %v6416, %v6644
      %v6646 = vpop.f32.mrb[0].mxu0
      %v6647 = vpop.f32.mrb[0].mxu0
      %v6648 = vadd.f32 %v6416, %v6647
      %v6649 = vpop.f32.mrb[0].mxu0
      %6650 = vmatprep.mubr.bf16.mxu0 0
      %6651 = vmatmul.mubr.bf16.gmra.mrb[0].mxu0 %v1506
      %v6652 = vpop.f32.mrb[0].mxu0
      %v6653 = vadd.f32 %v6416, %v6652
      %v6654 = vpop.f32.mrb[0].mxu0
      %v6655 = vpop.f32.mrb[0].mxu0
      %v6656 = vadd.f32 %v6416, %v6655
      %v6657 = vpop.f32.mrb[0].mxu0
      %6658 = vmatprep.mubr.bf16.mxu0 0
      %6659 = vmatmul.mubr.bf16.gmra.mrb[0].mxu0 %v1509
      %v6660 = vpop.f32.mrb[0].mxu0
      %v6661 = vadd.f32 %v6416, %v6660
      %v6662 = vpop.f32.mrb[0].mxu0
      %v6663 = vpop.f32.mrb[0].mxu0
      %v6664 = vadd.f32 %v6416, %v6663
      %v6665 = vpop.f32.mrb[0].mxu0
      %6666 = vmatprep.mubr.bf16.mxu0 0
      %6667 = vmatmul.mubr.bf16.gmra.mrb[0].mxu0 %v1512
      %v6668 = vpop.f32.mrb[0].mxu0
      %v6669 = vadd.f32 %v6416, %v6668
      %v6670 = vpop.f32.mrb[0].mxu0
      %v6671 = vpop.f32.mrb[0].mxu0
      %v6672 = vadd.f32 %v6416, %v6671
      %v6673 = vpop.f32.mrb[0].mxu0
      %6674 = vmatprep.mubr.bf16.mxu0 0
      %6675 = vmatmul.mubr.bf16.gmra.mrb[0].mxu0 %v1515
      %v6676 = vpop.f32.mrb[0].mxu0
      %v6677 = vadd.f32 %v6416, %v6676
      %v6678 = vpop.f32.mrb[0].mxu0
      %v6679 = vpop.f32.mrb[0].mxu0
      %v6680 = vadd.f32 %v6416, %v6679
      %v6681 = vpop.f32.mrb[0].mxu0
      %6682 = vmatprep.mubr.bf16.mxu0 0
      %6683 = vmatmul.mubr.bf16.gmra.mrb[0].mxu0 %v1518
      %v6684 = vpop.f32.mrb[0].mxu0
      %v6685 = vadd.f32 %v6416, %v6684
      %v6686 = vpop.f32.mrb[0].mxu0
      %v6687 = vpop.f32.mrb[0].mxu0
      %v6688 = vadd.f32 %v6416, %v6687
      %v6689 = vpop.f32.mrb[0].mxu0
      %6690 = vmatprep.mubr.bf16.mxu0 0
      %6691 = vmatmul.mubr.bf16.gmra.mrb[0].mxu0 %v1521
      %v6692 = vpop.f32.mrb[0].mxu0
      %v6693 = vadd.f32 %v6416, %v6692
      %v6694 = vpop.f32.mrb[0].mxu0
      %v6695 = vpop.f32.mrb[0].mxu0
      %v6696 = vadd.f32 %v6416, %v6695
      %v6697 = vpop.f32.mrb[0].mxu0
      %6698 = vmatprep.mubr.bf16.mxu0 0
      %6699 = vmatmul.mubr.bf16.gmra.mrb[0].mxu0 %v1524
      %v6700 = vpop.f32.mrb[0].mxu0
      %v6701 = vadd.f32 %v6416, %v6700
      %v6702 = vpop.f32.mrb[0].mxu0
      %v6703 = vpop.f32.mrb[0].mxu0
      %v6704 = vadd.f32 %v6416, %v6703
      %v6705 = vpop.f32.mrb[0].mxu0
      %6706 = vdwg.mxu0
      %6707 = vmatprep.subr.mxu0 0.0
      %6708 = vmatpush1.msra.mxu0 %v6389
      %6709 = vmatprep.subr.mxu0 0.0
      %6710 = vmatpush1.msra.mxu0 %v6390
      %6711 = vmatprep.subr.mxu0 0.0
      %6712 = vmatpush1.msra.mxu0 %v6391
      %6713 = vmatprep.subr.mxu0 0.0
      %6714 = vmatpush1.msra.mxu0 %v6392
      %6715 = vmatprep.subr.mxu0 0.0
      %6716 = vmatpush1.msra.mxu0 %v6393
      %6717 = vmatprep.subr.mxu0 0.0
      %6718 = vmatpush1.msra.mxu0 %v6394
      %6719 = vmatprep.subr.mxu0 0.0
      %6720 = vmatpush1.msra.mxu0 %v6395
      %6721 = vmatprep.subr.mxu0 0.0
      %6722 = vmatpush1.msra.mxu0 %v6396
      %6723 = vmatprep.subr.mxu0 0.0
      %6724 = vmatpush1.msra.mxu0 0.0
      %6725 = vmatprep.subr.mxu0 0.0
      %6726 = vmatpush1.msra.mxu0 0.0
      %6727 = vmatprep.subr.mxu0 0.0
      %6728 = vmatpush1.msra.mxu0 0.0
      %6729 = vmatprep.subr.mxu0 0.0
      %6730 = vmatpush1.msra.mxu0 0.0
      %6731 = vmatprep.subr.mxu0 0.0
      %6732 = vmatpush1.msra.mxu0 0.0
      %6733 = vmatprep.subr.mxu0 0.0
      %6734 = vmatpush1.msra.mxu0 0.0
      %6735 = vmatprep.subr.mxu0 0.0
      %6736 = vmatpush1.msra.mxu0 0.0
      %6737 = vmatprep.subr.mxu0 0.0
      %6738 = vmatpush1.msra.mxu0 0.0
      %6739 = vmatprep.subr.mxu0 0.0
      %6740 = vmatpush1.msra.mxu0 0.0
      %6741 = vmatprep.subr.mxu0 0.0
      %6742 = vmatpush1.msra.mxu0 0.0
      %6743 = vmatprep.subr.mxu0 0.0
      %6744 = vmatpush1.msra.mxu0 0.0
      %6745 = vmatprep.subr.mxu0 0.0
      %6746 = vmatpush1.msra.mxu0 0.0
      %6747 = vmatprep.subr.mxu0 0.0
      %6748 = vmatpush1.msra.mxu0 0.0
      %6749 = vmatprep.subr.mxu0 0.0
      %6750 = vmatpush1.msra.mxu0 0.0
      %6751 = vmatprep.subr.mxu0 0.0
      %6752 = vmatpush1.msra.mxu0 0.0
      %6753 = vmatprep.subr.mxu0 0.0
      %6754 = vmatpush1.msra.mxu0 0.0
      %6755 = vmatprep.subr.mxu0 0.0
      %6756 = vmatpush1.msra.mxu0 0.0
      %6757 = vmatprep.subr.mxu0 0.0
      %6758 = vmatpush1.msra.mxu0 0.0
      %6759 = vmatprep.subr.mxu0 0.0
      %6760 = vmatpush1.msra.mxu0 0.0
      %6761 = vmatprep.subr.mxu0 0.0
      %6762 = vmatpush1.msra.mxu0 0.0
      %6763 = vmatprep.subr.mxu0 0.0
      %6764 = vmatpush1.msra.mxu0 0.0
      %6765 = vmatprep.subr.mxu0 0.0
      %6766 = vmatpush1.msra.mxu0 0.0
      %6767 = vmatprep.subr.mxu0 0.0
      %6768 = vmatpush1.msra.mxu0 0.0
      %6769 = vmatprep.subr.mxu0 0.0
      %6770 = vmatpush1.msra.mxu0 0.0
      %6771 = vmatprep.mubr.f32.mxu0 0.0
      %6772 = vmatmul.mubr.f32.gmra.mrb[0].mxu0 %v1816
      %v6773 = vpop.f32.mrb[0].mxu0
      %v6774 = vadd.f32 0.0, %v6773
      %v6775 = vpop.f32.mrb[0].mxu0
      %6776 = vmatprep.mubr.f32.mxu0 0.0
      %6777 = vmatmul.mubr.f32.gmra.mrb[0].mxu0 %v1819
      %v6778 = vpop.f32.mrb[0].mxu0
      %v6779 = vadd.f32 0.0, %v6778
      %v6780 = vpop.f32.mrb[0].mxu0
      %6781 = vmatprep.mubr.f32.mxu0 0.0
      %6782 = vmatmul.mubr.f32.gmra.mrb[0].mxu0 %v1822
      %v6783 = vpop.f32.mrb[0].mxu0
      %v6784 = vadd.f32 0.0, %v6783
      %v6785 = vpop.f32.mrb[0].mxu0
      %6786 = vmatprep.mubr.f32.mxu0 0.0
      %6787 = vmatmul.mubr.f32.gmra.mrb[0].mxu0 %v1825
      %v6788 = vpop.f32.mrb[0].mxu0
      %v6789 = vadd.f32 0.0, %v6788
      %v6790 = vpop.f32.mrb[0].mxu0
      %6791 = vmatprep.mubr.f32.mxu0 0.0
      %6792 = vmatmul.mubr.f32.gmra.mrb[0].mxu0 %v1828
      %v6793 = vpop.f32.mrb[0].mxu0
      %v6794 = vadd.f32 0.0, %v6793
      %v6795 = vpop.f32.mrb[0].mxu0
      %6796 = vmatprep.mubr.f32.mxu0 0.0
      %6797 = vmatmul.mubr.f32.gmra.mrb[0].mxu0 %v1831
      %v6798 = vpop.f32.mrb[0].mxu0
      %v6799 = vadd.f32 0.0, %v6798
      %v6800 = vpop.f32.mrb[0].mxu0
      %6801 = vmatprep.mubr.f32.mxu0 0.0
      %6802 = vmatmul.mubr.f32.gmra.mrb[0].mxu0 %v1834
      %v6803 = vpop.f32.mrb[0].mxu0
      %v6804 = vadd.f32 0.0, %v6803
      %v6805 = vpop.f32.mrb[0].mxu0
      %6806 = vmatprep.mubr.f32.mxu0 0.0
      %6807 = vmatmul.mubr.f32.gmra.mrb[0].mxu0 %v1837
      %v6808 = vpop.f32.mrb[0].mxu0
      %v6809 = vadd.f32 0.0, %v6808
      %v6810 = vpop.f32.mrb[0].mxu0
      %6811 = vmatprep.mubr.f32.mxu0 0.0
      %6812 = vmatmul.mubr.f32.gmra.mrb[0].mxu0 %v1840
      %v6813 = vpop.f32.mrb[0].mxu0
      %v6814 = vadd.f32 0.0, %v6813
      %v6815 = vpop.f32.mrb[0].mxu0
      %6816 = vmatprep.mubr.f32.mxu0 0.0
      %6817 = vmatmul.mubr.f32.gmra.mrb[0].mxu0 %v1843
      %v6818 = vpop.f32.mrb[0].mxu0
      %v6819 = vadd.f32 0.0, %v6818
      %v6820 = vpop.f32.mrb[0].mxu0
      %6821 = vmatprep.mubr.f32.mxu0 0.0
      %6822 = vmatmul.mubr.f32.gmra.mrb[0].mxu0 %v1846
      %v6823 = vpop.f32.mrb[0].mxu0
      %v6824 = vadd.f32 0.0, %v6823
      %v6825 = vpop.f32.mrb[0].mxu0
      %6826 = vmatprep.mubr.f32.mxu0 0.0
      %6827 = vmatmul.mubr.f32.gmra.mrb[0].mxu0 %v1849
      %v6828 = vpop.f32.mrb[0].mxu0
      %v6829 = vadd.f32 0.0, %v6828
      %v6830 = vpop.f32.mrb[0].mxu0
      %6831 = vmatprep.mubr.f32.mxu0 0.0
      %6832 = vmatmul.mubr.f32.gmra.mrb[0].mxu0 %v1852
      %v6833 = vpop.f32.mrb[0].mxu0
      %v6834 = vadd.f32 0.0, %v6833
      %v6835 = vpop.f32.mrb[0].mxu0
      %6836 = vmatprep.mubr.f32.mxu0 0.0
      %6837 = vmatmul.mubr.f32.gmra.mrb[0].mxu0 %v1855
      %v6838 = vpop.f32.mrb[0].mxu0
      %v6839 = vadd.f32 0.0, %v6838
      %v6840 = vpop.f32.mrb[0].mxu0
      %6841 = vmatprep.mubr.f32.mxu0 0.0
      %6842 = vmatmul.mubr.f32.gmra.mrb[0].mxu0 %v1858
      %v6843 = vpop.f32.mrb[0].mxu0
      %v6844 = vadd.f32 0.0, %v6843
      %v6845 = vpop.f32.mrb[0].mxu0
      %6846 = vmatprep.mubr.f32.mxu0 0.0
      %6847 = vmatmul.mubr.f32.gmra.mrb[0].mxu0 %v1861
      %v6848 = vpop.f32.mrb[0].mxu0
      %v6849 = vadd.f32 0.0, %v6848
      %v6850 = vpop.f32.mrb[0].mxu0
      %6851 = vmatprep.mubr.f32.mxu0 0.0
      %6852 = vmatmul.mubr.f32.gmra.mrb[0].mxu0 %v1864
      %v6853 = vpop.f32.mrb[0].mxu0
      %v6854 = vadd.f32 0.0, %v6853
      %v6855 = vpop.f32.mrb[0].mxu0
      %6856 = vmatprep.mubr.f32.mxu0 0.0
      %6857 = vmatmul.mubr.f32.gmra.mrb[0].mxu0 %v1867
      %v6858 = vpop.f32.mrb[0].mxu0
      %v6859 = vadd.f32 0.0, %v6858
      %v6860 = vpop.f32.mrb[0].mxu0
      %6861 = vmatprep.mubr.f32.mxu0 0.0
      %6862 = vmatmul.mubr.f32.gmra.mrb[0].mxu0 %v1870
      %v6863 = vpop.f32.mrb[0].mxu0
      %v6864 = vadd.f32 0.0, %v6863
      %v6865 = vpop.f32.mrb[0].mxu0
      %6866 = vmatprep.mubr.f32.mxu0 0.0
      %6867 = vmatmul.mubr.f32.gmra.mrb[0].mxu0 %v1873
      %v6868 = vpop.f32.mrb[0].mxu0
      %v6869 = vadd.f32 0.0, %v6868
      %v6870 = vpop.f32.mrb[0].mxu0
      %6871 = vmatprep.mubr.f32.mxu0 0.0
      %6872 = vmatmul.mubr.f32.gmra.mrb[0].mxu0 %v1876
      %v6873 = vpop.f32.mrb[0].mxu0
      %v6874 = vadd.f32 0.0, %v6873
      %v6875 = vpop.f32.mrb[0].mxu0
      %6876 = vmatprep.mubr.f32.mxu0 0.0
      %6877 = vmatmul.mubr.f32.gmra.mrb[0].mxu0 %v1879
      %v6878 = vpop.f32.mrb[0].mxu0
      %v6879 = vadd.f32 0.0, %v6878
      %v6880 = vpop.f32.mrb[0].mxu0
      %6881 = vmatprep.mubr.f32.mxu0 0.0
      %6882 = vmatmul.mubr.f32.gmra.mrb[0].mxu0 %v1882
      %v6883 = vpop.f32.mrb[0].mxu0
      %v6884 = vadd.f32 0.0, %v6883
      %v6885 = vpop.f32.mrb[0].mxu0
      %6886 = vmatprep.mubr.f32.mxu0 0.0
      %6887 = vmatmul.mubr.f32.gmra.mrb[0].mxu0 %v1885
      %v6888 = vpop.f32.mrb[0].mxu0
      %v6889 = vadd.f32 0.0, %v6888
      %v6890 = vpop.f32.mrb[0].mxu0
      %6891 = vmatprep.mubr.f32.mxu0 0.0
      %6892 = vmatmul.mubr.f32.gmra.mrb[0].mxu0 %v1888
      %v6893 = vpop.f32.mrb[0].mxu0
      %v6894 = vadd.f32 0.0, %v6893
      %v6895 = vpop.f32.mrb[0].mxu0
      %6896 = vmatprep.mubr.f32.mxu0 0.0
      %6897 = vmatmul.mubr.f32.gmra.mrb[0].mxu0 %v1891
      %v6898 = vpop.f32.mrb[0].mxu0
      %v6899 = vadd.f32 0.0, %v6898
      %v6900 = vpop.f32.mrb[0].mxu0
      %6901 = vmatprep.mubr.f32.mxu0 0.0
      %6902 = vmatmul.mubr.f32.gmra.mrb[0].mxu0 %v1894
      %v6903 = vpop.f32.mrb[0].mxu0
      %v6904 = vadd.f32 0.0, %v6903
      %v6905 = vpop.f32.mrb[0].mxu0
      %6906 = vmatprep.mubr.f32.mxu0 0.0
      %6907 = vmatmul.mubr.f32.gmra.mrb[0].mxu0 %v1897
      %v6908 = vpop.f32.mrb[0].mxu0
      %v6909 = vadd.f32 0.0, %v6908
      %v6910 = vpop.f32.mrb[0].mxu0
      %6911 = vmatprep.mubr.f32.mxu0 0.0
      %6912 = vmatmul.mubr.f32.gmra.mrb[0].mxu0 %v1900
      %v6913 = vpop.f32.mrb[0].mxu0
      %v6914 = vadd.f32 0.0, %v6913
      %v6915 = vpop.f32.mrb[0].mxu0
      %6916 = vmatprep.mubr.f32.mxu0 0.0
      %6917 = vmatmul.mubr.f32.gmra.mrb[0].mxu0 %v1903
      %v6918 = vpop.f32.mrb[0].mxu0
      %v6919 = vadd.f32 0.0, %v6918
      %v6920 = vpop.f32.mrb[0].mxu0
      %6921 = vmatprep.mubr.f32.mxu0 0.0
      %6922 = vmatmul.mubr.f32.gmra.mrb[0].mxu0 %v1906
      %v6923 = vpop.f32.mrb[0].mxu0
      %v6924 = vadd.f32 0.0, %v6923
      %v6925 = vpop.f32.mrb[0].mxu0
      %6926 = vmatprep.mubr.f32.mxu0 0.0
      %6927 = vmatmul.mubr.f32.gmra.mrb[0].mxu0 %v1909
      %v6928 = vpop.f32.mrb[0].mxu0
      %v6929 = vadd.f32 0.0, %v6928
      %v6930 = vpop.f32.mrb[0].mxu0
      %6931 = vmatprep.mubr.f32.mxu0 0.0
      %6932 = vmatmul.mubr.f32.gmra.mrb[0].mxu0 %v1912
      %v6933 = vpop.f32.mrb[0].mxu0
      %v6934 = vadd.f32 0.0, %v6933
      %v6935 = vpop.f32.mrb[0].mxu0
      %6936 = vmatprep.mubr.f32.mxu0 0.0
      %6937 = vmatmul.mubr.f32.gmra.mrb[0].mxu0 %v1915
      %v6938 = vpop.f32.mrb[0].mxu0
      %v6939 = vadd.f32 0.0, %v6938
      %v6940 = vpop.f32.mrb[0].mxu0
      %6941 = vmatprep.mubr.f32.mxu0 0.0
      %6942 = vmatmul.mubr.f32.gmra.mrb[0].mxu0 %v1918
      %v6943 = vpop.f32.mrb[0].mxu0
      %v6944 = vadd.f32 0.0, %v6943
      %v6945 = vpop.f32.mrb[0].mxu0
      %6946 = vmatprep.mubr.f32.mxu0 0.0
      %6947 = vmatmul.mubr.f32.gmra.mrb[0].mxu0 %v1921
      %v6948 = vpop.f32.mrb[0].mxu0
      %v6949 = vadd.f32 0.0, %v6948
      %v6950 = vpop.f32.mrb[0].mxu0
      %6951 = vmatprep.mubr.f32.mxu0 0.0
      %6952 = vmatmul.mubr.f32.gmra.mrb[0].mxu0 %v1924
      %v6953 = vpop.f32.mrb[0].mxu0
      %v6954 = vadd.f32 0.0, %v6953
      %v6955 = vpop.f32.mrb[0].mxu0
      %6956 = vmatprep.mubr.f32.mxu0 0.0
      %6957 = vmatmul.mubr.f32.gmra.mrb[0].mxu0 %v1927
      %v6958 = vpop.f32.mrb[0].mxu0
      %v6959 = vadd.f32 0.0, %v6958
      %v6960 = vpop.f32.mrb[0].mxu0
      %6961 = vmatprep.mubr.f32.mxu0 0.0
      %6962 = vmatmul.mubr.f32.gmra.mrb[0].mxu0 %v1930
      %v6963 = vpop.f32.mrb[0].mxu0
      %v6964 = vadd.f32 0.0, %v6963
      %v6965 = vpop.f32.mrb[0].mxu0
      %6966 = vmatprep.mubr.f32.mxu0 0.0
      %6967 = vmatmul.mubr.f32.gmra.mrb[0].mxu0 %v1933
      %v6968 = vpop.f32.mrb[0].mxu0
      %v6969 = vadd.f32 0.0, %v6968
      %v6970 = vpop.f32.mrb[0].mxu0
      %6971 = vmatprep.mubr.f32.mxu0 0.0
      %6972 = vmatmul.mubr.f32.gmra.mrb[0].mxu0 %v1936
      %v6973 = vpop.f32.mrb[0].mxu0
      %v6974 = vadd.f32 0.0, %v6973
      %v6975 = vpop.f32.mrb[0].mxu0
      %6976 = vmatprep.mubr.f32.mxu0 0.0
      %6977 = vmatmul.mubr.f32.gmra.mrb[0].mxu0 %v1939
      %v6978 = vpop.f32.mrb[0].mxu0
      %v6979 = vadd.f32 0.0, %v6978
      %v6980 = vpop.f32.mrb[0].mxu0
      %6981 = vmatprep.mubr.f32.mxu0 0.0
      %6982 = vmatmul.mubr.f32.gmra.mrb[0].mxu0 %v1942
      %v6983 = vpop.f32.mrb[0].mxu0
      %v6984 = vadd.f32 0.0, %v6983
      %v6985 = vpop.f32.mrb[0].mxu0
      %6986 = vmatprep.mubr.f32.mxu0 0.0
      %6987 = vmatmul.mubr.f32.gmra.mrb[0].mxu0 %v1945
      %v6988 = vpop.f32.mrb[0].mxu0
      %v6989 = vadd.f32 0.0, %v6988
      %v6990 = vpop.f32.mrb[0].mxu0
      %6991 = vmatprep.mubr.f32.mxu0 0.0
      %6992 = vmatmul.mubr.f32.gmra.mrb[0].mxu0 %v1948
      %v6993 = vpop.f32.mrb[0].mxu0
      %v6994 = vadd.f32 0.0, %v6993
      %v6995 = vpop.f32.mrb[0].mxu0
      %6996 = vmatprep.mubr.f32.mxu0 0.0
      %6997 = vmatmul.mubr.f32.gmra.mrb[0].mxu0 %v1951
      %v6998 = vpop.f32.mrb[0].mxu0
      %v6999 = vadd.f32 0.0, %v6998
      %v7000 = vpop.f32.mrb[0].mxu0
      %7001 = vmatprep.mubr.f32.mxu0 0.0
      %7002 = vmatmul.mubr.f32.gmra.mrb[0].mxu0 %v1954
      %v7003 = vpop.f32.mrb[0].mxu0
      %v7004 = vadd.f32 0.0, %v7003
      %v7005 = vpop.f32.mrb[0].mxu0
      %7006 = vmatprep.mubr.f32.mxu0 0.0
      %7007 = vmatmul.mubr.f32.gmra.mrb[0].mxu0 %v1957
      %v7008 = vpop.f32.mrb[0].mxu0
      %v7009 = vadd.f32 0.0, %v7008
      %v7010 = vpop.f32.mrb[0].mxu0
      %7011 = vmatprep.mubr.f32.mxu0 0.0
      %7012 = vmatmul.mubr.f32.gmra.mrb[0].mxu0 %v1960
      %v7013 = vpop.f32.mrb[0].mxu0
      %v7014 = vadd.f32 0.0, %v7013
      %v7015 = vpop.f32.mrb[0].mxu0
      %7016 = vmatprep.mubr.f32.mxu0 0.0
      %7017 = vmatmul.mubr.f32.gmra.mrb[0].mxu0 %v1963
      %v7018 = vpop.f32.mrb[0].mxu0
      %v7019 = vadd.f32 0.0, %v7018
      %v7020 = vpop.f32.mrb[0].mxu0
      %7021 = vmatprep.mubr.f32.mxu0 0.0
      %7022 = vmatmul.mubr.f32.gmra.mrb[0].mxu0 %v1966
      %v7023 = vpop.f32.mrb[0].mxu0
      %v7024 = vadd.f32 0.0, %v7023
      %v7025 = vpop.f32.mrb[0].mxu0
      %7026 = vmatprep.mubr.f32.mxu0 0.0
      %7027 = vmatmul.mubr.f32.gmra.mrb[0].mxu0 %v1969
      %v7028 = vpop.f32.mrb[0].mxu0
      %v7029 = vadd.f32 0.0, %v7028
      %v7030 = vpop.f32.mrb[0].mxu0
      %7031 = vmatprep.mubr.f32.mxu0 0.0
      %7032 = vmatmul.mubr.f32.gmra.mrb[0].mxu0 %v1972
      %v7033 = vpop.f32.mrb[0].mxu0
      %v7034 = vadd.f32 0.0, %v7033
      %v7035 = vpop.f32.mrb[0].mxu0
      %7036 = vmatprep.mubr.f32.mxu0 0.0
      %7037 = vmatmul.mubr.f32.gmra.mrb[0].mxu0 %v1975
      %v7038 = vpop.f32.mrb[0].mxu0
      %v7039 = vadd.f32 0.0, %v7038
      %v7040 = vpop.f32.mrb[0].mxu0
      %7041 = vmatprep.mubr.f32.mxu0 0.0
      %7042 = vmatmul.mubr.f32.gmra.mrb[0].mxu0 %v1978
      %v7043 = vpop.f32.mrb[0].mxu0
      %v7044 = vadd.f32 0.0, %v7043
      %v7045 = vpop.f32.mrb[0].mxu0
      %7046 = vmatprep.mubr.f32.mxu0 0.0
      %7047 = vmatmul.mubr.f32.gmra.mrb[0].mxu0 %v1981
      %v7048 = vpop.f32.mrb[0].mxu0
      %v7049 = vadd.f32 0.0, %v7048
      %v7050 = vpop.f32.mrb[0].mxu0
      %7051 = vmatprep.mubr.f32.mxu0 0.0
      %7052 = vmatmul.mubr.f32.gmra.mrb[0].mxu0 %v1984
      %v7053 = vpop.f32.mrb[0].mxu0
      %v7054 = vadd.f32 0.0, %v7053
      %v7055 = vpop.f32.mrb[0].mxu0
      %7056 = vmatprep.mubr.f32.mxu0 0.0
      %7057 = vmatmul.mubr.f32.gmra.mrb[0].mxu0 %v1987
      %v7058 = vpop.f32.mrb[0].mxu0
      %v7059 = vadd.f32 0.0, %v7058
      %v7060 = vpop.f32.mrb[0].mxu0
      %7061 = vmatprep.mubr.f32.mxu0 0.0
      %7062 = vmatmul.mubr.f32.gmra.mrb[0].mxu0 %v1990
      %v7063 = vpop.f32.mrb[0].mxu0
      %v7064 = vadd.f32 0.0, %v7063
      %v7065 = vpop.f32.mrb[0].mxu0
      %7066 = vmatprep.mubr.f32.mxu0 0.0
      %7067 = vmatmul.mubr.f32.gmra.mrb[0].mxu0 %v1993
      %v7068 = vpop.f32.mrb[0].mxu0
      %v7069 = vadd.f32 0.0, %v7068
      %v7070 = vpop.f32.mrb[0].mxu0
      %7071 = vmatprep.mubr.f32.mxu0 0.0
      %7072 = vmatmul.mubr.f32.gmra.mrb[0].mxu0 %v1996
      %v7073 = vpop.f32.mrb[0].mxu0
      %v7074 = vadd.f32 0.0, %v7073
      %v7075 = vpop.f32.mrb[0].mxu0
      %7076 = vmatprep.mubr.f32.mxu0 0.0
      %7077 = vmatmul.mubr.f32.gmra.mrb[0].mxu0 %v1999
      %v7078 = vpop.f32.mrb[0].mxu0
      %v7079 = vadd.f32 0.0, %v7078
      %v7080 = vpop.f32.mrb[0].mxu0
      %7081 = vmatprep.mubr.f32.mxu0 0.0
      %7082 = vmatmul.mubr.f32.gmra.mrb[0].mxu0 %v2002
      %v7083 = vpop.f32.mrb[0].mxu0
      %v7084 = vadd.f32 0.0, %v7083
      %v7085 = vpop.f32.mrb[0].mxu0
      %7086 = vmatprep.mubr.f32.mxu0 0.0
      %7087 = vmatmul.mubr.f32.gmra.mrb[0].mxu0 %v2005
      %v7088 = vpop.f32.mrb[0].mxu0
      %v7089 = vadd.f32 0.0, %v7088
      %v7090 = vpop.f32.mrb[0].mxu0
      %7091 = vdwg.mxu0
      %v7092 = vmul.f32 %v6453, %v6774
      %v7093 = vmul.f32 %v6456, %v6779
      %v7094 = vmul.f32 %v6461, %v6784
      %v7095 = vmul.f32 %v6464, %v6789
      %v7096 = vmul.f32 %v6469, %v6794
      %v7097 = vmul.f32 %v6472, %v6799
      %v7098 = vmul.f32 %v6477, %v6804
      %v7099 = vmul.f32 %v6480, %v6809
      %v7100 = vmul.f32 %v6485, %v6814
      %v7101 = vmul.f32 %v6488, %v6819
      %v7102 = vmul.f32 %v6493, %v6824
      %v7103 = vmul.f32 %v6496, %v6829
      %v7104 = vmul.f32 %v6501, %v6834
      %v7105 = vmul.f32 %v6504, %v6839
      %v7106 = vmul.f32 %v6509, %v6844
      %v7107 = vmul.f32 %v6512, %v6849
      %v7108 = vmul.f32 %v6517, %v6854
      %v7109 = vmul.f32 %v6520, %v6859
      %v7110 = vmul.f32 %v6525, %v6864
      %v7111 = vmul.f32 %v6528, %v6869
      %v7112 = vmul.f32 %v6533, %v6874
      %v7113 = vmul.f32 %v6536, %v6879
      %v7114 = vmul.f32 %v6541, %v6884
      %v7115 = vmul.f32 %v6544, %v6889
      %v7116 = vmul.f32 %v6549, %v6894
      %v7117 = vmul.f32 %v6552, %v6899
      %v7118 = vmul.f32 %v6557, %v6904
      %v7119 = vmul.f32 %v6560, %v6909
      %v7120 = vmul.f32 %v6565, %v6914
      %v7121 = vmul.f32 %v6568, %v6919
      %v7122 = vmul.f32 %v6573, %v6924
      %v7123 = vmul.f32 %v6576, %v6929
      %v7124 = vmul.f32 %v6581, %v6934
      %v7125 = vmul.f32 %v6584, %v6939
      %v7126 = vmul.f32 %v6589, %v6944
      %v7127 = vmul.f32 %v6592, %v6949
      %v7128 = vmul.f32 %v6597, %v6954
      %v7129 = vmul.f32 %v6600, %v6959
      %v7130 = vmul.f32 %v6605, %v6964
      %v7131 = vmul.f32 %v6608, %v6969
      %v7132 = vmul.f32 %v6613, %v6974
      %v7133 = vmul.f32 %v6616, %v6979
      %v7134 = vmul.f32 %v6621, %v6984
      %v7135 = vmul.f32 %v6624, %v6989
      %v7136 = vmul.f32 %v6629, %v6994
      %v7137 = vmul.f32 %v6632, %v6999
      %v7138 = vmul.f32 %v6637, %v7004
      %v7139 = vmul.f32 %v6640, %v7009
      %v7140 = vmul.f32 %v6645, %v7014
      %v7141 = vmul.f32 %v6648, %v7019
      %v7142 = vmul.f32 %v6653, %v7024
      %v7143 = vmul.f32 %v6656, %v7029
      %v7144 = vmul.f32 %v6661, %v7034
      %v7145 = vmul.f32 %v6664, %v7039
      %v7146 = vmul.f32 %v6669, %v7044
      %v7147 = vmul.f32 %v6672, %v7049
      %v7148 = vmul.f32 %v6677, %v7054
      %v7149 = vmul.f32 %v6680, %v7059
      %v7150 = vmul.f32 %v6685, %v7064
      %v7151 = vmul.f32 %v6688, %v7069
      %v7152 = vmul.f32 %v6693, %v7074
      %v7153 = vmul.f32 %v6696, %v7079
      %v7154 = vmul.f32 %v6701, %v7084
      %v7155 = vmul.f32 %v6704, %v7089
      %v7156 = vsel %vm1429, %v7092, -inf
      %v7157 = vrot.slane %v7156, 4
      %v7158 = vmax.f32 %v7156, %v7157
      %v7159 = vrot.slane %v7158, 2
      %v7160 = vmax.f32 %v7158, %v7159
      %v7161 = vrot.slane %v7160, 1
      %v7162 = vmax.f32 %v7160, %v7161
      %v7163 = vsel %vm1429, %v7093, -inf
      %v7164 = vrot.slane %v7163, 4
      %v7165 = vmax.f32 %v7163, %v7164
      %v7166 = vrot.slane %v7165, 2
      %v7167 = vmax.f32 %v7165, %v7166
      %v7168 = vrot.slane %v7167, 1
      %v7169 = vmax.f32 %v7167, %v7168
      %v7170 = vsel %vm1429, %v7094, -inf
      %v7171 = vrot.slane %v7170, 4
      %v7172 = vmax.f32 %v7170, %v7171
      %v7173 = vrot.slane %v7172, 2
      %v7174 = vmax.f32 %v7172, %v7173
      %v7175 = vrot.slane %v7174, 1
      %v7176 = vmax.f32 %v7174, %v7175
      %v7177 = vsel %vm1429, %v7095, -inf
      %v7178 = vrot.slane %v7177, 4
      %v7179 = vmax.f32 %v7177, %v7178
      %v7180 = vrot.slane %v7179, 2
      %v7181 = vmax.f32 %v7179, %v7180
      %v7182 = vrot.slane %v7181, 1
      %v7183 = vmax.f32 %v7181, %v7182
      %v7184 = vsel %vm1429, %v7096, -inf
      %v7185 = vrot.slane %v7184, 4
      %v7186 = vmax.f32 %v7184, %v7185
      %v7187 = vrot.slane %v7186, 2
      %v7188 = vmax.f32 %v7186, %v7187
      %v7189 = vrot.slane %v7188, 1
      %v7190 = vmax.f32 %v7188, %v7189
      %v7191 = vsel %vm1429, %v7097, -inf
      %v7192 = vrot.slane %v7191, 4
      %v7193 = vmax.f32 %v7191, %v7192
      %v7194 = vrot.slane %v7193, 2
      %v7195 = vmax.f32 %v7193, %v7194
      %v7196 = vrot.slane %v7195, 1
      %v7197 = vmax.f32 %v7195, %v7196
      %v7198 = vsel %vm1429, %v7098, -inf
      %v7199 = vrot.slane %v7198, 4
      %v7200 = vmax.f32 %v7198, %v7199
      %v7201 = vrot.slane %v7200, 2
      %v7202 = vmax.f32 %v7200, %v7201
      %v7203 = vrot.slane %v7202, 1
      %v7204 = vmax.f32 %v7202, %v7203
      %v7205 = vsel %vm1429, %v7099, -inf
      %v7206 = vrot.slane %v7205, 4
      %v7207 = vmax.f32 %v7205, %v7206
      %v7208 = vrot.slane %v7207, 2
      %v7209 = vmax.f32 %v7207, %v7208
      %v7210 = vrot.slane %v7209, 1
      %v7211 = vmax.f32 %v7209, %v7210
      %v7212 = vsel %vm1429, %v7100, -inf
      %v7213 = vrot.slane %v7212, 4
      %v7214 = vmax.f32 %v7212, %v7213
      %v7215 = vrot.slane %v7214, 2
      %v7216 = vmax.f32 %v7214, %v7215
      %v7217 = vrot.slane %v7216, 1
      %v7218 = vmax.f32 %v7216, %v7217
      %v7219 = vsel %vm1429, %v7101, -inf
      %v7220 = vrot.slane %v7219, 4
      %v7221 = vmax.f32 %v7219, %v7220
      %v7222 = vrot.slane %v7221, 2
      %v7223 = vmax.f32 %v7221, %v7222
      %v7224 = vrot.slane %v7223, 1
      %v7225 = vmax.f32 %v7223, %v7224
      %v7226 = vsel %vm1429, %v7102, -inf
      %v7227 = vrot.slane %v7226, 4
      %v7228 = vmax.f32 %v7226, %v7227
      %v7229 = vrot.slane %v7228, 2
      %v7230 = vmax.f32 %v7228, %v7229
      %v7231 = vrot.slane %v7230, 1
      %v7232 = vmax.f32 %v7230, %v7231
      %v7233 = vsel %vm1429, %v7103, -inf
      %v7234 = vrot.slane %v7233, 4
      %v7235 = vmax.f32 %v7233, %v7234
      %v7236 = vrot.slane %v7235, 2
      %v7237 = vmax.f32 %v7235, %v7236
      %v7238 = vrot.slane %v7237, 1
      %v7239 = vmax.f32 %v7237, %v7238
      %v7240 = vsel %vm1429, %v7104, -inf
      %v7241 = vrot.slane %v7240, 4
      %v7242 = vmax.f32 %v7240, %v7241
      %v7243 = vrot.slane %v7242, 2
      %v7244 = vmax.f32 %v7242, %v7243
      %v7245 = vrot.slane %v7244, 1
      %v7246 = vmax.f32 %v7244, %v7245
      %v7247 = vsel %vm1429, %v7105, -inf
      %v7248 = vrot.slane %v7247, 4
      %v7249 = vmax.f32 %v7247, %v7248
      %v7250 = vrot.slane %v7249, 2
      %v7251 = vmax.f32 %v7249, %v7250
      %v7252 = vrot.slane %v7251, 1
      %v7253 = vmax.f32 %v7251, %v7252
      %v7254 = vsel %vm1429, %v7106, -inf
      %v7255 = vrot.slane %v7254, 4
      %v7256 = vmax.f32 %v7254, %v7255
      %v7257 = vrot.slane %v7256, 2
      %v7258 = vmax.f32 %v7256, %v7257
      %v7259 = vrot.slane %v7258, 1
      %v7260 = vmax.f32 %v7258, %v7259
      %v7261 = vsel %vm1429, %v7107, -inf
      %v7262 = vrot.slane %v7261, 4
      %v7263 = vmax.f32 %v7261, %v7262
      %v7264 = vrot.slane %v7263, 2
      %v7265 = vmax.f32 %v7263, %v7264
      %v7266 = vrot.slane %v7265, 1
      %v7267 = vmax.f32 %v7265, %v7266
      %v7268 = vsel %vm1429, %v7108, -inf
      %v7269 = vrot.slane %v7268, 4
      %v7270 = vmax.f32 %v7268, %v7269
      %v7271 = vrot.slane %v7270, 2
      %v7272 = vmax.f32 %v7270, %v7271
      %v7273 = vrot.slane %v7272, 1
      %v7274 = vmax.f32 %v7272, %v7273
      %v7275 = vsel %vm1429, %v7109, -inf
      %v7276 = vrot.slane %v7275, 4
      %v7277 = vmax.f32 %v7275, %v7276
      %v7278 = vrot.slane %v7277, 2
      %v7279 = vmax.f32 %v7277, %v7278
      %v7280 = vrot.slane %v7279, 1
      %v7281 = vmax.f32 %v7279, %v7280
      %v7282 = vsel %vm1429, %v7110, -inf
      %v7283 = vrot.slane %v7282, 4
      %v7284 = vmax.f32 %v7282, %v7283
      %v7285 = vrot.slane %v7284, 2
      %v7286 = vmax.f32 %v7284, %v7285
      %v7287 = vrot.slane %v7286, 1
      %v7288 = vmax.f32 %v7286, %v7287
      %v7289 = vsel %vm1429, %v7111, -inf
      %v7290 = vrot.slane %v7289, 4
      %v7291 = vmax.f32 %v7289, %v7290
      %v7292 = vrot.slane %v7291, 2
      %v7293 = vmax.f32 %v7291, %v7292
      %v7294 = vrot.slane %v7293, 1
      %v7295 = vmax.f32 %v7293, %v7294
      %v7296 = vsel %vm1429, %v7112, -inf
      %v7297 = vrot.slane %v7296, 4
      %v7298 = vmax.f32 %v7296, %v7297
      %v7299 = vrot.slane %v7298, 2
      %v7300 = vmax.f32 %v7298, %v7299
      %v7301 = vrot.slane %v7300, 1
      %v7302 = vmax.f32 %v7300, %v7301
      %v7303 = vsel %vm1429, %v7113, -inf
      %v7304 = vrot.slane %v7303, 4
      %v7305 = vmax.f32 %v7303, %v7304
      %v7306 = vrot.slane %v7305, 2
      %v7307 = vmax.f32 %v7305, %v7306
      %v7308 = vrot.slane %v7307, 1
      %v7309 = vmax.f32 %v7307, %v7308
      %v7310 = vsel %vm1429, %v7114, -inf
      %v7311 = vrot.slane %v7310, 4
      %v7312 = vmax.f32 %v7310, %v7311
      %v7313 = vrot.slane %v7312, 2
      %v7314 = vmax.f32 %v7312, %v7313
      %v7315 = vrot.slane %v7314, 1
      %v7316 = vmax.f32 %v7314, %v7315
      %v7317 = vsel %vm1429, %v7115, -inf
      %v7318 = vrot.slane %v7317, 4
      %v7319 = vmax.f32 %v7317, %v7318
      %v7320 = vrot.slane %v7319, 2
      %v7321 = vmax.f32 %v7319, %v7320
      %v7322 = vrot.slane %v7321, 1
      %v7323 = vmax.f32 %v7321, %v7322
      %v7324 = vsel %vm1429, %v7116, -inf
      %v7325 = vrot.slane %v7324, 4
      %v7326 = vmax.f32 %v7324, %v7325
      %v7327 = vrot.slane %v7326, 2
      %v7328 = vmax.f32 %v7326, %v7327
      %v7329 = vrot.slane %v7328, 1
      %v7330 = vmax.f32 %v7328, %v7329
      %v7331 = vsel %vm1429, %v7117, -inf
      %v7332 = vrot.slane %v7331, 4
      %v7333 = vmax.f32 %v7331, %v7332
      %v7334 = vrot.slane %v7333, 2
      %v7335 = vmax.f32 %v7333, %v7334
      %v7336 = vrot.slane %v7335, 1
      %v7337 = vmax.f32 %v7335, %v7336
      %v7338 = vsel %vm1429, %v7118, -inf
      %v7339 = vrot.slane %v7338, 4
      %v7340 = vmax.f32 %v7338, %v7339
      %v7341 = vrot.slane %v7340, 2
      %v7342 = vmax.f32 %v7340, %v7341
      %v7343 = vrot.slane %v7342, 1
      %v7344 = vmax.f32 %v7342, %v7343
      %v7345 = vsel %vm1429, %v7119, -inf
      %v7346 = vrot.slane %v7345, 4
      %v7347 = vmax.f32 %v7345, %v7346
      %v7348 = vrot.slane %v7347, 2
      %v7349 = vmax.f32 %v7347, %v7348
      %v7350 = vrot.slane %v7349, 1
      %v7351 = vmax.f32 %v7349, %v7350
      %v7352 = vsel %vm1429, %v7120, -inf
      %v7353 = vrot.slane %v7352, 4
      %v7354 = vmax.f32 %v7352, %v7353
      %v7355 = vrot.slane %v7354, 2
      %v7356 = vmax.f32 %v7354, %v7355
      %v7357 = vrot.slane %v7356, 1
      %v7358 = vmax.f32 %v7356, %v7357
      %v7359 = vsel %vm1429, %v7121, -inf
      %v7360 = vrot.slane %v7359, 4
      %v7361 = vmax.f32 %v7359, %v7360
      %v7362 = vrot.slane %v7361, 2
      %v7363 = vmax.f32 %v7361, %v7362
      %v7364 = vrot.slane %v7363, 1
      %v7365 = vmax.f32 %v7363, %v7364
      %v7366 = vsel %vm1429, %v7122, -inf
      %v7367 = vrot.slane %v7366, 4
      %v7368 = vmax.f32 %v7366, %v7367
      %v7369 = vrot.slane %v7368, 2
      %v7370 = vmax.f32 %v7368, %v7369
      %v7371 = vrot.slane %v7370, 1
      %v7372 = vmax.f32 %v7370, %v7371
      %v7373 = vsel %vm1429, %v7123, -inf
      %v7374 = vrot.slane %v7373, 4
      %v7375 = vmax.f32 %v7373, %v7374
      %v7376 = vrot.slane %v7375, 2
      %v7377 = vmax.f32 %v7375, %v7376
      %v7378 = vrot.slane %v7377, 1
      %v7379 = vmax.f32 %v7377, %v7378
      %v7380 = vsel %vm1429, %v7124, -inf
      %v7381 = vrot.slane %v7380, 4
      %v7382 = vmax.f32 %v7380, %v7381
      %v7383 = vrot.slane %v7382, 2
      %v7384 = vmax.f32 %v7382, %v7383
      %v7385 = vrot.slane %v7384, 1
      %v7386 = vmax.f32 %v7384, %v7385
      %v7387 = vsel %vm1429, %v7125, -inf
      %v7388 = vrot.slane %v7387, 4
      %v7389 = vmax.f32 %v7387, %v7388
      %v7390 = vrot.slane %v7389, 2
      %v7391 = vmax.f32 %v7389, %v7390
      %v7392 = vrot.slane %v7391, 1
      %v7393 = vmax.f32 %v7391, %v7392
      %v7394 = vsel %vm1429, %v7126, -inf
      %v7395 = vrot.slane %v7394, 4
      %v7396 = vmax.f32 %v7394, %v7395
      %v7397 = vrot.slane %v7396, 2
      %v7398 = vmax.f32 %v7396, %v7397
      %v7399 = vrot.slane %v7398, 1
      %v7400 = vmax.f32 %v7398, %v7399
      %v7401 = vsel %vm1429, %v7127, -inf
      %v7402 = vrot.slane %v7401, 4
      %v7403 = vmax.f32 %v7401, %v7402
      %v7404 = vrot.slane %v7403, 2
      %v7405 = vmax.f32 %v7403, %v7404
      %v7406 = vrot.slane %v7405, 1
      %v7407 = vmax.f32 %v7405, %v7406
      %v7408 = vsel %vm1429, %v7128, -inf
      %v7409 = vrot.slane %v7408, 4
      %v7410 = vmax.f32 %v7408, %v7409
      %v7411 = vrot.slane %v7410, 2
      %v7412 = vmax.f32 %v7410, %v7411
      %v7413 = vrot.slane %v7412, 1
      %v7414 = vmax.f32 %v7412, %v7413
      %v7415 = vsel %vm1429, %v7129, -inf
      %v7416 = vrot.slane %v7415, 4
      %v7417 = vmax.f32 %v7415, %v7416
      %v7418 = vrot.slane %v7417, 2
      %v7419 = vmax.f32 %v7417, %v7418
      %v7420 = vrot.slane %v7419, 1
      %v7421 = vmax.f32 %v7419, %v7420
      %v7422 = vsel %vm1429, %v7130, -inf
      %v7423 = vrot.slane %v7422, 4
      %v7424 = vmax.f32 %v7422, %v7423
      %v7425 = vrot.slane %v7424, 2
      %v7426 = vmax.f32 %v7424, %v7425
      %v7427 = vrot.slane %v7426, 1
      %v7428 = vmax.f32 %v7426, %v7427
      %v7429 = vsel %vm1429, %v7131, -inf
      %v7430 = vrot.slane %v7429, 4
      %v7431 = vmax.f32 %v7429, %v7430
      %v7432 = vrot.slane %v7431, 2
      %v7433 = vmax.f32 %v7431, %v7432
      %v7434 = vrot.slane %v7433, 1
      %v7435 = vmax.f32 %v7433, %v7434
      %v7436 = vsel %vm1429, %v7132, -inf
      %v7437 = vrot.slane %v7436, 4
      %v7438 = vmax.f32 %v7436, %v7437
      %v7439 = vrot.slane %v7438, 2
      %v7440 = vmax.f32 %v7438, %v7439
      %v7441 = vrot.slane %v7440, 1
      %v7442 = vmax.f32 %v7440, %v7441
      %v7443 = vsel %vm1429, %v7133, -inf
      %v7444 = vrot.slane %v7443, 4
      %v7445 = vmax.f32 %v7443, %v7444
      %v7446 = vrot.slane %v7445, 2
      %v7447 = vmax.f32 %v7445, %v7446
      %v7448 = vrot.slane %v7447, 1
      %v7449 = vmax.f32 %v7447, %v7448
      %v7450 = vsel %vm1429, %v7134, -inf
      %v7451 = vrot.slane %v7450, 4
      %v7452 = vmax.f32 %v7450, %v7451
      %v7453 = vrot.slane %v7452, 2
      %v7454 = vmax.f32 %v7452, %v7453
      %v7455 = vrot.slane %v7454, 1
      %v7456 = vmax.f32 %v7454, %v7455
      %v7457 = vsel %vm1429, %v7135, -inf
      %v7458 = vrot.slane %v7457, 4
      %v7459 = vmax.f32 %v7457, %v7458
      %v7460 = vrot.slane %v7459, 2
      %v7461 = vmax.f32 %v7459, %v7460
      %v7462 = vrot.slane %v7461, 1
      %v7463 = vmax.f32 %v7461, %v7462
      %v7464 = vsel %vm1429, %v7136, -inf
      %v7465 = vrot.slane %v7464, 4
      %v7466 = vmax.f32 %v7464, %v7465
      %v7467 = vrot.slane %v7466, 2
      %v7468 = vmax.f32 %v7466, %v7467
      %v7469 = vrot.slane %v7468, 1
      %v7470 = vmax.f32 %v7468, %v7469
      %v7471 = vsel %vm1429, %v7137, -inf
      %v7472 = vrot.slane %v7471, 4
      %v7473 = vmax.f32 %v7471, %v7472
      %v7474 = vrot.slane %v7473, 2
      %v7475 = vmax.f32 %v7473, %v7474
      %v7476 = vrot.slane %v7475, 1
      %v7477 = vmax.f32 %v7475, %v7476
      %v7478 = vsel %vm1429, %v7138, -inf
      %v7479 = vrot.slane %v7478, 4
      %v7480 = vmax.f32 %v7478, %v7479
      %v7481 = vrot.slane %v7480, 2
      %v7482 = vmax.f32 %v7480, %v7481
      %v7483 = vrot.slane %v7482, 1
      %v7484 = vmax.f32 %v7482, %v7483
      %v7485 = vsel %vm1429, %v7139, -inf
      %v7486 = vrot.slane %v7485, 4
      %v7487 = vmax.f32 %v7485, %v7486
      %v7488 = vrot.slane %v7487, 2
      %v7489 = vmax.f32 %v7487, %v7488
      %v7490 = vrot.slane %v7489, 1
      %v7491 = vmax.f32 %v7489, %v7490
      %v7492 = vsel %vm1429, %v7140, -inf
      %v7493 = vrot.slane %v7492, 4
      %v7494 = vmax.f32 %v7492, %v7493
      %v7495 = vrot.slane %v7494, 2
      %v7496 = vmax.f32 %v7494, %v7495
      %v7497 = vrot.slane %v7496, 1
      %v7498 = vmax.f32 %v7496, %v7497
      %v7499 = vsel %vm1429, %v7141, -inf
      %v7500 = vrot.slane %v7499, 4
      %v7501 = vmax.f32 %v7499, %v7500
      %v7502 = vrot.slane %v7501, 2
      %v7503 = vmax.f32 %v7501, %v7502
      %v7504 = vrot.slane %v7503, 1
      %v7505 = vmax.f32 %v7503, %v7504
      %v7506 = vsel %vm1429, %v7142, -inf
      %v7507 = vrot.slane %v7506, 4
      %v7508 = vmax.f32 %v7506, %v7507
      %v7509 = vrot.slane %v7508, 2
      %v7510 = vmax.f32 %v7508, %v7509
      %v7511 = vrot.slane %v7510, 1
      %v7512 = vmax.f32 %v7510, %v7511
      %v7513 = vsel %vm1429, %v7143, -inf
      %v7514 = vrot.slane %v7513, 4
      %v7515 = vmax.f32 %v7513, %v7514
      %v7516 = vrot.slane %v7515, 2
      %v7517 = vmax.f32 %v7515, %v7516
      %v7518 = vrot.slane %v7517, 1
      %v7519 = vmax.f32 %v7517, %v7518
      %v7520 = vsel %vm1429, %v7144, -inf
      %v7521 = vrot.slane %v7520, 4
      %v7522 = vmax.f32 %v7520, %v7521
      %v7523 = vrot.slane %v7522, 2
      %v7524 = vmax.f32 %v7522, %v7523
      %v7525 = vrot.slane %v7524, 1
      %v7526 = vmax.f32 %v7524, %v7525
      %v7527 = vsel %vm1429, %v7145, -inf
      %v7528 = vrot.slane %v7527, 4
      %v7529 = vmax.f32 %v7527, %v7528
      %v7530 = vrot.slane %v7529, 2
      %v7531 = vmax.f32 %v7529, %v7530
      %v7532 = vrot.slane %v7531, 1
      %v7533 = vmax.f32 %v7531, %v7532
      %v7534 = vsel %vm1429, %v7146, -inf
      %v7535 = vrot.slane %v7534, 4
      %v7536 = vmax.f32 %v7534, %v7535
      %v7537 = vrot.slane %v7536, 2
      %v7538 = vmax.f32 %v7536, %v7537
      %v7539 = vrot.slane %v7538, 1
      %v7540 = vmax.f32 %v7538, %v7539
      %v7541 = vsel %vm1429, %v7147, -inf
      %v7542 = vrot.slane %v7541, 4
      %v7543 = vmax.f32 %v7541, %v7542
      %v7544 = vrot.slane %v7543, 2
      %v7545 = vmax.f32 %v7543, %v7544
      %v7546 = vrot.slane %v7545, 1
      %v7547 = vmax.f32 %v7545, %v7546
      %v7548 = vsel %vm1429, %v7148, -inf
      %v7549 = vrot.slane %v7548, 4
      %v7550 = vmax.f32 %v7548, %v7549
      %v7551 = vrot.slane %v7550, 2
      %v7552 = vmax.f32 %v7550, %v7551
      %v7553 = vrot.slane %v7552, 1
      %v7554 = vmax.f32 %v7552, %v7553
      %v7555 = vsel %vm1429, %v7149, -inf
      %v7556 = vrot.slane %v7555, 4
      %v7557 = vmax.f32 %v7555, %v7556
      %v7558 = vrot.slane %v7557, 2
      %v7559 = vmax.f32 %v7557, %v7558
      %v7560 = vrot.slane %v7559, 1
      %v7561 = vmax.f32 %v7559, %v7560
      %v7562 = vsel %vm1429, %v7150, -inf
      %v7563 = vrot.slane %v7562, 4
      %v7564 = vmax.f32 %v7562, %v7563
      %v7565 = vrot.slane %v7564, 2
      %v7566 = vmax.f32 %v7564, %v7565
      %v7567 = vrot.slane %v7566, 1
      %v7568 = vmax.f32 %v7566, %v7567
      %v7569 = vsel %vm1429, %v7151, -inf
      %v7570 = vrot.slane %v7569, 4
      %v7571 = vmax.f32 %v7569, %v7570
      %v7572 = vrot.slane %v7571, 2
      %v7573 = vmax.f32 %v7571, %v7572
      %v7574 = vrot.slane %v7573, 1
      %v7575 = vmax.f32 %v7573, %v7574
      %v7576 = vsel %vm1429, %v7152, -inf
      %v7577 = vrot.slane %v7576, 4
      %v7578 = vmax.f32 %v7576, %v7577
      %v7579 = vrot.slane %v7578, 2
      %v7580 = vmax.f32 %v7578, %v7579
      %v7581 = vrot.slane %v7580, 1
      %v7582 = vmax.f32 %v7580, %v7581
      %v7583 = vsel %vm1429, %v7153, -inf
      %v7584 = vrot.slane %v7583, 4
      %v7585 = vmax.f32 %v7583, %v7584
      %v7586 = vrot.slane %v7585, 2
      %v7587 = vmax.f32 %v7585, %v7586
      %v7588 = vrot.slane %v7587, 1
      %v7589 = vmax.f32 %v7587, %v7588
      %v7590 = vsel %vm1429, %v7154, -inf
      %v7591 = vrot.slane %v7590, 4
      %v7592 = vmax.f32 %v7590, %v7591
      %v7593 = vrot.slane %v7592, 2
      %v7594 = vmax.f32 %v7592, %v7593
      %v7595 = vrot.slane %v7594, 1
      %v7596 = vmax.f32 %v7594, %v7595
      %v7597 = vsel %vm1429, %v7155, -inf
      %v7598 = vrot.slane %v7597, 4
      %v7599 = vmax.f32 %v7597, %v7598
      %v7600 = vrot.slane %v7599, 2
      %v7601 = vmax.f32 %v7599, %v7600
      %v7602 = vrot.slane %v7601, 1
      %v7603 = vmax.f32 %v7601, %v7602
      %s7604 = scalar_lea.vmem %s7, 192
      %v7605 = vld [vmem:[%s7604] sm:$0xff]
      %v7606 = vld [vmem:[%s7604 + $0x8] sm:$0xff]
      %v7607 = vld [vmem:[%s7604 + $0x10] sm:$0xff]
      %v7608 = vld [vmem:[%s7604 + $0x18] sm:$0xff]
      %v7609 = vld [vmem:[%s7604 + $0x20] sm:$0xff]
      %v7610 = vld [vmem:[%s7604 + $0x28] sm:$0xff]
      %v7611 = vld [vmem:[%s7604 + $0x30] sm:$0xff]
      %v7612 = vld [vmem:[%s7604 + $0x38] sm:$0xff]
      %v7613 = vpack.c.bf16 %v7162, %v7162
      %v7614 = vpack.c.bf16 %v7169, %v7169
      %v7615 = vpack.c.bf16 %v7176, %v7176
      %v7616 = vpack.c.bf16 %v7183, %v7183
      %v7617 = vpack.c.bf16 %v7190, %v7190
      %v7618 = vpack.c.bf16 %v7197, %v7197
      %v7619 = vpack.c.bf16 %v7204, %v7204
      %v7620 = vpack.c.bf16 %v7211, %v7211
      %v7621 = vpack.c.bf16 %v7218, %v7218
      %v7622 = vpack.c.bf16 %v7225, %v7225
      %v7623 = vpack.c.bf16 %v7232, %v7232
      %v7624 = vpack.c.bf16 %v7239, %v7239
      %v7625 = vpack.c.bf16 %v7246, %v7246
      %v7626 = vpack.c.bf16 %v7253, %v7253
      %v7627 = vpack.c.bf16 %v7260, %v7260
      %v7628 = vpack.c.bf16 %v7267, %v7267
      %v7629 = vpack.c.bf16 %v7274, %v7274
      %v7630 = vpack.c.bf16 %v7281, %v7281
      %v7631 = vpack.c.bf16 %v7288, %v7288
      %v7632 = vpack.c.bf16 %v7295, %v7295
      %v7633 = vpack.c.bf16 %v7302, %v7302
      %v7634 = vpack.c.bf16 %v7309, %v7309
      %v7635 = vpack.c.bf16 %v7316, %v7316
      %v7636 = vpack.c.bf16 %v7323, %v7323
      %v7637 = vpack.c.bf16 %v7330, %v7330
      %v7638 = vpack.c.bf16 %v7337, %v7337
      %v7639 = vpack.c.bf16 %v7344, %v7344
      %v7640 = vpack.c.bf16 %v7351, %v7351
      %v7641 = vpack.c.bf16 %v7358, %v7358
      %v7642 = vpack.c.bf16 %v7365, %v7365
      %v7643 = vpack.c.bf16 %v7372, %v7372
      %v7644 = vpack.c.bf16 %v7379, %v7379
      %v7645 = vpack.c.bf16 %v7386, %v7386
      %v7646 = vpack.c.bf16 %v7393, %v7393
      %v7647 = vpack.c.bf16 %v7400, %v7400
      %v7648 = vpack.c.bf16 %v7407, %v7407
      %v7649 = vpack.c.bf16 %v7414, %v7414
      %v7650 = vpack.c.bf16 %v7421, %v7421
      %v7651 = vpack.c.bf16 %v7428, %v7428
      %v7652 = vpack.c.bf16 %v7435, %v7435
      %v7653 = vpack.c.bf16 %v7442, %v7442
      %v7654 = vpack.c.bf16 %v7449, %v7449
      %v7655 = vpack.c.bf16 %v7456, %v7456
      %v7656 = vpack.c.bf16 %v7463, %v7463
      %v7657 = vpack.c.bf16 %v7470, %v7470
      %v7658 = vpack.c.bf16 %v7477, %v7477
      %v7659 = vpack.c.bf16 %v7484, %v7484
      %v7660 = vpack.c.bf16 %v7491, %v7491
      %v7661 = vpack.c.bf16 %v7498, %v7498
      %v7662 = vpack.c.bf16 %v7505, %v7505
      %v7663 = vpack.c.bf16 %v7512, %v7512
      %v7664 = vpack.c.bf16 %v7519, %v7519
      %v7665 = vpack.c.bf16 %v7526, %v7526
      %v7666 = vpack.c.bf16 %v7533, %v7533
      %v7667 = vpack.c.bf16 %v7540, %v7540
      %v7668 = vpack.c.bf16 %v7547, %v7547
      %v7669 = vpack.c.bf16 %v7554, %v7554
      %v7670 = vpack.c.bf16 %v7561, %v7561
      %v7671 = vpack.c.bf16 %v7568, %v7568
      %v7672 = vpack.c.bf16 %v7575, %v7575
      %v7673 = vpack.c.bf16 %v7582, %v7582
      %v7674 = vpack.c.bf16 %v7589, %v7589
      %v7675 = vpack.c.bf16 %v7596, %v7596
      %v7676 = vpack.c.bf16 %v7603, %v7603
      %v7677 = vpack.c.bf16 %v7606, %v7605
      %v7678 = vpack.c.bf16 %v7608, %v7607
      %v7679 = vpack.c.bf16 %v7610, %v7609
      %v7680 = vpack.c.bf16 %v7612, %v7611
      %s7681 = scalar_lea.vmem %s8, 3
      %v7682 = vld [vmem:[%s7681] sm:$0x1]
      %v7684 = vlaneseq
      %v7685 = vshrl.u32 %v7684, 7
      %v7686 = vsub.s32 0, %v7685
      %v7687 = vrot.slane %v7682, %v7686
      %v7753 = vunpack.c.l.b16 %v7613
      %v7754 = vunpack.c.l.b16 %v7614
      %v7755 = vunpack.c.l.b16 %v7615
      %v7756 = vunpack.c.l.b16 %v7616
      %v7757 = vunpack.c.l.b16 %v7617
      %v7758 = vunpack.c.l.b16 %v7618
      %v7759 = vunpack.c.l.b16 %v7619
      %v7760 = vunpack.c.l.b16 %v7620
      %v7761 = vunpack.c.l.b16 %v7621
      %v7762 = vunpack.c.l.b16 %v7622
      %v7763 = vunpack.c.l.b16 %v7623
      %v7764 = vunpack.c.l.b16 %v7624
      %v7765 = vunpack.c.l.b16 %v7625
      %v7766 = vunpack.c.l.b16 %v7626
      %v7767 = vunpack.c.l.b16 %v7627
      %v7768 = vunpack.c.l.b16 %v7628
      %v7769 = vunpack.c.l.b16 %v7629
      %v7770 = vunpack.c.l.b16 %v7630
      %v7771 = vunpack.c.l.b16 %v7631
      %v7772 = vunpack.c.l.b16 %v7632
      %v7773 = vunpack.c.l.b16 %v7633
      %v7774 = vunpack.c.l.b16 %v7634
      %v7775 = vunpack.c.l.b16 %v7635
      %v7776 = vunpack.c.l.b16 %v7636
      %v7777 = vunpack.c.l.b16 %v7637
      %v7778 = vunpack.c.l.b16 %v7638
      %v7779 = vunpack.c.l.b16 %v7639
      %v7780 = vunpack.c.l.b16 %v7640
      %v7781 = vunpack.c.l.b16 %v7641
      %v7782 = vunpack.c.l.b16 %v7642
      %v7783 = vunpack.c.l.b16 %v7643
      %v7784 = vunpack.c.l.b16 %v7644
      %v7785 = vunpack.c.l.b16 %v7645
      %v7786 = vunpack.c.l.b16 %v7646
      %v7787 = vunpack.c.l.b16 %v7647
      %v7788 = vunpack.c.l.b16 %v7648
      %v7789 = vunpack.c.l.b16 %v7649
      %v7790 = vunpack.c.l.b16 %v7650
      %v7791 = vunpack.c.l.b16 %v7651
      %v7792 = vunpack.c.l.b16 %v7652
      %v7793 = vunpack.c.l.b16 %v7653
      %v7794 = vunpack.c.l.b16 %v7654
      %v7795 = vunpack.c.l.b16 %v7655
      %v7796 = vunpack.c.l.b16 %v7656
      %v7797 = vunpack.c.l.b16 %v7657
      %v7798 = vunpack.c.l.b16 %v7658
      %v7799 = vunpack.c.l.b16 %v7659
      %v7800 = vunpack.c.l.b16 %v7660
      %v7801 = vunpack.c.l.b16 %v7661
      %v7802 = vunpack.c.l.b16 %v7662
      %v7803 = vunpack.c.l.b16 %v7663
      %v7804 = vunpack.c.l.b16 %v7664
      %v7805 = vunpack.c.l.b16 %v7665
      %v7806 = vunpack.c.l.b16 %v7666
      %v7807 = vunpack.c.l.b16 %v7667
      %v7808 = vunpack.c.l.b16 %v7668
      %v7809 = vunpack.c.l.b16 %v7669
      %v7810 = vunpack.c.l.b16 %v7670
      %v7811 = vunpack.c.l.b16 %v7671
      %v7812 = vunpack.c.l.b16 %v7672
      %v7813 = vunpack.c.l.b16 %v7673
      %v7814 = vunpack.c.l.b16 %v7674
      %v7815 = vunpack.c.l.b16 %v7675
      %v7816 = vunpack.c.l.b16 %v7676
      %v7817 = vsel %vm3115, %v7754, %v7753
      %v7818 = vsel %vm3117, %v7755, %v7817
      %v7819 = vsel %vm3119, %v7756, %v7818
      %v7820 = vsel %vm3121, %v7757, %v7819
      %v7821 = vsel %vm3123, %v7758, %v7820
      %v7822 = vsel %vm3125, %v7759, %v7821
      %v7823 = vsel %vm3127, %v7760, %v7822
      %v7824 = vsel %vm3115, %v7762, %v7761
      %v7825 = vsel %vm3117, %v7763, %v7824
      %v7826 = vsel %vm3119, %v7764, %v7825
      %v7827 = vsel %vm3121, %v7765, %v7826
      %v7828 = vsel %vm3123, %v7766, %v7827
      %v7829 = vsel %vm3125, %v7767, %v7828
      %v7830 = vsel %vm3127, %v7768, %v7829
      %v7831 = vsel %vm3115, %v7770, %v7769
      %v7832 = vsel %vm3117, %v7771, %v7831
      %v7833 = vsel %vm3119, %v7772, %v7832
      %v7834 = vsel %vm3121, %v7773, %v7833
      %v7835 = vsel %vm3123, %v7774, %v7834
      %v7836 = vsel %vm3125, %v7775, %v7835
      %v7837 = vsel %vm3127, %v7776, %v7836
      %v7838 = vsel %vm3115, %v7778, %v7777
      %v7839 = vsel %vm3117, %v7779, %v7838
      %v7840 = vsel %vm3119, %v7780, %v7839
      %v7841 = vsel %vm3121, %v7781, %v7840
      %v7842 = vsel %vm3123, %v7782, %v7841
      %v7843 = vsel %vm3125, %v7783, %v7842
      %v7844 = vsel %vm3127, %v7784, %v7843
      %v7845 = vsel %vm3115, %v7786, %v7785
      %v7846 = vsel %vm3117, %v7787, %v7845
      %v7847 = vsel %vm3119, %v7788, %v7846
      %v7848 = vsel %vm3121, %v7789, %v7847
      %v7849 = vsel %vm3123, %v7790, %v7848
      %v7850 = vsel %vm3125, %v7791, %v7849
      %v7851 = vsel %vm3127, %v7792, %v7850
      %v7852 = vsel %vm3115, %v7794, %v7793
      %v7853 = vsel %vm3117, %v7795, %v7852
      %v7854 = vsel %vm3119, %v7796, %v7853
      %v7855 = vsel %vm3121, %v7797, %v7854
      %v7856 = vsel %vm3123, %v7798, %v7855
      %v7857 = vsel %vm3125, %v7799, %v7856
      %v7858 = vsel %vm3127, %v7800, %v7857
      %v7859 = vsel %vm3115, %v7802, %v7801
      %v7860 = vsel %vm3117, %v7803, %v7859
      %v7861 = vsel %vm3119, %v7804, %v7860
      %v7862 = vsel %vm3121, %v7805, %v7861
      %v7863 = vsel %vm3123, %v7806, %v7862
      %v7864 = vsel %vm3125, %v7807, %v7863
      %v7865 = vsel %vm3127, %v7808, %v7864
      %v7866 = vsel %vm3115, %v7810, %v7809
      %v7867 = vsel %vm3117, %v7811, %v7866
      %v7868 = vsel %vm3119, %v7812, %v7867
      %v7869 = vsel %vm3121, %v7813, %v7868
      %v7870 = vsel %vm3123, %v7814, %v7869
      %v7871 = vsel %vm3125, %v7815, %v7870
      %v7872 = vsel %vm3127, %v7816, %v7871
      %v7873 = vpack.c.b16 %v7830, %v7823
      %v7874 = vpack.c.b16 %v7844, %v7837
      %v7875 = vpack.c.b16 %v7858, %v7851
      %v7876 = vpack.c.b16 %v7872, %v7865
      %v7878 = vsel %vm1429, %v7873, 0
      %v7881 = vsel %vm1429, %v7874, 0
      %v7884 = vsel %vm1429, %v7875, 0
      %v7887 = vsel %vm1429, %v7876, 0
      %7889 = vmatprep.subr.bf16.mxu0 0
      %7890 = vmatpush1.bf16.msra.mxu0 %v7677
      %7891 = vmatprep.subr.bf16.mxu0 0
      %7892 = vmatpush1.bf16.msra.mxu0 %v7678
      %7893 = vmatprep.subr.bf16.mxu0 0
      %7894 = vmatpush1.bf16.msra.mxu0 %v7679
      %7895 = vmatprep.subr.bf16.mxu0 0
      %7896 = vmatpush1.bf16.msra.mxu0 %v7680
      %7897 = vmatprep.subr.bf16.mxu0 0
      %7898 = vmatpush1.bf16.msra.mxu0 0
      %7899 = vmatprep.subr.bf16.mxu0 0
      %7900 = vmatpush1.bf16.msra.mxu0 0
      %7901 = vmatprep.subr.bf16.mxu0 0
      %7902 = vmatpush1.bf16.msra.mxu0 0
      %7903 = vmatprep.subr.bf16.mxu0 0
      %7904 = vmatpush1.bf16.msra.mxu0 0
      %7905 = vmatprep.subr.bf16.mxu0 0
      %7906 = vmatpush1.bf16.msra.mxu0 0
      %7907 = vmatprep.subr.bf16.mxu0 0
      %7908 = vmatpush1.bf16.msra.mxu0 0
      %7909 = vmatprep.subr.bf16.mxu0 0
      %7910 = vmatpush1.bf16.msra.mxu0 0
      %7911 = vmatprep.subr.bf16.mxu0 0
      %7912 = vmatpush1.bf16.msra.mxu0 0
      %7913 = vmatprep.subr.bf16.mxu0 0
      %7914 = vmatpush1.bf16.msra.mxu0 0
      %7915 = vmatprep.subr.bf16.mxu0 0
      %7916 = vmatpush1.bf16.msra.mxu0 0
      %7917 = vmatprep.subr.bf16.mxu0 0
      %7918 = vmatpush1.bf16.msra.mxu0 0
      %7919 = vmatprep.subr.bf16.mxu0 0
      %7920 = vmatpush1.bf16.msra.mxu0 0
      %7921 = vmatprep.mubr.bf16.mxu0 0
      %7922 = vmatmul.mubr.bf16.gmra.mrb[0].mxu0 %v7878
      %v7923 = vpop.f32.mrb[0].mxu0
      %v7924 = vadd.f32 %v7687, %v7923
      %v7925 = vpop.f32.mrb[0].mxu0
      %v7926 = vpop.f32.mrb[0].mxu0
      %v7927 = vadd.f32 %v7687, %v7926
      %v7928 = vpop.f32.mrb[0].mxu0
      %7929 = vmatprep.mubr.bf16.mxu0 0
      %7930 = vmatmul.mubr.bf16.gmra.mrb[0].mxu0 %v7881
      %v7931 = vpop.f32.mrb[0].mxu0
      %v7932 = vadd.f32 %v7687, %v7931
      %v7933 = vpop.f32.mrb[0].mxu0
      %v7934 = vpop.f32.mrb[0].mxu0
      %v7935 = vadd.f32 %v7687, %v7934
      %v7936 = vpop.f32.mrb[0].mxu0
      %7937 = vmatprep.mubr.bf16.mxu0 0
      %7938 = vmatmul.mubr.bf16.gmra.mrb[0].mxu0 %v7884
      %v7939 = vpop.f32.mrb[0].mxu0
      %v7940 = vadd.f32 %v7687, %v7939
      %v7941 = vpop.f32.mrb[0].mxu0
      %v7942 = vpop.f32.mrb[0].mxu0
      %v7943 = vadd.f32 %v7687, %v7942
      %v7944 = vpop.f32.mrb[0].mxu0
      %7945 = vmatprep.mubr.bf16.mxu0 0
      %7946 = vmatmul.mubr.bf16.gmra.mrb[0].mxu0 %v7887
      %v7947 = vpop.f32.mrb[0].mxu0
      %v7948 = vadd.f32 %v7687, %v7947
      %v7949 = vpop.f32.mrb[0].mxu0
      %v7950 = vpop.f32.mrb[0].mxu0
      %v7951 = vadd.f32 %v7687, %v7950
      %v7952 = vpop.f32.mrb[0].mxu0
      %7953 = vdwg.mxu0
      %v7954 = vmax.f32 %v7924, 0.0
      %v7955 = vmax.f32 %v7927, 0.0
      %v7956 = vmax.f32 %v7932, 0.0
      %v7957 = vmax.f32 %v7935, 0.0
      %v7958 = vmax.f32 %v7940, 0.0
      %v7959 = vmax.f32 %v7943, 0.0
      %v7960 = vmax.f32 %v7948, 0.0
      %v7961 = vmax.f32 %v7951, 0.0
      %v7962 = vsel %vm1429, %v7954, -inf
      %v7963 = vsel %vm1429, %v7955, -inf
      %v7964 = vsel %vm1429, %v7956, -inf
      %v7965 = vsel %vm1429, %v7957, -inf
      %v7966 = vsel %vm1429, %v7958, -inf
      %v7967 = vmax.f32 %v7962, %v7966
      %v7968 = vsel %vm1429, %v7959, -inf
      %v7969 = vmax.f32 %v7963, %v7968
      %v7970 = vsel %vm1429, %v7960, -inf
      %v7971 = vmax.f32 %v7964, %v7970
      %v7972 = vsel %vm1429, %v7961, -inf
      %v7973 = vmax.f32 %v7965, %v7972
      %v7974 = vmax.f32 %v7967, %v7969
      %v7975 = vmax.f32 %v7971, %v7973
      %v7976 = vmax.f32 %v7974, %v7975
      %v7977 = vrot.slane %v7976, 4
      %v7978 = vmax.f32 %v7976, %v7977
      %v7979 = vrot.slane %v7978, 2
      %v7980 = vmax.f32 %v7978, %v7979
      %v7981 = vrot.slane %v7980, 1
      %v7982 = vmax.f32 %v7980, %v7981
      %v7983 = vld [vmem:[%s9] sm:$0xff]
      %v7984 = vld [vmem:[%s9 + $0x8] sm:$0xff]
      %v7985 = vld [vmem:[%s9 + $0x10] sm:$0xff]
      %v7986 = vld [vmem:[%s9 + $0x18] sm:$0xff]
      %v7987 = vld [vmem:[%s9 + $0x20] sm:$0xff]
      %v7988 = vld [vmem:[%s9 + $0x28] sm:$0xff]
      %v7989 = vld [vmem:[%s9 + $0x30] sm:$0xff]
      %v7990 = vld [vmem:[%s9 + $0x38] sm:$0xff]
      %v7991 = vpack.c.bf16 %v7982, %v7982
      %v7992 = vpack.c.bf16 %v7984, %v7983
      %v7993 = vpack.c.bf16 %v7986, %v7985
      %v7994 = vpack.c.bf16 %v7988, %v7987
      %v7995 = vpack.c.bf16 %v7990, %v7989
      %v7996 = vld [vmem:[%s10] sm:$0x1]
      %v7998 = vsel %vm1429, %v7991, 0
      %8000 = vmatprep.subr.bf16.mxu0 0
      %8001 = vmatpush1.bf16.msra.mxu0 %v7992
      %8002 = vmatprep.subr.bf16.mxu0 0
      %8003 = vmatpush1.bf16.msra.mxu0 %v7993
      %8004 = vmatprep.subr.bf16.mxu0 0
      %8005 = vmatpush1.bf16.msra.mxu0 %v7994
      %8006 = vmatprep.subr.bf16.mxu0 0
      %8007 = vmatpush1.bf16.msra.mxu0 %v7995
      %8008 = vmatprep.subr.bf16.mxu0 0
      %8009 = vmatpush1.bf16.msra.mxu0 0
      %8010 = vmatprep.subr.bf16.mxu0 0
      %8011 = vmatpush1.bf16.msra.mxu0 0
      %8012 = vmatprep.subr.bf16.mxu0 0
      %8013 = vmatpush1.bf16.msra.mxu0 0
      %8014 = vmatprep.subr.bf16.mxu0 0
      %8015 = vmatpush1.bf16.msra.mxu0 0
      %8016 = vmatprep.subr.bf16.mxu0 0
      %8017 = vmatpush1.bf16.msra.mxu0 0
      %8018 = vmatprep.subr.bf16.mxu0 0
      %8019 = vmatpush1.bf16.msra.mxu0 0
      %8020 = vmatprep.subr.bf16.mxu0 0
      %8021 = vmatpush1.bf16.msra.mxu0 0
      %8022 = vmatprep.subr.bf16.mxu0 0
      %8023 = vmatpush1.bf16.msra.mxu0 0
      %8024 = vmatprep.subr.bf16.mxu0 0
      %8025 = vmatpush1.bf16.msra.mxu0 0
      %8026 = vmatprep.subr.bf16.mxu0 0
      %8027 = vmatpush1.bf16.msra.mxu0 0
      %8028 = vmatprep.subr.bf16.mxu0 0
      %8029 = vmatpush1.bf16.msra.mxu0 0
      %8030 = vmatprep.subr.bf16.mxu0 0
      %8031 = vmatpush1.bf16.msra.mxu0 0
      %8032 = vmatprep.mubr.bf16.mxu0 0
      %8033 = vmatmul.mubr.bf16.gmra.mrb[0].mxu0 %v7998
      %v8034 = vpop.f32.mrb[0].mxu0
      %v8035 = vadd.f32 %v7996, %v8034
      %v8036 = vpop.f32.mrb[0].mxu0
      %v8037 = vpop.f32.mrb[0].mxu0
      %v8038 = vpop.f32.mrb[0].mxu0
      %8039 = vdwg.mxu0
      %vm8040 = vcmask 180224
      %v8041 = vsel %vm8040, %v8035, -inf
      %8042 = vmax.xlane.f32.xlu0 %v8041
      %v8043 = vpop.xlane.xlu0 %8042
      %v8044 = vsub.f32 %v8035, %v8043
      %v8045 = vmul.f32 %v8044, 1.442695
      %v8046 = vpow.pop %v8045
      %v8047 = vsel %vm8040, %v8046, 0.0
      %8048 = vadd.xlane.f32.xlu0 %v8047
      %v8049 = vpop.xlane.xlu0 %8048
      %v8050 = vlog2.pop %v8049
      %v8051 = vmul.f32 %v8050, 0.6931472
      %v8052 = vsub.f32 %v8044, %v8051
      %8053 = vst.msk [vmem:[%s422] sm:$0x1] %vm8040, %v8052
      %p8054 = scmp.lt.s32.totalorder %s22, 1
      %s8055 = scalar_select %p8054, %s22, 1
      %s8056 = scalar_lea.vmem %s11, %s8055
      // Predicated region
      $region65: #{rsconv_classifier_forward.1} parent=63 // pred_check
        %p8057 = pneg %p286
      $region66: #{rsconv_classifier_forward.1} parent=63 // pred_check_branch
        %8059 = sbr.rel (%p8057) target = $region68
      $region67: #{rsconv_classifier_forward.1} parent=63 // pred_region
        _
      $region68: #{rsconv_classifier_forward.1} parent=63 // pred_fallthru
        _
    $region64: #{rsconv_classifier_forward.1} parent=5 // pred_fallthru
      _
    %p8060 = scmp.le.s32.totalorder 2, %s17
    // Predicated region
    $region69: #{rsconv_classifier_forward.1} parent=5 // pred_check
      %p8061 = pneg %p8060
    $region70: #{rsconv_classifier_forward.1} parent=5 // pred_check_branch
      %8063 = sbr.rel (%p8061) target = $region72
    $region71: #{rsconv_classifier_forward.1} parent=5 // pred_region
      %s8064 = ssub.s32 %s17, 2
      // Predicated region
      $region73: #{rsconv_classifier_forward.1} parent=71 // pred_check
        %p8065 = pneg %p292
      $region74: #{rsconv_classifier_forward.1} parent=71 // pred_check_branch
        %8067 = sbr.rel (%p8065) target = $region76
      $region75: #{rsconv_classifier_forward.1} parent=71 // pred_region
        %p8068 = scmp.lt.s32.totalorder %s23, 1
        %s8069 = scalar_select %p8068, %s23, 1
        %s8070 = scalar_lea.vmem %s11, %s8069
      $region76: #{rsconv_classifier_forward.1} parent=71 // pred_fallthru
        _
    $region72: #{rsconv_classifier_forward.1} parent=5 // pred_fallthru
      _
  $region6: #{rsconv_classifier_forward.1} parent=0 // loop_footer
    %s21 = sadd.s32 1, %s17
  $region7: #{rsconv_classifier_forward.1} parent=0 // loop_footer_branch
    %16 = sbr.rel target = $region3
  $region8: #{rsconv_classifier_forward.1} parent=0 // loop_exit
    _

</llo_original>
